<compile_context>
chip_gen: v7x
topology: tpu7x:2x2x1
jax: 0.10.0
libtpu: 0.0.40
codegen_flags: <defaults>
</compile_context>

<pallas_src>
import jax
import jax.numpy as jnp
from jax import lax
from jax.experimental import pallas as pl
from jax.experimental.pallas import tpu as pltpu


# ------------------------------ layout constants ----------------------------
W32 = 32            # row pitch (lanes) of the 32-wide activation layout
W12 = 12            # row pitch of the compact 12-wide layout after pool1
N1 = 1024           # conv1 positions computed (full 32x32 flat)
N2 = 896            # conv2 positions computed (covers everything conv3 reads)
N3 = 768            # conv3 positions computed (covers everything pool1 reads)
NP1 = 728           # pool1 max positions computed (wanted max = 2*11*32+2*11 = 726)
NSEL = 160          # pool1 selector columns (144 real 12x12 positions + zero tail)
N4 = 96             # conv4 positions computed (12-wide layout; pool2 reads <= 92)
L_IN = 1152         # padded input length (conv1 stack reads x[:, kx:kx+1088], kx<=2)
L_S1 = N1 + 2 * W32         # 1088  conv1 stack length
L_S2 = N2 + 2 * W32         # 960   conv2 stack length
L_S3 = N3 + 4 * W32         # 896   conv3 stack length
L_S4 = N4 + 4 * W12         # 144   conv4 stack length
L_A2 = 1024                 # conv2 buffer; [N2, 1024) zeroed once per grid step


# -------------------------------- fused kernel ------------------------------

def _net_kernel(x_ref, w1_ref, b1_ref, w2_ref, b2_ref, w3_ref, b3_ref,
                sel1_ref, w4_ref, b4_ref, kbig_ref, mask_ref, fold_ref, fcb_ref,
                o_ref,
                a1_ref, a2_ref, a3_ref, s1_ref, s2_ref, s3_ref, s4_ref):
    S = x_ref.shape[0]

    # The only scratch region the per-sample writes never cover; it feeds
    # garbage-only outputs so it just has to be finite.  Zeroed once per grid
    # step (NOT program_id-gated: with "parallel" semantics each core sees a
    # different first step).
    a2_ref[:, N2:] = jnp.zeros((16, L_A2 - N2), jnp.float32)

    def conv_relu(stack_ref, w_ref, b_ref, k, pitch, n_out):
        # stack_ref rows: kx-shifted copies of the source (Cin_pad rows each).
        # One dot per kernel row ky, contraction depth = k * Cin_pad.
        acc = None
        for ky in range(k):
            d = jnp.dot(w_ref[ky], stack_ref[:, ky * pitch: ky * pitch + n_out],
                        preferred_element_type=jnp.float32)
            acc = d if acc is None else acc + d
        return jnp.maximum(acc + b_ref[...], 0.0)

    def fill_stack(stack_ref, src_ref, cin, k):
        L = stack_ref.shape[1]
        for kx in range(k):
            stack_ref[kx * cin:(kx + 1) * cin, :] = src_ref[:, kx: kx + L]

    rows = []
    for j in range(S):                                   # unrolled sample loop
        # ---- conv1 (3x3): stack the 3 lane-shifted copies of the padded input
        for kx in range(3):
            s1_ref[kx * 8:(kx + 1) * 8, :] = x_ref[j, :, kx: kx + L_S1]
        a1_ref[...] = conv_relu(s1_ref, w1_ref, b1_ref, 3, W32, N1)      # (16,1024)

        # ---- conv2 (3x3)
        fill_stack(s2_ref, a1_ref, 16, 3)
        a2_ref[:, :N2] = conv_relu(s2_ref, w2_ref, b2_ref, 3, W32, N2)   # (16,896)

        # ---- conv3 (5x5)
        fill_stack(s3_ref, a2_ref, 16, 5)
        a3_ref[...] = conv_relu(s3_ref, w3_ref, b3_ref, 5, W32, N3)      # (24,768)

        # ---- pool1: 2x2/2 max (VPU) + compaction 32-wide -> 12-wide layout
        m = jnp.maximum(
            jnp.maximum(a3_ref[:, 0:NP1], a3_ref[:, 1:NP1 + 1]),
            jnp.maximum(a3_ref[:, W32:W32 + NP1],
                        a3_ref[:, W32 + 1:W32 + 1 + NP1]))               # (24,728)
        p1 = jnp.dot(m, sel1_ref[...],
                     preferred_element_type=jnp.float32)                 # (24,160)

        # ---- conv4 (5x5) on the 12-wide layout
        for kx in range(5):
            s4_ref[kx * 24:(kx + 1) * 24, :] = p1[:, kx: kx + L_S4]
        a4 = conv_relu(s4_ref, w4_ref, b4_ref, 5, W12, N4)               # (32,96)

        # ---- pool2 + fc(400 -> 10) folded into two matmuls
        m4 = jnp.maximum(jnp.maximum(a4[:, 0:80], a4[:, 1:81]),
                         jnp.maximum(a4[:, W12:W12 + 80],
                                     a4[:, W12 + 1:W12 + 1 + 80]))       # (32,80)
        z = jnp.dot(m4, kbig_ref[...],
                    preferred_element_type=jnp.float32)                  # (32,256)
        y = jnp.dot(z * mask_ref[...], fold_ref[...],
                    preferred_element_type=jnp.float32)                  # (32,10)
        rows.append(jnp.sum(y, axis=0, keepdims=True) + fcb_ref[...])    # (1,10)

    o_ref[0] = jnp.concatenate(rows, axis=0)                             # (S,10)


# ------------------------------- host-side prep -----------------------------

def _prep_conv_rows(w, b, cin_pad, cout_pad):
    """(Cout,Cin,KH,KW) -> per-row weights (KH, Cout_pad, KW*Cin_pad), bias."""
    cout, cin, kh, kw = w.shape
    wt = jnp.transpose(w, (2, 0, 3, 1))                       # (kh, cout, kw, cin)
    wt = jnp.pad(wt, ((0, 0), (0, cout_pad - cout), (0, 0), (0, cin_pad - cin)))
    wt = wt.reshape(kh, cout_pad, kw * cin_pad).astype(jnp.float32)
    bt = jnp.pad(b, (0, cout_pad - cout)).reshape(cout_pad, 1).astype(jnp.float32)
    return wt, bt


def _pool1_selector():
    """(728, 160) 0/1: column j = qy*12+qx (j<144) picks m position 2*qy*32+2*qx."""
    j = jnp.arange(NSEL)
    qy, qx = j // W12, j % W12
    src = jnp.where(j < 144, 2 * qy * W32 + 2 * qx, -1)
    p = jnp.arange(NP1)
    return (p[:, None] == src[None, :]).astype(jnp.float32)


def _fc_tables(fw, fb):
    """Fold pool2 selection + Linear(400,10) into (Kbig, mask, fold, bias)."""
    fcw = fw.reshape(25, 16, 10).astype(jnp.float32)          # [c, q, n], q = qy*4+qx
    j = jnp.arange(256)
    cj, nj = jnp.clip(j // 10, 0, 24), j % 10
    t = jnp.where((j < 250)[:, None], fcw[cj, :, nj], 0.0)    # (256, 16)
    q = jnp.arange(16)
    pos = 2 * (q // 4) * W12 + 2 * (q % 4)                    # a4 position of pool window q
    p = jnp.arange(80)
    kbig = (p[:, None] == pos[None, :]).astype(jnp.float32) @ t.T        # (80, 256)
    cc, jj = jnp.arange(32)[:, None], jnp.arange(256)[None, :]
    maskc = ((jj // 10 == cc) & (jj < 250)).astype(jnp.float32)          # (32, 256)
    jj2, nn = jnp.arange(256)[:, None], jnp.arange(10)[None, :]
    foldc = ((jj2 % 10 == nn) & (jj2 < 250)).astype(jnp.float32)         # (256, 10)
    return kbig, maskc, foldc, fb.reshape(1, 10).astype(jnp.float32)


def network_forward(params, x):
    B = x.shape[0]
    assert x.shape[1:] == (3, 32, 32), x.shape
    # pad channels 3->8 and flat spatial 1024->L_IN (zero tail)
    x_flat = jnp.pad(x.reshape(B, 3, 1024).astype(jnp.float32),
                     ((0, 0), (0, 5), (0, L_IN - 1024)))                 # (B, 8, 1152)

    w1, b1 = _prep_conv_rows(*params["conv1"], cin_pad=8, cout_pad=16)   # (3,16,24)
    w2, b2 = _prep_conv_rows(*params["conv2"], cin_pad=16, cout_pad=16)  # (3,16,48)
    w3, b3 = _prep_conv_rows(*params["conv3"], cin_pad=16, cout_pad=24)  # (5,24,80)
    w4, b4 = _prep_conv_rows(*params["conv4"], cin_pad=24, cout_pad=32)  # (5,32,120)
    sel1 = _pool1_selector()
    kbig, maskc, foldc, fcb = _fc_tables(*params["fc"])

    # Samples per grid step: amortize per-step overhead but keep >= 2 steps
    # when possible so megacore ("parallel") can split the grid across cores.
    divs = [s for s in (4, 2, 1) if B % s == 0]
    S = next((s for s in divs if B // s >= 2), divs[0])
    nsteps = B // S

    def full(a):
        nd = a.ndim
        return pl.BlockSpec(a.shape, lambda i, _nd=nd: (0,) * _nd)

    out = pl.pallas_call(
        _net_kernel,
        out_shape=jax.ShapeDtypeStruct((nsteps, S, 10), jnp.float32),
        grid=(nsteps,),
        in_specs=[
            pl.BlockSpec((S, 8, L_IN), lambda i: (i, 0, 0)),
            full(w1), full(b1), full(w2), full(b2), full(w3), full(b3),
            full(sel1), full(w4), full(b4),
            full(kbig), full(maskc), full(foldc), full(fcb),
        ],
        out_specs=pl.BlockSpec((1, S, 10), lambda i: (i, 0, 0)),
        scratch_shapes=[
            pltpu.VMEM((16, N1), jnp.float32),      # a1  (conv1 output)
            pltpu.VMEM((16, L_A2), jnp.float32),    # a2  (conv2 output + zero tail)
            pltpu.VMEM((24, N3), jnp.float32),      # a3  (conv3 output)
            pltpu.VMEM((24, L_S1), jnp.float32),    # conv1 row stack
            pltpu.VMEM((48, L_S2), jnp.float32),    # conv2 row stack
            pltpu.VMEM((80, L_S3), jnp.float32),    # conv3 row stack
            pltpu.VMEM((120, L_S4), jnp.float32),   # conv4 row stack
        ],
        compiler_params=pltpu.CompilerParams(
            dimension_semantics=("parallel",)),
    )(x_flat, w1, b1, w2, b2, w3, b3, sel1, w4, b4, kbig, maskc, foldc, fcb)
    return out.reshape(B, 10)


# ------------------------- params + pure-JAX reference ----------------------

def init_params(key):
    def conv_init(key, cout, cin, k):
        kw, kb = jax.random.split(key)
        bound = 1.0 / jnp.sqrt(cin * k * k)
        w = jax.random.uniform(kw, (cout, cin, k, k), jnp.float32, -bound, bound)
        b = jax.random.uniform(kb, (cout,), jnp.float32, -bound, bound)
        return w, b

    ks = jax.random.split(key, 5)
    params = {
        "conv1": conv_init(ks[0], 10, 3, 3),
        "conv2": conv_init(ks[1], 15, 10, 3),
        "conv3": conv_init(ks[2], 20, 15, 5),
        "conv4": conv_init(ks[3], 25, 20, 5),
    }
    kfw, kfb = jax.random.split(ks[4])
    bound = 1.0 / jnp.sqrt(400.0)
    fw = jax.random.uniform(kfw, (400, 10), jnp.float32, -bound, bound)  # (in, out)
    fb = jax.random.uniform(kfb, (10,), jnp.float32, -bound, bound)
    params["fc"] = (fw, fb)
    return params


def _reference_forward(params, x):
    prec = lax.Precision.HIGHEST

    def conv(v, wb):
        w, b = wb
        y = lax.conv_general_dilated(
            v, w, window_strides=(1, 1), padding="VALID",
            dimension_numbers=("NCHW", "OIHW", "NCHW"), precision=prec)
        return jnp.maximum(y + b[None, :, None, None], 0.0)

    def pool(v):
        return lax.reduce_window(v, -jnp.inf, lax.max,
                                 (1, 1, 2, 2), (1, 1, 2, 2), "VALID")

    v = conv(x, params["conv1"])
    v = conv(v, params["conv2"])
    v = pool(conv(v, params["conv3"]))
    v = pool(conv(v, params["conv4"]))
    v = v.reshape(v.shape[0], -1)
    fw, fb = params["fc"]
    return jnp.dot(v, fw, precision=prec) + fb


if __name__ == "__main__":
    key = jax.random.PRNGKey(0)
    kx, kp = jax.random.split(key)
    # Input spatial size 32x32 is forced by fc(400): 25 * 4 * 4 = 400.
    x = jax.random.normal(kx, (2, 3, 32, 32), jnp.float32)
    params = init_params(kp)

    out = jax.block_until_ready(jax.jit(network_forward)(params, x))
    assert out.shape == (2, 10), out.shape

    ref = jax.block_until_ready(jax.jit(_reference_forward)(params, x))
    err = float(jnp.max(jnp.abs(out - ref)))
    assert err < 1e-3, f"mismatch vs reference: {err}"
    print("KERNEL_OK")
</pallas_src>

<mosaic_0001>
module attributes {stable_mosaic.version = 11 : i64} {
  func.func @_net_kernel(%arg0: i32, %arg1: memref<1x8x1152xf32, #tpu.memory_space<vmem>>, %arg2: memref<3x16x24xf32, #tpu.memory_space<vmem>>, %arg3: memref<16x1xf32, #tpu.memory_space<vmem>>, %arg4: memref<3x16x48xf32, #tpu.memory_space<vmem>>, %arg5: memref<16x1xf32, #tpu.memory_space<vmem>>, %arg6: memref<5x24x80xf32, #tpu.memory_space<vmem>>, %arg7: memref<24x1xf32, #tpu.memory_space<vmem>>, %arg8: memref<728x160xf32, #tpu.memory_space<vmem>>, %arg9: memref<5x32x120xf32, #tpu.memory_space<vmem>>, %arg10: memref<32x1xf32, #tpu.memory_space<vmem>>, %arg11: memref<80x256xf32, #tpu.memory_space<vmem>>, %arg12: memref<32x256xf32, #tpu.memory_space<vmem>>, %arg13: memref<256x10xf32, #tpu.memory_space<vmem>>, %arg14: memref<1x10xf32, #tpu.memory_space<vmem>>, %arg15: memref<1x1x10xf32, #tpu.memory_space<vmem>>, %arg16: memref<16x1024xf32, #tpu.memory_space<vmem>>, %arg17: memref<16x1024xf32, #tpu.memory_space<vmem>>, %arg18: memref<24x768xf32, #tpu.memory_space<vmem>>, %arg19: memref<24x1088xf32, #tpu.memory_space<vmem>>, %arg20: memref<48x960xf32, #tpu.memory_space<vmem>>, %arg21: memref<80x896xf32, #tpu.memory_space<vmem>>, %arg22: memref<120x144xf32, #tpu.memory_space<vmem>>) attributes {dimension_semantics = [#tpu.dimension_semantics<parallel>], iteration_bounds = array<i64: 2>, scalar_prefetch = 0 : i64, scratch_operands = 7 : i64, tpu.core_type = #tpu.core_type<tc>, window_params = [{transform_indices = @transform_0, window_bounds = array<i64: 1, 8, 1152>}, {pipeline_mode = #tpu.pipeline_mode<synchronous>, transform_indices = @transform_1, window_bounds = array<i64: 3, 16, 24>}, {pipeline_mode = #tpu.pipeline_mode<synchronous>, transform_indices = @transform_2, window_bounds = array<i64: 16, 1>}, {pipeline_mode = #tpu.pipeline_mode<synchronous>, transform_indices = @transform_3, window_bounds = array<i64: 3, 16, 48>}, {pipeline_mode = #tpu.pipeline_mode<synchronous>, transform_indices = @transform_4, window_bounds = array<i64: 16, 1>}, {pipeline_mode = #tpu.pipeline_mode<synchronous>, transform_indices = @transform_5, window_bounds = array<i64: 5, 24, 80>}, {pipeline_mode = #tpu.pipeline_mode<synchronous>, transform_indices = @transform_6, window_bounds = array<i64: 24, 1>}, {pipeline_mode = #tpu.pipeline_mode<synchronous>, transform_indices = @transform_7, window_bounds = array<i64: 728, 160>}, {pipeline_mode = #tpu.pipeline_mode<synchronous>, transform_indices = @transform_8, window_bounds = array<i64: 5, 32, 120>}, {pipeline_mode = #tpu.pipeline_mode<synchronous>, transform_indices = @transform_9, window_bounds = array<i64: 32, 1>}, {pipeline_mode = #tpu.pipeline_mode<synchronous>, transform_indices = @transform_10, window_bounds = array<i64: 80, 256>}, {pipeline_mode = #tpu.pipeline_mode<synchronous>, transform_indices = @transform_11, window_bounds = array<i64: 32, 256>}, {pipeline_mode = #tpu.pipeline_mode<synchronous>, transform_indices = @transform_12, window_bounds = array<i64: 256, 10>}, {pipeline_mode = #tpu.pipeline_mode<synchronous>, transform_indices = @transform_13, window_bounds = array<i64: 1, 10>}, {transform_indices = @transform_14, window_bounds = array<i64: 1, 1, 10>}]} {
    %cst = arith.constant 0.000000e+00 : f32
    %0 = vector.broadcast %cst : f32 to vector<16x128xf32>
    %c0 = arith.constant 0 : index
    %c896 = arith.constant 896 : index
    %1 = vector.load %arg17[%c0, %c896] : memref<16x1024xf32, #tpu.memory_space<vmem>>, vector<16x128xf32>
    tpu.vector_store %arg17[%c0, %c896], %0 {strides = array<i32>} : memref<16x1024xf32, #tpu.memory_space<vmem>>, vector<16x128xf32>,
    %c0_0 = arith.constant 0 : index
    %c0_1 = arith.constant 0 : index
    %c0_2 = arith.constant 0 : index
    %2 = vector.load %arg1[%c0_0, %c0_1, %c0_2] : memref<1x8x1152xf32, #tpu.memory_space<vmem>>, vector<1x8x1088xf32>
    %3 = vector.shape_cast %2 : vector<1x8x1088xf32> to vector<8x1088xf32>
    %c0_3 = arith.constant 0 : index
    %c0_4 = arith.constant 0 : index
    %4 = vector.load %arg19[%c0_3, %c0_4] : memref<24x1088xf32, #tpu.memory_space<vmem>>, vector<8x1088xf32>
    tpu.vector_store %arg19[%c0_3, %c0_4], %3 {strides = array<i32>} : memref<24x1088xf32, #tpu.memory_space<vmem>>, vector<8x1088xf32>,
    %c0_5 = arith.constant 0 : index
    %c0_6 = arith.constant 0 : index
    %c1 = arith.constant 1 : index
    %5 = vector.load %arg1[%c0_5, %c0_6, %c1] : memref<1x8x1152xf32, #tpu.memory_space<vmem>>, vector<1x8x1088xf32>
    %6 = vector.shape_cast %5 : vector<1x8x1088xf32> to vector<8x1088xf32>
    %c8 = arith.constant 8 : index
    %c0_7 = arith.constant 0 : index
    %7 = vector.load %arg19[%c8, %c0_7] : memref<24x1088xf32, #tpu.memory_space<vmem>>, vector<8x1088xf32>
    tpu.vector_store %arg19[%c8, %c0_7], %6 {strides = array<i32>} : memref<24x1088xf32, #tpu.memory_space<vmem>>, vector<8x1088xf32>,
    %c0_8 = arith.constant 0 : index
    %c0_9 = arith.constant 0 : index
    %c2 = arith.constant 2 : index
    %8 = vector.load %arg1[%c0_8, %c0_9, %c2] : memref<1x8x1152xf32, #tpu.memory_space<vmem>>, vector<1x8x1088xf32>
    %9 = vector.shape_cast %8 : vector<1x8x1088xf32> to vector<8x1088xf32>
    %c16 = arith.constant 16 : index
    %c0_10 = arith.constant 0 : index
    %10 = vector.load %arg19[%c16, %c0_10] : memref<24x1088xf32, #tpu.memory_space<vmem>>, vector<8x1088xf32>
    tpu.vector_store %arg19[%c16, %c0_10], %9 {strides = array<i32>} : memref<24x1088xf32, #tpu.memory_space<vmem>>, vector<8x1088xf32>,
    %c0_11 = arith.constant 0 : index
    %c0_12 = arith.constant 0 : index
    %c0_13 = arith.constant 0 : index
    %11 = vector.load %arg2[%c0_11, %c0_12, %c0_13] : memref<3x16x24xf32, #tpu.memory_space<vmem>>, vector<1x16x24xf32>
    %12 = vector.shape_cast %11 : vector<1x16x24xf32> to vector<16x24xf32>
    %c0_14 = arith.constant 0 : index
    %c0_15 = arith.constant 0 : index
    %13 = vector.load %arg19[%c0_14, %c0_15] : memref<24x1088xf32, #tpu.memory_space<vmem>>, vector<24x1024xf32>
    %cst_16 = arith.constant dense<0.000000e+00> : vector<16x1024xf32>
    %14 = tpu.matmul %12, %13, %cst_16 {dimension_numbers = #tpu.dot_dimension_numbers<[1], [0], [0], [1], [0, 0, 1, 1], [], []>} : vector<16x24xf32>, vector<24x1024xf32>, vector<16x1024xf32> -> vector<16x1024xf32>
    %c1_17 = arith.constant 1 : index
    %c0_18 = arith.constant 0 : index
    %c0_19 = arith.constant 0 : index
    %15 = vector.load %arg2[%c1_17, %c0_18, %c0_19] : memref<3x16x24xf32, #tpu.memory_space<vmem>>, vector<1x16x24xf32>
    %16 = vector.shape_cast %15 : vector<1x16x24xf32> to vector<16x24xf32>
    %c0_20 = arith.constant 0 : index
    %c32 = arith.constant 32 : index
    %17 = vector.load %arg19[%c0_20, %c32] : memref<24x1088xf32, #tpu.memory_space<vmem>>, vector<24x1024xf32>
    %cst_21 = arith.constant dense<0.000000e+00> : vector<16x1024xf32>
    %18 = tpu.matmul %16, %17, %cst_21 {dimension_numbers = #tpu.dot_dimension_numbers<[1], [0], [0], [1], [0, 0, 1, 1], [], []>} : vector<16x24xf32>, vector<24x1024xf32>, vector<16x1024xf32> -> vector<16x1024xf32>
    %19 = arith.addf %14, %18 : vector<16x1024xf32>
    %c2_22 = arith.constant 2 : index
    %c0_23 = arith.constant 0 : index
    %c0_24 = arith.constant 0 : index
    %20 = vector.load %arg2[%c2_22, %c0_23, %c0_24] : memref<3x16x24xf32, #tpu.memory_space<vmem>>, vector<1x16x24xf32>
    %21 = vector.shape_cast %20 : vector<1x16x24xf32> to vector<16x24xf32>
    %c0_25 = arith.constant 0 : index
    %c64 = arith.constant 64 : index
    %22 = vector.load %arg19[%c0_25, %c64] : memref<24x1088xf32, #tpu.memory_space<vmem>>, vector<24x1024xf32>
    %cst_26 = arith.constant dense<0.000000e+00> : vector<16x1024xf32>
    %23 = tpu.matmul %21, %22, %cst_26 {dimension_numbers = #tpu.dot_dimension_numbers<[1], [0], [0], [1], [0, 0, 1, 1], [], []>} : vector<16x24xf32>, vector<24x1024xf32>, vector<16x1024xf32> -> vector<16x1024xf32>
    %24 = arith.addf %19, %23 : vector<16x1024xf32>
    %c0_27 = arith.constant 0 : index
    %c0_28 = arith.constant 0 : index
    %25 = vector.load %arg3[%c0_27, %c0_28] : memref<16x1xf32, #tpu.memory_space<vmem>>, vector<16x1xf32>
    %26 = vector.broadcast %25 : vector<16x1xf32> to vector<16x1024xf32>
    %27 = arith.addf %24, %26 : vector<16x1024xf32>
    %cst_29 = arith.constant 0.000000e+00 : f32
    %28 = vector.broadcast %cst_29 : f32 to vector<16x1024xf32>
    %29 = arith.maximumf %27, %28 : vector<16x1024xf32>
    %c0_30 = arith.constant 0 : index
    %c0_31 = arith.constant 0 : index
    %30 = vector.load %arg16[%c0_30, %c0_31] : memref<16x1024xf32, #tpu.memory_space<vmem>>, vector<16x1024xf32>
    tpu.vector_store %arg16[%c0_30, %c0_31], %29 {strides = array<i32>} : memref<16x1024xf32, #tpu.memory_space<vmem>>, vector<16x1024xf32>,
    %c0_32 = arith.constant 0 : index
    %c0_33 = arith.constant 0 : index
    %31 = vector.load %arg16[%c0_32, %c0_33] : memref<16x1024xf32, #tpu.memory_space<vmem>>, vector<16x960xf32>
    %c0_34 = arith.constant 0 : index
    %c0_35 = arith.constant 0 : index
    %32 = vector.load %arg20[%c0_34, %c0_35] : memref<48x960xf32, #tpu.memory_space<vmem>>, vector<16x960xf32>
    tpu.vector_store %arg20[%c0_34, %c0_35], %31 {strides = array<i32>} : memref<48x960xf32, #tpu.memory_space<vmem>>, vector<16x960xf32>,
    %c0_36 = arith.constant 0 : index
    %c1_37 = arith.constant 1 : index
    %33 = vector.load %arg16[%c0_36, %c1_37] : memref<16x1024xf32, #tpu.memory_space<vmem>>, vector<16x960xf32>
    %c16_38 = arith.constant 16 : index
    %c0_39 = arith.constant 0 : index
    %34 = vector.load %arg20[%c16_38, %c0_39] : memref<48x960xf32, #tpu.memory_space<vmem>>, vector<16x960xf32>
    tpu.vector_store %arg20[%c16_38, %c0_39], %33 {strides = array<i32>} : memref<48x960xf32, #tpu.memory_space<vmem>>, vector<16x960xf32>,
    %c0_40 = arith.constant 0 : index
    %c2_41 = arith.constant 2 : index
    %35 = vector.load %arg16[%c0_40, %c2_41] : memref<16x1024xf32, #tpu.memory_space<vmem>>, vector<16x960xf32>
    %c32_42 = arith.constant 32 : index
    %c0_43 = arith.constant 0 : index
    %36 = vector.load %arg20[%c32_42, %c0_43] : memref<48x960xf32, #tpu.memory_space<vmem>>, vector<16x960xf32>
    tpu.vector_store %arg20[%c32_42, %c0_43], %35 {strides = array<i32>} : memref<48x960xf32, #tpu.memory_space<vmem>>, vector<16x960xf32>,
    %c0_44 = arith.constant 0 : index
    %c0_45 = arith.constant 0 : index
    %c0_46 = arith.constant 0 : index
    %37 = vector.load %arg4[%c0_44, %c0_45, %c0_46] : memref<3x16x48xf32, #tpu.memory_space<vmem>>, vector<1x16x48xf32>
    %38 = vector.shape_cast %37 : vector<1x16x48xf32> to vector<16x48xf32>
    %c0_47 = arith.constant 0 : index
    %c0_48 = arith.constant 0 : index
    %39 = vector.load %arg20[%c0_47, %c0_48] : memref<48x960xf32, #tpu.memory_space<vmem>>, vector<48x896xf32>
    %cst_49 = arith.constant dense<0.000000e+00> : vector<16x896xf32>
    %40 = tpu.matmul %38, %39, %cst_49 {dimension_numbers = #tpu.dot_dimension_numbers<[1], [0], [0], [1], [0, 0, 1, 1], [], []>} : vector<16x48xf32>, vector<48x896xf32>, vector<16x896xf32> -> vector<16x896xf32>
    %c1_50 = arith.constant 1 : index
    %c0_51 = arith.constant 0 : index
    %c0_52 = arith.constant 0 : index
    %41 = vector.load %arg4[%c1_50, %c0_51, %c0_52] : memref<3x16x48xf32, #tpu.memory_space<vmem>>, vector<1x16x48xf32>
    %42 = vector.shape_cast %41 : vector<1x16x48xf32> to vector<16x48xf32>
    %c0_53 = arith.constant 0 : index
    %c32_54 = arith.constant 32 : index
    %43 = vector.load %arg20[%c0_53, %c32_54] : memref<48x960xf32, #tpu.memory_space<vmem>>, vector<48x896xf32>
    %cst_55 = arith.constant dense<0.000000e+00> : vector<16x896xf32>
    %44 = tpu.matmul %42, %43, %cst_55 {dimension_numbers = #tpu.dot_dimension_numbers<[1], [0], [0], [1], [0, 0, 1, 1], [], []>} : vector<16x48xf32>, vector<48x896xf32>, vector<16x896xf32> -> vector<16x896xf32>
    %45 = arith.addf %40, %44 : vector<16x896xf32>
    %c2_56 = arith.constant 2 : index
    %c0_57 = arith.constant 0 : index
    %c0_58 = arith.constant 0 : index
    %46 = vector.load %arg4[%c2_56, %c0_57, %c0_58] : memref<3x16x48xf32, #tpu.memory_space<vmem>>, vector<1x16x48xf32>
    %47 = vector.shape_cast %46 : vector<1x16x48xf32> to vector<16x48xf32>
    %c0_59 = arith.constant 0 : index
    %c64_60 = arith.constant 64 : index
    %48 = vector.load %arg20[%c0_59, %c64_60] : memref<48x960xf32, #tpu.memory_space<vmem>>, vector<48x896xf32>
    %cst_61 = arith.constant dense<0.000000e+00> : vector<16x896xf32>
    %49 = tpu.matmul %47, %48, %cst_61 {dimension_numbers = #tpu.dot_dimension_numbers<[1], [0], [0], [1], [0, 0, 1, 1], [], []>} : vector<16x48xf32>, vector<48x896xf32>, vector<16x896xf32> -> vector<16x896xf32>
    %50 = arith.addf %45, %49 : vector<16x896xf32>
    %c0_62 = arith.constant 0 : index
    %c0_63 = arith.constant 0 : index
    %51 = vector.load %arg5[%c0_62, %c0_63] : memref<16x1xf32, #tpu.memory_space<vmem>>, vector<16x1xf32>
    %52 = vector.broadcast %51 : vector<16x1xf32> to vector<16x896xf32>
    %53 = arith.addf %50, %52 : vector<16x896xf32>
    %cst_64 = arith.constant 0.000000e+00 : f32
    %54 = vector.broadcast %cst_64 : f32 to vector<16x896xf32>
    %55 = arith.maximumf %53, %54 : vector<16x896xf32>
    %c0_65 = arith.constant 0 : index
    %c0_66 = arith.constant 0 : index
    %56 = vector.load %arg17[%c0_65, %c0_66] : memref<16x1024xf32, #tpu.memory_space<vmem>>, vector<16x896xf32>
    tpu.vector_store %arg17[%c0_65, %c0_66], %55 {strides = array<i32>} : memref<16x1024xf32, #tpu.memory_space<vmem>>, vector<16x896xf32>,
    %c0_67 = arith.constant 0 : index
    %c0_68 = arith.constant 0 : index
    %57 = vector.load %arg17[%c0_67, %c0_68] : memref<16x1024xf32, #tpu.memory_space<vmem>>, vector<16x896xf32>
    %c0_69 = arith.constant 0 : index
    %c0_70 = arith.constant 0 : index
    %58 = vector.load %arg21[%c0_69, %c0_70] : memref<80x896xf32, #tpu.memory_space<vmem>>, vector<16x896xf32>
    tpu.vector_store %arg21[%c0_69, %c0_70], %57 {strides = array<i32>} : memref<80x896xf32, #tpu.memory_space<vmem>>, vector<16x896xf32>,
    %c0_71 = arith.constant 0 : index
    %c1_72 = arith.constant 1 : index
    %59 = vector.load %arg17[%c0_71, %c1_72] : memref<16x1024xf32, #tpu.memory_space<vmem>>, vector<16x896xf32>
    %c16_73 = arith.constant 16 : index
    %c0_74 = arith.constant 0 : index
    %60 = vector.load %arg21[%c16_73, %c0_74] : memref<80x896xf32, #tpu.memory_space<vmem>>, vector<16x896xf32>
    tpu.vector_store %arg21[%c16_73, %c0_74], %59 {strides = array<i32>} : memref<80x896xf32, #tpu.memory_space<vmem>>, vector<16x896xf32>,
    %c0_75 = arith.constant 0 : index
    %c2_76 = arith.constant 2 : index
    %61 = vector.load %arg17[%c0_75, %c2_76] : memref<16x1024xf32, #tpu.memory_space<vmem>>, vector<16x896xf32>
    %c32_77 = arith.constant 32 : index
    %c0_78 = arith.constant 0 : index
    %62 = vector.load %arg21[%c32_77, %c0_78] : memref<80x896xf32, #tpu.memory_space<vmem>>, vector<16x896xf32>
    tpu.vector_store %arg21[%c32_77, %c0_78], %61 {strides = array<i32>} : memref<80x896xf32, #tpu.memory_space<vmem>>, vector<16x896xf32>,
    %c0_79 = arith.constant 0 : index
    %c3 = arith.constant 3 : index
    %63 = vector.load %arg17[%c0_79, %c3] : memref<16x1024xf32, #tpu.memory_space<vmem>>, vector<16x896xf32>
    %c48 = arith.constant 48 : index
    %c0_80 = arith.constant 0 : index
    %64 = vector.load %arg21[%c48, %c0_80] : memref<80x896xf32, #tpu.memory_space<vmem>>, vector<16x896xf32>
    tpu.vector_store %arg21[%c48, %c0_80], %63 {strides = array<i32>} : memref<80x896xf32, #tpu.memory_space<vmem>>, vector<16x896xf32>,
    %c0_81 = arith.constant 0 : index
    %c4 = arith.constant 4 : index
    %65 = vector.load %arg17[%c0_81, %c4] : memref<16x1024xf32, #tpu.memory_space<vmem>>, vector<16x896xf32>
    %c64_82 = arith.constant 64 : index
    %c0_83 = arith.constant 0 : index
    %66 = vector.load %arg21[%c64_82, %c0_83] : memref<80x896xf32, #tpu.memory_space<vmem>>, vector<16x896xf32>
    tpu.vector_store %arg21[%c64_82, %c0_83], %65 {strides = array<i32>} : memref<80x896xf32, #tpu.memory_space<vmem>>, vector<16x896xf32>,
    %c0_84 = arith.constant 0 : index
    %c0_85 = arith.constant 0 : index
    %c0_86 = arith.constant 0 : index
    %67 = vector.load %arg6[%c0_84, %c0_85, %c0_86] : memref<5x24x80xf32, #tpu.memory_space<vmem>>, vector<1x24x80xf32>
    %68 = vector.shape_cast %67 : vector<1x24x80xf32> to vector<24x80xf32>
    %c0_87 = arith.constant 0 : index
    %c0_88 = arith.constant 0 : index
    %69 = vector.load %arg21[%c0_87, %c0_88] : memref<80x896xf32, #tpu.memory_space<vmem>>, vector<80x768xf32>
    %cst_89 = arith.constant dense<0.000000e+00> : vector<24x768xf32>
    %70 = tpu.matmul %68, %69, %cst_89 {dimension_numbers = #tpu.dot_dimension_numbers<[1], [0], [0], [1], [0, 0, 1, 1], [], []>} : vector<24x80xf32>, vector<80x768xf32>, vector<24x768xf32> -> vector<24x768xf32>
    %c1_90 = arith.constant 1 : index
    %c0_91 = arith.constant 0 : index
    %c0_92 = arith.constant 0 : index
    %71 = vector.load %arg6[%c1_90, %c0_91, %c0_92] : memref<5x24x80xf32, #tpu.memory_space<vmem>>, vector<1x24x80xf32>
    %72 = vector.shape_cast %71 : vector<1x24x80xf32> to vector<24x80xf32>
    %c0_93 = arith.constant 0 : index
    %c32_94 = arith.constant 32 : index
    %73 = vector.load %arg21[%c0_93, %c32_94] : memref<80x896xf32, #tpu.memory_space<vmem>>, vector<80x768xf32>
    %cst_95 = arith.constant dense<0.000000e+00> : vector<24x768xf32>
    %74 = tpu.matmul %72, %73, %cst_95 {dimension_numbers = #tpu.dot_dimension_numbers<[1], [0], [0], [1], [0, 0, 1, 1], [], []>} : vector<24x80xf32>, vector<80x768xf32>, vector<24x768xf32> -> vector<24x768xf32>
    %75 = arith.addf %70, %74 : vector<24x768xf32>
    %c2_96 = arith.constant 2 : index
    %c0_97 = arith.constant 0 : index
    %c0_98 = arith.constant 0 : index
    %76 = vector.load %arg6[%c2_96, %c0_97, %c0_98] : memref<5x24x80xf32, #tpu.memory_space<vmem>>, vector<1x24x80xf32>
    %77 = vector.shape_cast %76 : vector<1x24x80xf32> to vector<24x80xf32>
    %c0_99 = arith.constant 0 : index
    %c64_100 = arith.constant 64 : index
    %78 = vector.load %arg21[%c0_99, %c64_100] : memref<80x896xf32, #tpu.memory_space<vmem>>, vector<80x768xf32>
    %cst_101 = arith.constant dense<0.000000e+00> : vector<24x768xf32>
    %79 = tpu.matmul %77, %78, %cst_101 {dimension_numbers = #tpu.dot_dimension_numbers<[1], [0], [0], [1], [0, 0, 1, 1], [], []>} : vector<24x80xf32>, vector<80x768xf32>, vector<24x768xf32> -> vector<24x768xf32>
    %80 = arith.addf %75, %79 : vector<24x768xf32>
    %c3_102 = arith.constant 3 : index
    %c0_103 = arith.constant 0 : index
    %c0_104 = arith.constant 0 : index
    %81 = vector.load %arg6[%c3_102, %c0_103, %c0_104] : memref<5x24x80xf32, #tpu.memory_space<vmem>>, vector<1x24x80xf32>
    %82 = vector.shape_cast %81 : vector<1x24x80xf32> to vector<24x80xf32>
    %c0_105 = arith.constant 0 : index
    %c96 = arith.constant 96 : index
    %83 = vector.load %arg21[%c0_105, %c96] : memref<80x896xf32, #tpu.memory_space<vmem>>, vector<80x768xf32>
    %cst_106 = arith.constant dense<0.000000e+00> : vector<24x768xf32>
    %84 = tpu.matmul %82, %83, %cst_106 {dimension_numbers = #tpu.dot_dimension_numbers<[1], [0], [0], [1], [0, 0, 1, 1], [], []>} : vector<24x80xf32>, vector<80x768xf32>, vector<24x768xf32> -> vector<24x768xf32>
    %85 = arith.addf %80, %84 : vector<24x768xf32>
    %c4_107 = arith.constant 4 : index
    %c0_108 = arith.constant 0 : index
    %c0_109 = arith.constant 0 : index
    %86 = vector.load %arg6[%c4_107, %c0_108, %c0_109] : memref<5x24x80xf32, #tpu.memory_space<vmem>>, vector<1x24x80xf32>
    %87 = vector.shape_cast %86 : vector<1x24x80xf32> to vector<24x80xf32>
    %c0_110 = arith.constant 0 : index
    %c128 = arith.constant 128 : index
    %88 = vector.load %arg21[%c0_110, %c128] : memref<80x896xf32, #tpu.memory_space<vmem>>, vector<80x768xf32>
    %cst_111 = arith.constant dense<0.000000e+00> : vector<24x768xf32>
    %89 = tpu.matmul %87, %88, %cst_111 {dimension_numbers = #tpu.dot_dimension_numbers<[1], [0], [0], [1], [0, 0, 1, 1], [], []>} : vector<24x80xf32>, vector<80x768xf32>, vector<24x768xf32> -> vector<24x768xf32>
    %90 = arith.addf %85, %89 : vector<24x768xf32>
    %c0_112 = arith.constant 0 : index
    %c0_113 = arith.constant 0 : index
    %91 = vector.load %arg7[%c0_112, %c0_113] : memref<24x1xf32, #tpu.memory_space<vmem>>, vector<24x1xf32>
    %92 = vector.broadcast %91 : vector<24x1xf32> to vector<24x768xf32>
    %93 = arith.addf %90, %92 : vector<24x768xf32>
    %cst_114 = arith.constant 0.000000e+00 : f32
    %94 = vector.broadcast %cst_114 : f32 to vector<24x768xf32>
    %95 = arith.maximumf %93, %94 : vector<24x768xf32>
    %c0_115 = arith.constant 0 : index
    %c0_116 = arith.constant 0 : index
    %96 = vector.load %arg18[%c0_115, %c0_116] : memref<24x768xf32, #tpu.memory_space<vmem>>, vector<24x768xf32>
    tpu.vector_store %arg18[%c0_115, %c0_116], %95 {strides = array<i32>} : memref<24x768xf32, #tpu.memory_space<vmem>>, vector<24x768xf32>,
    %c0_117 = arith.constant 0 : index
    %c0_118 = arith.constant 0 : index
    %97 = vector.load %arg18[%c0_117, %c0_118] : memref<24x768xf32, #tpu.memory_space<vmem>>, vector<24x728xf32>
    %c0_119 = arith.constant 0 : index
    %c1_120 = arith.constant 1 : index
    %98 = vector.load %arg18[%c0_119, %c1_120] : memref<24x768xf32, #tpu.memory_space<vmem>>, vector<24x728xf32>
    %99 = arith.maximumf %97, %98 : vector<24x728xf32>
    %c0_121 = arith.constant 0 : index
    %c32_122 = arith.constant 32 : index
    %100 = vector.load %arg18[%c0_121, %c32_122] : memref<24x768xf32, #tpu.memory_space<vmem>>, vector<24x728xf32>
    %c0_123 = arith.constant 0 : index
    %c33 = arith.constant 33 : index
    %101 = vector.load %arg18[%c0_123, %c33] : memref<24x768xf32, #tpu.memory_space<vmem>>, vector<24x728xf32>
    %102 = arith.maximumf %100, %101 : vector<24x728xf32>
    %103 = arith.maximumf %99, %102 : vector<24x728xf32>
    %c0_124 = arith.constant 0 : index
    %c0_125 = arith.constant 0 : index
    %104 = vector.load %arg8[%c0_124, %c0_125] : memref<728x160xf32, #tpu.memory_space<vmem>>, vector<728x160xf32>
    %cst_126 = arith.constant dense<0.000000e+00> : vector<24x160xf32>
    %105 = tpu.matmul %103, %104, %cst_126 {dimension_numbers = #tpu.dot_dimension_numbers<[1], [0], [0], [1], [0, 0, 1, 1], [], []>} : vector<24x728xf32>, vector<728x160xf32>, vector<24x160xf32> -> vector<24x160xf32>
    %106 = vector.extract_strided_slice %105 {offsets = [0, 0], sizes = [24, 144], strides = [1, 1]} : vector<24x160xf32> to vector<24x144xf32>
    %c0_127 = arith.constant 0 : index
    %c0_128 = arith.constant 0 : index
    %107 = vector.load %arg22[%c0_127, %c0_128] : memref<120x144xf32, #tpu.memory_space<vmem>>, vector<24x144xf32>
    tpu.vector_store %arg22[%c0_127, %c0_128], %106 {strides = array<i32>} : memref<120x144xf32, #tpu.memory_space<vmem>>, vector<24x144xf32>,
    %108 = vector.extract_strided_slice %105 {offsets = [0, 1], sizes = [24, 144], strides = [1, 1]} : vector<24x160xf32> to vector<24x144xf32>
    %c24 = arith.constant 24 : index
    %c0_129 = arith.constant 0 : index
    %109 = vector.load %arg22[%c24, %c0_129] : memref<120x144xf32, #tpu.memory_space<vmem>>, vector<24x144xf32>
    tpu.vector_store %arg22[%c24, %c0_129], %108 {strides = array<i32>} : memref<120x144xf32, #tpu.memory_space<vmem>>, vector<24x144xf32>,
    %110 = vector.extract_strided_slice %105 {offsets = [0, 2], sizes = [24, 144], strides = [1, 1]} : vector<24x160xf32> to vector<24x144xf32>
    %c48_130 = arith.constant 48 : index
    %c0_131 = arith.constant 0 : index
    %111 = vector.load %arg22[%c48_130, %c0_131] : memref<120x144xf32, #tpu.memory_space<vmem>>, vector<24x144xf32>
    tpu.vector_store %arg22[%c48_130, %c0_131], %110 {strides = array<i32>} : memref<120x144xf32, #tpu.memory_space<vmem>>, vector<24x144xf32>,
    %112 = vector.extract_strided_slice %105 {offsets = [0, 3], sizes = [24, 144], strides = [1, 1]} : vector<24x160xf32> to vector<24x144xf32>
    %c72 = arith.constant 72 : index
    %c0_132 = arith.constant 0 : index
    %113 = vector.load %arg22[%c72, %c0_132] : memref<120x144xf32, #tpu.memory_space<vmem>>, vector<24x144xf32>
    tpu.vector_store %arg22[%c72, %c0_132], %112 {strides = array<i32>} : memref<120x144xf32, #tpu.memory_space<vmem>>, vector<24x144xf32>,
    %114 = vector.extract_strided_slice %105 {offsets = [0, 4], sizes = [24, 144], strides = [1, 1]} : vector<24x160xf32> to vector<24x144xf32>
    %c96_133 = arith.constant 96 : index
    %c0_134 = arith.constant 0 : index
    %115 = vector.load %arg22[%c96_133, %c0_134] : memref<120x144xf32, #tpu.memory_space<vmem>>, vector<24x144xf32>
    tpu.vector_store %arg22[%c96_133, %c0_134], %114 {strides = array<i32>} : memref<120x144xf32, #tpu.memory_space<vmem>>, vector<24x144xf32>,
    %c0_135 = arith.constant 0 : index
    %c0_136 = arith.constant 0 : index
    %c0_137 = arith.constant 0 : index
    %116 = vector.load %arg9[%c0_135, %c0_136, %c0_137] : memref<5x32x120xf32, #tpu.memory_space<vmem>>, vector<1x32x120xf32>
    %117 = vector.shape_cast %116 : vector<1x32x120xf32> to vector<32x120xf32>
    %c0_138 = arith.constant 0 : index
    %c0_139 = arith.constant 0 : index
    %118 = vector.load %arg22[%c0_138, %c0_139] : memref<120x144xf32, #tpu.memory_space<vmem>>, vector<120x96xf32>
    %cst_140 = arith.constant dense<0.000000e+00> : vector<32x96xf32>
    %119 = tpu.matmul %117, %118, %cst_140 {dimension_numbers = #tpu.dot_dimension_numbers<[1], [0], [0], [1], [0, 0, 1, 1], [], []>} : vector<32x120xf32>, vector<120x96xf32>, vector<32x96xf32> -> vector<32x96xf32>
    %c1_141 = arith.constant 1 : index
    %c0_142 = arith.constant 0 : index
    %c0_143 = arith.constant 0 : index
    %120 = vector.load %arg9[%c1_141, %c0_142, %c0_143] : memref<5x32x120xf32, #tpu.memory_space<vmem>>, vector<1x32x120xf32>
    %121 = vector.shape_cast %120 : vector<1x32x120xf32> to vector<32x120xf32>
    %c0_144 = arith.constant 0 : index
    %c12 = arith.constant 12 : index
    %122 = vector.load %arg22[%c0_144, %c12] : memref<120x144xf32, #tpu.memory_space<vmem>>, vector<120x96xf32>
    %cst_145 = arith.constant dense<0.000000e+00> : vector<32x96xf32>
    %123 = tpu.matmul %121, %122, %cst_145 {dimension_numbers = #tpu.dot_dimension_numbers<[1], [0], [0], [1], [0, 0, 1, 1], [], []>} : vector<32x120xf32>, vector<120x96xf32>, vector<32x96xf32> -> vector<32x96xf32>
    %124 = arith.addf %119, %123 : vector<32x96xf32>
    %c2_146 = arith.constant 2 : index
    %c0_147 = arith.constant 0 : index
    %c0_148 = arith.constant 0 : index
    %125 = vector.load %arg9[%c2_146, %c0_147, %c0_148] : memref<5x32x120xf32, #tpu.memory_space<vmem>>, vector<1x32x120xf32>
    %126 = vector.shape_cast %125 : vector<1x32x120xf32> to vector<32x120xf32>
    %c0_149 = arith.constant 0 : index
    %c24_150 = arith.constant 24 : index
    %127 = vector.load %arg22[%c0_149, %c24_150] : memref<120x144xf32, #tpu.memory_space<vmem>>, vector<120x96xf32>
    %cst_151 = arith.constant dense<0.000000e+00> : vector<32x96xf32>
    %128 = tpu.matmul %126, %127, %cst_151 {dimension_numbers = #tpu.dot_dimension_numbers<[1], [0], [0], [1], [0, 0, 1, 1], [], []>} : vector<32x120xf32>, vector<120x96xf32>, vector<32x96xf32> -> vector<32x96xf32>
    %129 = arith.addf %124, %128 : vector<32x96xf32>
    %c3_152 = arith.constant 3 : index
    %c0_153 = arith.constant 0 : index
    %c0_154 = arith.constant 0 : index
    %130 = vector.load %arg9[%c3_152, %c0_153, %c0_154] : memref<5x32x120xf32, #tpu.memory_space<vmem>>, vector<1x32x120xf32>
    %131 = vector.shape_cast %130 : vector<1x32x120xf32> to vector<32x120xf32>
    %c0_155 = arith.constant 0 : index
    %c36 = arith.constant 36 : index
    %132 = vector.load %arg22[%c0_155, %c36] : memref<120x144xf32, #tpu.memory_space<vmem>>, vector<120x96xf32>
    %cst_156 = arith.constant dense<0.000000e+00> : vector<32x96xf32>
    %133 = tpu.matmul %131, %132, %cst_156 {dimension_numbers = #tpu.dot_dimension_numbers<[1], [0], [0], [1], [0, 0, 1, 1], [], []>} : vector<32x120xf32>, vector<120x96xf32>, vector<32x96xf32> -> vector<32x96xf32>
    %134 = arith.addf %129, %133 : vector<32x96xf32>
    %c4_157 = arith.constant 4 : index
    %c0_158 = arith.constant 0 : index
    %c0_159 = arith.constant 0 : index
    %135 = vector.load %arg9[%c4_157, %c0_158, %c0_159] : memref<5x32x120xf32, #tpu.memory_space<vmem>>, vector<1x32x120xf32>
    %136 = vector.shape_cast %135 : vector<1x32x120xf32> to vector<32x120xf32>
    %c0_160 = arith.constant 0 : index
    %c48_161 = arith.constant 48 : index
    %137 = vector.load %arg22[%c0_160, %c48_161] : memref<120x144xf32, #tpu.memory_space<vmem>>, vector<120x96xf32>
    %cst_162 = arith.constant dense<0.000000e+00> : vector<32x96xf32>
    %138 = tpu.matmul %136, %137, %cst_162 {dimension_numbers = #tpu.dot_dimension_numbers<[1], [0], [0], [1], [0, 0, 1, 1], [], []>} : vector<32x120xf32>, vector<120x96xf32>, vector<32x96xf32> -> vector<32x96xf32>
    %139 = arith.addf %134, %138 : vector<32x96xf32>
    %c0_163 = arith.constant 0 : index
    %c0_164 = arith.constant 0 : index
    %140 = vector.load %arg10[%c0_163, %c0_164] : memref<32x1xf32, #tpu.memory_space<vmem>>, vector<32x1xf32>
    %141 = vector.broadcast %140 : vector<32x1xf32> to vector<32x96xf32>
    %142 = arith.addf %139, %141 : vector<32x96xf32>
    %cst_165 = arith.constant 0.000000e+00 : f32
    %143 = vector.broadcast %cst_165 : f32 to vector<32x96xf32>
    %144 = arith.maximumf %142, %143 : vector<32x96xf32>
    %145 = vector.extract_strided_slice %144 {offsets = [0, 0], sizes = [32, 80], strides = [1, 1]} : vector<32x96xf32> to vector<32x80xf32>
    %146 = vector.extract_strided_slice %144 {offsets = [0, 1], sizes = [32, 80], strides = [1, 1]} : vector<32x96xf32> to vector<32x80xf32>
    %147 = arith.maximumf %145, %146 : vector<32x80xf32>
    %148 = vector.extract_strided_slice %144 {offsets = [0, 12], sizes = [32, 80], strides = [1, 1]} : vector<32x96xf32> to vector<32x80xf32>
    %149 = vector.extract_strided_slice %144 {offsets = [0, 13], sizes = [32, 80], strides = [1, 1]} : vector<32x96xf32> to vector<32x80xf32>
    %150 = arith.maximumf %148, %149 : vector<32x80xf32>
    %151 = arith.maximumf %147, %150 : vector<32x80xf32>
    %c0_166 = arith.constant 0 : index
    %c0_167 = arith.constant 0 : index
    %152 = vector.load %arg11[%c0_166, %c0_167] : memref<80x256xf32, #tpu.memory_space<vmem>>, vector<80x256xf32>
    %cst_168 = arith.constant dense<0.000000e+00> : vector<32x256xf32>
    %153 = tpu.matmul %151, %152, %cst_168 {dimension_numbers = #tpu.dot_dimension_numbers<[1], [0], [0], [1], [0, 0, 1, 1], [], []>} : vector<32x80xf32>, vector<80x256xf32>, vector<32x256xf32> -> vector<32x256xf32>
    %c0_169 = arith.constant 0 : index
    %c0_170 = arith.constant 0 : index
    %154 = vector.load %arg12[%c0_169, %c0_170] : memref<32x256xf32, #tpu.memory_space<vmem>>, vector<32x256xf32>
    %155 = arith.mulf %153, %154 : vector<32x256xf32>
    %c0_171 = arith.constant 0 : index
    %c0_172 = arith.constant 0 : index
    %156 = vector.load %arg13[%c0_171, %c0_172] : memref<256x10xf32, #tpu.memory_space<vmem>>, vector<256x10xf32>
    %cst_173 = arith.constant dense<0.000000e+00> : vector<32x10xf32>
    %157 = tpu.matmul %155, %156, %cst_173 {dimension_numbers = #tpu.dot_dimension_numbers<[1], [0], [0], [1], [0, 0, 1, 1], [], []>} : vector<32x256xf32>, vector<256x10xf32>, vector<32x10xf32> -> vector<32x10xf32>
    %cst_174 = arith.constant dense<0.000000e+00> : vector<10xf32>
    %158 = vector.multi_reduction <add>, %157, %cst_174 [0] : vector<32x10xf32> to vector<10xf32>
    %159 = vector.shape_cast %158 : vector<10xf32> to vector<1x10xf32>
    %c0_175 = arith.constant 0 : index
    %c0_176 = arith.constant 0 : index
    %160 = vector.load %arg14[%c0_175, %c0_176] : memref<1x10xf32, #tpu.memory_space<vmem>>, vector<1x10xf32>
    %161 = arith.addf %159, %160 : vector<1x10xf32>
    %c0_177 = arith.constant 0 : index
    %c0_178 = arith.constant 0 : index
    %c0_179 = arith.constant 0 : index
    %162 = vector.load %arg15[%c0_177, %c0_178, %c0_179] : memref<1x1x10xf32, #tpu.memory_space<vmem>>, vector<1x1x10xf32>
    %163 = vector.shape_cast %162 : vector<1x1x10xf32> to vector<1x10xf32>
    %164 = vector.shape_cast %161 : vector<1x10xf32> to vector<1x1x10xf32>
    tpu.vector_store %arg15[%c0_177, %c0_178, %c0_179], %164 {strides = array<i32>} : memref<1x1x10xf32, #tpu.memory_space<vmem>>, vector<1x1x10xf32>,
    return
  }
  func.func @transform_0(%arg0: i32) -> (i32, i32, i32) {
    %c0_i32 = arith.constant 0 : i32
    %c0_i32_0 = arith.constant 0 : i32
    %c0_i32_1 = arith.constant 0 : i32
    return %arg0, %c0_i32, %c0_i32_0 : i32, i32, i32
  }
  func.func @transform_1(%arg0: i32) -> (i32, i32, i32) {
    %c0_i32 = arith.constant 0 : i32
    %c0_i32_0 = arith.constant 0 : i32
    %c0_i32_1 = arith.constant 0 : i32
    %c0_i32_2 = arith.constant 0 : i32
    return %c0_i32, %c0_i32_0, %c0_i32_1 : i32, i32, i32
  }
  func.func @transform_2(%arg0: i32) -> (i32, i32) {
    %c0_i32 = arith.constant 0 : i32
    %c0_i32_0 = arith.constant 0 : i32
    %c0_i32_1 = arith.constant 0 : i32
    return %c0_i32, %c0_i32_0 : i32, i32
  }
  func.func @transform_3(%arg0: i32) -> (i32, i32, i32) {
    %c0_i32 = arith.constant 0 : i32
    %c0_i32_0 = arith.constant 0 : i32
    %c0_i32_1 = arith.constant 0 : i32
    %c0_i32_2 = arith.constant 0 : i32
    return %c0_i32, %c0_i32_0, %c0_i32_1 : i32, i32, i32
  }
  func.func @transform_4(%arg0: i32) -> (i32, i32) {
    %c0_i32 = arith.constant 0 : i32
    %c0_i32_0 = arith.constant 0 : i32
    %c0_i32_1 = arith.constant 0 : i32
    return %c0_i32, %c0_i32_0 : i32, i32
  }
  func.func @transform_5(%arg0: i32) -> (i32, i32, i32) {
    %c0_i32 = arith.constant 0 : i32
    %c0_i32_0 = arith.constant 0 : i32
    %c0_i32_1 = arith.constant 0 : i32
    %c0_i32_2 = arith.constant 0 : i32
    return %c0_i32, %c0_i32_0, %c0_i32_1 : i32, i32, i32
  }
  func.func @transform_6(%arg0: i32) -> (i32, i32) {
    %c0_i32 = arith.constant 0 : i32
    %c0_i32_0 = arith.constant 0 : i32
    %c0_i32_1 = arith.constant 0 : i32
    return %c0_i32, %c0_i32_0 : i32, i32
  }
  func.func @transform_7(%arg0: i32) -> (i32, i32) {
    %c0_i32 = arith.constant 0 : i32
    %c0_i32_0 = arith.constant 0 : i32
    %c0_i32_1 = arith.constant 0 : i32
    return %c0_i32, %c0_i32_0 : i32, i32
  }
  func.func @transform_8(%arg0: i32) -> (i32, i32, i32) {
    %c0_i32 = arith.constant 0 : i32
    %c0_i32_0 = arith.constant 0 : i32
    %c0_i32_1 = arith.constant 0 : i32
    %c0_i32_2 = arith.constant 0 : i32
    return %c0_i32, %c0_i32_0, %c0_i32_1 : i32, i32, i32
  }
  func.func @transform_9(%arg0: i32) -> (i32, i32) {
    %c0_i32 = arith.constant 0 : i32
    %c0_i32_0 = arith.constant 0 : i32
    %c0_i32_1 = arith.constant 0 : i32
    return %c0_i32, %c0_i32_0 : i32, i32
  }
  func.func @transform_10(%arg0: i32) -> (i32, i32) {
    %c0_i32 = arith.constant 0 : i32
    %c0_i32_0 = arith.constant 0 : i32
    %c0_i32_1 = arith.constant 0 : i32
    return %c0_i32, %c0_i32_0 : i32, i32
  }
  func.func @transform_11(%arg0: i32) -> (i32, i32) {
    %c0_i32 = arith.constant 0 : i32
    %c0_i32_0 = arith.constant 0 : i32
    %c0_i32_1 = arith.constant 0 : i32
    return %c0_i32, %c0_i32_0 : i32, i32
  }
  func.func @transform_12(%arg0: i32) -> (i32, i32) {
    %c0_i32 = arith.constant 0 : i32
    %c0_i32_0 = arith.constant 0 : i32
    %c0_i32_1 = arith.constant 0 : i32
    return %c0_i32, %c0_i32_0 : i32, i32
  }
  func.func @transform_13(%arg0: i32) -> (i32, i32) {
    %c0_i32 = arith.constant 0 : i32
    %c0_i32_0 = arith.constant 0 : i32
    %c0_i32_1 = arith.constant 0 : i32
    return %c0_i32, %c0_i32_0 : i32, i32
  }
  func.func @transform_14(%arg0: i32) -> (i32, i32, i32) {
    %c0_i32 = arith.constant 0 : i32
    %c0_i32_0 = arith.constant 0 : i32
    %c0_i32_1 = arith.constant 0 : i32
    return %arg0, %c0_i32, %c0_i32_0 : i32, i32, i32
  }
}

</mosaic_0001>

<llo_original>
// kernel: network_forward.1
$region0: #{network_forward.1}
  #allocation0 [shape = 'u32[]', space=smem, size = 0x4, offset = 0x4, fixed_abs, tag = 'smem constant byte address 0x4 - core index']
  #allocation1 [shape = 'u32[144,128]{1,0:T(1,128)}', space=vmem, size = 0x12000, scoped, tag = 'internal scratch']
  #allocation2 [shape = 'f32[16,1024]{1,0:T(8,128)}', space=vmem, size = 0x10000, scoped, tag = 'scratch operand']
  #allocation3 [shape = 'f32[16,1024]{1,0:T(8,128)}', space=vmem, size = 0x10000, scoped, tag = 'scratch operand']
  #allocation4 [shape = 'f32[24,768]{1,0:T(8,128)}', space=vmem, size = 0x12000, scoped, tag = 'scratch operand']
  #allocation5 [shape = 'f32[24,1088]{1,0:T(8,128)}', space=vmem, size = 0x1b000, scoped, tag = 'scratch operand']
  #allocation6 [shape = 'f32[48,960]{1,0:T(8,128)}', space=vmem, size = 0x30000, scoped, tag = 'scratch operand']
  #allocation7 [shape = 'f32[80,896]{1,0:T(8,128)}', space=vmem, size = 0x46000, scoped, tag = 'scratch operand']
  #allocation8 [shape = 'f32[120,144]{1,0:T(8,128)}', space=vmem, size = 0x1e000, scoped, tag = 'scratch operand']
  %s0 = inlined_call_operand.vmem [shape: f32[2,8,1152], index: 0, kind: input, shape index: {}]
  %s1 = inlined_call_operand.vmem [shape: f32[3,16,24], index: 1, kind: input, shape index: {}]
  %s2 = inlined_call_operand.vmem [shape: f32[16,1], index: 2, kind: input, shape index: {}]
  %s3 = inlined_call_operand.vmem [shape: f32[3,16,48], index: 3, kind: input, shape index: {}]
  %s4 = inlined_call_operand.vmem [shape: f32[16,1], index: 4, kind: input, shape index: {}]
  %s5 = inlined_call_operand.vmem [shape: f32[5,24,80], index: 5, kind: input, shape index: {}]
  %s6 = inlined_call_operand.vmem [shape: f32[24,1], index: 6, kind: input, shape index: {}]
  %s7 = inlined_call_operand.vmem [shape: f32[728,160], index: 7, kind: input, shape index: {}]
  %s8 = inlined_call_operand.vmem [shape: f32[5,32,120], index: 8, kind: input, shape index: {}]
  %s9 = inlined_call_operand.vmem [shape: f32[32,1], index: 9, kind: input, shape index: {}]
  %s10 = inlined_call_operand.vmem [shape: f32[80,256], index: 10, kind: input, shape index: {}]
  %s11 = inlined_call_operand.vmem [shape: f32[32,256], index: 11, kind: input, shape index: {}]
  %s12 = inlined_call_operand.vmem [shape: f32[256,10], index: 12, kind: input, shape index: {}]
  %s13 = inlined_call_operand.vmem [shape: f32[1,10], index: 13, kind: input, shape index: {}]
  %s14 = inlined_call_operand.hbm [shape: f32[2,1,10], index: 14, kind: output, shape index: {}]
  %s15 = sld [smem:[#allocation0]]
  $region89: #{network_forward.1} parent=0
    _
  %s17 = ssub.s32 1, %s15
  %s18 = scalar_select 0, %s17, %s15
  $region1: #{network_forward.1} parent=0
    #allocation9 [shape = 'u8[1024]{0}', space=vmem, size = 0x400, scoped, tag = 'output window, operand 0']
    #allocation10 [shape = 's32[2]{0}', space=sflag, size = 0x8, scoped, tag = 'scoped memory for network_forward.1']
    %19 = vsyncpa [#allocation10], 0
    %s20 = scalar_lea.sflag [#allocation10], 1
    %21 = vsyncpa %s20, 0
    loop: start=0, step=1, limit=4
    $region2: #{network_forward.1} parent=1 // loop_pre_header
      _
    $region3: #{network_forward.1} parent=1 // loop_header
      %s23 = sphi 0, %s27
      %p24 = scmp.ge.s32.totalorder %s23, 4
      %s33 = sphi 0, %s35
      %s36 = sphi 0, %s33
      %s37 = sphi 0, %s36
      %s53 = sphi 0, %s37
      %s57 = sphi 0, %s57
      %s59 = sphi 0, %s57
      %s60 = sphi 0, %s59
      %s74 = sphi 0, %s60
      %s78 = sphi 0, %s78
      %s80 = sphi 0, %s78
      %s81 = sphi 0, %s80
      %s95 = sphi 0, %s81
      %s99 = sphi 0, %s99
      %s101 = sphi 0, %s99
      %s102 = sphi 0, %s101
      %s116 = sphi 0, %s102
      %s120 = sphi 0, %s120
      %s122 = sphi 0, %s120
      %s123 = sphi 0, %s122
      %s137 = sphi 0, %s123
      %s141 = sphi 0, %s141
      %s143 = sphi 0, %s141
      %s144 = sphi 0, %s143
      %s158 = sphi 0, %s144
      %s162 = sphi 0, %s162
      %s164 = sphi 0, %s162
      %s165 = sphi 0, %s164
      %s179 = sphi 0, %s165
      %s183 = sphi 0, %s183
      %s185 = sphi 0, %s183
      %s186 = sphi 0, %s185
      %s200 = sphi 0, %s186
      %s204 = sphi 0, %s204
      %s206 = sphi 0, %s204
      %s207 = sphi 0, %s206
      %s221 = sphi 0, %s207
      %s225 = sphi 0, %s225
      %s227 = sphi 0, %s225
      %s228 = sphi 0, %s227
      %s242 = sphi 0, %s228
      %s246 = sphi 0, %s246
      %s248 = sphi 0, %s246
      %s249 = sphi 0, %s248
      %s263 = sphi 0, %s249
      %s267 = sphi 0, %s267
      %s269 = sphi 0, %s267
      %s270 = sphi 0, %s269
      %s284 = sphi 0, %s270
      %s288 = sphi 0, %s288
      %s290 = sphi 0, %s288
      %s291 = sphi 0, %s290
      %s305 = sphi 0, %s291
      %s309 = sphi 0, %s309
      %s311 = sphi 0, %s309
      %s312 = sphi 0, %s311
      %s326 = sphi 0, %s312
      %s332 = sphi 0, %s334
      %s335 = sphi 0, %s332
      %s336 = sphi 0, %s335
      %s352 = sphi 0, %s336
    $region4: #{network_forward.1} parent=1 // loop_header_branch
      %26 = sbr.rel (%p24) target = $region8
    $region5: #{network_forward.1} parent=1 // loop_body
      %s28 = ssub.s32 %s23, 1
      %s29 = ssub.s32 %s23, 2
      %s30 = sadd.s32 %s23, 1
      %s31 = ssub.s32 %s23, %s30
      %p32 = scmp.eq.s32.totalorder %s31, 0
      %s34 = sadd.s32 %s33, 1
      %s35 = scalar_select %p32, %s33, %s34
      %p38 = pneg %p32
      %p39 = scmp.eq.s32.totalorder %s23, 1
      %p40 = por %p38, %p39
      %p41 = scmp.ne.s32.totalorder %s33, %s36
      %p42 = scmp.eq.s32.totalorder %s23, 0
      %p43 = por %p41, %p42
      %p44 = scmp.ne.s32.totalorder %s33, %s36
      %p45 = scmp.eq.s32.totalorder %s28, 1
      %p46 = por %p44, %p45
      %p47 = scmp.ne.s32.totalorder %s36, %s37
      %p48 = scmp.eq.s32.totalorder %s28, 0
      %p49 = por %p47, %p48
      %p50 = scmp.ne.s32.totalorder %s36, %s37
      %p51 = scmp.eq.s32.totalorder %s29, 1
      %p52 = por %p50, %p51
      %p54 = scmp.ne.s32.totalorder %s37, %s53
      %p55 = scmp.eq.s32.totalorder %s29, 0
      %p56 = por %p54, %p55
      %s58 = sadd.s32 %s57, 1
      %p61 = scmp.eq.s32.totalorder %s23, 1
      %p62 = scmp.ne.s32.totalorder %s57, %s59
      %p63 = scmp.eq.s32.totalorder %s23, 0
      %p64 = por %p62, %p63
      %p65 = scmp.ne.s32.totalorder %s57, %s59
      %p66 = scmp.eq.s32.totalorder %s28, 1
      %p67 = por %p65, %p66
      %p68 = scmp.ne.s32.totalorder %s59, %s60
      %p69 = scmp.eq.s32.totalorder %s28, 0
      %p70 = por %p68, %p69
      %p71 = scmp.ne.s32.totalorder %s59, %s60
      %p72 = scmp.eq.s32.totalorder %s29, 1
      %p73 = por %p71, %p72
      %p75 = scmp.ne.s32.totalorder %s60, %s74
      %p76 = scmp.eq.s32.totalorder %s29, 0
      %p77 = por %p75, %p76
      %s79 = sadd.s32 %s78, 1
      %p82 = scmp.eq.s32.totalorder %s23, 1
      %p83 = scmp.ne.s32.totalorder %s78, %s80
      %p84 = scmp.eq.s32.totalorder %s23, 0
      %p85 = por %p83, %p84
      %p86 = scmp.ne.s32.totalorder %s78, %s80
      %p87 = scmp.eq.s32.totalorder %s28, 1
      %p88 = por %p86, %p87
      %p89 = scmp.ne.s32.totalorder %s80, %s81
      %p90 = scmp.eq.s32.totalorder %s28, 0
      %p91 = por %p89, %p90
      %p92 = scmp.ne.s32.totalorder %s80, %s81
      %p93 = scmp.eq.s32.totalorder %s29, 1
      %p94 = por %p92, %p93
      %p96 = scmp.ne.s32.totalorder %s81, %s95
      %p97 = scmp.eq.s32.totalorder %s29, 0
      %p98 = por %p96, %p97
      %s100 = sadd.s32 %s99, 1
      %p103 = scmp.eq.s32.totalorder %s23, 1
      %p104 = scmp.ne.s32.totalorder %s99, %s101
      %p105 = scmp.eq.s32.totalorder %s23, 0
      %p106 = por %p104, %p105
      %p107 = scmp.ne.s32.totalorder %s99, %s101
      %p108 = scmp.eq.s32.totalorder %s28, 1
      %p109 = por %p107, %p108
      %p110 = scmp.ne.s32.totalorder %s101, %s102
      %p111 = scmp.eq.s32.totalorder %s28, 0
      %p112 = por %p110, %p111
      %p113 = scmp.ne.s32.totalorder %s101, %s102
      %p114 = scmp.eq.s32.totalorder %s29, 1
      %p115 = por %p113, %p114
      %p117 = scmp.ne.s32.totalorder %s102, %s116
      %p118 = scmp.eq.s32.totalorder %s29, 0
      %p119 = por %p117, %p118
      %s121 = sadd.s32 %s120, 1
      %p124 = scmp.eq.s32.totalorder %s23, 1
      %p125 = scmp.ne.s32.totalorder %s120, %s122
      %p126 = scmp.eq.s32.totalorder %s23, 0
      %p127 = por %p125, %p126
      %p128 = scmp.ne.s32.totalorder %s120, %s122
      %p129 = scmp.eq.s32.totalorder %s28, 1
      %p130 = por %p128, %p129
      %p131 = scmp.ne.s32.totalorder %s122, %s123
      %p132 = scmp.eq.s32.totalorder %s28, 0
      %p133 = por %p131, %p132
      %p134 = scmp.ne.s32.totalorder %s122, %s123
      %p135 = scmp.eq.s32.totalorder %s29, 1
      %p136 = por %p134, %p135
      %p138 = scmp.ne.s32.totalorder %s123, %s137
      %p139 = scmp.eq.s32.totalorder %s29, 0
      %p140 = por %p138, %p139
      %s142 = sadd.s32 %s141, 1
      %p145 = scmp.eq.s32.totalorder %s23, 1
      %p146 = scmp.ne.s32.totalorder %s141, %s143
      %p147 = scmp.eq.s32.totalorder %s23, 0
      %p148 = por %p146, %p147
      %p149 = scmp.ne.s32.totalorder %s141, %s143
      %p150 = scmp.eq.s32.totalorder %s28, 1
      %p151 = por %p149, %p150
      %p152 = scmp.ne.s32.totalorder %s143, %s144
      %p153 = scmp.eq.s32.totalorder %s28, 0
      %p154 = por %p152, %p153
      %p155 = scmp.ne.s32.totalorder %s143, %s144
      %p156 = scmp.eq.s32.totalorder %s29, 1
      %p157 = por %p155, %p156
      %p159 = scmp.ne.s32.totalorder %s144, %s158
      %p160 = scmp.eq.s32.totalorder %s29, 0
      %p161 = por %p159, %p160
      %s163 = sadd.s32 %s162, 1
      %p166 = scmp.eq.s32.totalorder %s23, 1
      %p167 = scmp.ne.s32.totalorder %s162, %s164
      %p168 = scmp.eq.s32.totalorder %s23, 0
      %p169 = por %p167, %p168
      %p170 = scmp.ne.s32.totalorder %s162, %s164
      %p171 = scmp.eq.s32.totalorder %s28, 1
      %p172 = por %p170, %p171
      %p173 = scmp.ne.s32.totalorder %s164, %s165
      %p174 = scmp.eq.s32.totalorder %s28, 0
      %p175 = por %p173, %p174
      %p176 = scmp.ne.s32.totalorder %s164, %s165
      %p177 = scmp.eq.s32.totalorder %s29, 1
      %p178 = por %p176, %p177
      %p180 = scmp.ne.s32.totalorder %s165, %s179
      %p181 = scmp.eq.s32.totalorder %s29, 0
      %p182 = por %p180, %p181
      %s184 = sadd.s32 %s183, 1
      %p187 = scmp.eq.s32.totalorder %s23, 1
      %p188 = scmp.ne.s32.totalorder %s183, %s185
      %p189 = scmp.eq.s32.totalorder %s23, 0
      %p190 = por %p188, %p189
      %p191 = scmp.ne.s32.totalorder %s183, %s185
      %p192 = scmp.eq.s32.totalorder %s28, 1
      %p193 = por %p191, %p192
      %p194 = scmp.ne.s32.totalorder %s185, %s186
      %p195 = scmp.eq.s32.totalorder %s28, 0
      %p196 = por %p194, %p195
      %p197 = scmp.ne.s32.totalorder %s185, %s186
      %p198 = scmp.eq.s32.totalorder %s29, 1
      %p199 = por %p197, %p198
      %p201 = scmp.ne.s32.totalorder %s186, %s200
      %p202 = scmp.eq.s32.totalorder %s29, 0
      %p203 = por %p201, %p202
      %s205 = sadd.s32 %s204, 1
      %p208 = scmp.eq.s32.totalorder %s23, 1
      %p209 = scmp.ne.s32.totalorder %s204, %s206
      %p210 = scmp.eq.s32.totalorder %s23, 0
      %p211 = por %p209, %p210
      %p212 = scmp.ne.s32.totalorder %s204, %s206
      %p213 = scmp.eq.s32.totalorder %s28, 1
      %p214 = por %p212, %p213
      %p215 = scmp.ne.s32.totalorder %s206, %s207
      %p216 = scmp.eq.s32.totalorder %s28, 0
      %p217 = por %p215, %p216
      %p218 = scmp.ne.s32.totalorder %s206, %s207
      %p219 = scmp.eq.s32.totalorder %s29, 1
      %p220 = por %p218, %p219
      %p222 = scmp.ne.s32.totalorder %s207, %s221
      %p223 = scmp.eq.s32.totalorder %s29, 0
      %p224 = por %p222, %p223
      %s226 = sadd.s32 %s225, 1
      %p229 = scmp.eq.s32.totalorder %s23, 1
      %p230 = scmp.ne.s32.totalorder %s225, %s227
      %p231 = scmp.eq.s32.totalorder %s23, 0
      %p232 = por %p230, %p231
      %p233 = scmp.ne.s32.totalorder %s225, %s227
      %p234 = scmp.eq.s32.totalorder %s28, 1
      %p235 = por %p233, %p234
      %p236 = scmp.ne.s32.totalorder %s227, %s228
      %p237 = scmp.eq.s32.totalorder %s28, 0
      %p238 = por %p236, %p237
      %p239 = scmp.ne.s32.totalorder %s227, %s228
      %p240 = scmp.eq.s32.totalorder %s29, 1
      %p241 = por %p239, %p240
      %p243 = scmp.ne.s32.totalorder %s228, %s242
      %p244 = scmp.eq.s32.totalorder %s29, 0
      %p245 = por %p243, %p244
      %s247 = sadd.s32 %s246, 1
      %p250 = scmp.eq.s32.totalorder %s23, 1
      %p251 = scmp.ne.s32.totalorder %s246, %s248
      %p252 = scmp.eq.s32.totalorder %s23, 0
      %p253 = por %p251, %p252
      %p254 = scmp.ne.s32.totalorder %s246, %s248
      %p255 = scmp.eq.s32.totalorder %s28, 1
      %p256 = por %p254, %p255
      %p257 = scmp.ne.s32.totalorder %s248, %s249
      %p258 = scmp.eq.s32.totalorder %s28, 0
      %p259 = por %p257, %p258
      %p260 = scmp.ne.s32.totalorder %s248, %s249
      %p261 = scmp.eq.s32.totalorder %s29, 1
      %p262 = por %p260, %p261
      %p264 = scmp.ne.s32.totalorder %s249, %s263
      %p265 = scmp.eq.s32.totalorder %s29, 0
      %p266 = por %p264, %p265
      %s268 = sadd.s32 %s267, 1
      %p271 = scmp.eq.s32.totalorder %s23, 1
      %p272 = scmp.ne.s32.totalorder %s267, %s269
      %p273 = scmp.eq.s32.totalorder %s23, 0
      %p274 = por %p272, %p273
      %p275 = scmp.ne.s32.totalorder %s267, %s269
      %p276 = scmp.eq.s32.totalorder %s28, 1
      %p277 = por %p275, %p276
      %p278 = scmp.ne.s32.totalorder %s269, %s270
      %p279 = scmp.eq.s32.totalorder %s28, 0
      %p280 = por %p278, %p279
      %p281 = scmp.ne.s32.totalorder %s269, %s270
      %p282 = scmp.eq.s32.totalorder %s29, 1
      %p283 = por %p281, %p282
      %p285 = scmp.ne.s32.totalorder %s270, %s284
      %p286 = scmp.eq.s32.totalorder %s29, 0
      %p287 = por %p285, %p286
      %s289 = sadd.s32 %s288, 1
      %p292 = scmp.eq.s32.totalorder %s23, 1
      %p293 = scmp.ne.s32.totalorder %s288, %s290
      %p294 = scmp.eq.s32.totalorder %s23, 0
      %p295 = por %p293, %p294
      %p296 = scmp.ne.s32.totalorder %s288, %s290
      %p297 = scmp.eq.s32.totalorder %s28, 1
      %p298 = por %p296, %p297
      %p299 = scmp.ne.s32.totalorder %s290, %s291
      %p300 = scmp.eq.s32.totalorder %s28, 0
      %p301 = por %p299, %p300
      %p302 = scmp.ne.s32.totalorder %s290, %s291
      %p303 = scmp.eq.s32.totalorder %s29, 1
      %p304 = por %p302, %p303
      %p306 = scmp.ne.s32.totalorder %s291, %s305
      %p307 = scmp.eq.s32.totalorder %s29, 0
      %p308 = por %p306, %p307
      %s310 = sadd.s32 %s309, 1
      %p313 = scmp.eq.s32.totalorder %s23, 1
      %p314 = scmp.ne.s32.totalorder %s309, %s311
      %p315 = scmp.eq.s32.totalorder %s23, 0
      %p316 = por %p314, %p315
      %p317 = scmp.ne.s32.totalorder %s309, %s311
      %p318 = scmp.eq.s32.totalorder %s28, 1
      %p319 = por %p317, %p318
      %p320 = scmp.ne.s32.totalorder %s311, %s312
      %p321 = scmp.eq.s32.totalorder %s28, 0
      %p322 = por %p320, %p321
      %p323 = scmp.ne.s32.totalorder %s311, %s312
      %p324 = scmp.eq.s32.totalorder %s29, 1
      %p325 = por %p323, %p324
      %p327 = scmp.ne.s32.totalorder %s312, %s326
      %p328 = scmp.eq.s32.totalorder %s29, 0
      %p329 = por %p327, %p328
      %s330 = ssub.s32 %s23, %s30
      %p331 = scmp.eq.s32.totalorder %s330, 0
      %s333 = sadd.s32 %s332, 1
      %s334 = scalar_select %p331, %s332, %s333
      %p337 = pneg %p331
      %p338 = scmp.eq.s32.totalorder %s23, 1
      %p339 = por %p337, %p338
      %p340 = scmp.ne.s32.totalorder %s332, %s335
      %p341 = scmp.eq.s32.totalorder %s23, 0
      %p342 = por %p340, %p341
      %p343 = scmp.ne.s32.totalorder %s332, %s335
      %p344 = scmp.eq.s32.totalorder %s28, 1
      %p345 = por %p343, %p344
      %p346 = scmp.ne.s32.totalorder %s335, %s336
      %p347 = scmp.eq.s32.totalorder %s28, 0
      %p348 = por %p346, %p347
      %p349 = scmp.ne.s32.totalorder %s335, %s336
      %p350 = scmp.eq.s32.totalorder %s29, 1
      %p351 = por %p349, %p350
      %p353 = scmp.ne.s32.totalorder %s336, %s352
      %p354 = scmp.eq.s32.totalorder %s29, 0
      %p355 = por %p353, %p354
      %p356 = scmp.le.s32.totalorder 1, %s23
      %p357 = scmp.lt.s32.totalorder %s23, 3
      %p358 = pnand %p356, %p357
      %p359 = pneg %p358
      // Predicated region
      $region9: #{network_forward.1} parent=5 // pred_check
        _
      $region10: #{network_forward.1} parent=5 // pred_check_branch
        %361 = sbr.rel (%p358) target = $region12
      $region11: #{network_forward.1} parent=5 // pred_region
        %s362 = ssub.s32 %s23, 1
        // Predicated region
        $region13: #{network_forward.1} parent=11 // pred_check
          %p363 = pneg %p70
        $region14: #{network_forward.1} parent=11 // pred_check_branch
          %365 = sbr.rel (%p363) target = $region16
        $region15: #{network_forward.1} parent=11 // pred_region
          _
        $region16: #{network_forward.1} parent=11 // pred_fallthru
          _
        // Predicated region
        $region17: #{network_forward.1} parent=11 // pred_check
          %p366 = pneg %p91
        $region18: #{network_forward.1} parent=11 // pred_check_branch
          %368 = sbr.rel (%p366) target = $region20
        $region19: #{network_forward.1} parent=11 // pred_region
          _
        $region20: #{network_forward.1} parent=11 // pred_fallthru
          _
        // Predicated region
        $region21: #{network_forward.1} parent=11 // pred_check
          %p369 = pneg %p112
        $region22: #{network_forward.1} parent=11 // pred_check_branch
          %371 = sbr.rel (%p369) target = $region24
        $region23: #{network_forward.1} parent=11 // pred_region
          _
        $region24: #{network_forward.1} parent=11 // pred_fallthru
          _
        // Predicated region
        $region25: #{network_forward.1} parent=11 // pred_check
          %p372 = pneg %p133
        $region26: #{network_forward.1} parent=11 // pred_check_branch
          %374 = sbr.rel (%p372) target = $region28
        $region27: #{network_forward.1} parent=11 // pred_region
          _
        $region28: #{network_forward.1} parent=11 // pred_fallthru
          _
        // Predicated region
        $region29: #{network_forward.1} parent=11 // pred_check
          %p375 = pneg %p154
        $region30: #{network_forward.1} parent=11 // pred_check_branch
          %377 = sbr.rel (%p375) target = $region32
        $region31: #{network_forward.1} parent=11 // pred_region
          _
        $region32: #{network_forward.1} parent=11 // pred_fallthru
          _
        // Predicated region
        $region33: #{network_forward.1} parent=11 // pred_check
          %p378 = pneg %p175
        $region34: #{network_forward.1} parent=11 // pred_check_branch
          %380 = sbr.rel (%p378) target = $region36
        $region35: #{network_forward.1} parent=11 // pred_region
          _
        $region36: #{network_forward.1} parent=11 // pred_fallthru
          _
        // Predicated region
        $region37: #{network_forward.1} parent=11 // pred_check
          %p381 = pneg %p196
        $region38: #{network_forward.1} parent=11 // pred_check_branch
          %383 = sbr.rel (%p381) target = $region40
        $region39: #{network_forward.1} parent=11 // pred_region
          _
        $region40: #{network_forward.1} parent=11 // pred_fallthru
          _
        // Predicated region
        $region41: #{network_forward.1} parent=11 // pred_check
          %p384 = pneg %p217
        $region42: #{network_forward.1} parent=11 // pred_check_branch
          %386 = sbr.rel (%p384) target = $region44
        $region43: #{network_forward.1} parent=11 // pred_region
          _
        $region44: #{network_forward.1} parent=11 // pred_fallthru
          _
        // Predicated region
        $region45: #{network_forward.1} parent=11 // pred_check
          %p387 = pneg %p238
        $region46: #{network_forward.1} parent=11 // pred_check_branch
          %389 = sbr.rel (%p387) target = $region48
        $region47: #{network_forward.1} parent=11 // pred_region
          _
        $region48: #{network_forward.1} parent=11 // pred_fallthru
          _
        // Predicated region
        $region49: #{network_forward.1} parent=11 // pred_check
          %p390 = pneg %p259
        $region50: #{network_forward.1} parent=11 // pred_check_branch
          %392 = sbr.rel (%p390) target = $region52
        $region51: #{network_forward.1} parent=11 // pred_region
          _
        $region52: #{network_forward.1} parent=11 // pred_fallthru
          _
        // Predicated region
        $region53: #{network_forward.1} parent=11 // pred_check
          %p393 = pneg %p280
        $region54: #{network_forward.1} parent=11 // pred_check_branch
          %395 = sbr.rel (%p393) target = $region56
        $region55: #{network_forward.1} parent=11 // pred_region
          _
        $region56: #{network_forward.1} parent=11 // pred_fallthru
          _
        // Predicated region
        $region57: #{network_forward.1} parent=11 // pred_check
          %p396 = pneg %p301
        $region58: #{network_forward.1} parent=11 // pred_check_branch
          %398 = sbr.rel (%p396) target = $region60
        $region59: #{network_forward.1} parent=11 // pred_region
          _
        $region60: #{network_forward.1} parent=11 // pred_fallthru
          _
        // Predicated region
        $region61: #{network_forward.1} parent=11 // pred_check
          %p399 = pneg %p322
        $region62: #{network_forward.1} parent=11 // pred_check_branch
          %401 = sbr.rel (%p399) target = $region64
        $region63: #{network_forward.1} parent=11 // pred_region
          _
        $region64: #{network_forward.1} parent=11 // pred_fallthru
          _
      $region12: #{network_forward.1} parent=5 // pred_fallthru
        _
      %p402 = scmp.lt.s32.totalorder %s23, 2
      // Predicated region
      $region65: #{network_forward.1} parent=5 // pred_check
        %p403 = pneg %p402
      $region66: #{network_forward.1} parent=5 // pred_check_branch
        %405 = sbr.rel (%p403) target = $region68
      $region67: #{network_forward.1} parent=5 // pred_region
        // Predicated region
        $region69: #{network_forward.1} parent=67 // pred_check
          %p406 = pneg %p43
        $region70: #{network_forward.1} parent=67 // pred_check_branch
          %408 = sbr.rel (%p406) target = $region72
        $region71: #{network_forward.1} parent=67 // pred_region
          %p409 = scmp.lt.s32.totalorder %s23, 1
          %s410 = scalar_select %p409, %s23, 1
          %s411 = smul.addr %s410, 9
          %s412 = smul.addr %s411, 8
          %s413 = scalar_lea.vmem %s0, %s412
        $region72: #{network_forward.1} parent=67 // pred_fallthru
          _
      $region68: #{network_forward.1} parent=5 // pred_fallthru
        _
      %p414 = scmp.le.s32.totalorder 1, %s23
      %p415 = scmp.lt.s32.totalorder %s23, 3
      %p416 = pnand %p414, %p415
      %p417 = pneg %p416
      // Predicated region
      $region73: #{network_forward.1} parent=5 // pred_check
        _
      $region74: #{network_forward.1} parent=5 // pred_check_branch
        %419 = sbr.rel (%p416) target = $region76
      $region75: #{network_forward.1} parent=5 // pred_region
        %s420 = ssub.s32 %s23, 1
        %p421 = scmp.lt.s32.totalorder %s28, 1
        %s422 = scalar_select %p421, %s28, 1
        %s423 = smul.addr %s422, 9
        %s424 = smul.addr %s423, 8
        %s425 = scalar_lea.vmem %s0, %s424
        %p426 = pneg %p49
        %p427 = pneg %p46
        %p428 = pneg %p70
        %p429 = pneg %p67
        %p430 = pneg %p91
        %p431 = pneg %p88
        %p432 = pneg %p112
        %p433 = pneg %p109
        %p434 = pneg %p133
        %p435 = pneg %p130
        %p436 = pneg %p154
        %p437 = pneg %p151
        %p438 = pneg %p175
        %p439 = pneg %p172
        %p440 = pneg %p196
        %p441 = pneg %p193
        %p442 = pneg %p217
        %p443 = pneg %p214
        %p444 = pneg %p238
        %p445 = pneg %p235
        %p446 = pneg %p259
        %p447 = pneg %p256
        %p448 = pneg %p280
        %p449 = pneg %p277
        %p450 = pneg %p301
        %p451 = pneg %p298
        %p452 = pneg %p322
        %p453 = pneg %p319
        %p454 = pneg %p348
        %p455 = pneg %p345
        %s456 = sand.u32 %s335, 1
        %s457 = scalar_lea.sflag [#allocation10], %s456
        %s458 = sand.u32 %s335, 1
        %s459 = scalar_lea.vmem [#allocation9], %s458
        %p460 = scmp.lt.s32.totalorder %s28, 1
        %s461 = scalar_select %p460, %s28, 1
        %s462 = smul.addr %s461, 9
        %s463 = smul.addr %s462, 8
        %s464 = scalar_lea.vmem %s0, %s463
        %465 = vst [vmem:[#allocation3 + $0x38] sm:$0xff] 0.0
        %466 = vst [vmem:[#allocation3 + $0x78] sm:$0xff] 0.0
        %v467 = vld [vmem:[%s464] sm:$0xff]
        %v468 = vld [vmem:[%s464 + $0x8] sm:$0xff]
        %v469 = vld [vmem:[%s464 + $0x10] sm:$0xff]
        %v470 = vld [vmem:[%s464 + $0x18] sm:$0xff]
        %v471 = vld [vmem:[%s464 + $0x20] sm:$0xff]
        %v472 = vld [vmem:[%s464 + $0x28] sm:$0xff]
        %v473 = vld [vmem:[%s464 + $0x30] sm:$0xff]
        %v474 = vld [vmem:[%s464 + $0x38] sm:$0xff]
        %v475 = vld [vmem:[%s464 + $0x40] sm:$0xff]
        %476 = vst [vmem:[#allocation5] sm:$0xff] %v467
        %477 = vst [vmem:[#allocation5 + $0x8] sm:$0xff] %v468
        %478 = vst [vmem:[#allocation5 + $0x10] sm:$0xff] %v469
        %479 = vst [vmem:[#allocation5 + $0x18] sm:$0xff] %v470
        %480 = vst [vmem:[#allocation5 + $0x20] sm:$0xff] %v471
        %481 = vst [vmem:[#allocation5 + $0x28] sm:$0xff] %v472
        %482 = vst [vmem:[#allocation5 + $0x30] sm:$0xff] %v473
        %483 = vst [vmem:[#allocation5 + $0x38] sm:$0xff] %v474
        %vm484 = vcmask 523264
        %485 = vst.msk [vmem:[#allocation5 + $0x40] sm:$0xff] %vm484, %v475
        %v486 = vld [vmem:[%s464] sm:$0xff]
        %v487 = vld [vmem:[%s464 + $0x8] sm:$0xff]
        %v488 = vld [vmem:[%s464 + $0x10] sm:$0xff]
        %v489 = vld [vmem:[%s464 + $0x18] sm:$0xff]
        %v490 = vld [vmem:[%s464 + $0x20] sm:$0xff]
        %v491 = vld [vmem:[%s464 + $0x28] sm:$0xff]
        %v492 = vld [vmem:[%s464 + $0x30] sm:$0xff]
        %v493 = vld [vmem:[%s464 + $0x38] sm:$0xff]
        %v494 = vld [vmem:[%s464 + $0x40] sm:$0xff]
        %504 = vrot.lane.b32.xlu0 %v486, 127
        %v505 = vpop.permute.xlu0 %504
        %506 = vrot.lane.b32.xlu0 %v487, 127
        %v507 = vpop.permute.xlu0 %506
        %508 = vrot.lane.b32.xlu0 %v488, 127
        %v509 = vpop.permute.xlu0 %508
        %510 = vrot.lane.b32.xlu0 %v489, 127
        %v511 = vpop.permute.xlu0 %510
        %512 = vrot.lane.b32.xlu0 %v490, 127
        %v513 = vpop.permute.xlu0 %512
        %514 = vrot.lane.b32.xlu0 %v491, 127
        %v515 = vpop.permute.xlu0 %514
        %516 = vrot.lane.b32.xlu0 %v492, 127
        %v517 = vpop.permute.xlu0 %516
        %518 = vrot.lane.b32.xlu0 %v493, 127
        %v519 = vpop.permute.xlu0 %518
        %520 = vrot.lane.b32.xlu0 %v494, 127
        %v521 = vpop.permute.xlu0 %520
        %vm522 = vcmask 1039360
        %v523 = vsel %vm522, %v505, %v507
        %v524 = vsel %vm522, %v507, %v509
        %v525 = vsel %vm522, %v509, %v511
        %v526 = vsel %vm522, %v511, %v513
        %v527 = vsel %vm522, %v513, %v515
        %v528 = vsel %vm522, %v515, %v517
        %v529 = vsel %vm522, %v517, %v519
        %v530 = vsel %vm522, %v519, %v521
        %540 = vst [vmem:[#allocation5 + $0x48] sm:$0xff] %v523
        %541 = vst [vmem:[#allocation5 + $0x50] sm:$0xff] %v524
        %542 = vst [vmem:[#allocation5 + $0x58] sm:$0xff] %v525
        %543 = vst [vmem:[#allocation5 + $0x60] sm:$0xff] %v526
        %544 = vst [vmem:[#allocation5 + $0x68] sm:$0xff] %v527
        %545 = vst [vmem:[#allocation5 + $0x70] sm:$0xff] %v528
        %546 = vst [vmem:[#allocation5 + $0x78] sm:$0xff] %v529
        %547 = vst [vmem:[#allocation5 + $0x80] sm:$0xff] %v530
        %548 = vst.msk [vmem:[#allocation5 + $0x88] sm:$0xff] %vm484, %v521
        %v549 = vld [vmem:[%s464] sm:$0xff]
        %v550 = vld [vmem:[%s464 + $0x8] sm:$0xff]
        %v551 = vld [vmem:[%s464 + $0x10] sm:$0xff]
        %v552 = vld [vmem:[%s464 + $0x18] sm:$0xff]
        %v553 = vld [vmem:[%s464 + $0x20] sm:$0xff]
        %v554 = vld [vmem:[%s464 + $0x28] sm:$0xff]
        %v555 = vld [vmem:[%s464 + $0x30] sm:$0xff]
        %v556 = vld [vmem:[%s464 + $0x38] sm:$0xff]
        %v557 = vld [vmem:[%s464 + $0x40] sm:$0xff]
        %567 = vrot.lane.b32.xlu0 %v549, 126
        %v568 = vpop.permute.xlu0 %567
        %569 = vrot.lane.b32.xlu0 %v550, 126
        %v570 = vpop.permute.xlu0 %569
        %571 = vrot.lane.b32.xlu0 %v551, 126
        %v572 = vpop.permute.xlu0 %571
        %573 = vrot.lane.b32.xlu0 %v552, 126
        %v574 = vpop.permute.xlu0 %573
        %575 = vrot.lane.b32.xlu0 %v553, 126
        %v576 = vpop.permute.xlu0 %575
        %577 = vrot.lane.b32.xlu0 %v554, 126
        %v578 = vpop.permute.xlu0 %577
        %579 = vrot.lane.b32.xlu0 %v555, 126
        %v580 = vpop.permute.xlu0 %579
        %581 = vrot.lane.b32.xlu0 %v556, 126
        %v582 = vpop.permute.xlu0 %581
        %583 = vrot.lane.b32.xlu0 %v557, 126
        %v584 = vpop.permute.xlu0 %583
        %vm585 = vcmask 1031168
        %v586 = vsel %vm585, %v568, %v570
        %v587 = vsel %vm585, %v570, %v572
        %v588 = vsel %vm585, %v572, %v574
        %v589 = vsel %vm585, %v574, %v576
        %v590 = vsel %vm585, %v576, %v578
        %v591 = vsel %vm585, %v578, %v580
        %v592 = vsel %vm585, %v580, %v582
        %v593 = vsel %vm585, %v582, %v584
        %603 = vst [vmem:[#allocation5 + $0x90] sm:$0xff] %v586
        %604 = vst [vmem:[#allocation5 + $0x98] sm:$0xff] %v587
        %605 = vst [vmem:[#allocation5 + $0xa0] sm:$0xff] %v588
        %606 = vst [vmem:[#allocation5 + $0xa8] sm:$0xff] %v589
        %607 = vst [vmem:[#allocation5 + $0xb0] sm:$0xff] %v590
        %608 = vst [vmem:[#allocation5 + $0xb8] sm:$0xff] %v591
        %609 = vst [vmem:[#allocation5 + $0xc0] sm:$0xff] %v592
        %610 = vst [vmem:[#allocation5 + $0xc8] sm:$0xff] %v593
        %611 = vst.msk [vmem:[#allocation5 + $0xd0] sm:$0xff] %vm484, %v584
        %v612 = vld [vmem:[%s1] sm:$0xff]
        %v613 = vld [vmem:[%s1 + $0x8] sm:$0xff]
        %v614 = vld [vmem:[#allocation5] sm:$0xff]
        %v615 = vld [vmem:[#allocation5 + $0x8] sm:$0xff]
        %v616 = vld [vmem:[#allocation5 + $0x10] sm:$0xff]
        %v617 = vld [vmem:[#allocation5 + $0x18] sm:$0xff]
        %v618 = vld [vmem:[#allocation5 + $0x20] sm:$0xff]
        %v619 = vld [vmem:[#allocation5 + $0x28] sm:$0xff]
        %v620 = vld [vmem:[#allocation5 + $0x30] sm:$0xff]
        %v621 = vld [vmem:[#allocation5 + $0x38] sm:$0xff]
        %v622 = vld [vmem:[#allocation5 + $0x48] sm:$0xff]
        %v623 = vld [vmem:[#allocation5 + $0x50] sm:$0xff]
        %v624 = vld [vmem:[#allocation5 + $0x58] sm:$0xff]
        %v625 = vld [vmem:[#allocation5 + $0x60] sm:$0xff]
        %v626 = vld [vmem:[#allocation5 + $0x68] sm:$0xff]
        %v627 = vld [vmem:[#allocation5 + $0x70] sm:$0xff]
        %v628 = vld [vmem:[#allocation5 + $0x78] sm:$0xff]
        %v629 = vld [vmem:[#allocation5 + $0x80] sm:$0xff]
        %v630 = vld [vmem:[#allocation5 + $0x90] sm:$0xff]
        %v631 = vld [vmem:[#allocation5 + $0x98] sm:$0xff]
        %v632 = vld [vmem:[#allocation5 + $0xa0] sm:$0xff]
        %v633 = vld [vmem:[#allocation5 + $0xa8] sm:$0xff]
        %v634 = vld [vmem:[#allocation5 + $0xb0] sm:$0xff]
        %v635 = vld [vmem:[#allocation5 + $0xb8] sm:$0xff]
        %v636 = vld [vmem:[#allocation5 + $0xc0] sm:$0xff]
        %v637 = vld [vmem:[#allocation5 + $0xc8] sm:$0xff]
        %s638 = scalar_lea.vmem %s1, 16
        %v639 = vld [vmem:[%s638] sm:$0xff]
        %v640 = vld [vmem:[%s638 + $0x8] sm:$0xff]
        %v641 = vld [vmem:[#allocation5 + $0x40] sm:$0xff]
        %v642 = vld [vmem:[#allocation5 + $0x88] sm:$0xff]
        %v643 = vld [vmem:[#allocation5 + $0xd0] sm:$0xff]
        %671 = vrot.lane.b32.xlu0 %v614, 96
        %v672 = vpop.permute.xlu0 %671
        %673 = vrot.lane.b32.xlu0 %v615, 96
        %v674 = vpop.permute.xlu0 %673
        %675 = vrot.lane.b32.xlu0 %v616, 96
        %v676 = vpop.permute.xlu0 %675
        %677 = vrot.lane.b32.xlu0 %v617, 96
        %v678 = vpop.permute.xlu0 %677
        %679 = vrot.lane.b32.xlu0 %v618, 96
        %v680 = vpop.permute.xlu0 %679
        %681 = vrot.lane.b32.xlu0 %v619, 96
        %v682 = vpop.permute.xlu0 %681
        %683 = vrot.lane.b32.xlu0 %v620, 96
        %v684 = vpop.permute.xlu0 %683
        %685 = vrot.lane.b32.xlu0 %v621, 96
        %v686 = vpop.permute.xlu0 %685
        %687 = vrot.lane.b32.xlu0 %v641, 96
        %v688 = vpop.permute.xlu0 %687
        %689 = vrot.lane.b32.xlu0 %v622, 96
        %v690 = vpop.permute.xlu0 %689
        %691 = vrot.lane.b32.xlu0 %v623, 96
        %v692 = vpop.permute.xlu0 %691
        %693 = vrot.lane.b32.xlu0 %v624, 96
        %v694 = vpop.permute.xlu0 %693
        %695 = vrot.lane.b32.xlu0 %v625, 96
        %v696 = vpop.permute.xlu0 %695
        %697 = vrot.lane.b32.xlu0 %v626, 96
        %v698 = vpop.permute.xlu0 %697
        %699 = vrot.lane.b32.xlu0 %v627, 96
        %v700 = vpop.permute.xlu0 %699
        %701 = vrot.lane.b32.xlu0 %v628, 96
        %v702 = vpop.permute.xlu0 %701
        %703 = vrot.lane.b32.xlu0 %v629, 96
        %v704 = vpop.permute.xlu0 %703
        %705 = vrot.lane.b32.xlu0 %v642, 96
        %v706 = vpop.permute.xlu0 %705
        %707 = vrot.lane.b32.xlu0 %v630, 96
        %v708 = vpop.permute.xlu0 %707
        %709 = vrot.lane.b32.xlu0 %v631, 96
        %v710 = vpop.permute.xlu0 %709
        %711 = vrot.lane.b32.xlu0 %v632, 96
        %v712 = vpop.permute.xlu0 %711
        %713 = vrot.lane.b32.xlu0 %v633, 96
        %v714 = vpop.permute.xlu0 %713
        %715 = vrot.lane.b32.xlu0 %v634, 96
        %v716 = vpop.permute.xlu0 %715
        %717 = vrot.lane.b32.xlu0 %v635, 96
        %v718 = vpop.permute.xlu0 %717
        %719 = vrot.lane.b32.xlu0 %v636, 96
        %v720 = vpop.permute.xlu0 %719
        %721 = vrot.lane.b32.xlu0 %v637, 96
        %v722 = vpop.permute.xlu0 %721
        %723 = vrot.lane.b32.xlu0 %v643, 96
        %v724 = vpop.permute.xlu0 %723
        %vm725 = vcmask 785408
        %v726 = vsel %vm725, %v672, %v674
        %v727 = vsel %vm725, %v674, %v676
        %v728 = vsel %vm725, %v676, %v678
        %v729 = vsel %vm725, %v678, %v680
        %v730 = vsel %vm725, %v680, %v682
        %v731 = vsel %vm725, %v682, %v684
        %v732 = vsel %vm725, %v684, %v686
        %v733 = vsel %vm725, %v686, %v688
        %v734 = vsel %vm725, %v690, %v692
        %v735 = vsel %vm725, %v692, %v694
        %v736 = vsel %vm725, %v694, %v696
        %v737 = vsel %vm725, %v696, %v698
        %v738 = vsel %vm725, %v698, %v700
        %v739 = vsel %vm725, %v700, %v702
        %v740 = vsel %vm725, %v702, %v704
        %v741 = vsel %vm725, %v704, %v706
        %v742 = vsel %vm725, %v708, %v710
        %v743 = vsel %vm725, %v710, %v712
        %v744 = vsel %vm725, %v712, %v714
        %v745 = vsel %vm725, %v714, %v716
        %v746 = vsel %vm725, %v716, %v718
        %v747 = vsel %vm725, %v718, %v720
        %v748 = vsel %vm725, %v720, %v722
        %v749 = vsel %vm725, %v722, %v724
        %vm774 = vcmask 195584
        %v776 = vsel %vm774, %v639, 0
        %v779 = vsel %vm774, %v640, 0
        %781 = vmatprep.subr.mxu0 %v727
        %782 = vmatpush1.msra.mxu0 %v726
        %783 = vmatprep.subr.mxu0 %v735
        %784 = vmatpush1.msra.mxu0 %v734
        %785 = vmatprep.subr.mxu0 %v743
        %786 = vmatpush1.msra.mxu0 %v742
        %787 = vmatprep.subr.mxu0 0.0
        %788 = vmatpush1.msra.mxu0 0.0
        %789 = vmatprep.subr.mxu0 0.0
        %790 = vmatpush1.msra.mxu0 0.0
        %791 = vmatprep.subr.mxu0 0.0
        %792 = vmatpush1.msra.mxu0 0.0
        %793 = vmatprep.subr.mxu0 0.0
        %794 = vmatpush1.msra.mxu0 0.0
        %795 = vmatprep.subr.mxu0 0.0
        %796 = vmatpush1.msra.mxu0 0.0
        %797 = vmatprep.subr.mxu0 0.0
        %798 = vmatpush1.msra.mxu0 0.0
        %799 = vmatprep.subr.mxu0 0.0
        %800 = vmatpush1.msra.mxu0 0.0
        %801 = vmatprep.subr.mxu0 0.0
        %802 = vmatpush1.msra.mxu0 0.0
        %803 = vmatprep.subr.mxu0 0.0
        %804 = vmatpush1.msra.mxu0 0.0
        %805 = vmatprep.subr.mxu0 0.0
        %806 = vmatpush1.msra.mxu0 0.0
        %807 = vmatprep.subr.mxu0 0.0
        %808 = vmatpush1.msra.mxu0 0.0
        %809 = vmatprep.subr.mxu0 0.0
        %810 = vmatpush1.msra.mxu0 0.0
        %811 = vmatprep.subr.mxu0 0.0
        %812 = vmatpush1.msra.mxu0 0.0
        %813 = vmatprep.subr.mxu0 0.0
        %814 = vmatpush1.msra.mxu0 0.0
        %815 = vmatprep.subr.mxu0 0.0
        %816 = vmatpush1.msra.mxu0 0.0
        %817 = vmatprep.subr.mxu0 0.0
        %818 = vmatpush1.msra.mxu0 0.0
        %819 = vmatprep.subr.mxu0 0.0
        %820 = vmatpush1.msra.mxu0 0.0
        %821 = vmatprep.subr.mxu0 0.0
        %822 = vmatpush1.msra.mxu0 0.0
        %823 = vmatprep.subr.mxu0 0.0
        %824 = vmatpush1.msra.mxu0 0.0
        %825 = vmatprep.subr.mxu0 0.0
        %826 = vmatpush1.msra.mxu0 0.0
        %827 = vmatprep.subr.mxu0 0.0
        %828 = vmatpush1.msra.mxu0 0.0
        %829 = vmatprep.subr.mxu0 0.0
        %830 = vmatpush1.msra.mxu0 0.0
        %831 = vmatprep.subr.mxu0 0.0
        %832 = vmatpush1.msra.mxu0 0.0
        %833 = vmatprep.subr.mxu0 0.0
        %834 = vmatpush1.msra.mxu0 0.0
        %835 = vmatprep.subr.mxu0 0.0
        %836 = vmatpush1.msra.mxu0 0.0
        %837 = vmatprep.subr.mxu0 0.0
        %838 = vmatpush1.msra.mxu0 0.0
        %839 = vmatprep.subr.mxu0 0.0
        %840 = vmatpush1.msra.mxu0 0.0
        %841 = vmatprep.subr.mxu0 0.0
        %842 = vmatpush1.msra.mxu0 0.0
        %843 = vmatprep.subr.mxu0 0.0
        %844 = vmatpush1.msra.mxu0 0.0
        %845 = vmatprep.mubr.f32.mxu0 0.0
        %846 = vmatmul.mubr.f32.gmra.mrb[0].mxu0 %v776
        %v847 = vpop.f32.mrb[0].mxu0
        %v848 = vadd.f32 0.0, %v847
        %v849 = vpop.f32.mrb[0].mxu0
        %v850 = vadd.f32 0.0, %v849
        %851 = vmatprep.mubr.f32.mxu0 0.0
        %852 = vmatmul.mubr.f32.gmra.mrb[0].mxu0 %v779
        %v853 = vpop.f32.mrb[0].mxu0
        %v854 = vadd.f32 0.0, %v853
        %v855 = vpop.f32.mrb[0].mxu0
        %v856 = vadd.f32 0.0, %v855
        %857 = vdwg.mxu0
        %858 = vmatprep.subr.mxu0 %v729
        %859 = vmatpush1.msra.mxu0 %v728
        %860 = vmatprep.subr.mxu0 %v737
        %861 = vmatpush1.msra.mxu0 %v736
        %862 = vmatprep.subr.mxu0 %v745
        %863 = vmatpush1.msra.mxu0 %v744
        %864 = vmatprep.subr.mxu0 0.0
        %865 = vmatpush1.msra.mxu0 0.0
        %866 = vmatprep.subr.mxu0 0.0
        %867 = vmatpush1.msra.mxu0 0.0
        %868 = vmatprep.subr.mxu0 0.0
        %869 = vmatpush1.msra.mxu0 0.0
        %870 = vmatprep.subr.mxu0 0.0
        %871 = vmatpush1.msra.mxu0 0.0
        %872 = vmatprep.subr.mxu0 0.0
        %873 = vmatpush1.msra.mxu0 0.0
        %874 = vmatprep.subr.mxu0 0.0
        %875 = vmatpush1.msra.mxu0 0.0
        %876 = vmatprep.subr.mxu0 0.0
        %877 = vmatpush1.msra.mxu0 0.0
        %878 = vmatprep.subr.mxu0 0.0
        %879 = vmatpush1.msra.mxu0 0.0
        %880 = vmatprep.subr.mxu0 0.0
        %881 = vmatpush1.msra.mxu0 0.0
        %882 = vmatprep.subr.mxu0 0.0
        %883 = vmatpush1.msra.mxu0 0.0
        %884 = vmatprep.subr.mxu0 0.0
        %885 = vmatpush1.msra.mxu0 0.0
        %886 = vmatprep.subr.mxu0 0.0
        %887 = vmatpush1.msra.mxu0 0.0
        %888 = vmatprep.subr.mxu0 0.0
        %889 = vmatpush1.msra.mxu0 0.0
        %890 = vmatprep.subr.mxu0 0.0
        %891 = vmatpush1.msra.mxu0 0.0
        %892 = vmatprep.subr.mxu0 0.0
        %893 = vmatpush1.msra.mxu0 0.0
        %894 = vmatprep.subr.mxu0 0.0
        %895 = vmatpush1.msra.mxu0 0.0
        %896 = vmatprep.subr.mxu0 0.0
        %897 = vmatpush1.msra.mxu0 0.0
        %898 = vmatprep.subr.mxu0 0.0
        %899 = vmatpush1.msra.mxu0 0.0
        %900 = vmatprep.subr.mxu0 0.0
        %901 = vmatpush1.msra.mxu0 0.0
        %902 = vmatprep.subr.mxu0 0.0
        %903 = vmatpush1.msra.mxu0 0.0
        %904 = vmatprep.subr.mxu0 0.0
        %905 = vmatpush1.msra.mxu0 0.0
        %906 = vmatprep.subr.mxu0 0.0
        %907 = vmatpush1.msra.mxu0 0.0
        %908 = vmatprep.subr.mxu0 0.0
        %909 = vmatpush1.msra.mxu0 0.0
        %910 = vmatprep.subr.mxu0 0.0
        %911 = vmatpush1.msra.mxu0 0.0
        %912 = vmatprep.subr.mxu0 0.0
        %913 = vmatpush1.msra.mxu0 0.0
        %914 = vmatprep.subr.mxu0 0.0
        %915 = vmatpush1.msra.mxu0 0.0
        %916 = vmatprep.subr.mxu0 0.0
        %917 = vmatpush1.msra.mxu0 0.0
        %918 = vmatprep.subr.mxu0 0.0
        %919 = vmatpush1.msra.mxu0 0.0
        %920 = vmatprep.subr.mxu0 0.0
        %921 = vmatpush1.msra.mxu0 0.0
        %922 = vmatprep.mubr.f32.mxu0 0.0
        %923 = vmatmul.mubr.f32.gmra.mrb[0].mxu0 %v776
        %v924 = vpop.f32.mrb[0].mxu0
        %v925 = vadd.f32 0.0, %v924
        %v926 = vpop.f32.mrb[0].mxu0
        %v927 = vadd.f32 0.0, %v926
        %928 = vmatprep.mubr.f32.mxu0 0.0
        %929 = vmatmul.mubr.f32.gmra.mrb[0].mxu0 %v779
        %v930 = vpop.f32.mrb[0].mxu0
        %v931 = vadd.f32 0.0, %v930
        %v932 = vpop.f32.mrb[0].mxu0
        %v933 = vadd.f32 0.0, %v932
        %934 = vdwg.mxu0
        %935 = vmatprep.subr.mxu0 %v731
        %936 = vmatpush1.msra.mxu0 %v730
        %937 = vmatprep.subr.mxu0 %v739
        %938 = vmatpush1.msra.mxu0 %v738
        %939 = vmatprep.subr.mxu0 %v747
        %940 = vmatpush1.msra.mxu0 %v746
        %941 = vmatprep.subr.mxu0 0.0
        %942 = vmatpush1.msra.mxu0 0.0
        %943 = vmatprep.subr.mxu0 0.0
        %944 = vmatpush1.msra.mxu0 0.0
        %945 = vmatprep.subr.mxu0 0.0
        %946 = vmatpush1.msra.mxu0 0.0
        %947 = vmatprep.subr.mxu0 0.0
        %948 = vmatpush1.msra.mxu0 0.0
        %949 = vmatprep.subr.mxu0 0.0
        %950 = vmatpush1.msra.mxu0 0.0
        %951 = vmatprep.subr.mxu0 0.0
        %952 = vmatpush1.msra.mxu0 0.0
        %953 = vmatprep.subr.mxu0 0.0
        %954 = vmatpush1.msra.mxu0 0.0
        %955 = vmatprep.subr.mxu0 0.0
        %956 = vmatpush1.msra.mxu0 0.0
        %957 = vmatprep.subr.mxu0 0.0
        %958 = vmatpush1.msra.mxu0 0.0
        %959 = vmatprep.subr.mxu0 0.0
        %960 = vmatpush1.msra.mxu0 0.0
        %961 = vmatprep.subr.mxu0 0.0
        %962 = vmatpush1.msra.mxu0 0.0
        %963 = vmatprep.subr.mxu0 0.0
        %964 = vmatpush1.msra.mxu0 0.0
        %965 = vmatprep.subr.mxu0 0.0
        %966 = vmatpush1.msra.mxu0 0.0
        %967 = vmatprep.subr.mxu0 0.0
        %968 = vmatpush1.msra.mxu0 0.0
        %969 = vmatprep.subr.mxu0 0.0
        %970 = vmatpush1.msra.mxu0 0.0
        %971 = vmatprep.subr.mxu0 0.0
        %972 = vmatpush1.msra.mxu0 0.0
        %973 = vmatprep.subr.mxu0 0.0
        %974 = vmatpush1.msra.mxu0 0.0
        %975 = vmatprep.subr.mxu0 0.0
        %976 = vmatpush1.msra.mxu0 0.0
        %977 = vmatprep.subr.mxu0 0.0
        %978 = vmatpush1.msra.mxu0 0.0
        %979 = vmatprep.subr.mxu0 0.0
        %980 = vmatpush1.msra.mxu0 0.0
        %981 = vmatprep.subr.mxu0 0.0
        %982 = vmatpush1.msra.mxu0 0.0
        %983 = vmatprep.subr.mxu0 0.0
        %984 = vmatpush1.msra.mxu0 0.0
        %985 = vmatprep.subr.mxu0 0.0
        %986 = vmatpush1.msra.mxu0 0.0
        %987 = vmatprep.subr.mxu0 0.0
        %988 = vmatpush1.msra.mxu0 0.0
        %989 = vmatprep.subr.mxu0 0.0
        %990 = vmatpush1.msra.mxu0 0.0
        %991 = vmatprep.subr.mxu0 0.0
        %992 = vmatpush1.msra.mxu0 0.0
        %993 = vmatprep.subr.mxu0 0.0
        %994 = vmatpush1.msra.mxu0 0.0
        %995 = vmatprep.subr.mxu0 0.0
        %996 = vmatpush1.msra.mxu0 0.0
        %997 = vmatprep.subr.mxu0 0.0
        %998 = vmatpush1.msra.mxu0 0.0
        %999 = vmatprep.mubr.f32.mxu0 0.0
        %1000 = vmatmul.mubr.f32.gmra.mrb[0].mxu0 %v776
        %v1001 = vpop.f32.mrb[0].mxu0
        %v1002 = vadd.f32 0.0, %v1001
        %v1003 = vpop.f32.mrb[0].mxu0
        %v1004 = vadd.f32 0.0, %v1003
        %1005 = vmatprep.mubr.f32.mxu0 0.0
        %1006 = vmatmul.mubr.f32.gmra.mrb[0].mxu0 %v779
        %v1007 = vpop.f32.mrb[0].mxu0
        %v1008 = vadd.f32 0.0, %v1007
        %v1009 = vpop.f32.mrb[0].mxu0
        %v1010 = vadd.f32 0.0, %v1009
        %1011 = vdwg.mxu0
        %1012 = vmatprep.subr.mxu0 %v733
        %1013 = vmatpush1.msra.mxu0 %v732
        %1014 = vmatprep.subr.mxu0 %v741
        %1015 = vmatpush1.msra.mxu0 %v740
        %1016 = vmatprep.subr.mxu0 %v749
        %1017 = vmatpush1.msra.mxu0 %v748
        %1018 = vmatprep.subr.mxu0 0.0
        %1019 = vmatpush1.msra.mxu0 0.0
        %1020 = vmatprep.subr.mxu0 0.0
        %1021 = vmatpush1.msra.mxu0 0.0
        %1022 = vmatprep.subr.mxu0 0.0
        %1023 = vmatpush1.msra.mxu0 0.0
        %1024 = vmatprep.subr.mxu0 0.0
        %1025 = vmatpush1.msra.mxu0 0.0
        %1026 = vmatprep.subr.mxu0 0.0
        %1027 = vmatpush1.msra.mxu0 0.0
        %1028 = vmatprep.subr.mxu0 0.0
        %1029 = vmatpush1.msra.mxu0 0.0
        %1030 = vmatprep.subr.mxu0 0.0
        %1031 = vmatpush1.msra.mxu0 0.0
        %1032 = vmatprep.subr.mxu0 0.0
        %1033 = vmatpush1.msra.mxu0 0.0
        %1034 = vmatprep.subr.mxu0 0.0
        %1035 = vmatpush1.msra.mxu0 0.0
        %1036 = vmatprep.subr.mxu0 0.0
        %1037 = vmatpush1.msra.mxu0 0.0
        %1038 = vmatprep.subr.mxu0 0.0
        %1039 = vmatpush1.msra.mxu0 0.0
        %1040 = vmatprep.subr.mxu0 0.0
        %1041 = vmatpush1.msra.mxu0 0.0
        %1042 = vmatprep.subr.mxu0 0.0
        %1043 = vmatpush1.msra.mxu0 0.0
        %1044 = vmatprep.subr.mxu0 0.0
        %1045 = vmatpush1.msra.mxu0 0.0
        %1046 = vmatprep.subr.mxu0 0.0
        %1047 = vmatpush1.msra.mxu0 0.0
        %1048 = vmatprep.subr.mxu0 0.0
        %1049 = vmatpush1.msra.mxu0 0.0
        %1050 = vmatprep.subr.mxu0 0.0
        %1051 = vmatpush1.msra.mxu0 0.0
        %1052 = vmatprep.subr.mxu0 0.0
        %1053 = vmatpush1.msra.mxu0 0.0
        %1054 = vmatprep.subr.mxu0 0.0
        %1055 = vmatpush1.msra.mxu0 0.0
        %1056 = vmatprep.subr.mxu0 0.0
        %1057 = vmatpush1.msra.mxu0 0.0
        %1058 = vmatprep.subr.mxu0 0.0
        %1059 = vmatpush1.msra.mxu0 0.0
        %1060 = vmatprep.subr.mxu0 0.0
        %1061 = vmatpush1.msra.mxu0 0.0
        %1062 = vmatprep.subr.mxu0 0.0
        %1063 = vmatpush1.msra.mxu0 0.0
        %1064 = vmatprep.subr.mxu0 0.0
        %1065 = vmatpush1.msra.mxu0 0.0
        %1066 = vmatprep.subr.mxu0 0.0
        %1067 = vmatpush1.msra.mxu0 0.0
        %1068 = vmatprep.subr.mxu0 0.0
        %1069 = vmatpush1.msra.mxu0 0.0
        %1070 = vmatprep.subr.mxu0 0.0
        %1071 = vmatpush1.msra.mxu0 0.0
        %1072 = vmatprep.subr.mxu0 0.0
        %1073 = vmatpush1.msra.mxu0 0.0
        %1074 = vmatprep.subr.mxu0 0.0
        %1075 = vmatpush1.msra.mxu0 0.0
        %1076 = vmatprep.mubr.f32.mxu0 0.0
        %1077 = vmatmul.mubr.f32.gmra.mrb[0].mxu0 %v776
        %v1078 = vpop.f32.mrb[0].mxu0
        %v1079 = vadd.f32 0.0, %v1078
        %v1080 = vpop.f32.mrb[0].mxu0
        %v1081 = vadd.f32 0.0, %v1080
        %1082 = vmatprep.mubr.f32.mxu0 0.0
        %1083 = vmatmul.mubr.f32.gmra.mrb[0].mxu0 %v779
        %v1084 = vpop.f32.mrb[0].mxu0
        %v1085 = vadd.f32 0.0, %v1084
        %v1086 = vpop.f32.mrb[0].mxu0
        %v1087 = vadd.f32 0.0, %v1086
        %1088 = vdwg.mxu0
        %v1090 = vsel %vm774, %v612, 0
        %v1093 = vsel %vm774, %v613, 0
        %1095 = vmatprep.subr.mxu0 %v615
        %1096 = vmatpush1.msra.mxu0 %v614
        %1097 = vmatprep.subr.mxu0 %v623
        %1098 = vmatpush1.msra.mxu0 %v622
        %1099 = vmatprep.subr.mxu0 %v631
        %1100 = vmatpush1.msra.mxu0 %v630
        %1101 = vmatprep.subr.mxu0 0.0
        %1102 = vmatpush1.msra.mxu0 0.0
        %1103 = vmatprep.subr.mxu0 0.0
        %1104 = vmatpush1.msra.mxu0 0.0
        %1105 = vmatprep.subr.mxu0 0.0
        %1106 = vmatpush1.msra.mxu0 0.0
        %1107 = vmatprep.subr.mxu0 0.0
        %1108 = vmatpush1.msra.mxu0 0.0
        %1109 = vmatprep.subr.mxu0 0.0
        %1110 = vmatpush1.msra.mxu0 0.0
        %1111 = vmatprep.subr.mxu0 0.0
        %1112 = vmatpush1.msra.mxu0 0.0
        %1113 = vmatprep.subr.mxu0 0.0
        %1114 = vmatpush1.msra.mxu0 0.0
        %1115 = vmatprep.subr.mxu0 0.0
        %1116 = vmatpush1.msra.mxu0 0.0
        %1117 = vmatprep.subr.mxu0 0.0
        %1118 = vmatpush1.msra.mxu0 0.0
        %1119 = vmatprep.subr.mxu0 0.0
        %1120 = vmatpush1.msra.mxu0 0.0
        %1121 = vmatprep.subr.mxu0 0.0
        %1122 = vmatpush1.msra.mxu0 0.0
        %1123 = vmatprep.subr.mxu0 0.0
        %1124 = vmatpush1.msra.mxu0 0.0
        %1125 = vmatprep.subr.mxu0 0.0
        %1126 = vmatpush1.msra.mxu0 0.0
        %1127 = vmatprep.subr.mxu0 0.0
        %1128 = vmatpush1.msra.mxu0 0.0
        %1129 = vmatprep.subr.mxu0 0.0
        %1130 = vmatpush1.msra.mxu0 0.0
        %1131 = vmatprep.subr.mxu0 0.0
        %1132 = vmatpush1.msra.mxu0 0.0
        %1133 = vmatprep.subr.mxu0 0.0
        %1134 = vmatpush1.msra.mxu0 0.0
        %1135 = vmatprep.subr.mxu0 0.0
        %1136 = vmatpush1.msra.mxu0 0.0
        %1137 = vmatprep.subr.mxu0 0.0
        %1138 = vmatpush1.msra.mxu0 0.0
        %1139 = vmatprep.subr.mxu0 0.0
        %1140 = vmatpush1.msra.mxu0 0.0
        %1141 = vmatprep.subr.mxu0 0.0
        %1142 = vmatpush1.msra.mxu0 0.0
        %1143 = vmatprep.subr.mxu0 0.0
        %1144 = vmatpush1.msra.mxu0 0.0
        %1145 = vmatprep.subr.mxu0 0.0
        %1146 = vmatpush1.msra.mxu0 0.0
        %1147 = vmatprep.subr.mxu0 0.0
        %1148 = vmatpush1.msra.mxu0 0.0
        %1149 = vmatprep.subr.mxu0 0.0
        %1150 = vmatpush1.msra.mxu0 0.0
        %1151 = vmatprep.subr.mxu0 0.0
        %1152 = vmatpush1.msra.mxu0 0.0
        %1153 = vmatprep.subr.mxu0 0.0
        %1154 = vmatpush1.msra.mxu0 0.0
        %1155 = vmatprep.subr.mxu0 0.0
        %1156 = vmatpush1.msra.mxu0 0.0
        %1157 = vmatprep.subr.mxu0 0.0
        %1158 = vmatpush1.msra.mxu0 0.0
        %1159 = vmatprep.mubr.f32.mxu0 0.0
        %1160 = vmatmul.mubr.f32.gmra.mrb[0].mxu0 %v1090
        %v1161 = vpop.f32.mrb[0].mxu0
        %v1162 = vadd.f32 %v848, %v1161
        %v1163 = vpop.f32.mrb[0].mxu0
        %v1164 = vadd.f32 %v850, %v1163
        %1165 = vmatprep.mubr.f32.mxu0 0.0
        %1166 = vmatmul.mubr.f32.gmra.mrb[0].mxu0 %v1093
        %v1167 = vpop.f32.mrb[0].mxu0
        %v1168 = vadd.f32 %v854, %v1167
        %v1169 = vpop.f32.mrb[0].mxu0
        %v1170 = vadd.f32 %v856, %v1169
        %1171 = vdwg.mxu0
        %1172 = vmatprep.subr.mxu0 %v617
        %1173 = vmatpush1.msra.mxu0 %v616
        %1174 = vmatprep.subr.mxu0 %v625
        %1175 = vmatpush1.msra.mxu0 %v624
        %1176 = vmatprep.subr.mxu0 %v633
        %1177 = vmatpush1.msra.mxu0 %v632
        %1178 = vmatprep.subr.mxu0 0.0
        %1179 = vmatpush1.msra.mxu0 0.0
        %1180 = vmatprep.subr.mxu0 0.0
        %1181 = vmatpush1.msra.mxu0 0.0
        %1182 = vmatprep.subr.mxu0 0.0
        %1183 = vmatpush1.msra.mxu0 0.0
        %1184 = vmatprep.subr.mxu0 0.0
        %1185 = vmatpush1.msra.mxu0 0.0
        %1186 = vmatprep.subr.mxu0 0.0
        %1187 = vmatpush1.msra.mxu0 0.0
        %1188 = vmatprep.subr.mxu0 0.0
        %1189 = vmatpush1.msra.mxu0 0.0
        %1190 = vmatprep.subr.mxu0 0.0
        %1191 = vmatpush1.msra.mxu0 0.0
        %1192 = vmatprep.subr.mxu0 0.0
        %1193 = vmatpush1.msra.mxu0 0.0
        %1194 = vmatprep.subr.mxu0 0.0
        %1195 = vmatpush1.msra.mxu0 0.0
        %1196 = vmatprep.subr.mxu0 0.0
        %1197 = vmatpush1.msra.mxu0 0.0
        %1198 = vmatprep.subr.mxu0 0.0
        %1199 = vmatpush1.msra.mxu0 0.0
        %1200 = vmatprep.subr.mxu0 0.0
        %1201 = vmatpush1.msra.mxu0 0.0
        %1202 = vmatprep.subr.mxu0 0.0
        %1203 = vmatpush1.msra.mxu0 0.0
        %1204 = vmatprep.subr.mxu0 0.0
        %1205 = vmatpush1.msra.mxu0 0.0
        %1206 = vmatprep.subr.mxu0 0.0
        %1207 = vmatpush1.msra.mxu0 0.0
        %1208 = vmatprep.subr.mxu0 0.0
        %1209 = vmatpush1.msra.mxu0 0.0
        %1210 = vmatprep.subr.mxu0 0.0
        %1211 = vmatpush1.msra.mxu0 0.0
        %1212 = vmatprep.subr.mxu0 0.0
        %1213 = vmatpush1.msra.mxu0 0.0
        %1214 = vmatprep.subr.mxu0 0.0
        %1215 = vmatpush1.msra.mxu0 0.0
        %1216 = vmatprep.subr.mxu0 0.0
        %1217 = vmatpush1.msra.mxu0 0.0
        %1218 = vmatprep.subr.mxu0 0.0
        %1219 = vmatpush1.msra.mxu0 0.0
        %1220 = vmatprep.subr.mxu0 0.0
        %1221 = vmatpush1.msra.mxu0 0.0
        %1222 = vmatprep.subr.mxu0 0.0
        %1223 = vmatpush1.msra.mxu0 0.0
        %1224 = vmatprep.subr.mxu0 0.0
        %1225 = vmatpush1.msra.mxu0 0.0
        %1226 = vmatprep.subr.mxu0 0.0
        %1227 = vmatpush1.msra.mxu0 0.0
        %1228 = vmatprep.subr.mxu0 0.0
        %1229 = vmatpush1.msra.mxu0 0.0
        %1230 = vmatprep.subr.mxu0 0.0
        %1231 = vmatpush1.msra.mxu0 0.0
        %1232 = vmatprep.subr.mxu0 0.0
        %1233 = vmatpush1.msra.mxu0 0.0
        %1234 = vmatprep.subr.mxu0 0.0
        %1235 = vmatpush1.msra.mxu0 0.0
        %1236 = vmatprep.mubr.f32.mxu0 0.0
        %1237 = vmatmul.mubr.f32.gmra.mrb[0].mxu0 %v1090
        %v1238 = vpop.f32.mrb[0].mxu0
        %v1239 = vadd.f32 %v925, %v1238
        %v1240 = vpop.f32.mrb[0].mxu0
        %v1241 = vadd.f32 %v927, %v1240
        %1242 = vmatprep.mubr.f32.mxu0 0.0
        %1243 = vmatmul.mubr.f32.gmra.mrb[0].mxu0 %v1093
        %v1244 = vpop.f32.mrb[0].mxu0
        %v1245 = vadd.f32 %v931, %v1244
        %v1246 = vpop.f32.mrb[0].mxu0
        %v1247 = vadd.f32 %v933, %v1246
        %1248 = vdwg.mxu0
        %1249 = vmatprep.subr.mxu0 %v619
        %1250 = vmatpush1.msra.mxu0 %v618
        %1251 = vmatprep.subr.mxu0 %v627
        %1252 = vmatpush1.msra.mxu0 %v626
        %1253 = vmatprep.subr.mxu0 %v635
        %1254 = vmatpush1.msra.mxu0 %v634
        %1255 = vmatprep.subr.mxu0 0.0
        %1256 = vmatpush1.msra.mxu0 0.0
        %1257 = vmatprep.subr.mxu0 0.0
        %1258 = vmatpush1.msra.mxu0 0.0
        %1259 = vmatprep.subr.mxu0 0.0
        %1260 = vmatpush1.msra.mxu0 0.0
        %1261 = vmatprep.subr.mxu0 0.0
        %1262 = vmatpush1.msra.mxu0 0.0
        %1263 = vmatprep.subr.mxu0 0.0
        %1264 = vmatpush1.msra.mxu0 0.0
        %1265 = vmatprep.subr.mxu0 0.0
        %1266 = vmatpush1.msra.mxu0 0.0
        %1267 = vmatprep.subr.mxu0 0.0
        %1268 = vmatpush1.msra.mxu0 0.0
        %1269 = vmatprep.subr.mxu0 0.0
        %1270 = vmatpush1.msra.mxu0 0.0
        %1271 = vmatprep.subr.mxu0 0.0
        %1272 = vmatpush1.msra.mxu0 0.0
        %1273 = vmatprep.subr.mxu0 0.0
        %1274 = vmatpush1.msra.mxu0 0.0
        %1275 = vmatprep.subr.mxu0 0.0
        %1276 = vmatpush1.msra.mxu0 0.0
        %1277 = vmatprep.subr.mxu0 0.0
        %1278 = vmatpush1.msra.mxu0 0.0
        %1279 = vmatprep.subr.mxu0 0.0
        %1280 = vmatpush1.msra.mxu0 0.0
        %1281 = vmatprep.subr.mxu0 0.0
        %1282 = vmatpush1.msra.mxu0 0.0
        %1283 = vmatprep.subr.mxu0 0.0
        %1284 = vmatpush1.msra.mxu0 0.0
        %1285 = vmatprep.subr.mxu0 0.0
        %1286 = vmatpush1.msra.mxu0 0.0
        %1287 = vmatprep.subr.mxu0 0.0
        %1288 = vmatpush1.msra.mxu0 0.0
        %1289 = vmatprep.subr.mxu0 0.0
        %1290 = vmatpush1.msra.mxu0 0.0
        %1291 = vmatprep.subr.mxu0 0.0
        %1292 = vmatpush1.msra.mxu0 0.0
        %1293 = vmatprep.subr.mxu0 0.0
        %1294 = vmatpush1.msra.mxu0 0.0
        %1295 = vmatprep.subr.mxu0 0.0
        %1296 = vmatpush1.msra.mxu0 0.0
        %1297 = vmatprep.subr.mxu0 0.0
        %1298 = vmatpush1.msra.mxu0 0.0
        %1299 = vmatprep.subr.mxu0 0.0
        %1300 = vmatpush1.msra.mxu0 0.0
        %1301 = vmatprep.subr.mxu0 0.0
        %1302 = vmatpush1.msra.mxu0 0.0
        %1303 = vmatprep.subr.mxu0 0.0
        %1304 = vmatpush1.msra.mxu0 0.0
        %1305 = vmatprep.subr.mxu0 0.0
        %1306 = vmatpush1.msra.mxu0 0.0
        %1307 = vmatprep.subr.mxu0 0.0
        %1308 = vmatpush1.msra.mxu0 0.0
        %1309 = vmatprep.subr.mxu0 0.0
        %1310 = vmatpush1.msra.mxu0 0.0
        %1311 = vmatprep.subr.mxu0 0.0
        %1312 = vmatpush1.msra.mxu0 0.0
        %1313 = vmatprep.mubr.f32.mxu0 0.0
        %1314 = vmatmul.mubr.f32.gmra.mrb[0].mxu0 %v1090
        %v1315 = vpop.f32.mrb[0].mxu0
        %v1316 = vadd.f32 %v1002, %v1315
        %v1317 = vpop.f32.mrb[0].mxu0
        %v1318 = vadd.f32 %v1004, %v1317
        %1319 = vmatprep.mubr.f32.mxu0 0.0
        %1320 = vmatmul.mubr.f32.gmra.mrb[0].mxu0 %v1093
        %v1321 = vpop.f32.mrb[0].mxu0
        %v1322 = vadd.f32 %v1008, %v1321
        %v1323 = vpop.f32.mrb[0].mxu0
        %v1324 = vadd.f32 %v1010, %v1323
        %1325 = vdwg.mxu0
        %1326 = vmatprep.subr.mxu0 %v621
        %1327 = vmatpush1.msra.mxu0 %v620
        %1328 = vmatprep.subr.mxu0 %v629
        %1329 = vmatpush1.msra.mxu0 %v628
        %1330 = vmatprep.subr.mxu0 %v637
        %1331 = vmatpush1.msra.mxu0 %v636
        %1332 = vmatprep.subr.mxu0 0.0
        %1333 = vmatpush1.msra.mxu0 0.0
        %1334 = vmatprep.subr.mxu0 0.0
        %1335 = vmatpush1.msra.mxu0 0.0
        %1336 = vmatprep.subr.mxu0 0.0
        %1337 = vmatpush1.msra.mxu0 0.0
        %1338 = vmatprep.subr.mxu0 0.0
        %1339 = vmatpush1.msra.mxu0 0.0
        %1340 = vmatprep.subr.mxu0 0.0
        %1341 = vmatpush1.msra.mxu0 0.0
        %1342 = vmatprep.subr.mxu0 0.0
        %1343 = vmatpush1.msra.mxu0 0.0
        %1344 = vmatprep.subr.mxu0 0.0
        %1345 = vmatpush1.msra.mxu0 0.0
        %1346 = vmatprep.subr.mxu0 0.0
        %1347 = vmatpush1.msra.mxu0 0.0
        %1348 = vmatprep.subr.mxu0 0.0
        %1349 = vmatpush1.msra.mxu0 0.0
        %1350 = vmatprep.subr.mxu0 0.0
        %1351 = vmatpush1.msra.mxu0 0.0
        %1352 = vmatprep.subr.mxu0 0.0
        %1353 = vmatpush1.msra.mxu0 0.0
        %1354 = vmatprep.subr.mxu0 0.0
        %1355 = vmatpush1.msra.mxu0 0.0
        %1356 = vmatprep.subr.mxu0 0.0
        %1357 = vmatpush1.msra.mxu0 0.0
        %1358 = vmatprep.subr.mxu0 0.0
        %1359 = vmatpush1.msra.mxu0 0.0
        %1360 = vmatprep.subr.mxu0 0.0
        %1361 = vmatpush1.msra.mxu0 0.0
        %1362 = vmatprep.subr.mxu0 0.0
        %1363 = vmatpush1.msra.mxu0 0.0
        %1364 = vmatprep.subr.mxu0 0.0
        %1365 = vmatpush1.msra.mxu0 0.0
        %1366 = vmatprep.subr.mxu0 0.0
        %1367 = vmatpush1.msra.mxu0 0.0
        %1368 = vmatprep.subr.mxu0 0.0
        %1369 = vmatpush1.msra.mxu0 0.0
        %1370 = vmatprep.subr.mxu0 0.0
        %1371 = vmatpush1.msra.mxu0 0.0
        %1372 = vmatprep.subr.mxu0 0.0
        %1373 = vmatpush1.msra.mxu0 0.0
        %1374 = vmatprep.subr.mxu0 0.0
        %1375 = vmatpush1.msra.mxu0 0.0
        %1376 = vmatprep.subr.mxu0 0.0
        %1377 = vmatpush1.msra.mxu0 0.0
        %1378 = vmatprep.subr.mxu0 0.0
        %1379 = vmatpush1.msra.mxu0 0.0
        %1380 = vmatprep.subr.mxu0 0.0
        %1381 = vmatpush1.msra.mxu0 0.0
        %1382 = vmatprep.subr.mxu0 0.0
        %1383 = vmatpush1.msra.mxu0 0.0
        %1384 = vmatprep.subr.mxu0 0.0
        %1385 = vmatpush1.msra.mxu0 0.0
        %1386 = vmatprep.subr.mxu0 0.0
        %1387 = vmatpush1.msra.mxu0 0.0
        %1388 = vmatprep.subr.mxu0 0.0
        %1389 = vmatpush1.msra.mxu0 0.0
        %1390 = vmatprep.mubr.f32.mxu0 0.0
        %1391 = vmatmul.mubr.f32.gmra.mrb[0].mxu0 %v1090
        %v1392 = vpop.f32.mrb[0].mxu0
        %v1393 = vadd.f32 %v1079, %v1392
        %v1394 = vpop.f32.mrb[0].mxu0
        %v1395 = vadd.f32 %v1081, %v1394
        %1396 = vmatprep.mubr.f32.mxu0 0.0
        %1397 = vmatmul.mubr.f32.gmra.mrb[0].mxu0 %v1093
        %v1398 = vpop.f32.mrb[0].mxu0
        %v1399 = vadd.f32 %v1085, %v1398
        %v1400 = vpop.f32.mrb[0].mxu0
        %v1401 = vadd.f32 %v1087, %v1400
        %1402 = vdwg.mxu0
        %s1403 = scalar_lea.vmem %s1, 32
        %v1404 = vld [vmem:[%s1403] sm:$0xff]
        %v1405 = vld [vmem:[%s1403 + $0x8] sm:$0xff]
        %1406 = vrot.lane.b32.xlu0 %v614, 64
        %v1407 = vpop.permute.xlu0 %1406
        %1408 = vrot.lane.b32.xlu0 %v615, 64
        %v1409 = vpop.permute.xlu0 %1408
        %1410 = vrot.lane.b32.xlu0 %v616, 64
        %v1411 = vpop.permute.xlu0 %1410
        %1412 = vrot.lane.b32.xlu0 %v617, 64
        %v1413 = vpop.permute.xlu0 %1412
        %1414 = vrot.lane.b32.xlu0 %v618, 64
        %v1415 = vpop.permute.xlu0 %1414
        %1416 = vrot.lane.b32.xlu0 %v619, 64
        %v1417 = vpop.permute.xlu0 %1416
        %1418 = vrot.lane.b32.xlu0 %v620, 64
        %v1419 = vpop.permute.xlu0 %1418
        %1420 = vrot.lane.b32.xlu0 %v621, 64
        %v1421 = vpop.permute.xlu0 %1420
        %1422 = vrot.lane.b32.xlu0 %v641, 64
        %v1423 = vpop.permute.xlu0 %1422
        %1424 = vrot.lane.b32.xlu0 %v622, 64
        %v1425 = vpop.permute.xlu0 %1424
        %1426 = vrot.lane.b32.xlu0 %v623, 64
        %v1427 = vpop.permute.xlu0 %1426
        %1428 = vrot.lane.b32.xlu0 %v624, 64
        %v1429 = vpop.permute.xlu0 %1428
        %1430 = vrot.lane.b32.xlu0 %v625, 64
        %v1431 = vpop.permute.xlu0 %1430
        %1432 = vrot.lane.b32.xlu0 %v626, 64
        %v1433 = vpop.permute.xlu0 %1432
        %1434 = vrot.lane.b32.xlu0 %v627, 64
        %v1435 = vpop.permute.xlu0 %1434
        %1436 = vrot.lane.b32.xlu0 %v628, 64
        %v1437 = vpop.permute.xlu0 %1436
        %1438 = vrot.lane.b32.xlu0 %v629, 64
        %v1439 = vpop.permute.xlu0 %1438
        %1440 = vrot.lane.b32.xlu0 %v642, 64
        %v1441 = vpop.permute.xlu0 %1440
        %1442 = vrot.lane.b32.xlu0 %v630, 64
        %v1443 = vpop.permute.xlu0 %1442
        %1444 = vrot.lane.b32.xlu0 %v631, 64
        %v1445 = vpop.permute.xlu0 %1444
        %1446 = vrot.lane.b32.xlu0 %v632, 64
        %v1447 = vpop.permute.xlu0 %1446
        %1448 = vrot.lane.b32.xlu0 %v633, 64
        %v1449 = vpop.permute.xlu0 %1448
        %1450 = vrot.lane.b32.xlu0 %v634, 64
        %v1451 = vpop.permute.xlu0 %1450
        %1452 = vrot.lane.b32.xlu0 %v635, 64
        %v1453 = vpop.permute.xlu0 %1452
        %1454 = vrot.lane.b32.xlu0 %v636, 64
        %v1455 = vpop.permute.xlu0 %1454
        %1456 = vrot.lane.b32.xlu0 %v637, 64
        %v1457 = vpop.permute.xlu0 %1456
        %1458 = vrot.lane.b32.xlu0 %v643, 64
        %v1459 = vpop.permute.xlu0 %1458
        %v1460 = vsel %vm484, %v1407, %v1409
        %v1461 = vsel %vm484, %v1409, %v1411
        %v1462 = vsel %vm484, %v1411, %v1413
        %v1463 = vsel %vm484, %v1413, %v1415
        %v1464 = vsel %vm484, %v1415, %v1417
        %v1465 = vsel %vm484, %v1417, %v1419
        %v1466 = vsel %vm484, %v1419, %v1421
        %v1467 = vsel %vm484, %v1421, %v1423
        %v1468 = vsel %vm484, %v1425, %v1427
        %v1469 = vsel %vm484, %v1427, %v1429
        %v1470 = vsel %vm484, %v1429, %v1431
        %v1471 = vsel %vm484, %v1431, %v1433
        %v1472 = vsel %vm484, %v1433, %v1435
        %v1473 = vsel %vm484, %v1435, %v1437
        %v1474 = vsel %vm484, %v1437, %v1439
        %v1475 = vsel %vm484, %v1439, %v1441
        %v1476 = vsel %vm484, %v1443, %v1445
        %v1477 = vsel %vm484, %v1445, %v1447
        %v1478 = vsel %vm484, %v1447, %v1449
        %v1479 = vsel %vm484, %v1449, %v1451
        %v1480 = vsel %vm484, %v1451, %v1453
        %v1481 = vsel %vm484, %v1453, %v1455
        %v1482 = vsel %vm484, %v1455, %v1457
        %v1483 = vsel %vm484, %v1457, %v1459
        %v1509 = vsel %vm774, %v1404, 0
        %v1512 = vsel %vm774, %v1405, 0
        %1514 = vmatprep.subr.mxu0 %v1461
        %1515 = vmatpush1.msra.mxu0 %v1460
        %1516 = vmatprep.subr.mxu0 %v1469
        %1517 = vmatpush1.msra.mxu0 %v1468
        %1518 = vmatprep.subr.mxu0 %v1477
        %1519 = vmatpush1.msra.mxu0 %v1476
        %1520 = vmatprep.subr.mxu0 0.0
        %1521 = vmatpush1.msra.mxu0 0.0
        %1522 = vmatprep.subr.mxu0 0.0
        %1523 = vmatpush1.msra.mxu0 0.0
        %1524 = vmatprep.subr.mxu0 0.0
        %1525 = vmatpush1.msra.mxu0 0.0
        %1526 = vmatprep.subr.mxu0 0.0
        %1527 = vmatpush1.msra.mxu0 0.0
        %1528 = vmatprep.subr.mxu0 0.0
        %1529 = vmatpush1.msra.mxu0 0.0
        %1530 = vmatprep.subr.mxu0 0.0
        %1531 = vmatpush1.msra.mxu0 0.0
        %1532 = vmatprep.subr.mxu0 0.0
        %1533 = vmatpush1.msra.mxu0 0.0
        %1534 = vmatprep.subr.mxu0 0.0
        %1535 = vmatpush1.msra.mxu0 0.0
        %1536 = vmatprep.subr.mxu0 0.0
        %1537 = vmatpush1.msra.mxu0 0.0
        %1538 = vmatprep.subr.mxu0 0.0
        %1539 = vmatpush1.msra.mxu0 0.0
        %1540 = vmatprep.subr.mxu0 0.0
        %1541 = vmatpush1.msra.mxu0 0.0
        %1542 = vmatprep.subr.mxu0 0.0
        %1543 = vmatpush1.msra.mxu0 0.0
        %1544 = vmatprep.subr.mxu0 0.0
        %1545 = vmatpush1.msra.mxu0 0.0
        %1546 = vmatprep.subr.mxu0 0.0
        %1547 = vmatpush1.msra.mxu0 0.0
        %1548 = vmatprep.subr.mxu0 0.0
        %1549 = vmatpush1.msra.mxu0 0.0
        %1550 = vmatprep.subr.mxu0 0.0
        %1551 = vmatpush1.msra.mxu0 0.0
        %1552 = vmatprep.subr.mxu0 0.0
        %1553 = vmatpush1.msra.mxu0 0.0
        %1554 = vmatprep.subr.mxu0 0.0
        %1555 = vmatpush1.msra.mxu0 0.0
        %1556 = vmatprep.subr.mxu0 0.0
        %1557 = vmatpush1.msra.mxu0 0.0
        %1558 = vmatprep.subr.mxu0 0.0
        %1559 = vmatpush1.msra.mxu0 0.0
        %1560 = vmatprep.subr.mxu0 0.0
        %1561 = vmatpush1.msra.mxu0 0.0
        %1562 = vmatprep.subr.mxu0 0.0
        %1563 = vmatpush1.msra.mxu0 0.0
        %1564 = vmatprep.subr.mxu0 0.0
        %1565 = vmatpush1.msra.mxu0 0.0
        %1566 = vmatprep.subr.mxu0 0.0
        %1567 = vmatpush1.msra.mxu0 0.0
        %1568 = vmatprep.subr.mxu0 0.0
        %1569 = vmatpush1.msra.mxu0 0.0
        %1570 = vmatprep.subr.mxu0 0.0
        %1571 = vmatpush1.msra.mxu0 0.0
        %1572 = vmatprep.subr.mxu0 0.0
        %1573 = vmatpush1.msra.mxu0 0.0
        %1574 = vmatprep.subr.mxu0 0.0
        %1575 = vmatpush1.msra.mxu0 0.0
        %1576 = vmatprep.subr.mxu0 0.0
        %1577 = vmatpush1.msra.mxu0 0.0
        %1578 = vmatprep.mubr.f32.mxu0 0.0
        %1579 = vmatmul.mubr.f32.gmra.mrb[0].mxu0 %v1509
        %v1580 = vpop.f32.mrb[0].mxu0
        %v1581 = vadd.f32 0.0, %v1580
        %v1582 = vpop.f32.mrb[0].mxu0
        %v1583 = vadd.f32 0.0, %v1582
        %1584 = vmatprep.mubr.f32.mxu0 0.0
        %1585 = vmatmul.mubr.f32.gmra.mrb[0].mxu0 %v1512
        %v1586 = vpop.f32.mrb[0].mxu0
        %v1587 = vadd.f32 0.0, %v1586
        %v1588 = vpop.f32.mrb[0].mxu0
        %v1589 = vadd.f32 0.0, %v1588
        %1590 = vdwg.mxu0
        %1591 = vmatprep.subr.mxu0 %v1463
        %1592 = vmatpush1.msra.mxu0 %v1462
        %1593 = vmatprep.subr.mxu0 %v1471
        %1594 = vmatpush1.msra.mxu0 %v1470
        %1595 = vmatprep.subr.mxu0 %v1479
        %1596 = vmatpush1.msra.mxu0 %v1478
        %1597 = vmatprep.subr.mxu0 0.0
        %1598 = vmatpush1.msra.mxu0 0.0
        %1599 = vmatprep.subr.mxu0 0.0
        %1600 = vmatpush1.msra.mxu0 0.0
        %1601 = vmatprep.subr.mxu0 0.0
        %1602 = vmatpush1.msra.mxu0 0.0
        %1603 = vmatprep.subr.mxu0 0.0
        %1604 = vmatpush1.msra.mxu0 0.0
        %1605 = vmatprep.subr.mxu0 0.0
        %1606 = vmatpush1.msra.mxu0 0.0
        %1607 = vmatprep.subr.mxu0 0.0
        %1608 = vmatpush1.msra.mxu0 0.0
        %1609 = vmatprep.subr.mxu0 0.0
        %1610 = vmatpush1.msra.mxu0 0.0
        %1611 = vmatprep.subr.mxu0 0.0
        %1612 = vmatpush1.msra.mxu0 0.0
        %1613 = vmatprep.subr.mxu0 0.0
        %1614 = vmatpush1.msra.mxu0 0.0
        %1615 = vmatprep.subr.mxu0 0.0
        %1616 = vmatpush1.msra.mxu0 0.0
        %1617 = vmatprep.subr.mxu0 0.0
        %1618 = vmatpush1.msra.mxu0 0.0
        %1619 = vmatprep.subr.mxu0 0.0
        %1620 = vmatpush1.msra.mxu0 0.0
        %1621 = vmatprep.subr.mxu0 0.0
        %1622 = vmatpush1.msra.mxu0 0.0
        %1623 = vmatprep.subr.mxu0 0.0
        %1624 = vmatpush1.msra.mxu0 0.0
        %1625 = vmatprep.subr.mxu0 0.0
        %1626 = vmatpush1.msra.mxu0 0.0
        %1627 = vmatprep.subr.mxu0 0.0
        %1628 = vmatpush1.msra.mxu0 0.0
        %1629 = vmatprep.subr.mxu0 0.0
        %1630 = vmatpush1.msra.mxu0 0.0
        %1631 = vmatprep.subr.mxu0 0.0
        %1632 = vmatpush1.msra.mxu0 0.0
        %1633 = vmatprep.subr.mxu0 0.0
        %1634 = vmatpush1.msra.mxu0 0.0
        %1635 = vmatprep.subr.mxu0 0.0
        %1636 = vmatpush1.msra.mxu0 0.0
        %1637 = vmatprep.subr.mxu0 0.0
        %1638 = vmatpush1.msra.mxu0 0.0
        %1639 = vmatprep.subr.mxu0 0.0
        %1640 = vmatpush1.msra.mxu0 0.0
        %1641 = vmatprep.subr.mxu0 0.0
        %1642 = vmatpush1.msra.mxu0 0.0
        %1643 = vmatprep.subr.mxu0 0.0
        %1644 = vmatpush1.msra.mxu0 0.0
        %1645 = vmatprep.subr.mxu0 0.0
        %1646 = vmatpush1.msra.mxu0 0.0
        %1647 = vmatprep.subr.mxu0 0.0
        %1648 = vmatpush1.msra.mxu0 0.0
        %1649 = vmatprep.subr.mxu0 0.0
        %1650 = vmatpush1.msra.mxu0 0.0
        %1651 = vmatprep.subr.mxu0 0.0
        %1652 = vmatpush1.msra.mxu0 0.0
        %1653 = vmatprep.subr.mxu0 0.0
        %1654 = vmatpush1.msra.mxu0 0.0
        %1655 = vmatprep.mubr.f32.mxu0 0.0
        %1656 = vmatmul.mubr.f32.gmra.mrb[0].mxu0 %v1509
        %v1657 = vpop.f32.mrb[0].mxu0
        %v1658 = vadd.f32 0.0, %v1657
        %v1659 = vpop.f32.mrb[0].mxu0
        %v1660 = vadd.f32 0.0, %v1659
        %1661 = vmatprep.mubr.f32.mxu0 0.0
        %1662 = vmatmul.mubr.f32.gmra.mrb[0].mxu0 %v1512
        %v1663 = vpop.f32.mrb[0].mxu0
        %v1664 = vadd.f32 0.0, %v1663
        %v1665 = vpop.f32.mrb[0].mxu0
        %v1666 = vadd.f32 0.0, %v1665
        %1667 = vdwg.mxu0
        %1668 = vmatprep.subr.mxu0 %v1465
        %1669 = vmatpush1.msra.mxu0 %v1464
        %1670 = vmatprep.subr.mxu0 %v1473
        %1671 = vmatpush1.msra.mxu0 %v1472
        %1672 = vmatprep.subr.mxu0 %v1481
        %1673 = vmatpush1.msra.mxu0 %v1480
        %1674 = vmatprep.subr.mxu0 0.0
        %1675 = vmatpush1.msra.mxu0 0.0
        %1676 = vmatprep.subr.mxu0 0.0
        %1677 = vmatpush1.msra.mxu0 0.0
        %1678 = vmatprep.subr.mxu0 0.0
        %1679 = vmatpush1.msra.mxu0 0.0
        %1680 = vmatprep.subr.mxu0 0.0
        %1681 = vmatpush1.msra.mxu0 0.0
        %1682 = vmatprep.subr.mxu0 0.0
        %1683 = vmatpush1.msra.mxu0 0.0
        %1684 = vmatprep.subr.mxu0 0.0
        %1685 = vmatpush1.msra.mxu0 0.0
        %1686 = vmatprep.subr.mxu0 0.0
        %1687 = vmatpush1.msra.mxu0 0.0
        %1688 = vmatprep.subr.mxu0 0.0
        %1689 = vmatpush1.msra.mxu0 0.0
        %1690 = vmatprep.subr.mxu0 0.0
        %1691 = vmatpush1.msra.mxu0 0.0
        %1692 = vmatprep.subr.mxu0 0.0
        %1693 = vmatpush1.msra.mxu0 0.0
        %1694 = vmatprep.subr.mxu0 0.0
        %1695 = vmatpush1.msra.mxu0 0.0
        %1696 = vmatprep.subr.mxu0 0.0
        %1697 = vmatpush1.msra.mxu0 0.0
        %1698 = vmatprep.subr.mxu0 0.0
        %1699 = vmatpush1.msra.mxu0 0.0
        %1700 = vmatprep.subr.mxu0 0.0
        %1701 = vmatpush1.msra.mxu0 0.0
        %1702 = vmatprep.subr.mxu0 0.0
        %1703 = vmatpush1.msra.mxu0 0.0
        %1704 = vmatprep.subr.mxu0 0.0
        %1705 = vmatpush1.msra.mxu0 0.0
        %1706 = vmatprep.subr.mxu0 0.0
        %1707 = vmatpush1.msra.mxu0 0.0
        %1708 = vmatprep.subr.mxu0 0.0
        %1709 = vmatpush1.msra.mxu0 0.0
        %1710 = vmatprep.subr.mxu0 0.0
        %1711 = vmatpush1.msra.mxu0 0.0
        %1712 = vmatprep.subr.mxu0 0.0
        %1713 = vmatpush1.msra.mxu0 0.0
        %1714 = vmatprep.subr.mxu0 0.0
        %1715 = vmatpush1.msra.mxu0 0.0
        %1716 = vmatprep.subr.mxu0 0.0
        %1717 = vmatpush1.msra.mxu0 0.0
        %1718 = vmatprep.subr.mxu0 0.0
        %1719 = vmatpush1.msra.mxu0 0.0
        %1720 = vmatprep.subr.mxu0 0.0
        %1721 = vmatpush1.msra.mxu0 0.0
        %1722 = vmatprep.subr.mxu0 0.0
        %1723 = vmatpush1.msra.mxu0 0.0
        %1724 = vmatprep.subr.mxu0 0.0
        %1725 = vmatpush1.msra.mxu0 0.0
        %1726 = vmatprep.subr.mxu0 0.0
        %1727 = vmatpush1.msra.mxu0 0.0
        %1728 = vmatprep.subr.mxu0 0.0
        %1729 = vmatpush1.msra.mxu0 0.0
        %1730 = vmatprep.subr.mxu0 0.0
        %1731 = vmatpush1.msra.mxu0 0.0
        %1732 = vmatprep.mubr.f32.mxu0 0.0
        %1733 = vmatmul.mubr.f32.gmra.mrb[0].mxu0 %v1509
        %v1734 = vpop.f32.mrb[0].mxu0
        %v1735 = vadd.f32 0.0, %v1734
        %v1736 = vpop.f32.mrb[0].mxu0
        %v1737 = vadd.f32 0.0, %v1736
        %1738 = vmatprep.mubr.f32.mxu0 0.0
        %1739 = vmatmul.mubr.f32.gmra.mrb[0].mxu0 %v1512
        %v1740 = vpop.f32.mrb[0].mxu0
        %v1741 = vadd.f32 0.0, %v1740
        %v1742 = vpop.f32.mrb[0].mxu0
        %v1743 = vadd.f32 0.0, %v1742
        %1744 = vdwg.mxu0
        %1745 = vmatprep.subr.mxu0 %v1467
        %1746 = vmatpush1.msra.mxu0 %v1466
        %1747 = vmatprep.subr.mxu0 %v1475
        %1748 = vmatpush1.msra.mxu0 %v1474
        %1749 = vmatprep.subr.mxu0 %v1483
        %1750 = vmatpush1.msra.mxu0 %v1482
        %1751 = vmatprep.subr.mxu0 0.0
        %1752 = vmatpush1.msra.mxu0 0.0
        %1753 = vmatprep.subr.mxu0 0.0
        %1754 = vmatpush1.msra.mxu0 0.0
        %1755 = vmatprep.subr.mxu0 0.0
        %1756 = vmatpush1.msra.mxu0 0.0
        %1757 = vmatprep.subr.mxu0 0.0
        %1758 = vmatpush1.msra.mxu0 0.0
        %1759 = vmatprep.subr.mxu0 0.0
        %1760 = vmatpush1.msra.mxu0 0.0
        %1761 = vmatprep.subr.mxu0 0.0
        %1762 = vmatpush1.msra.mxu0 0.0
        %1763 = vmatprep.subr.mxu0 0.0
        %1764 = vmatpush1.msra.mxu0 0.0
        %1765 = vmatprep.subr.mxu0 0.0
        %1766 = vmatpush1.msra.mxu0 0.0
        %1767 = vmatprep.subr.mxu0 0.0
        %1768 = vmatpush1.msra.mxu0 0.0
        %1769 = vmatprep.subr.mxu0 0.0
        %1770 = vmatpush1.msra.mxu0 0.0
        %1771 = vmatprep.subr.mxu0 0.0
        %1772 = vmatpush1.msra.mxu0 0.0
        %1773 = vmatprep.subr.mxu0 0.0
        %1774 = vmatpush1.msra.mxu0 0.0
        %1775 = vmatprep.subr.mxu0 0.0
        %1776 = vmatpush1.msra.mxu0 0.0
        %1777 = vmatprep.subr.mxu0 0.0
        %1778 = vmatpush1.msra.mxu0 0.0
        %1779 = vmatprep.subr.mxu0 0.0
        %1780 = vmatpush1.msra.mxu0 0.0
        %1781 = vmatprep.subr.mxu0 0.0
        %1782 = vmatpush1.msra.mxu0 0.0
        %1783 = vmatprep.subr.mxu0 0.0
        %1784 = vmatpush1.msra.mxu0 0.0
        %1785 = vmatprep.subr.mxu0 0.0
        %1786 = vmatpush1.msra.mxu0 0.0
        %1787 = vmatprep.subr.mxu0 0.0
        %1788 = vmatpush1.msra.mxu0 0.0
        %1789 = vmatprep.subr.mxu0 0.0
        %1790 = vmatpush1.msra.mxu0 0.0
        %1791 = vmatprep.subr.mxu0 0.0
        %1792 = vmatpush1.msra.mxu0 0.0
        %1793 = vmatprep.subr.mxu0 0.0
        %1794 = vmatpush1.msra.mxu0 0.0
        %1795 = vmatprep.subr.mxu0 0.0
        %1796 = vmatpush1.msra.mxu0 0.0
        %1797 = vmatprep.subr.mxu0 0.0
        %1798 = vmatpush1.msra.mxu0 0.0
        %1799 = vmatprep.subr.mxu0 0.0
        %1800 = vmatpush1.msra.mxu0 0.0
        %1801 = vmatprep.subr.mxu0 0.0
        %1802 = vmatpush1.msra.mxu0 0.0
        %1803 = vmatprep.subr.mxu0 0.0
        %1804 = vmatpush1.msra.mxu0 0.0
        %1805 = vmatprep.subr.mxu0 0.0
        %1806 = vmatpush1.msra.mxu0 0.0
        %1807 = vmatprep.subr.mxu0 0.0
        %1808 = vmatpush1.msra.mxu0 0.0
        %1809 = vmatprep.mubr.f32.mxu0 0.0
        %1810 = vmatmul.mubr.f32.gmra.mrb[0].mxu0 %v1509
        %v1811 = vpop.f32.mrb[0].mxu0
        %v1812 = vadd.f32 0.0, %v1811
        %v1813 = vpop.f32.mrb[0].mxu0
        %v1814 = vadd.f32 0.0, %v1813
        %1815 = vmatprep.mubr.f32.mxu0 0.0
        %1816 = vmatmul.mubr.f32.gmra.mrb[0].mxu0 %v1512
        %v1817 = vpop.f32.mrb[0].mxu0
        %v1818 = vadd.f32 0.0, %v1817
        %v1819 = vpop.f32.mrb[0].mxu0
        %v1820 = vadd.f32 0.0, %v1819
        %1821 = vdwg.mxu0
        %v1822 = vadd.f32 %v1162, %v1581
        %v1823 = vadd.f32 %v1164, %v1583
        %v1824 = vadd.f32 %v1239, %v1658
        %v1825 = vadd.f32 %v1241, %v1660
        %v1826 = vadd.f32 %v1316, %v1735
        %v1827 = vadd.f32 %v1318, %v1737
        %v1828 = vadd.f32 %v1393, %v1812
        %v1829 = vadd.f32 %v1395, %v1814
        %v1830 = vadd.f32 %v1168, %v1587
        %v1831 = vadd.f32 %v1170, %v1589
        %v1832 = vadd.f32 %v1245, %v1664
        %v1833 = vadd.f32 %v1247, %v1666
        %v1834 = vadd.f32 %v1322, %v1741
        %v1835 = vadd.f32 %v1324, %v1743
        %v1836 = vadd.f32 %v1399, %v1818
        %v1837 = vadd.f32 %v1401, %v1820
        %v1838 = vld [vmem:[%s2] sm:$0xff]
        %v1839 = vld [vmem:[%s2 + $0x8] sm:$0xff]
        %1841 = vset.pattern.permute.xlu0 0
        %1842 = vperm.xlu0 %1841, %v1838
        %v1843 = vpop.permute.xlu0 %1842
        %1846 = vset.pattern.permute.xlu0 0
        %1847 = vperm.xlu0 %1846, %v1839
        %v1848 = vpop.permute.xlu0 %1847
        %v1850 = vadd.f32 %v1822, %v1843
        %v1851 = vadd.f32 %v1823, %v1843
        %v1852 = vadd.f32 %v1824, %v1843
        %v1853 = vadd.f32 %v1825, %v1843
        %v1854 = vadd.f32 %v1826, %v1843
        %v1855 = vadd.f32 %v1827, %v1843
        %v1856 = vadd.f32 %v1828, %v1843
        %v1857 = vadd.f32 %v1829, %v1843
        %v1858 = vadd.f32 %v1830, %v1848
        %v1859 = vadd.f32 %v1831, %v1848
        %v1860 = vadd.f32 %v1832, %v1848
        %v1861 = vadd.f32 %v1833, %v1848
        %v1862 = vadd.f32 %v1834, %v1848
        %v1863 = vadd.f32 %v1835, %v1848
        %v1864 = vadd.f32 %v1836, %v1848
        %v1865 = vadd.f32 %v1837, %v1848
        %v1866 = vmax.f32 %v1850, 0.0
        %v1867 = vmax.f32 %v1851, 0.0
        %v1868 = vmax.f32 %v1852, 0.0
        %v1869 = vmax.f32 %v1853, 0.0
        %v1870 = vmax.f32 %v1854, 0.0
        %v1871 = vmax.f32 %v1855, 0.0
        %v1872 = vmax.f32 %v1856, 0.0
        %v1873 = vmax.f32 %v1857, 0.0
        %v1874 = vmax.f32 %v1858, 0.0
        %v1875 = vmax.f32 %v1859, 0.0
        %v1876 = vmax.f32 %v1860, 0.0
        %v1877 = vmax.f32 %v1861, 0.0
        %v1878 = vmax.f32 %v1862, 0.0
        %v1879 = vmax.f32 %v1863, 0.0
        %v1880 = vmax.f32 %v1864, 0.0
        %v1881 = vmax.f32 %v1865, 0.0
        %1882 = vst [vmem:[#allocation2] sm:$0xff] %v1866
        %1883 = vst [vmem:[#allocation2 + $0x8] sm:$0xff] %v1867
        %1884 = vst [vmem:[#allocation2 + $0x10] sm:$0xff] %v1868
        %1885 = vst [vmem:[#allocation2 + $0x18] sm:$0xff] %v1869
        %1886 = vst [vmem:[#allocation2 + $0x20] sm:$0xff] %v1870
        %1887 = vst [vmem:[#allocation2 + $0x28] sm:$0xff] %v1871
        %1888 = vst [vmem:[#allocation2 + $0x30] sm:$0xff] %v1872
        %1889 = vst [vmem:[#allocation2 + $0x38] sm:$0xff] %v1873
        %1890 = vst [vmem:[#allocation2 + $0x40] sm:$0xff] %v1874
        %1891 = vst [vmem:[#allocation2 + $0x48] sm:$0xff] %v1875
        %1892 = vst [vmem:[#allocation2 + $0x50] sm:$0xff] %v1876
        %1893 = vst [vmem:[#allocation2 + $0x58] sm:$0xff] %v1877
        %1894 = vst [vmem:[#allocation2 + $0x60] sm:$0xff] %v1878
        %1895 = vst [vmem:[#allocation2 + $0x68] sm:$0xff] %v1879
        %1896 = vst [vmem:[#allocation2 + $0x70] sm:$0xff] %v1880
        %1897 = vst [vmem:[#allocation2 + $0x78] sm:$0xff] %v1881
        %v1898 = vld [vmem:[#allocation2] sm:$0xff]
        %v1899 = vld [vmem:[#allocation2 + $0x8] sm:$0xff]
        %v1900 = vld [vmem:[#allocation2 + $0x10] sm:$0xff]
        %v1901 = vld [vmem:[#allocation2 + $0x18] sm:$0xff]
        %v1902 = vld [vmem:[#allocation2 + $0x20] sm:$0xff]
        %v1903 = vld [vmem:[#allocation2 + $0x28] sm:$0xff]
        %v1904 = vld [vmem:[#allocation2 + $0x30] sm:$0xff]
        %v1905 = vld [vmem:[#allocation2 + $0x38] sm:$0xff]
        %v1906 = vld [vmem:[#allocation2 + $0x40] sm:$0xff]
        %v1907 = vld [vmem:[#allocation2 + $0x48] sm:$0xff]
        %v1908 = vld [vmem:[#allocation2 + $0x50] sm:$0xff]
        %v1909 = vld [vmem:[#allocation2 + $0x58] sm:$0xff]
        %v1910 = vld [vmem:[#allocation2 + $0x60] sm:$0xff]
        %v1911 = vld [vmem:[#allocation2 + $0x68] sm:$0xff]
        %v1912 = vld [vmem:[#allocation2 + $0x70] sm:$0xff]
        %v1913 = vld [vmem:[#allocation2 + $0x78] sm:$0xff]
        %1914 = vst [vmem:[#allocation6] sm:$0xff] %v1898
        %1915 = vst [vmem:[#allocation6 + $0x8] sm:$0xff] %v1899
        %1916 = vst [vmem:[#allocation6 + $0x10] sm:$0xff] %v1900
        %1917 = vst [vmem:[#allocation6 + $0x18] sm:$0xff] %v1901
        %1918 = vst [vmem:[#allocation6 + $0x20] sm:$0xff] %v1902
        %1919 = vst [vmem:[#allocation6 + $0x28] sm:$0xff] %v1903
        %1920 = vst [vmem:[#allocation6 + $0x30] sm:$0xff] %v1904
        %1921 = vst.msk [vmem:[#allocation6 + $0x38] sm:$0xff] %vm484, %v1905
        %1922 = vst [vmem:[#allocation6 + $0x40] sm:$0xff] %v1906
        %1923 = vst [vmem:[#allocation6 + $0x48] sm:$0xff] %v1907
        %1924 = vst [vmem:[#allocation6 + $0x50] sm:$0xff] %v1908
        %1925 = vst [vmem:[#allocation6 + $0x58] sm:$0xff] %v1909
        %1926 = vst [vmem:[#allocation6 + $0x60] sm:$0xff] %v1910
        %1927 = vst [vmem:[#allocation6 + $0x68] sm:$0xff] %v1911
        %1928 = vst [vmem:[#allocation6 + $0x70] sm:$0xff] %v1912
        %1929 = vst.msk [vmem:[#allocation6 + $0x78] sm:$0xff] %vm484, %v1913
        %v1930 = vld [vmem:[#allocation2] sm:$0xff]
        %v1931 = vld [vmem:[#allocation2 + $0x8] sm:$0xff]
        %v1932 = vld [vmem:[#allocation2 + $0x10] sm:$0xff]
        %v1933 = vld [vmem:[#allocation2 + $0x18] sm:$0xff]
        %v1934 = vld [vmem:[#allocation2 + $0x20] sm:$0xff]
        %v1935 = vld [vmem:[#allocation2 + $0x28] sm:$0xff]
        %v1936 = vld [vmem:[#allocation2 + $0x30] sm:$0xff]
        %v1937 = vld [vmem:[#allocation2 + $0x38] sm:$0xff]
        %v1938 = vld [vmem:[#allocation2 + $0x40] sm:$0xff]
        %v1939 = vld [vmem:[#allocation2 + $0x48] sm:$0xff]
        %v1940 = vld [vmem:[#allocation2 + $0x50] sm:$0xff]
        %v1941 = vld [vmem:[#allocation2 + $0x58] sm:$0xff]
        %v1942 = vld [vmem:[#allocation2 + $0x60] sm:$0xff]
        %v1943 = vld [vmem:[#allocation2 + $0x68] sm:$0xff]
        %v1944 = vld [vmem:[#allocation2 + $0x70] sm:$0xff]
        %v1945 = vld [vmem:[#allocation2 + $0x78] sm:$0xff]
        %1962 = vrot.lane.b32.xlu0 %v1930, 127
        %v1963 = vpop.permute.xlu0 %1962
        %1964 = vrot.lane.b32.xlu0 %v1931, 127
        %v1965 = vpop.permute.xlu0 %1964
        %1966 = vrot.lane.b32.xlu0 %v1932, 127
        %v1967 = vpop.permute.xlu0 %1966
        %1968 = vrot.lane.b32.xlu0 %v1933, 127
        %v1969 = vpop.permute.xlu0 %1968
        %1970 = vrot.lane.b32.xlu0 %v1934, 127
        %v1971 = vpop.permute.xlu0 %1970
        %1972 = vrot.lane.b32.xlu0 %v1935, 127
        %v1973 = vpop.permute.xlu0 %1972
        %1974 = vrot.lane.b32.xlu0 %v1936, 127
        %v1975 = vpop.permute.xlu0 %1974
        %1976 = vrot.lane.b32.xlu0 %v1937, 127
        %v1977 = vpop.permute.xlu0 %1976
        %1978 = vrot.lane.b32.xlu0 %v1938, 127
        %v1979 = vpop.permute.xlu0 %1978
        %1980 = vrot.lane.b32.xlu0 %v1939, 127
        %v1981 = vpop.permute.xlu0 %1980
        %1982 = vrot.lane.b32.xlu0 %v1940, 127
        %v1983 = vpop.permute.xlu0 %1982
        %1984 = vrot.lane.b32.xlu0 %v1941, 127
        %v1985 = vpop.permute.xlu0 %1984
        %1986 = vrot.lane.b32.xlu0 %v1942, 127
        %v1987 = vpop.permute.xlu0 %1986
        %1988 = vrot.lane.b32.xlu0 %v1943, 127
        %v1989 = vpop.permute.xlu0 %1988
        %1990 = vrot.lane.b32.xlu0 %v1944, 127
        %v1991 = vpop.permute.xlu0 %1990
        %1992 = vrot.lane.b32.xlu0 %v1945, 127
        %v1993 = vpop.permute.xlu0 %1992
        %v1994 = vsel %vm522, %v1963, %v1965
        %v1995 = vsel %vm522, %v1965, %v1967
        %v1996 = vsel %vm522, %v1967, %v1969
        %v1997 = vsel %vm522, %v1969, %v1971
        %v1998 = vsel %vm522, %v1971, %v1973
        %v1999 = vsel %vm522, %v1973, %v1975
        %v2000 = vsel %vm522, %v1975, %v1977
        %v2001 = vsel %vm522, %v1979, %v1981
        %v2002 = vsel %vm522, %v1981, %v1983
        %v2003 = vsel %vm522, %v1983, %v1985
        %v2004 = vsel %vm522, %v1985, %v1987
        %v2005 = vsel %vm522, %v1987, %v1989
        %v2006 = vsel %vm522, %v1989, %v1991
        %v2007 = vsel %vm522, %v1991, %v1993
        %2024 = vst [vmem:[#allocation6 + $0x80] sm:$0xff] %v1994
        %2025 = vst [vmem:[#allocation6 + $0x88] sm:$0xff] %v1995
        %2026 = vst [vmem:[#allocation6 + $0x90] sm:$0xff] %v1996
        %2027 = vst [vmem:[#allocation6 + $0x98] sm:$0xff] %v1997
        %2028 = vst [vmem:[#allocation6 + $0xa0] sm:$0xff] %v1998
        %2029 = vst [vmem:[#allocation6 + $0xa8] sm:$0xff] %v1999
        %2030 = vst [vmem:[#allocation6 + $0xb0] sm:$0xff] %v2000
        %2031 = vst.msk [vmem:[#allocation6 + $0xb8] sm:$0xff] %vm484, %v1977
        %2032 = vst [vmem:[#allocation6 + $0xc0] sm:$0xff] %v2001
        %2033 = vst [vmem:[#allocation6 + $0xc8] sm:$0xff] %v2002
        %2034 = vst [vmem:[#allocation6 + $0xd0] sm:$0xff] %v2003
        %2035 = vst [vmem:[#allocation6 + $0xd8] sm:$0xff] %v2004
        %2036 = vst [vmem:[#allocation6 + $0xe0] sm:$0xff] %v2005
        %2037 = vst [vmem:[#allocation6 + $0xe8] sm:$0xff] %v2006
        %2038 = vst [vmem:[#allocation6 + $0xf0] sm:$0xff] %v2007
        %2039 = vst.msk [vmem:[#allocation6 + $0xf8] sm:$0xff] %vm484, %v1993
        %v2040 = vld [vmem:[#allocation2] sm:$0xff]
        %v2041 = vld [vmem:[#allocation2 + $0x8] sm:$0xff]
        %v2042 = vld [vmem:[#allocation2 + $0x10] sm:$0xff]
        %v2043 = vld [vmem:[#allocation2 + $0x18] sm:$0xff]
        %v2044 = vld [vmem:[#allocation2 + $0x20] sm:$0xff]
        %v2045 = vld [vmem:[#allocation2 + $0x28] sm:$0xff]
        %v2046 = vld [vmem:[#allocation2 + $0x30] sm:$0xff]
        %v2047 = vld [vmem:[#allocation2 + $0x38] sm:$0xff]
        %v2048 = vld [vmem:[#allocation2 + $0x40] sm:$0xff]
        %v2049 = vld [vmem:[#allocation2 + $0x48] sm:$0xff]
        %v2050 = vld [vmem:[#allocation2 + $0x50] sm:$0xff]
        %v2051 = vld [vmem:[#allocation2 + $0x58] sm:$0xff]
        %v2052 = vld [vmem:[#allocation2 + $0x60] sm:$0xff]
        %v2053 = vld [vmem:[#allocation2 + $0x68] sm:$0xff]
        %v2054 = vld [vmem:[#allocation2 + $0x70] sm:$0xff]
        %v2055 = vld [vmem:[#allocation2 + $0x78] sm:$0xff]
        %2072 = vrot.lane.b32.xlu0 %v2040, 126
        %v2073 = vpop.permute.xlu0 %2072
        %2074 = vrot.lane.b32.xlu0 %v2041, 126
        %v2075 = vpop.permute.xlu0 %2074
        %2076 = vrot.lane.b32.xlu0 %v2042, 126
        %v2077 = vpop.permute.xlu0 %2076
        %2078 = vrot.lane.b32.xlu0 %v2043, 126
        %v2079 = vpop.permute.xlu0 %2078
        %2080 = vrot.lane.b32.xlu0 %v2044, 126
        %v2081 = vpop.permute.xlu0 %2080
        %2082 = vrot.lane.b32.xlu0 %v2045, 126
        %v2083 = vpop.permute.xlu0 %2082
        %2084 = vrot.lane.b32.xlu0 %v2046, 126
        %v2085 = vpop.permute.xlu0 %2084
        %2086 = vrot.lane.b32.xlu0 %v2047, 126
        %v2087 = vpop.permute.xlu0 %2086
        %2088 = vrot.lane.b32.xlu0 %v2048, 126
        %v2089 = vpop.permute.xlu0 %2088
        %2090 = vrot.lane.b32.xlu0 %v2049, 126
        %v2091 = vpop.permute.xlu0 %2090
        %2092 = vrot.lane.b32.xlu0 %v2050, 126
        %v2093 = vpop.permute.xlu0 %2092
        %2094 = vrot.lane.b32.xlu0 %v2051, 126
        %v2095 = vpop.permute.xlu0 %2094
        %2096 = vrot.lane.b32.xlu0 %v2052, 126
        %v2097 = vpop.permute.xlu0 %2096
        %2098 = vrot.lane.b32.xlu0 %v2053, 126
        %v2099 = vpop.permute.xlu0 %2098
        %2100 = vrot.lane.b32.xlu0 %v2054, 126
        %v2101 = vpop.permute.xlu0 %2100
        %2102 = vrot.lane.b32.xlu0 %v2055, 126
        %v2103 = vpop.permute.xlu0 %2102
        %v2104 = vsel %vm585, %v2073, %v2075
        %v2105 = vsel %vm585, %v2075, %v2077
        %v2106 = vsel %vm585, %v2077, %v2079
        %v2107 = vsel %vm585, %v2079, %v2081
        %v2108 = vsel %vm585, %v2081, %v2083
        %v2109 = vsel %vm585, %v2083, %v2085
        %v2110 = vsel %vm585, %v2085, %v2087
        %v2111 = vsel %vm585, %v2089, %v2091
        %v2112 = vsel %vm585, %v2091, %v2093
        %v2113 = vsel %vm585, %v2093, %v2095
        %v2114 = vsel %vm585, %v2095, %v2097
        %v2115 = vsel %vm585, %v2097, %v2099
        %v2116 = vsel %vm585, %v2099, %v2101
        %v2117 = vsel %vm585, %v2101, %v2103
        %2134 = vst [vmem:[#allocation6 + $0x100] sm:$0xff] %v2104
        %2135 = vst [vmem:[#allocation6 + $0x108] sm:$0xff] %v2105
        %2136 = vst [vmem:[#allocation6 + $0x110] sm:$0xff] %v2106
        %2137 = vst [vmem:[#allocation6 + $0x118] sm:$0xff] %v2107
        %2138 = vst [vmem:[#allocation6 + $0x120] sm:$0xff] %v2108
        %2139 = vst [vmem:[#allocation6 + $0x128] sm:$0xff] %v2109
        %2140 = vst [vmem:[#allocation6 + $0x130] sm:$0xff] %v2110
        %2141 = vst.msk [vmem:[#allocation6 + $0x138] sm:$0xff] %vm484, %v2087
        %2142 = vst [vmem:[#allocation6 + $0x140] sm:$0xff] %v2111
        %2143 = vst [vmem:[#allocation6 + $0x148] sm:$0xff] %v2112
        %2144 = vst [vmem:[#allocation6 + $0x150] sm:$0xff] %v2113
        %2145 = vst [vmem:[#allocation6 + $0x158] sm:$0xff] %v2114
        %2146 = vst [vmem:[#allocation6 + $0x160] sm:$0xff] %v2115
        %2147 = vst [vmem:[#allocation6 + $0x168] sm:$0xff] %v2116
        %2148 = vst [vmem:[#allocation6 + $0x170] sm:$0xff] %v2117
        %2149 = vst.msk [vmem:[#allocation6 + $0x178] sm:$0xff] %vm484, %v2103
        %v2150 = vld [vmem:[%s3] sm:$0xff]
        %v2151 = vld [vmem:[%s3 + $0x8] sm:$0xff]
        %v2152 = vld [vmem:[#allocation6] sm:$0xff]
        %v2153 = vld [vmem:[#allocation6 + $0x8] sm:$0xff]
        %v2154 = vld [vmem:[#allocation6 + $0x10] sm:$0xff]
        %v2155 = vld [vmem:[#allocation6 + $0x18] sm:$0xff]
        %v2156 = vld [vmem:[#allocation6 + $0x20] sm:$0xff]
        %v2157 = vld [vmem:[#allocation6 + $0x28] sm:$0xff]
        %v2158 = vld [vmem:[#allocation6 + $0x30] sm:$0xff]
        %v2159 = vld [vmem:[#allocation6 + $0x40] sm:$0xff]
        %v2160 = vld [vmem:[#allocation6 + $0x48] sm:$0xff]
        %v2161 = vld [vmem:[#allocation6 + $0x50] sm:$0xff]
        %v2162 = vld [vmem:[#allocation6 + $0x58] sm:$0xff]
        %v2163 = vld [vmem:[#allocation6 + $0x60] sm:$0xff]
        %v2164 = vld [vmem:[#allocation6 + $0x68] sm:$0xff]
        %v2165 = vld [vmem:[#allocation6 + $0x70] sm:$0xff]
        %v2166 = vld [vmem:[#allocation6 + $0x80] sm:$0xff]
        %v2167 = vld [vmem:[#allocation6 + $0x88] sm:$0xff]
        %v2168 = vld [vmem:[#allocation6 + $0x90] sm:$0xff]
        %v2169 = vld [vmem:[#allocation6 + $0x98] sm:$0xff]
        %v2170 = vld [vmem:[#allocation6 + $0xa0] sm:$0xff]
        %v2171 = vld [vmem:[#allocation6 + $0xa8] sm:$0xff]
        %v2172 = vld [vmem:[#allocation6 + $0xb0] sm:$0xff]
        %v2173 = vld [vmem:[#allocation6 + $0xc0] sm:$0xff]
        %v2174 = vld [vmem:[#allocation6 + $0xc8] sm:$0xff]
        %v2175 = vld [vmem:[#allocation6 + $0xd0] sm:$0xff]
        %v2176 = vld [vmem:[#allocation6 + $0xd8] sm:$0xff]
        %v2177 = vld [vmem:[#allocation6 + $0xe0] sm:$0xff]
        %v2178 = vld [vmem:[#allocation6 + $0xe8] sm:$0xff]
        %v2179 = vld [vmem:[#allocation6 + $0xf0] sm:$0xff]
        %v2180 = vld [vmem:[#allocation6 + $0x100] sm:$0xff]
        %v2181 = vld [vmem:[#allocation6 + $0x108] sm:$0xff]
        %v2182 = vld [vmem:[#allocation6 + $0x110] sm:$0xff]
        %v2183 = vld [vmem:[#allocation6 + $0x118] sm:$0xff]
        %v2184 = vld [vmem:[#allocation6 + $0x120] sm:$0xff]
        %v2185 = vld [vmem:[#allocation6 + $0x128] sm:$0xff]
        %v2186 = vld [vmem:[#allocation6 + $0x130] sm:$0xff]
        %v2187 = vld [vmem:[#allocation6 + $0x140] sm:$0xff]
        %v2188 = vld [vmem:[#allocation6 + $0x148] sm:$0xff]
        %v2189 = vld [vmem:[#allocation6 + $0x150] sm:$0xff]
        %v2190 = vld [vmem:[#allocation6 + $0x158] sm:$0xff]
        %v2191 = vld [vmem:[#allocation6 + $0x160] sm:$0xff]
        %v2192 = vld [vmem:[#allocation6 + $0x168] sm:$0xff]
        %v2193 = vld [vmem:[#allocation6 + $0x170] sm:$0xff]
        %s2194 = scalar_lea.vmem %s3, 16
        %v2195 = vld [vmem:[%s2194] sm:$0xff]
        %v2196 = vld [vmem:[%s2194 + $0x8] sm:$0xff]
        %v2197 = vld [vmem:[#allocation6 + $0x38] sm:$0xff]
        %v2198 = vld [vmem:[#allocation6 + $0x78] sm:$0xff]
        %v2199 = vld [vmem:[#allocation6 + $0xb8] sm:$0xff]
        %v2200 = vld [vmem:[#allocation6 + $0xf8] sm:$0xff]
        %v2201 = vld [vmem:[#allocation6 + $0x138] sm:$0xff]
        %v2202 = vld [vmem:[#allocation6 + $0x178] sm:$0xff]
        %2251 = vrot.lane.b32.xlu0 %v2152, 96
        %v2252 = vpop.permute.xlu0 %2251
        %2253 = vrot.lane.b32.xlu0 %v2153, 96
        %v2254 = vpop.permute.xlu0 %2253
        %2255 = vrot.lane.b32.xlu0 %v2154, 96
        %v2256 = vpop.permute.xlu0 %2255
        %2257 = vrot.lane.b32.xlu0 %v2155, 96
        %v2258 = vpop.permute.xlu0 %2257
        %2259 = vrot.lane.b32.xlu0 %v2156, 96
        %v2260 = vpop.permute.xlu0 %2259
        %2261 = vrot.lane.b32.xlu0 %v2157, 96
        %v2262 = vpop.permute.xlu0 %2261
        %2263 = vrot.lane.b32.xlu0 %v2158, 96
        %v2264 = vpop.permute.xlu0 %2263
        %2265 = vrot.lane.b32.xlu0 %v2197, 96
        %v2266 = vpop.permute.xlu0 %2265
        %2267 = vrot.lane.b32.xlu0 %v2159, 96
        %v2268 = vpop.permute.xlu0 %2267
        %2269 = vrot.lane.b32.xlu0 %v2160, 96
        %v2270 = vpop.permute.xlu0 %2269
        %2271 = vrot.lane.b32.xlu0 %v2161, 96
        %v2272 = vpop.permute.xlu0 %2271
        %2273 = vrot.lane.b32.xlu0 %v2162, 96
        %v2274 = vpop.permute.xlu0 %2273
        %2275 = vrot.lane.b32.xlu0 %v2163, 96
        %v2276 = vpop.permute.xlu0 %2275
        %2277 = vrot.lane.b32.xlu0 %v2164, 96
        %v2278 = vpop.permute.xlu0 %2277
        %2279 = vrot.lane.b32.xlu0 %v2165, 96
        %v2280 = vpop.permute.xlu0 %2279
        %2281 = vrot.lane.b32.xlu0 %v2198, 96
        %v2282 = vpop.permute.xlu0 %2281
        %2283 = vrot.lane.b32.xlu0 %v2166, 96
        %v2284 = vpop.permute.xlu0 %2283
        %2285 = vrot.lane.b32.xlu0 %v2167, 96
        %v2286 = vpop.permute.xlu0 %2285
        %2287 = vrot.lane.b32.xlu0 %v2168, 96
        %v2288 = vpop.permute.xlu0 %2287
        %2289 = vrot.lane.b32.xlu0 %v2169, 96
        %v2290 = vpop.permute.xlu0 %2289
        %2291 = vrot.lane.b32.xlu0 %v2170, 96
        %v2292 = vpop.permute.xlu0 %2291
        %2293 = vrot.lane.b32.xlu0 %v2171, 96
        %v2294 = vpop.permute.xlu0 %2293
        %2295 = vrot.lane.b32.xlu0 %v2172, 96
        %v2296 = vpop.permute.xlu0 %2295
        %2297 = vrot.lane.b32.xlu0 %v2199, 96
        %v2298 = vpop.permute.xlu0 %2297
        %2299 = vrot.lane.b32.xlu0 %v2173, 96
        %v2300 = vpop.permute.xlu0 %2299
        %2301 = vrot.lane.b32.xlu0 %v2174, 96
        %v2302 = vpop.permute.xlu0 %2301
        %2303 = vrot.lane.b32.xlu0 %v2175, 96
        %v2304 = vpop.permute.xlu0 %2303
        %2305 = vrot.lane.b32.xlu0 %v2176, 96
        %v2306 = vpop.permute.xlu0 %2305
        %2307 = vrot.lane.b32.xlu0 %v2177, 96
        %v2308 = vpop.permute.xlu0 %2307
        %2309 = vrot.lane.b32.xlu0 %v2178, 96
        %v2310 = vpop.permute.xlu0 %2309
        %2311 = vrot.lane.b32.xlu0 %v2179, 96
        %v2312 = vpop.permute.xlu0 %2311
        %2313 = vrot.lane.b32.xlu0 %v2200, 96
        %v2314 = vpop.permute.xlu0 %2313
        %2315 = vrot.lane.b32.xlu0 %v2180, 96
        %v2316 = vpop.permute.xlu0 %2315
        %2317 = vrot.lane.b32.xlu0 %v2181, 96
        %v2318 = vpop.permute.xlu0 %2317
        %2319 = vrot.lane.b32.xlu0 %v2182, 96
        %v2320 = vpop.permute.xlu0 %2319
        %2321 = vrot.lane.b32.xlu0 %v2183, 96
        %v2322 = vpop.permute.xlu0 %2321
        %2323 = vrot.lane.b32.xlu0 %v2184, 96
        %v2324 = vpop.permute.xlu0 %2323
        %2325 = vrot.lane.b32.xlu0 %v2185, 96
        %v2326 = vpop.permute.xlu0 %2325
        %2327 = vrot.lane.b32.xlu0 %v2186, 96
        %v2328 = vpop.permute.xlu0 %2327
        %2329 = vrot.lane.b32.xlu0 %v2201, 96
        %v2330 = vpop.permute.xlu0 %2329
        %2331 = vrot.lane.b32.xlu0 %v2187, 96
        %v2332 = vpop.permute.xlu0 %2331
        %2333 = vrot.lane.b32.xlu0 %v2188, 96
        %v2334 = vpop.permute.xlu0 %2333
        %2335 = vrot.lane.b32.xlu0 %v2189, 96
        %v2336 = vpop.permute.xlu0 %2335
        %2337 = vrot.lane.b32.xlu0 %v2190, 96
        %v2338 = vpop.permute.xlu0 %2337
        %2339 = vrot.lane.b32.xlu0 %v2191, 96
        %v2340 = vpop.permute.xlu0 %2339
        %2341 = vrot.lane.b32.xlu0 %v2192, 96
        %v2342 = vpop.permute.xlu0 %2341
        %2343 = vrot.lane.b32.xlu0 %v2193, 96
        %v2344 = vpop.permute.xlu0 %2343
        %2345 = vrot.lane.b32.xlu0 %v2202, 96
        %v2346 = vpop.permute.xlu0 %2345
        %v2347 = vsel %vm725, %v2252, %v2254
        %v2348 = vsel %vm725, %v2254, %v2256
        %v2349 = vsel %vm725, %v2256, %v2258
        %v2350 = vsel %vm725, %v2258, %v2260
        %v2351 = vsel %vm725, %v2260, %v2262
        %v2352 = vsel %vm725, %v2262, %v2264
        %v2353 = vsel %vm725, %v2264, %v2266
        %v2354 = vsel %vm725, %v2268, %v2270
        %v2355 = vsel %vm725, %v2270, %v2272
        %v2356 = vsel %vm725, %v2272, %v2274
        %v2357 = vsel %vm725, %v2274, %v2276
        %v2358 = vsel %vm725, %v2276, %v2278
        %v2359 = vsel %vm725, %v2278, %v2280
        %v2360 = vsel %vm725, %v2280, %v2282
        %v2361 = vsel %vm725, %v2284, %v2286
        %v2362 = vsel %vm725, %v2286, %v2288
        %v2363 = vsel %vm725, %v2288, %v2290
        %v2364 = vsel %vm725, %v2290, %v2292
        %v2365 = vsel %vm725, %v2292, %v2294
        %v2366 = vsel %vm725, %v2294, %v2296
        %v2367 = vsel %vm725, %v2296, %v2298
        %v2368 = vsel %vm725, %v2300, %v2302
        %v2369 = vsel %vm725, %v2302, %v2304
        %v2370 = vsel %vm725, %v2304, %v2306
        %v2371 = vsel %vm725, %v2306, %v2308
        %v2372 = vsel %vm725, %v2308, %v2310
        %v2373 = vsel %vm725, %v2310, %v2312
        %v2374 = vsel %vm725, %v2312, %v2314
        %v2375 = vsel %vm725, %v2316, %v2318
        %v2376 = vsel %vm725, %v2318, %v2320
        %v2377 = vsel %vm725, %v2320, %v2322
        %v2378 = vsel %vm725, %v2322, %v2324
        %v2379 = vsel %vm725, %v2324, %v2326
        %v2380 = vsel %vm725, %v2326, %v2328
        %v2381 = vsel %vm725, %v2328, %v2330
        %v2382 = vsel %vm725, %v2332, %v2334
        %v2383 = vsel %vm725, %v2334, %v2336
        %v2384 = vsel %vm725, %v2336, %v2338
        %v2385 = vsel %vm725, %v2338, %v2340
        %v2386 = vsel %vm725, %v2340, %v2342
        %v2387 = vsel %vm725, %v2342, %v2344
        %v2388 = vsel %vm725, %v2344, %v2346
        %vm2431 = vcmask 392192
        %v2433 = vsel %vm2431, %v2195, 0
        %v2436 = vsel %vm2431, %v2196, 0
        %2438 = vmatprep.subr.mxu0 %v2348
        %2439 = vmatpush1.msra.mxu0 %v2347
        %2440 = vmatprep.subr.mxu0 %v2355
        %2441 = vmatpush1.msra.mxu0 %v2354
        %2442 = vmatprep.subr.mxu0 %v2362
        %2443 = vmatpush1.msra.mxu0 %v2361
        %2444 = vmatprep.subr.mxu0 %v2369
        %2445 = vmatpush1.msra.mxu0 %v2368
        %2446 = vmatprep.subr.mxu0 %v2376
        %2447 = vmatpush1.msra.mxu0 %v2375
        %2448 = vmatprep.subr.mxu0 %v2383
        %2449 = vmatpush1.msra.mxu0 %v2382
        %2450 = vmatprep.subr.mxu0 0.0
        %2451 = vmatpush1.msra.mxu0 0.0
        %2452 = vmatprep.subr.mxu0 0.0
        %2453 = vmatpush1.msra.mxu0 0.0
        %2454 = vmatprep.subr.mxu0 0.0
        %2455 = vmatpush1.msra.mxu0 0.0
        %2456 = vmatprep.subr.mxu0 0.0
        %2457 = vmatpush1.msra.mxu0 0.0
        %2458 = vmatprep.subr.mxu0 0.0
        %2459 = vmatpush1.msra.mxu0 0.0
        %2460 = vmatprep.subr.mxu0 0.0
        %2461 = vmatpush1.msra.mxu0 0.0
        %2462 = vmatprep.subr.mxu0 0.0
        %2463 = vmatpush1.msra.mxu0 0.0
        %2464 = vmatprep.subr.mxu0 0.0
        %2465 = vmatpush1.msra.mxu0 0.0
        %2466 = vmatprep.subr.mxu0 0.0
        %2467 = vmatpush1.msra.mxu0 0.0
        %2468 = vmatprep.subr.mxu0 0.0
        %2469 = vmatpush1.msra.mxu0 0.0
        %2470 = vmatprep.subr.mxu0 0.0
        %2471 = vmatpush1.msra.mxu0 0.0
        %2472 = vmatprep.subr.mxu0 0.0
        %2473 = vmatpush1.msra.mxu0 0.0
        %2474 = vmatprep.subr.mxu0 0.0
        %2475 = vmatpush1.msra.mxu0 0.0
        %2476 = vmatprep.subr.mxu0 0.0
        %2477 = vmatpush1.msra.mxu0 0.0
        %2478 = vmatprep.subr.mxu0 0.0
        %2479 = vmatpush1.msra.mxu0 0.0
        %2480 = vmatprep.subr.mxu0 0.0
        %2481 = vmatpush1.msra.mxu0 0.0
        %2482 = vmatprep.subr.mxu0 0.0
        %2483 = vmatpush1.msra.mxu0 0.0
        %2484 = vmatprep.subr.mxu0 0.0
        %2485 = vmatpush1.msra.mxu0 0.0
        %2486 = vmatprep.subr.mxu0 0.0
        %2487 = vmatpush1.msra.mxu0 0.0
        %2488 = vmatprep.subr.mxu0 0.0
        %2489 = vmatpush1.msra.mxu0 0.0
        %2490 = vmatprep.subr.mxu0 0.0
        %2491 = vmatpush1.msra.mxu0 0.0
        %2492 = vmatprep.subr.mxu0 0.0
        %2493 = vmatpush1.msra.mxu0 0.0
        %2494 = vmatprep.subr.mxu0 0.0
        %2495 = vmatpush1.msra.mxu0 0.0
        %2496 = vmatprep.subr.mxu0 0.0
        %2497 = vmatpush1.msra.mxu0 0.0
        %2498 = vmatprep.subr.mxu0 0.0
        %2499 = vmatpush1.msra.mxu0 0.0
        %2500 = vmatprep.subr.mxu0 0.0
        %2501 = vmatpush1.msra.mxu0 0.0
        %2502 = vmatprep.mubr.f32.mxu0 0.0
        %2503 = vmatmul.mubr.f32.gmra.mrb[0].mxu0 %v2433
        %v2504 = vpop.f32.mrb[0].mxu0
        %v2505 = vadd.f32 0.0, %v2504
        %v2506 = vpop.f32.mrb[0].mxu0
        %v2507 = vadd.f32 0.0, %v2506
        %2508 = vmatprep.mubr.f32.mxu0 0.0
        %2509 = vmatmul.mubr.f32.gmra.mrb[0].mxu0 %v2436
        %v2510 = vpop.f32.mrb[0].mxu0
        %v2511 = vadd.f32 0.0, %v2510
        %v2512 = vpop.f32.mrb[0].mxu0
        %v2513 = vadd.f32 0.0, %v2512
        %2514 = vdwg.mxu0
        %2515 = vmatprep.subr.mxu0 %v2350
        %2516 = vmatpush1.msra.mxu0 %v2349
        %2517 = vmatprep.subr.mxu0 %v2357
        %2518 = vmatpush1.msra.mxu0 %v2356
        %2519 = vmatprep.subr.mxu0 %v2364
        %2520 = vmatpush1.msra.mxu0 %v2363
        %2521 = vmatprep.subr.mxu0 %v2371
        %2522 = vmatpush1.msra.mxu0 %v2370
        %2523 = vmatprep.subr.mxu0 %v2378
        %2524 = vmatpush1.msra.mxu0 %v2377
        %2525 = vmatprep.subr.mxu0 %v2385
        %2526 = vmatpush1.msra.mxu0 %v2384
        %2527 = vmatprep.subr.mxu0 0.0
        %2528 = vmatpush1.msra.mxu0 0.0
        %2529 = vmatprep.subr.mxu0 0.0
        %2530 = vmatpush1.msra.mxu0 0.0
        %2531 = vmatprep.subr.mxu0 0.0
        %2532 = vmatpush1.msra.mxu0 0.0
        %2533 = vmatprep.subr.mxu0 0.0
        %2534 = vmatpush1.msra.mxu0 0.0
        %2535 = vmatprep.subr.mxu0 0.0
        %2536 = vmatpush1.msra.mxu0 0.0
        %2537 = vmatprep.subr.mxu0 0.0
        %2538 = vmatpush1.msra.mxu0 0.0
        %2539 = vmatprep.subr.mxu0 0.0
        %2540 = vmatpush1.msra.mxu0 0.0
        %2541 = vmatprep.subr.mxu0 0.0
        %2542 = vmatpush1.msra.mxu0 0.0
        %2543 = vmatprep.subr.mxu0 0.0
        %2544 = vmatpush1.msra.mxu0 0.0
        %2545 = vmatprep.subr.mxu0 0.0
        %2546 = vmatpush1.msra.mxu0 0.0
        %2547 = vmatprep.subr.mxu0 0.0
        %2548 = vmatpush1.msra.mxu0 0.0
        %2549 = vmatprep.subr.mxu0 0.0
        %2550 = vmatpush1.msra.mxu0 0.0
        %2551 = vmatprep.subr.mxu0 0.0
        %2552 = vmatpush1.msra.mxu0 0.0
        %2553 = vmatprep.subr.mxu0 0.0
        %2554 = vmatpush1.msra.mxu0 0.0
        %2555 = vmatprep.subr.mxu0 0.0
        %2556 = vmatpush1.msra.mxu0 0.0
        %2557 = vmatprep.subr.mxu0 0.0
        %2558 = vmatpush1.msra.mxu0 0.0
        %2559 = vmatprep.subr.mxu0 0.0
        %2560 = vmatpush1.msra.mxu0 0.0
        %2561 = vmatprep.subr.mxu0 0.0
        %2562 = vmatpush1.msra.mxu0 0.0
        %2563 = vmatprep.subr.mxu0 0.0
        %2564 = vmatpush1.msra.mxu0 0.0
        %2565 = vmatprep.subr.mxu0 0.0
        %2566 = vmatpush1.msra.mxu0 0.0
        %2567 = vmatprep.subr.mxu0 0.0
        %2568 = vmatpush1.msra.mxu0 0.0
        %2569 = vmatprep.subr.mxu0 0.0
        %2570 = vmatpush1.msra.mxu0 0.0
        %2571 = vmatprep.subr.mxu0 0.0
        %2572 = vmatpush1.msra.mxu0 0.0
        %2573 = vmatprep.subr.mxu0 0.0
        %2574 = vmatpush1.msra.mxu0 0.0
        %2575 = vmatprep.subr.mxu0 0.0
        %2576 = vmatpush1.msra.mxu0 0.0
        %2577 = vmatprep.subr.mxu0 0.0
        %2578 = vmatpush1.msra.mxu0 0.0
        %2579 = vmatprep.mubr.f32.mxu0 0.0
        %2580 = vmatmul.mubr.f32.gmra.mrb[0].mxu0 %v2433
        %v2581 = vpop.f32.mrb[0].mxu0
        %v2582 = vadd.f32 0.0, %v2581
        %v2583 = vpop.f32.mrb[0].mxu0
        %v2584 = vadd.f32 0.0, %v2583
        %2585 = vmatprep.mubr.f32.mxu0 0.0
        %2586 = vmatmul.mubr.f32.gmra.mrb[0].mxu0 %v2436
        %v2587 = vpop.f32.mrb[0].mxu0
        %v2588 = vadd.f32 0.0, %v2587
        %v2589 = vpop.f32.mrb[0].mxu0
        %v2590 = vadd.f32 0.0, %v2589
        %2591 = vdwg.mxu0
        %2592 = vmatprep.subr.mxu0 %v2352
        %2593 = vmatpush1.msra.mxu0 %v2351
        %2594 = vmatprep.subr.mxu0 %v2359
        %2595 = vmatpush1.msra.mxu0 %v2358
        %2596 = vmatprep.subr.mxu0 %v2366
        %2597 = vmatpush1.msra.mxu0 %v2365
        %2598 = vmatprep.subr.mxu0 %v2373
        %2599 = vmatpush1.msra.mxu0 %v2372
        %2600 = vmatprep.subr.mxu0 %v2380
        %2601 = vmatpush1.msra.mxu0 %v2379
        %2602 = vmatprep.subr.mxu0 %v2387
        %2603 = vmatpush1.msra.mxu0 %v2386
        %2604 = vmatprep.subr.mxu0 0.0
        %2605 = vmatpush1.msra.mxu0 0.0
        %2606 = vmatprep.subr.mxu0 0.0
        %2607 = vmatpush1.msra.mxu0 0.0
        %2608 = vmatprep.subr.mxu0 0.0
        %2609 = vmatpush1.msra.mxu0 0.0
        %2610 = vmatprep.subr.mxu0 0.0
        %2611 = vmatpush1.msra.mxu0 0.0
        %2612 = vmatprep.subr.mxu0 0.0
        %2613 = vmatpush1.msra.mxu0 0.0
        %2614 = vmatprep.subr.mxu0 0.0
        %2615 = vmatpush1.msra.mxu0 0.0
        %2616 = vmatprep.subr.mxu0 0.0
        %2617 = vmatpush1.msra.mxu0 0.0
        %2618 = vmatprep.subr.mxu0 0.0
        %2619 = vmatpush1.msra.mxu0 0.0
        %2620 = vmatprep.subr.mxu0 0.0
        %2621 = vmatpush1.msra.mxu0 0.0
        %2622 = vmatprep.subr.mxu0 0.0
        %2623 = vmatpush1.msra.mxu0 0.0
        %2624 = vmatprep.subr.mxu0 0.0
        %2625 = vmatpush1.msra.mxu0 0.0
        %2626 = vmatprep.subr.mxu0 0.0
        %2627 = vmatpush1.msra.mxu0 0.0
        %2628 = vmatprep.subr.mxu0 0.0
        %2629 = vmatpush1.msra.mxu0 0.0
        %2630 = vmatprep.subr.mxu0 0.0
        %2631 = vmatpush1.msra.mxu0 0.0
        %2632 = vmatprep.subr.mxu0 0.0
        %2633 = vmatpush1.msra.mxu0 0.0
        %2634 = vmatprep.subr.mxu0 0.0
        %2635 = vmatpush1.msra.mxu0 0.0
        %2636 = vmatprep.subr.mxu0 0.0
        %2637 = vmatpush1.msra.mxu0 0.0
        %2638 = vmatprep.subr.mxu0 0.0
        %2639 = vmatpush1.msra.mxu0 0.0
        %2640 = vmatprep.subr.mxu0 0.0
        %2641 = vmatpush1.msra.mxu0 0.0
        %2642 = vmatprep.subr.mxu0 0.0
        %2643 = vmatpush1.msra.mxu0 0.0
        %2644 = vmatprep.subr.mxu0 0.0
        %2645 = vmatpush1.msra.mxu0 0.0
        %2646 = vmatprep.subr.mxu0 0.0
        %2647 = vmatpush1.msra.mxu0 0.0
        %2648 = vmatprep.subr.mxu0 0.0
        %2649 = vmatpush1.msra.mxu0 0.0
        %2650 = vmatprep.subr.mxu0 0.0
        %2651 = vmatpush1.msra.mxu0 0.0
        %2652 = vmatprep.subr.mxu0 0.0
        %2653 = vmatpush1.msra.mxu0 0.0
        %2654 = vmatprep.subr.mxu0 0.0
        %2655 = vmatpush1.msra.mxu0 0.0
        %2656 = vmatprep.mubr.f32.mxu0 0.0
        %2657 = vmatmul.mubr.f32.gmra.mrb[0].mxu0 %v2433
        %v2658 = vpop.f32.mrb[0].mxu0
        %v2659 = vadd.f32 0.0, %v2658
        %v2660 = vpop.f32.mrb[0].mxu0
        %v2661 = vadd.f32 0.0, %v2660
        %2662 = vmatprep.mubr.f32.mxu0 0.0
        %2663 = vmatmul.mubr.f32.gmra.mrb[0].mxu0 %v2436
        %v2664 = vpop.f32.mrb[0].mxu0
        %v2665 = vadd.f32 0.0, %v2664
        %v2666 = vpop.f32.mrb[0].mxu0
        %v2667 = vadd.f32 0.0, %v2666
        %2668 = vdwg.mxu0
        %2669 = vmatprep.subr.mxu0 0.0
        %2670 = vmatpush1.msra.mxu0 %v2353
        %2671 = vmatprep.subr.mxu0 0.0
        %2672 = vmatpush1.msra.mxu0 %v2360
        %2673 = vmatprep.subr.mxu0 0.0
        %2674 = vmatpush1.msra.mxu0 %v2367
        %2675 = vmatprep.subr.mxu0 0.0
        %2676 = vmatpush1.msra.mxu0 %v2374
        %2677 = vmatprep.subr.mxu0 0.0
        %2678 = vmatpush1.msra.mxu0 %v2381
        %2679 = vmatprep.subr.mxu0 0.0
        %2680 = vmatpush1.msra.mxu0 %v2388
        %2681 = vmatprep.subr.mxu0 0.0
        %2682 = vmatpush1.msra.mxu0 0.0
        %2683 = vmatprep.subr.mxu0 0.0
        %2684 = vmatpush1.msra.mxu0 0.0
        %2685 = vmatprep.subr.mxu0 0.0
        %2686 = vmatpush1.msra.mxu0 0.0
        %2687 = vmatprep.subr.mxu0 0.0
        %2688 = vmatpush1.msra.mxu0 0.0
        %2689 = vmatprep.subr.mxu0 0.0
        %2690 = vmatpush1.msra.mxu0 0.0
        %2691 = vmatprep.subr.mxu0 0.0
        %2692 = vmatpush1.msra.mxu0 0.0
        %2693 = vmatprep.subr.mxu0 0.0
        %2694 = vmatpush1.msra.mxu0 0.0
        %2695 = vmatprep.subr.mxu0 0.0
        %2696 = vmatpush1.msra.mxu0 0.0
        %2697 = vmatprep.subr.mxu0 0.0
        %2698 = vmatpush1.msra.mxu0 0.0
        %2699 = vmatprep.subr.mxu0 0.0
        %2700 = vmatpush1.msra.mxu0 0.0
        %2701 = vmatprep.subr.mxu0 0.0
        %2702 = vmatpush1.msra.mxu0 0.0
        %2703 = vmatprep.subr.mxu0 0.0
        %2704 = vmatpush1.msra.mxu0 0.0
        %2705 = vmatprep.subr.mxu0 0.0
        %2706 = vmatpush1.msra.mxu0 0.0
        %2707 = vmatprep.subr.mxu0 0.0
        %2708 = vmatpush1.msra.mxu0 0.0
        %2709 = vmatprep.subr.mxu0 0.0
        %2710 = vmatpush1.msra.mxu0 0.0
        %2711 = vmatprep.subr.mxu0 0.0
        %2712 = vmatpush1.msra.mxu0 0.0
        %2713 = vmatprep.subr.mxu0 0.0
        %2714 = vmatpush1.msra.mxu0 0.0
        %2715 = vmatprep.subr.mxu0 0.0
        %2716 = vmatpush1.msra.mxu0 0.0
        %2717 = vmatprep.subr.mxu0 0.0
        %2718 = vmatpush1.msra.mxu0 0.0
        %2719 = vmatprep.subr.mxu0 0.0
        %2720 = vmatpush1.msra.mxu0 0.0
        %2721 = vmatprep.subr.mxu0 0.0
        %2722 = vmatpush1.msra.mxu0 0.0
        %2723 = vmatprep.subr.mxu0 0.0
        %2724 = vmatpush1.msra.mxu0 0.0
        %2725 = vmatprep.subr.mxu0 0.0
        %2726 = vmatpush1.msra.mxu0 0.0
        %2727 = vmatprep.subr.mxu0 0.0
        %2728 = vmatpush1.msra.mxu0 0.0
        %2729 = vmatprep.subr.mxu0 0.0
        %2730 = vmatpush1.msra.mxu0 0.0
        %2731 = vmatprep.subr.mxu0 0.0
        %2732 = vmatpush1.msra.mxu0 0.0
        %2733 = vmatprep.mubr.f32.mxu0 0.0
        %2734 = vmatmul.mubr.f32.gmra.mrb[0].mxu0 %v2433
        %v2735 = vpop.f32.mrb[0].mxu0
        %v2736 = vadd.f32 0.0, %v2735
        %v2737 = vpop.f32.mrb[0].mxu0
        %2738 = vmatprep.mubr.f32.mxu0 0.0
        %2739 = vmatmul.mubr.f32.gmra.mrb[0].mxu0 %v2436
        %v2740 = vpop.f32.mrb[0].mxu0
        %v2741 = vadd.f32 0.0, %v2740
        %v2742 = vpop.f32.mrb[0].mxu0
        %2743 = vdwg.mxu0
        %v2745 = vsel %vm2431, %v2150, 0
        %v2748 = vsel %vm2431, %v2151, 0
        %2750 = vmatprep.subr.mxu0 %v2153
        %2751 = vmatpush1.msra.mxu0 %v2152
        %2752 = vmatprep.subr.mxu0 %v2160
        %2753 = vmatpush1.msra.mxu0 %v2159
        %2754 = vmatprep.subr.mxu0 %v2167
        %2755 = vmatpush1.msra.mxu0 %v2166
        %2756 = vmatprep.subr.mxu0 %v2174
        %2757 = vmatpush1.msra.mxu0 %v2173
        %2758 = vmatprep.subr.mxu0 %v2181
        %2759 = vmatpush1.msra.mxu0 %v2180
        %2760 = vmatprep.subr.mxu0 %v2188
        %2761 = vmatpush1.msra.mxu0 %v2187
        %2762 = vmatprep.subr.mxu0 0.0
        %2763 = vmatpush1.msra.mxu0 0.0
        %2764 = vmatprep.subr.mxu0 0.0
        %2765 = vmatpush1.msra.mxu0 0.0
        %2766 = vmatprep.subr.mxu0 0.0
        %2767 = vmatpush1.msra.mxu0 0.0
        %2768 = vmatprep.subr.mxu0 0.0
        %2769 = vmatpush1.msra.mxu0 0.0
        %2770 = vmatprep.subr.mxu0 0.0
        %2771 = vmatpush1.msra.mxu0 0.0
        %2772 = vmatprep.subr.mxu0 0.0
        %2773 = vmatpush1.msra.mxu0 0.0
        %2774 = vmatprep.subr.mxu0 0.0
        %2775 = vmatpush1.msra.mxu0 0.0
        %2776 = vmatprep.subr.mxu0 0.0
        %2777 = vmatpush1.msra.mxu0 0.0
        %2778 = vmatprep.subr.mxu0 0.0
        %2779 = vmatpush1.msra.mxu0 0.0
        %2780 = vmatprep.subr.mxu0 0.0
        %2781 = vmatpush1.msra.mxu0 0.0
        %2782 = vmatprep.subr.mxu0 0.0
        %2783 = vmatpush1.msra.mxu0 0.0
        %2784 = vmatprep.subr.mxu0 0.0
        %2785 = vmatpush1.msra.mxu0 0.0
        %2786 = vmatprep.subr.mxu0 0.0
        %2787 = vmatpush1.msra.mxu0 0.0
        %2788 = vmatprep.subr.mxu0 0.0
        %2789 = vmatpush1.msra.mxu0 0.0
        %2790 = vmatprep.subr.mxu0 0.0
        %2791 = vmatpush1.msra.mxu0 0.0
        %2792 = vmatprep.subr.mxu0 0.0
        %2793 = vmatpush1.msra.mxu0 0.0
        %2794 = vmatprep.subr.mxu0 0.0
        %2795 = vmatpush1.msra.mxu0 0.0
        %2796 = vmatprep.subr.mxu0 0.0
        %2797 = vmatpush1.msra.mxu0 0.0
        %2798 = vmatprep.subr.mxu0 0.0
        %2799 = vmatpush1.msra.mxu0 0.0
        %2800 = vmatprep.subr.mxu0 0.0
        %2801 = vmatpush1.msra.mxu0 0.0
        %2802 = vmatprep.subr.mxu0 0.0
        %2803 = vmatpush1.msra.mxu0 0.0
        %2804 = vmatprep.subr.mxu0 0.0
        %2805 = vmatpush1.msra.mxu0 0.0
        %2806 = vmatprep.subr.mxu0 0.0
        %2807 = vmatpush1.msra.mxu0 0.0
        %2808 = vmatprep.subr.mxu0 0.0
        %2809 = vmatpush1.msra.mxu0 0.0
        %2810 = vmatprep.subr.mxu0 0.0
        %2811 = vmatpush1.msra.mxu0 0.0
        %2812 = vmatprep.subr.mxu0 0.0
        %2813 = vmatpush1.msra.mxu0 0.0
        %2814 = vmatprep.mubr.f32.mxu0 0.0
        %2815 = vmatmul.mubr.f32.gmra.mrb[0].mxu0 %v2745
        %v2816 = vpop.f32.mrb[0].mxu0
        %v2817 = vadd.f32 %v2505, %v2816
        %v2818 = vpop.f32.mrb[0].mxu0
        %v2819 = vadd.f32 %v2507, %v2818
        %2820 = vmatprep.mubr.f32.mxu0 0.0
        %2821 = vmatmul.mubr.f32.gmra.mrb[0].mxu0 %v2748
        %v2822 = vpop.f32.mrb[0].mxu0
        %v2823 = vadd.f32 %v2511, %v2822
        %v2824 = vpop.f32.mrb[0].mxu0
        %v2825 = vadd.f32 %v2513, %v2824
        %2826 = vdwg.mxu0
        %2827 = vmatprep.subr.mxu0 %v2155
        %2828 = vmatpush1.msra.mxu0 %v2154
        %2829 = vmatprep.subr.mxu0 %v2162
        %2830 = vmatpush1.msra.mxu0 %v2161
        %2831 = vmatprep.subr.mxu0 %v2169
        %2832 = vmatpush1.msra.mxu0 %v2168
        %2833 = vmatprep.subr.mxu0 %v2176
        %2834 = vmatpush1.msra.mxu0 %v2175
        %2835 = vmatprep.subr.mxu0 %v2183
        %2836 = vmatpush1.msra.mxu0 %v2182
        %2837 = vmatprep.subr.mxu0 %v2190
        %2838 = vmatpush1.msra.mxu0 %v2189
        %2839 = vmatprep.subr.mxu0 0.0
        %2840 = vmatpush1.msra.mxu0 0.0
        %2841 = vmatprep.subr.mxu0 0.0
        %2842 = vmatpush1.msra.mxu0 0.0
        %2843 = vmatprep.subr.mxu0 0.0
        %2844 = vmatpush1.msra.mxu0 0.0
        %2845 = vmatprep.subr.mxu0 0.0
        %2846 = vmatpush1.msra.mxu0 0.0
        %2847 = vmatprep.subr.mxu0 0.0
        %2848 = vmatpush1.msra.mxu0 0.0
        %2849 = vmatprep.subr.mxu0 0.0
        %2850 = vmatpush1.msra.mxu0 0.0
        %2851 = vmatprep.subr.mxu0 0.0
        %2852 = vmatpush1.msra.mxu0 0.0
        %2853 = vmatprep.subr.mxu0 0.0
        %2854 = vmatpush1.msra.mxu0 0.0
        %2855 = vmatprep.subr.mxu0 0.0
        %2856 = vmatpush1.msra.mxu0 0.0
        %2857 = vmatprep.subr.mxu0 0.0
        %2858 = vmatpush1.msra.mxu0 0.0
        %2859 = vmatprep.subr.mxu0 0.0
        %2860 = vmatpush1.msra.mxu0 0.0
        %2861 = vmatprep.subr.mxu0 0.0
        %2862 = vmatpush1.msra.mxu0 0.0
        %2863 = vmatprep.subr.mxu0 0.0
        %2864 = vmatpush1.msra.mxu0 0.0
        %2865 = vmatprep.subr.mxu0 0.0
        %2866 = vmatpush1.msra.mxu0 0.0
        %2867 = vmatprep.subr.mxu0 0.0
        %2868 = vmatpush1.msra.mxu0 0.0
        %2869 = vmatprep.subr.mxu0 0.0
        %2870 = vmatpush1.msra.mxu0 0.0
        %2871 = vmatprep.subr.mxu0 0.0
        %2872 = vmatpush1.msra.mxu0 0.0
        %2873 = vmatprep.subr.mxu0 0.0
        %2874 = vmatpush1.msra.mxu0 0.0
        %2875 = vmatprep.subr.mxu0 0.0
        %2876 = vmatpush1.msra.mxu0 0.0
        %2877 = vmatprep.subr.mxu0 0.0
        %2878 = vmatpush1.msra.mxu0 0.0
        %2879 = vmatprep.subr.mxu0 0.0
        %2880 = vmatpush1.msra.mxu0 0.0
        %2881 = vmatprep.subr.mxu0 0.0
        %2882 = vmatpush1.msra.mxu0 0.0
        %2883 = vmatprep.subr.mxu0 0.0
        %2884 = vmatpush1.msra.mxu0 0.0
        %2885 = vmatprep.subr.mxu0 0.0
        %2886 = vmatpush1.msra.mxu0 0.0
        %2887 = vmatprep.subr.mxu0 0.0
        %2888 = vmatpush1.msra.mxu0 0.0
        %2889 = vmatprep.subr.mxu0 0.0
        %2890 = vmatpush1.msra.mxu0 0.0
        %2891 = vmatprep.mubr.f32.mxu0 0.0
        %2892 = vmatmul.mubr.f32.gmra.mrb[0].mxu0 %v2745
        %v2893 = vpop.f32.mrb[0].mxu0
        %v2894 = vadd.f32 %v2582, %v2893
        %v2895 = vpop.f32.mrb[0].mxu0
        %v2896 = vadd.f32 %v2584, %v2895
        %2897 = vmatprep.mubr.f32.mxu0 0.0
        %2898 = vmatmul.mubr.f32.gmra.mrb[0].mxu0 %v2748
        %v2899 = vpop.f32.mrb[0].mxu0
        %v2900 = vadd.f32 %v2588, %v2899
        %v2901 = vpop.f32.mrb[0].mxu0
        %v2902 = vadd.f32 %v2590, %v2901
        %2903 = vdwg.mxu0
        %2904 = vmatprep.subr.mxu0 %v2157
        %2905 = vmatpush1.msra.mxu0 %v2156
        %2906 = vmatprep.subr.mxu0 %v2164
        %2907 = vmatpush1.msra.mxu0 %v2163
        %2908 = vmatprep.subr.mxu0 %v2171
        %2909 = vmatpush1.msra.mxu0 %v2170
        %2910 = vmatprep.subr.mxu0 %v2178
        %2911 = vmatpush1.msra.mxu0 %v2177
        %2912 = vmatprep.subr.mxu0 %v2185
        %2913 = vmatpush1.msra.mxu0 %v2184
        %2914 = vmatprep.subr.mxu0 %v2192
        %2915 = vmatpush1.msra.mxu0 %v2191
        %2916 = vmatprep.subr.mxu0 0.0
        %2917 = vmatpush1.msra.mxu0 0.0
        %2918 = vmatprep.subr.mxu0 0.0
        %2919 = vmatpush1.msra.mxu0 0.0
        %2920 = vmatprep.subr.mxu0 0.0
        %2921 = vmatpush1.msra.mxu0 0.0
        %2922 = vmatprep.subr.mxu0 0.0
        %2923 = vmatpush1.msra.mxu0 0.0
        %2924 = vmatprep.subr.mxu0 0.0
        %2925 = vmatpush1.msra.mxu0 0.0
        %2926 = vmatprep.subr.mxu0 0.0
        %2927 = vmatpush1.msra.mxu0 0.0
        %2928 = vmatprep.subr.mxu0 0.0
        %2929 = vmatpush1.msra.mxu0 0.0
        %2930 = vmatprep.subr.mxu0 0.0
        %2931 = vmatpush1.msra.mxu0 0.0
        %2932 = vmatprep.subr.mxu0 0.0
        %2933 = vmatpush1.msra.mxu0 0.0
        %2934 = vmatprep.subr.mxu0 0.0
        %2935 = vmatpush1.msra.mxu0 0.0
        %2936 = vmatprep.subr.mxu0 0.0
        %2937 = vmatpush1.msra.mxu0 0.0
        %2938 = vmatprep.subr.mxu0 0.0
        %2939 = vmatpush1.msra.mxu0 0.0
        %2940 = vmatprep.subr.mxu0 0.0
        %2941 = vmatpush1.msra.mxu0 0.0
        %2942 = vmatprep.subr.mxu0 0.0
        %2943 = vmatpush1.msra.mxu0 0.0
        %2944 = vmatprep.subr.mxu0 0.0
        %2945 = vmatpush1.msra.mxu0 0.0
        %2946 = vmatprep.subr.mxu0 0.0
        %2947 = vmatpush1.msra.mxu0 0.0
        %2948 = vmatprep.subr.mxu0 0.0
        %2949 = vmatpush1.msra.mxu0 0.0
        %2950 = vmatprep.subr.mxu0 0.0
        %2951 = vmatpush1.msra.mxu0 0.0
        %2952 = vmatprep.subr.mxu0 0.0
        %2953 = vmatpush1.msra.mxu0 0.0
        %2954 = vmatprep.subr.mxu0 0.0
        %2955 = vmatpush1.msra.mxu0 0.0
        %2956 = vmatprep.subr.mxu0 0.0
        %2957 = vmatpush1.msra.mxu0 0.0
        %2958 = vmatprep.subr.mxu0 0.0
        %2959 = vmatpush1.msra.mxu0 0.0
        %2960 = vmatprep.subr.mxu0 0.0
        %2961 = vmatpush1.msra.mxu0 0.0
        %2962 = vmatprep.subr.mxu0 0.0
        %2963 = vmatpush1.msra.mxu0 0.0
        %2964 = vmatprep.subr.mxu0 0.0
        %2965 = vmatpush1.msra.mxu0 0.0
        %2966 = vmatprep.subr.mxu0 0.0
        %2967 = vmatpush1.msra.mxu0 0.0
        %2968 = vmatprep.mubr.f32.mxu0 0.0
        %2969 = vmatmul.mubr.f32.gmra.mrb[0].mxu0 %v2745
        %v2970 = vpop.f32.mrb[0].mxu0
        %v2971 = vadd.f32 %v2659, %v2970
        %v2972 = vpop.f32.mrb[0].mxu0
        %v2973 = vadd.f32 %v2661, %v2972
        %2974 = vmatprep.mubr.f32.mxu0 0.0
        %2975 = vmatmul.mubr.f32.gmra.mrb[0].mxu0 %v2748
        %v2976 = vpop.f32.mrb[0].mxu0
        %v2977 = vadd.f32 %v2665, %v2976
        %v2978 = vpop.f32.mrb[0].mxu0
        %v2979 = vadd.f32 %v2667, %v2978
        %2980 = vdwg.mxu0
        %2981 = vmatprep.subr.mxu0 0.0
        %2982 = vmatpush1.msra.mxu0 %v2158
        %2983 = vmatprep.subr.mxu0 0.0
        %2984 = vmatpush1.msra.mxu0 %v2165
        %2985 = vmatprep.subr.mxu0 0.0
        %2986 = vmatpush1.msra.mxu0 %v2172
        %2987 = vmatprep.subr.mxu0 0.0
        %2988 = vmatpush1.msra.mxu0 %v2179
        %2989 = vmatprep.subr.mxu0 0.0
        %2990 = vmatpush1.msra.mxu0 %v2186
        %2991 = vmatprep.subr.mxu0 0.0
        %2992 = vmatpush1.msra.mxu0 %v2193
        %2993 = vmatprep.subr.mxu0 0.0
        %2994 = vmatpush1.msra.mxu0 0.0
        %2995 = vmatprep.subr.mxu0 0.0
        %2996 = vmatpush1.msra.mxu0 0.0
        %2997 = vmatprep.subr.mxu0 0.0
        %2998 = vmatpush1.msra.mxu0 0.0
        %2999 = vmatprep.subr.mxu0 0.0
        %3000 = vmatpush1.msra.mxu0 0.0
        %3001 = vmatprep.subr.mxu0 0.0
        %3002 = vmatpush1.msra.mxu0 0.0
        %3003 = vmatprep.subr.mxu0 0.0
        %3004 = vmatpush1.msra.mxu0 0.0
        %3005 = vmatprep.subr.mxu0 0.0
        %3006 = vmatpush1.msra.mxu0 0.0
        %3007 = vmatprep.subr.mxu0 0.0
        %3008 = vmatpush1.msra.mxu0 0.0
        %3009 = vmatprep.subr.mxu0 0.0
        %3010 = vmatpush1.msra.mxu0 0.0
        %3011 = vmatprep.subr.mxu0 0.0
        %3012 = vmatpush1.msra.mxu0 0.0
        %3013 = vmatprep.subr.mxu0 0.0
        %3014 = vmatpush1.msra.mxu0 0.0
        %3015 = vmatprep.subr.mxu0 0.0
        %3016 = vmatpush1.msra.mxu0 0.0
        %3017 = vmatprep.subr.mxu0 0.0
        %3018 = vmatpush1.msra.mxu0 0.0
        %3019 = vmatprep.subr.mxu0 0.0
        %3020 = vmatpush1.msra.mxu0 0.0
        %3021 = vmatprep.subr.mxu0 0.0
        %3022 = vmatpush1.msra.mxu0 0.0
        %3023 = vmatprep.subr.mxu0 0.0
        %3024 = vmatpush1.msra.mxu0 0.0
        %3025 = vmatprep.subr.mxu0 0.0
        %3026 = vmatpush1.msra.mxu0 0.0
        %3027 = vmatprep.subr.mxu0 0.0
        %3028 = vmatpush1.msra.mxu0 0.0
        %3029 = vmatprep.subr.mxu0 0.0
        %3030 = vmatpush1.msra.mxu0 0.0
        %3031 = vmatprep.subr.mxu0 0.0
        %3032 = vmatpush1.msra.mxu0 0.0
        %3033 = vmatprep.subr.mxu0 0.0
        %3034 = vmatpush1.msra.mxu0 0.0
        %3035 = vmatprep.subr.mxu0 0.0
        %3036 = vmatpush1.msra.mxu0 0.0
        %3037 = vmatprep.subr.mxu0 0.0
        %3038 = vmatpush1.msra.mxu0 0.0
        %3039 = vmatprep.subr.mxu0 0.0
        %3040 = vmatpush1.msra.mxu0 0.0
        %3041 = vmatprep.subr.mxu0 0.0
        %3042 = vmatpush1.msra.mxu0 0.0
        %3043 = vmatprep.subr.mxu0 0.0
        %3044 = vmatpush1.msra.mxu0 0.0
        %3045 = vmatprep.mubr.f32.mxu0 0.0
        %3046 = vmatmul.mubr.f32.gmra.mrb[0].mxu0 %v2745
        %v3047 = vpop.f32.mrb[0].mxu0
        %v3048 = vadd.f32 %v2736, %v3047
        %v3049 = vpop.f32.mrb[0].mxu0
        %3050 = vmatprep.mubr.f32.mxu0 0.0
        %3051 = vmatmul.mubr.f32.gmra.mrb[0].mxu0 %v2748
        %v3052 = vpop.f32.mrb[0].mxu0
        %v3053 = vadd.f32 %v2741, %v3052
        %v3054 = vpop.f32.mrb[0].mxu0
        %3055 = vdwg.mxu0
        %s3056 = scalar_lea.vmem %s3, 32
        %v3057 = vld [vmem:[%s3056] sm:$0xff]
        %v3058 = vld [vmem:[%s3056 + $0x8] sm:$0xff]
        %3059 = vrot.lane.b32.xlu0 %v2152, 64
        %v3060 = vpop.permute.xlu0 %3059
        %3061 = vrot.lane.b32.xlu0 %v2153, 64
        %v3062 = vpop.permute.xlu0 %3061
        %3063 = vrot.lane.b32.xlu0 %v2154, 64
        %v3064 = vpop.permute.xlu0 %3063
        %3065 = vrot.lane.b32.xlu0 %v2155, 64
        %v3066 = vpop.permute.xlu0 %3065
        %3067 = vrot.lane.b32.xlu0 %v2156, 64
        %v3068 = vpop.permute.xlu0 %3067
        %3069 = vrot.lane.b32.xlu0 %v2157, 64
        %v3070 = vpop.permute.xlu0 %3069
        %3071 = vrot.lane.b32.xlu0 %v2158, 64
        %v3072 = vpop.permute.xlu0 %3071
        %3073 = vrot.lane.b32.xlu0 %v2197, 64
        %v3074 = vpop.permute.xlu0 %3073
        %3075 = vrot.lane.b32.xlu0 %v2159, 64
        %v3076 = vpop.permute.xlu0 %3075
        %3077 = vrot.lane.b32.xlu0 %v2160, 64
        %v3078 = vpop.permute.xlu0 %3077
        %3079 = vrot.lane.b32.xlu0 %v2161, 64
        %v3080 = vpop.permute.xlu0 %3079
        %3081 = vrot.lane.b32.xlu0 %v2162, 64
        %v3082 = vpop.permute.xlu0 %3081
        %3083 = vrot.lane.b32.xlu0 %v2163, 64
        %v3084 = vpop.permute.xlu0 %3083
        %3085 = vrot.lane.b32.xlu0 %v2164, 64
        %v3086 = vpop.permute.xlu0 %3085
        %3087 = vrot.lane.b32.xlu0 %v2165, 64
        %v3088 = vpop.permute.xlu0 %3087
        %3089 = vrot.lane.b32.xlu0 %v2198, 64
        %v3090 = vpop.permute.xlu0 %3089
        %3091 = vrot.lane.b32.xlu0 %v2166, 64
        %v3092 = vpop.permute.xlu0 %3091
        %3093 = vrot.lane.b32.xlu0 %v2167, 64
        %v3094 = vpop.permute.xlu0 %3093
        %3095 = vrot.lane.b32.xlu0 %v2168, 64
        %v3096 = vpop.permute.xlu0 %3095
        %3097 = vrot.lane.b32.xlu0 %v2169, 64
        %v3098 = vpop.permute.xlu0 %3097
        %3099 = vrot.lane.b32.xlu0 %v2170, 64
        %v3100 = vpop.permute.xlu0 %3099
        %3101 = vrot.lane.b32.xlu0 %v2171, 64
        %v3102 = vpop.permute.xlu0 %3101
        %3103 = vrot.lane.b32.xlu0 %v2172, 64
        %v3104 = vpop.permute.xlu0 %3103
        %3105 = vrot.lane.b32.xlu0 %v2199, 64
        %v3106 = vpop.permute.xlu0 %3105
        %3107 = vrot.lane.b32.xlu0 %v2173, 64
        %v3108 = vpop.permute.xlu0 %3107
        %3109 = vrot.lane.b32.xlu0 %v2174, 64
        %v3110 = vpop.permute.xlu0 %3109
        %3111 = vrot.lane.b32.xlu0 %v2175, 64
        %v3112 = vpop.permute.xlu0 %3111
        %3113 = vrot.lane.b32.xlu0 %v2176, 64
        %v3114 = vpop.permute.xlu0 %3113
        %3115 = vrot.lane.b32.xlu0 %v2177, 64
        %v3116 = vpop.permute.xlu0 %3115
        %3117 = vrot.lane.b32.xlu0 %v2178, 64
        %v3118 = vpop.permute.xlu0 %3117
        %3119 = vrot.lane.b32.xlu0 %v2179, 64
        %v3120 = vpop.permute.xlu0 %3119
        %3121 = vrot.lane.b32.xlu0 %v2200, 64
        %v3122 = vpop.permute.xlu0 %3121
        %3123 = vrot.lane.b32.xlu0 %v2180, 64
        %v3124 = vpop.permute.xlu0 %3123
        %3125 = vrot.lane.b32.xlu0 %v2181, 64
        %v3126 = vpop.permute.xlu0 %3125
        %3127 = vrot.lane.b32.xlu0 %v2182, 64
        %v3128 = vpop.permute.xlu0 %3127
        %3129 = vrot.lane.b32.xlu0 %v2183, 64
        %v3130 = vpop.permute.xlu0 %3129
        %3131 = vrot.lane.b32.xlu0 %v2184, 64
        %v3132 = vpop.permute.xlu0 %3131
        %3133 = vrot.lane.b32.xlu0 %v2185, 64
        %v3134 = vpop.permute.xlu0 %3133
        %3135 = vrot.lane.b32.xlu0 %v2186, 64
        %v3136 = vpop.permute.xlu0 %3135
        %3137 = vrot.lane.b32.xlu0 %v2201, 64
        %v3138 = vpop.permute.xlu0 %3137
        %3139 = vrot.lane.b32.xlu0 %v2187, 64
        %v3140 = vpop.permute.xlu0 %3139
        %3141 = vrot.lane.b32.xlu0 %v2188, 64
        %v3142 = vpop.permute.xlu0 %3141
        %3143 = vrot.lane.b32.xlu0 %v2189, 64
        %v3144 = vpop.permute.xlu0 %3143
        %3145 = vrot.lane.b32.xlu0 %v2190, 64
        %v3146 = vpop.permute.xlu0 %3145
        %3147 = vrot.lane.b32.xlu0 %v2191, 64
        %v3148 = vpop.permute.xlu0 %3147
        %3149 = vrot.lane.b32.xlu0 %v2192, 64
        %v3150 = vpop.permute.xlu0 %3149
        %3151 = vrot.lane.b32.xlu0 %v2193, 64
        %v3152 = vpop.permute.xlu0 %3151
        %3153 = vrot.lane.b32.xlu0 %v2202, 64
        %v3154 = vpop.permute.xlu0 %3153
        %v3155 = vsel %vm484, %v3060, %v3062
        %v3156 = vsel %vm484, %v3062, %v3064
        %v3157 = vsel %vm484, %v3064, %v3066
        %v3158 = vsel %vm484, %v3066, %v3068
        %v3159 = vsel %vm484, %v3068, %v3070
        %v3160 = vsel %vm484, %v3070, %v3072
        %v3161 = vsel %vm484, %v3072, %v3074
        %v3162 = vsel %vm484, %v3076, %v3078
        %v3163 = vsel %vm484, %v3078, %v3080
        %v3164 = vsel %vm484, %v3080, %v3082
        %v3165 = vsel %vm484, %v3082, %v3084
        %v3166 = vsel %vm484, %v3084, %v3086
        %v3167 = vsel %vm484, %v3086, %v3088
        %v3168 = vsel %vm484, %v3088, %v3090
        %v3169 = vsel %vm484, %v3092, %v3094
        %v3170 = vsel %vm484, %v3094, %v3096
        %v3171 = vsel %vm484, %v3096, %v3098
        %v3172 = vsel %vm484, %v3098, %v3100
        %v3173 = vsel %vm484, %v3100, %v3102
        %v3174 = vsel %vm484, %v3102, %v3104
        %v3175 = vsel %vm484, %v3104, %v3106
        %v3176 = vsel %vm484, %v3108, %v3110
        %v3177 = vsel %vm484, %v3110, %v3112
        %v3178 = vsel %vm484, %v3112, %v3114
        %v3179 = vsel %vm484, %v3114, %v3116
        %v3180 = vsel %vm484, %v3116, %v3118
        %v3181 = vsel %vm484, %v3118, %v3120
        %v3182 = vsel %vm484, %v3120, %v3122
        %v3183 = vsel %vm484, %v3124, %v3126
        %v3184 = vsel %vm484, %v3126, %v3128
        %v3185 = vsel %vm484, %v3128, %v3130
        %v3186 = vsel %vm484, %v3130, %v3132
        %v3187 = vsel %vm484, %v3132, %v3134
        %v3188 = vsel %vm484, %v3134, %v3136
        %v3189 = vsel %vm484, %v3136, %v3138
        %v3190 = vsel %vm484, %v3140, %v3142
        %v3191 = vsel %vm484, %v3142, %v3144
        %v3192 = vsel %vm484, %v3144, %v3146
        %v3193 = vsel %vm484, %v3146, %v3148
        %v3194 = vsel %vm484, %v3148, %v3150
        %v3195 = vsel %vm484, %v3150, %v3152
        %v3196 = vsel %vm484, %v3152, %v3154
        %v3240 = vsel %vm2431, %v3057, 0
        %v3243 = vsel %vm2431, %v3058, 0
        %3245 = vmatprep.subr.mxu0 %v3156
        %3246 = vmatpush1.msra.mxu0 %v3155
        %3247 = vmatprep.subr.mxu0 %v3163
        %3248 = vmatpush1.msra.mxu0 %v3162
        %3249 = vmatprep.subr.mxu0 %v3170
        %3250 = vmatpush1.msra.mxu0 %v3169
        %3251 = vmatprep.subr.mxu0 %v3177
        %3252 = vmatpush1.msra.mxu0 %v3176
        %3253 = vmatprep.subr.mxu0 %v3184
        %3254 = vmatpush1.msra.mxu0 %v3183
        %3255 = vmatprep.subr.mxu0 %v3191
        %3256 = vmatpush1.msra.mxu0 %v3190
        %3257 = vmatprep.subr.mxu0 0.0
        %3258 = vmatpush1.msra.mxu0 0.0
        %3259 = vmatprep.subr.mxu0 0.0
        %3260 = vmatpush1.msra.mxu0 0.0
        %3261 = vmatprep.subr.mxu0 0.0
        %3262 = vmatpush1.msra.mxu0 0.0
        %3263 = vmatprep.subr.mxu0 0.0
        %3264 = vmatpush1.msra.mxu0 0.0
        %3265 = vmatprep.subr.mxu0 0.0
        %3266 = vmatpush1.msra.mxu0 0.0
        %3267 = vmatprep.subr.mxu0 0.0
        %3268 = vmatpush1.msra.mxu0 0.0
        %3269 = vmatprep.subr.mxu0 0.0
        %3270 = vmatpush1.msra.mxu0 0.0
        %3271 = vmatprep.subr.mxu0 0.0
        %3272 = vmatpush1.msra.mxu0 0.0
        %3273 = vmatprep.subr.mxu0 0.0
        %3274 = vmatpush1.msra.mxu0 0.0
        %3275 = vmatprep.subr.mxu0 0.0
        %3276 = vmatpush1.msra.mxu0 0.0
        %3277 = vmatprep.subr.mxu0 0.0
        %3278 = vmatpush1.msra.mxu0 0.0
        %3279 = vmatprep.subr.mxu0 0.0
        %3280 = vmatpush1.msra.mxu0 0.0
        %3281 = vmatprep.subr.mxu0 0.0
        %3282 = vmatpush1.msra.mxu0 0.0
        %3283 = vmatprep.subr.mxu0 0.0
        %3284 = vmatpush1.msra.mxu0 0.0
        %3285 = vmatprep.subr.mxu0 0.0
        %3286 = vmatpush1.msra.mxu0 0.0
        %3287 = vmatprep.subr.mxu0 0.0
        %3288 = vmatpush1.msra.mxu0 0.0
        %3289 = vmatprep.subr.mxu0 0.0
        %3290 = vmatpush1.msra.mxu0 0.0
        %3291 = vmatprep.subr.mxu0 0.0
        %3292 = vmatpush1.msra.mxu0 0.0
        %3293 = vmatprep.subr.mxu0 0.0
        %3294 = vmatpush1.msra.mxu0 0.0
        %3295 = vmatprep.subr.mxu0 0.0
        %3296 = vmatpush1.msra.mxu0 0.0
        %3297 = vmatprep.subr.mxu0 0.0
        %3298 = vmatpush1.msra.mxu0 0.0
        %3299 = vmatprep.subr.mxu0 0.0
        %3300 = vmatpush1.msra.mxu0 0.0
        %3301 = vmatprep.subr.mxu0 0.0
        %3302 = vmatpush1.msra.mxu0 0.0
        %3303 = vmatprep.subr.mxu0 0.0
        %3304 = vmatpush1.msra.mxu0 0.0
        %3305 = vmatprep.subr.mxu0 0.0
        %3306 = vmatpush1.msra.mxu0 0.0
        %3307 = vmatprep.subr.mxu0 0.0
        %3308 = vmatpush1.msra.mxu0 0.0
        %3309 = vmatprep.mubr.f32.mxu0 0.0
        %3310 = vmatmul.mubr.f32.gmra.mrb[0].mxu0 %v3240
        %v3311 = vpop.f32.mrb[0].mxu0
        %v3312 = vadd.f32 0.0, %v3311
        %v3313 = vpop.f32.mrb[0].mxu0
        %v3314 = vadd.f32 0.0, %v3313
        %3315 = vmatprep.mubr.f32.mxu0 0.0
        %3316 = vmatmul.mubr.f32.gmra.mrb[0].mxu0 %v3243
        %v3317 = vpop.f32.mrb[0].mxu0
        %v3318 = vadd.f32 0.0, %v3317
        %v3319 = vpop.f32.mrb[0].mxu0
        %v3320 = vadd.f32 0.0, %v3319
        %3321 = vdwg.mxu0
        %3322 = vmatprep.subr.mxu0 %v3158
        %3323 = vmatpush1.msra.mxu0 %v3157
        %3324 = vmatprep.subr.mxu0 %v3165
        %3325 = vmatpush1.msra.mxu0 %v3164
        %3326 = vmatprep.subr.mxu0 %v3172
        %3327 = vmatpush1.msra.mxu0 %v3171
        %3328 = vmatprep.subr.mxu0 %v3179
        %3329 = vmatpush1.msra.mxu0 %v3178
        %3330 = vmatprep.subr.mxu0 %v3186
        %3331 = vmatpush1.msra.mxu0 %v3185
        %3332 = vmatprep.subr.mxu0 %v3193
        %3333 = vmatpush1.msra.mxu0 %v3192
        %3334 = vmatprep.subr.mxu0 0.0
        %3335 = vmatpush1.msra.mxu0 0.0
        %3336 = vmatprep.subr.mxu0 0.0
        %3337 = vmatpush1.msra.mxu0 0.0
        %3338 = vmatprep.subr.mxu0 0.0
        %3339 = vmatpush1.msra.mxu0 0.0
        %3340 = vmatprep.subr.mxu0 0.0
        %3341 = vmatpush1.msra.mxu0 0.0
        %3342 = vmatprep.subr.mxu0 0.0
        %3343 = vmatpush1.msra.mxu0 0.0
        %3344 = vmatprep.subr.mxu0 0.0
        %3345 = vmatpush1.msra.mxu0 0.0
        %3346 = vmatprep.subr.mxu0 0.0
        %3347 = vmatpush1.msra.mxu0 0.0
        %3348 = vmatprep.subr.mxu0 0.0
        %3349 = vmatpush1.msra.mxu0 0.0
        %3350 = vmatprep.subr.mxu0 0.0
        %3351 = vmatpush1.msra.mxu0 0.0
        %3352 = vmatprep.subr.mxu0 0.0
        %3353 = vmatpush1.msra.mxu0 0.0
        %3354 = vmatprep.subr.mxu0 0.0
        %3355 = vmatpush1.msra.mxu0 0.0
        %3356 = vmatprep.subr.mxu0 0.0
        %3357 = vmatpush1.msra.mxu0 0.0
        %3358 = vmatprep.subr.mxu0 0.0
        %3359 = vmatpush1.msra.mxu0 0.0
        %3360 = vmatprep.subr.mxu0 0.0
        %3361 = vmatpush1.msra.mxu0 0.0
        %3362 = vmatprep.subr.mxu0 0.0
        %3363 = vmatpush1.msra.mxu0 0.0
        %3364 = vmatprep.subr.mxu0 0.0
        %3365 = vmatpush1.msra.mxu0 0.0
        %3366 = vmatprep.subr.mxu0 0.0
        %3367 = vmatpush1.msra.mxu0 0.0
        %3368 = vmatprep.subr.mxu0 0.0
        %3369 = vmatpush1.msra.mxu0 0.0
        %3370 = vmatprep.subr.mxu0 0.0
        %3371 = vmatpush1.msra.mxu0 0.0
        %3372 = vmatprep.subr.mxu0 0.0
        %3373 = vmatpush1.msra.mxu0 0.0
        %3374 = vmatprep.subr.mxu0 0.0
        %3375 = vmatpush1.msra.mxu0 0.0
        %3376 = vmatprep.subr.mxu0 0.0
        %3377 = vmatpush1.msra.mxu0 0.0
        %3378 = vmatprep.subr.mxu0 0.0
        %3379 = vmatpush1.msra.mxu0 0.0
        %3380 = vmatprep.subr.mxu0 0.0
        %3381 = vmatpush1.msra.mxu0 0.0
        %3382 = vmatprep.subr.mxu0 0.0
        %3383 = vmatpush1.msra.mxu0 0.0
        %3384 = vmatprep.subr.mxu0 0.0
        %3385 = vmatpush1.msra.mxu0 0.0
        %3386 = vmatprep.mubr.f32.mxu0 0.0
        %3387 = vmatmul.mubr.f32.gmra.mrb[0].mxu0 %v3240
        %v3388 = vpop.f32.mrb[0].mxu0
        %v3389 = vadd.f32 0.0, %v3388
        %v3390 = vpop.f32.mrb[0].mxu0
        %v3391 = vadd.f32 0.0, %v3390
        %3392 = vmatprep.mubr.f32.mxu0 0.0
        %3393 = vmatmul.mubr.f32.gmra.mrb[0].mxu0 %v3243
        %v3394 = vpop.f32.mrb[0].mxu0
        %v3395 = vadd.f32 0.0, %v3394
        %v3396 = vpop.f32.mrb[0].mxu0
        %v3397 = vadd.f32 0.0, %v3396
        %3398 = vdwg.mxu0
        %3399 = vmatprep.subr.mxu0 %v3160
        %3400 = vmatpush1.msra.mxu0 %v3159
        %3401 = vmatprep.subr.mxu0 %v3167
        %3402 = vmatpush1.msra.mxu0 %v3166
        %3403 = vmatprep.subr.mxu0 %v3174
        %3404 = vmatpush1.msra.mxu0 %v3173
        %3405 = vmatprep.subr.mxu0 %v3181
        %3406 = vmatpush1.msra.mxu0 %v3180
        %3407 = vmatprep.subr.mxu0 %v3188
        %3408 = vmatpush1.msra.mxu0 %v3187
        %3409 = vmatprep.subr.mxu0 %v3195
        %3410 = vmatpush1.msra.mxu0 %v3194
        %3411 = vmatprep.subr.mxu0 0.0
        %3412 = vmatpush1.msra.mxu0 0.0
        %3413 = vmatprep.subr.mxu0 0.0
        %3414 = vmatpush1.msra.mxu0 0.0
        %3415 = vmatprep.subr.mxu0 0.0
        %3416 = vmatpush1.msra.mxu0 0.0
        %3417 = vmatprep.subr.mxu0 0.0
        %3418 = vmatpush1.msra.mxu0 0.0
        %3419 = vmatprep.subr.mxu0 0.0
        %3420 = vmatpush1.msra.mxu0 0.0
        %3421 = vmatprep.subr.mxu0 0.0
        %3422 = vmatpush1.msra.mxu0 0.0
        %3423 = vmatprep.subr.mxu0 0.0
        %3424 = vmatpush1.msra.mxu0 0.0
        %3425 = vmatprep.subr.mxu0 0.0
        %3426 = vmatpush1.msra.mxu0 0.0
        %3427 = vmatprep.subr.mxu0 0.0
        %3428 = vmatpush1.msra.mxu0 0.0
        %3429 = vmatprep.subr.mxu0 0.0
        %3430 = vmatpush1.msra.mxu0 0.0
        %3431 = vmatprep.subr.mxu0 0.0
        %3432 = vmatpush1.msra.mxu0 0.0
        %3433 = vmatprep.subr.mxu0 0.0
        %3434 = vmatpush1.msra.mxu0 0.0
        %3435 = vmatprep.subr.mxu0 0.0
        %3436 = vmatpush1.msra.mxu0 0.0
        %3437 = vmatprep.subr.mxu0 0.0
        %3438 = vmatpush1.msra.mxu0 0.0
        %3439 = vmatprep.subr.mxu0 0.0
        %3440 = vmatpush1.msra.mxu0 0.0
        %3441 = vmatprep.subr.mxu0 0.0
        %3442 = vmatpush1.msra.mxu0 0.0
        %3443 = vmatprep.subr.mxu0 0.0
        %3444 = vmatpush1.msra.mxu0 0.0
        %3445 = vmatprep.subr.mxu0 0.0
        %3446 = vmatpush1.msra.mxu0 0.0
        %3447 = vmatprep.subr.mxu0 0.0
        %3448 = vmatpush1.msra.mxu0 0.0
        %3449 = vmatprep.subr.mxu0 0.0
        %3450 = vmatpush1.msra.mxu0 0.0
        %3451 = vmatprep.subr.mxu0 0.0
        %3452 = vmatpush1.msra.mxu0 0.0
        %3453 = vmatprep.subr.mxu0 0.0
        %3454 = vmatpush1.msra.mxu0 0.0
        %3455 = vmatprep.subr.mxu0 0.0
        %3456 = vmatpush1.msra.mxu0 0.0
        %3457 = vmatprep.subr.mxu0 0.0
        %3458 = vmatpush1.msra.mxu0 0.0
        %3459 = vmatprep.subr.mxu0 0.0
        %3460 = vmatpush1.msra.mxu0 0.0
        %3461 = vmatprep.subr.mxu0 0.0
        %3462 = vmatpush1.msra.mxu0 0.0
        %3463 = vmatprep.mubr.f32.mxu0 0.0
        %3464 = vmatmul.mubr.f32.gmra.mrb[0].mxu0 %v3240
        %v3465 = vpop.f32.mrb[0].mxu0
        %v3466 = vadd.f32 0.0, %v3465
        %v3467 = vpop.f32.mrb[0].mxu0
        %v3468 = vadd.f32 0.0, %v3467
        %3469 = vmatprep.mubr.f32.mxu0 0.0
        %3470 = vmatmul.mubr.f32.gmra.mrb[0].mxu0 %v3243
        %v3471 = vpop.f32.mrb[0].mxu0
        %v3472 = vadd.f32 0.0, %v3471
        %v3473 = vpop.f32.mrb[0].mxu0
        %v3474 = vadd.f32 0.0, %v3473
        %3475 = vdwg.mxu0
        %3476 = vmatprep.subr.mxu0 0.0
        %3477 = vmatpush1.msra.mxu0 %v3161
        %3478 = vmatprep.subr.mxu0 0.0
        %3479 = vmatpush1.msra.mxu0 %v3168
        %3480 = vmatprep.subr.mxu0 0.0
        %3481 = vmatpush1.msra.mxu0 %v3175
        %3482 = vmatprep.subr.mxu0 0.0
        %3483 = vmatpush1.msra.mxu0 %v3182
        %3484 = vmatprep.subr.mxu0 0.0
        %3485 = vmatpush1.msra.mxu0 %v3189
        %3486 = vmatprep.subr.mxu0 0.0
        %3487 = vmatpush1.msra.mxu0 %v3196
        %3488 = vmatprep.subr.mxu0 0.0
        %3489 = vmatpush1.msra.mxu0 0.0
        %3490 = vmatprep.subr.mxu0 0.0
        %3491 = vmatpush1.msra.mxu0 0.0
        %3492 = vmatprep.subr.mxu0 0.0
        %3493 = vmatpush1.msra.mxu0 0.0
        %3494 = vmatprep.subr.mxu0 0.0
        %3495 = vmatpush1.msra.mxu0 0.0
        %3496 = vmatprep.subr.mxu0 0.0
        %3497 = vmatpush1.msra.mxu0 0.0
        %3498 = vmatprep.subr.mxu0 0.0
        %3499 = vmatpush1.msra.mxu0 0.0
        %3500 = vmatprep.subr.mxu0 0.0
        %3501 = vmatpush1.msra.mxu0 0.0
        %3502 = vmatprep.subr.mxu0 0.0
        %3503 = vmatpush1.msra.mxu0 0.0
        %3504 = vmatprep.subr.mxu0 0.0
        %3505 = vmatpush1.msra.mxu0 0.0
        %3506 = vmatprep.subr.mxu0 0.0
        %3507 = vmatpush1.msra.mxu0 0.0
        %3508 = vmatprep.subr.mxu0 0.0
        %3509 = vmatpush1.msra.mxu0 0.0
        %3510 = vmatprep.subr.mxu0 0.0
        %3511 = vmatpush1.msra.mxu0 0.0
        %3512 = vmatprep.subr.mxu0 0.0
        %3513 = vmatpush1.msra.mxu0 0.0
        %3514 = vmatprep.subr.mxu0 0.0
        %3515 = vmatpush1.msra.mxu0 0.0
        %3516 = vmatprep.subr.mxu0 0.0
        %3517 = vmatpush1.msra.mxu0 0.0
        %3518 = vmatprep.subr.mxu0 0.0
        %3519 = vmatpush1.msra.mxu0 0.0
        %3520 = vmatprep.subr.mxu0 0.0
        %3521 = vmatpush1.msra.mxu0 0.0
        %3522 = vmatprep.subr.mxu0 0.0
        %3523 = vmatpush1.msra.mxu0 0.0
        %3524 = vmatprep.subr.mxu0 0.0
        %3525 = vmatpush1.msra.mxu0 0.0
        %3526 = vmatprep.subr.mxu0 0.0
        %3527 = vmatpush1.msra.mxu0 0.0
        %3528 = vmatprep.subr.mxu0 0.0
        %3529 = vmatpush1.msra.mxu0 0.0
        %3530 = vmatprep.subr.mxu0 0.0
        %3531 = vmatpush1.msra.mxu0 0.0
        %3532 = vmatprep.subr.mxu0 0.0
        %3533 = vmatpush1.msra.mxu0 0.0
        %3534 = vmatprep.subr.mxu0 0.0
        %3535 = vmatpush1.msra.mxu0 0.0
        %3536 = vmatprep.subr.mxu0 0.0
        %3537 = vmatpush1.msra.mxu0 0.0
        %3538 = vmatprep.subr.mxu0 0.0
        %3539 = vmatpush1.msra.mxu0 0.0
        %3540 = vmatprep.mubr.f32.mxu0 0.0
        %3541 = vmatmul.mubr.f32.gmra.mrb[0].mxu0 %v3240
        %v3542 = vpop.f32.mrb[0].mxu0
        %v3543 = vadd.f32 0.0, %v3542
        %v3544 = vpop.f32.mrb[0].mxu0
        %3545 = vmatprep.mubr.f32.mxu0 0.0
        %3546 = vmatmul.mubr.f32.gmra.mrb[0].mxu0 %v3243
        %v3547 = vpop.f32.mrb[0].mxu0
        %v3548 = vadd.f32 0.0, %v3547
        %v3549 = vpop.f32.mrb[0].mxu0
        %3550 = vdwg.mxu0
        %v3551 = vadd.f32 %v2817, %v3312
        %v3552 = vadd.f32 %v2819, %v3314
        %v3553 = vadd.f32 %v2894, %v3389
        %v3554 = vadd.f32 %v2896, %v3391
        %v3555 = vadd.f32 %v2971, %v3466
        %v3556 = vadd.f32 %v2973, %v3468
        %v3557 = vadd.f32 %v3048, %v3543
        %v3558 = vadd.f32 %v2823, %v3318
        %v3559 = vadd.f32 %v2825, %v3320
        %v3560 = vadd.f32 %v2900, %v3395
        %v3561 = vadd.f32 %v2902, %v3397
        %v3562 = vadd.f32 %v2977, %v3472
        %v3563 = vadd.f32 %v2979, %v3474
        %v3564 = vadd.f32 %v3053, %v3548
        %v3565 = vld [vmem:[%s4] sm:$0xff]
        %v3566 = vld [vmem:[%s4 + $0x8] sm:$0xff]
        %3568 = vset.pattern.permute.xlu0 0
        %3569 = vperm.xlu0 %3568, %v3565
        %v3570 = vpop.permute.xlu0 %3569
        %3573 = vset.pattern.permute.xlu0 0
        %3574 = vperm.xlu0 %3573, %v3566
        %v3575 = vpop.permute.xlu0 %3574
        %v3577 = vadd.f32 %v3551, %v3570
        %v3578 = vadd.f32 %v3552, %v3570
        %v3579 = vadd.f32 %v3553, %v3570
        %v3580 = vadd.f32 %v3554, %v3570
        %v3581 = vadd.f32 %v3555, %v3570
        %v3582 = vadd.f32 %v3556, %v3570
        %v3583 = vadd.f32 %v3557, %v3570
        %v3584 = vadd.f32 %v3558, %v3575
        %v3585 = vadd.f32 %v3559, %v3575
        %v3586 = vadd.f32 %v3560, %v3575
        %v3587 = vadd.f32 %v3561, %v3575
        %v3588 = vadd.f32 %v3562, %v3575
        %v3589 = vadd.f32 %v3563, %v3575
        %v3590 = vadd.f32 %v3564, %v3575
        %v3591 = vmax.f32 %v3577, 0.0
        %v3592 = vmax.f32 %v3578, 0.0
        %v3593 = vmax.f32 %v3579, 0.0
        %v3594 = vmax.f32 %v3580, 0.0
        %v3595 = vmax.f32 %v3581, 0.0
        %v3596 = vmax.f32 %v3582, 0.0
        %v3597 = vmax.f32 %v3583, 0.0
        %v3598 = vmax.f32 %v3584, 0.0
        %v3599 = vmax.f32 %v3585, 0.0
        %v3600 = vmax.f32 %v3586, 0.0
        %v3601 = vmax.f32 %v3587, 0.0
        %v3602 = vmax.f32 %v3588, 0.0
        %v3603 = vmax.f32 %v3589, 0.0
        %v3604 = vmax.f32 %v3590, 0.0
        %3605 = vst [vmem:[#allocation3] sm:$0xff] %v3591
        %3606 = vst [vmem:[#allocation3 + $0x8] sm:$0xff] %v3592
        %3607 = vst [vmem:[#allocation3 + $0x10] sm:$0xff] %v3593
        %3608 = vst [vmem:[#allocation3 + $0x18] sm:$0xff] %v3594
        %3609 = vst [vmem:[#allocation3 + $0x20] sm:$0xff] %v3595
        %3610 = vst [vmem:[#allocation3 + $0x28] sm:$0xff] %v3596
        %3611 = vst [vmem:[#allocation3 + $0x30] sm:$0xff] %v3597
        %3612 = vst [vmem:[#allocation3 + $0x40] sm:$0xff] %v3598
        %3613 = vst [vmem:[#allocation3 + $0x48] sm:$0xff] %v3599
        %3614 = vst [vmem:[#allocation3 + $0x50] sm:$0xff] %v3600
        %3615 = vst [vmem:[#allocation3 + $0x58] sm:$0xff] %v3601
        %3616 = vst [vmem:[#allocation3 + $0x60] sm:$0xff] %v3602
        %3617 = vst [vmem:[#allocation3 + $0x68] sm:$0xff] %v3603
        %3618 = vst [vmem:[#allocation3 + $0x70] sm:$0xff] %v3604
        %v3619 = vld [vmem:[#allocation3] sm:$0xff]
        %v3620 = vld [vmem:[#allocation3 + $0x8] sm:$0xff]
        %v3621 = vld [vmem:[#allocation3 + $0x10] sm:$0xff]
        %v3622 = vld [vmem:[#allocation3 + $0x18] sm:$0xff]
        %v3623 = vld [vmem:[#allocation3 + $0x20] sm:$0xff]
        %v3624 = vld [vmem:[#allocation3 + $0x28] sm:$0xff]
        %v3625 = vld [vmem:[#allocation3 + $0x30] sm:$0xff]
        %v3626 = vld [vmem:[#allocation3 + $0x40] sm:$0xff]
        %v3627 = vld [vmem:[#allocation3 + $0x48] sm:$0xff]
        %v3628 = vld [vmem:[#allocation3 + $0x50] sm:$0xff]
        %v3629 = vld [vmem:[#allocation3 + $0x58] sm:$0xff]
        %v3630 = vld [vmem:[#allocation3 + $0x60] sm:$0xff]
        %v3631 = vld [vmem:[#allocation3 + $0x68] sm:$0xff]
        %v3632 = vld [vmem:[#allocation3 + $0x70] sm:$0xff]
        %3633 = vst [vmem:[#allocation7] sm:$0xff] %v3619
        %3634 = vst [vmem:[#allocation7 + $0x8] sm:$0xff] %v3620
        %3635 = vst [vmem:[#allocation7 + $0x10] sm:$0xff] %v3621
        %3636 = vst [vmem:[#allocation7 + $0x18] sm:$0xff] %v3622
        %3637 = vst [vmem:[#allocation7 + $0x20] sm:$0xff] %v3623
        %3638 = vst [vmem:[#allocation7 + $0x28] sm:$0xff] %v3624
        %3639 = vst [vmem:[#allocation7 + $0x30] sm:$0xff] %v3625
        %3640 = vst [vmem:[#allocation7 + $0x38] sm:$0xff] %v3626
        %3641 = vst [vmem:[#allocation7 + $0x40] sm:$0xff] %v3627
        %3642 = vst [vmem:[#allocation7 + $0x48] sm:$0xff] %v3628
        %3643 = vst [vmem:[#allocation7 + $0x50] sm:$0xff] %v3629
        %3644 = vst [vmem:[#allocation7 + $0x58] sm:$0xff] %v3630
        %3645 = vst [vmem:[#allocation7 + $0x60] sm:$0xff] %v3631
        %3646 = vst [vmem:[#allocation7 + $0x68] sm:$0xff] %v3632
        %v3647 = vld [vmem:[#allocation3] sm:$0xff]
        %v3648 = vld [vmem:[#allocation3 + $0x8] sm:$0xff]
        %v3649 = vld [vmem:[#allocation3 + $0x10] sm:$0xff]
        %v3650 = vld [vmem:[#allocation3 + $0x18] sm:$0xff]
        %v3651 = vld [vmem:[#allocation3 + $0x20] sm:$0xff]
        %v3652 = vld [vmem:[#allocation3 + $0x28] sm:$0xff]
        %v3653 = vld [vmem:[#allocation3 + $0x30] sm:$0xff]
        %v3654 = vld [vmem:[#allocation3 + $0x38] sm:$0xff]
        %v3655 = vld [vmem:[#allocation3 + $0x40] sm:$0xff]
        %v3656 = vld [vmem:[#allocation3 + $0x48] sm:$0xff]
        %v3657 = vld [vmem:[#allocation3 + $0x50] sm:$0xff]
        %v3658 = vld [vmem:[#allocation3 + $0x58] sm:$0xff]
        %v3659 = vld [vmem:[#allocation3 + $0x60] sm:$0xff]
        %v3660 = vld [vmem:[#allocation3 + $0x68] sm:$0xff]
        %v3661 = vld [vmem:[#allocation3 + $0x70] sm:$0xff]
        %v3662 = vld [vmem:[#allocation3 + $0x78] sm:$0xff]
        %3679 = vrot.lane.b32.xlu0 %v3647, 127
        %v3680 = vpop.permute.xlu0 %3679
        %3681 = vrot.lane.b32.xlu0 %v3648, 127
        %v3682 = vpop.permute.xlu0 %3681
        %3683 = vrot.lane.b32.xlu0 %v3649, 127
        %v3684 = vpop.permute.xlu0 %3683
        %3685 = vrot.lane.b32.xlu0 %v3650, 127
        %v3686 = vpop.permute.xlu0 %3685
        %3687 = vrot.lane.b32.xlu0 %v3651, 127
        %v3688 = vpop.permute.xlu0 %3687
        %3689 = vrot.lane.b32.xlu0 %v3652, 127
        %v3690 = vpop.permute.xlu0 %3689
        %3691 = vrot.lane.b32.xlu0 %v3653, 127
        %v3692 = vpop.permute.xlu0 %3691
        %3693 = vrot.lane.b32.xlu0 %v3654, 127
        %v3694 = vpop.permute.xlu0 %3693
        %3695 = vrot.lane.b32.xlu0 %v3655, 127
        %v3696 = vpop.permute.xlu0 %3695
        %3697 = vrot.lane.b32.xlu0 %v3656, 127
        %v3698 = vpop.permute.xlu0 %3697
        %3699 = vrot.lane.b32.xlu0 %v3657, 127
        %v3700 = vpop.permute.xlu0 %3699
        %3701 = vrot.lane.b32.xlu0 %v3658, 127
        %v3702 = vpop.permute.xlu0 %3701
        %3703 = vrot.lane.b32.xlu0 %v3659, 127
        %v3704 = vpop.permute.xlu0 %3703
        %3705 = vrot.lane.b32.xlu0 %v3660, 127
        %v3706 = vpop.permute.xlu0 %3705
        %3707 = vrot.lane.b32.xlu0 %v3661, 127
        %v3708 = vpop.permute.xlu0 %3707
        %3709 = vrot.lane.b32.xlu0 %v3662, 127
        %v3710 = vpop.permute.xlu0 %3709
        %v3711 = vsel %vm522, %v3680, %v3682
        %v3712 = vsel %vm522, %v3682, %v3684
        %v3713 = vsel %vm522, %v3684, %v3686
        %v3714 = vsel %vm522, %v3686, %v3688
        %v3715 = vsel %vm522, %v3688, %v3690
        %v3716 = vsel %vm522, %v3690, %v3692
        %v3717 = vsel %vm522, %v3692, %v3694
        %v3718 = vsel %vm522, %v3696, %v3698
        %v3719 = vsel %vm522, %v3698, %v3700
        %v3720 = vsel %vm522, %v3700, %v3702
        %v3721 = vsel %vm522, %v3702, %v3704
        %v3722 = vsel %vm522, %v3704, %v3706
        %v3723 = vsel %vm522, %v3706, %v3708
        %v3724 = vsel %vm522, %v3708, %v3710
        %3739 = vst [vmem:[#allocation7 + $0x70] sm:$0xff] %v3711
        %3740 = vst [vmem:[#allocation7 + $0x78] sm:$0xff] %v3712
        %3741 = vst [vmem:[#allocation7 + $0x80] sm:$0xff] %v3713
        %3742 = vst [vmem:[#allocation7 + $0x88] sm:$0xff] %v3714
        %3743 = vst [vmem:[#allocation7 + $0x90] sm:$0xff] %v3715
        %3744 = vst [vmem:[#allocation7 + $0x98] sm:$0xff] %v3716
        %3745 = vst [vmem:[#allocation7 + $0xa0] sm:$0xff] %v3717
        %3746 = vst [vmem:[#allocation7 + $0xa8] sm:$0xff] %v3718
        %3747 = vst [vmem:[#allocation7 + $0xb0] sm:$0xff] %v3719
        %3748 = vst [vmem:[#allocation7 + $0xb8] sm:$0xff] %v3720
        %3749 = vst [vmem:[#allocation7 + $0xc0] sm:$0xff] %v3721
        %3750 = vst [vmem:[#allocation7 + $0xc8] sm:$0xff] %v3722
        %3751 = vst [vmem:[#allocation7 + $0xd0] sm:$0xff] %v3723
        %3752 = vst [vmem:[#allocation7 + $0xd8] sm:$0xff] %v3724
        %v3753 = vld [vmem:[#allocation3] sm:$0xff]
        %v3754 = vld [vmem:[#allocation3 + $0x8] sm:$0xff]
        %v3755 = vld [vmem:[#allocation3 + $0x10] sm:$0xff]
        %v3756 = vld [vmem:[#allocation3 + $0x18] sm:$0xff]
        %v3757 = vld [vmem:[#allocation3 + $0x20] sm:$0xff]
        %v3758 = vld [vmem:[#allocation3 + $0x28] sm:$0xff]
        %v3759 = vld [vmem:[#allocation3 + $0x30] sm:$0xff]
        %v3760 = vld [vmem:[#allocation3 + $0x38] sm:$0xff]
        %v3761 = vld [vmem:[#allocation3 + $0x40] sm:$0xff]
        %v3762 = vld [vmem:[#allocation3 + $0x48] sm:$0xff]
        %v3763 = vld [vmem:[#allocation3 + $0x50] sm:$0xff]
        %v3764 = vld [vmem:[#allocation3 + $0x58] sm:$0xff]
        %v3765 = vld [vmem:[#allocation3 + $0x60] sm:$0xff]
        %v3766 = vld [vmem:[#allocation3 + $0x68] sm:$0xff]
        %v3767 = vld [vmem:[#allocation3 + $0x70] sm:$0xff]
        %v3768 = vld [vmem:[#allocation3 + $0x78] sm:$0xff]
        %3785 = vrot.lane.b32.xlu0 %v3753, 126
        %v3786 = vpop.permute.xlu0 %3785
        %3787 = vrot.lane.b32.xlu0 %v3754, 126
        %v3788 = vpop.permute.xlu0 %3787
        %3789 = vrot.lane.b32.xlu0 %v3755, 126
        %v3790 = vpop.permute.xlu0 %3789
        %3791 = vrot.lane.b32.xlu0 %v3756, 126
        %v3792 = vpop.permute.xlu0 %3791
        %3793 = vrot.lane.b32.xlu0 %v3757, 126
        %v3794 = vpop.permute.xlu0 %3793
        %3795 = vrot.lane.b32.xlu0 %v3758, 126
        %v3796 = vpop.permute.xlu0 %3795
        %3797 = vrot.lane.b32.xlu0 %v3759, 126
        %v3798 = vpop.permute.xlu0 %3797
        %3799 = vrot.lane.b32.xlu0 %v3760, 126
        %v3800 = vpop.permute.xlu0 %3799
        %3801 = vrot.lane.b32.xlu0 %v3761, 126
        %v3802 = vpop.permute.xlu0 %3801
        %3803 = vrot.lane.b32.xlu0 %v3762, 126
        %v3804 = vpop.permute.xlu0 %3803
        %3805 = vrot.lane.b32.xlu0 %v3763, 126
        %v3806 = vpop.permute.xlu0 %3805
        %3807 = vrot.lane.b32.xlu0 %v3764, 126
        %v3808 = vpop.permute.xlu0 %3807
        %3809 = vrot.lane.b32.xlu0 %v3765, 126
        %v3810 = vpop.permute.xlu0 %3809
        %3811 = vrot.lane.b32.xlu0 %v3766, 126
        %v3812 = vpop.permute.xlu0 %3811
        %3813 = vrot.lane.b32.xlu0 %v3767, 126
        %v3814 = vpop.permute.xlu0 %3813
        %3815 = vrot.lane.b32.xlu0 %v3768, 126
        %v3816 = vpop.permute.xlu0 %3815
        %v3817 = vsel %vm585, %v3786, %v3788
        %v3818 = vsel %vm585, %v3788, %v3790
        %v3819 = vsel %vm585, %v3790, %v3792
        %v3820 = vsel %vm585, %v3792, %v3794
        %v3821 = vsel %vm585, %v3794, %v3796
        %v3822 = vsel %vm585, %v3796, %v3798
        %v3823 = vsel %vm585, %v3798, %v3800
        %v3824 = vsel %vm585, %v3802, %v3804
        %v3825 = vsel %vm585, %v3804, %v3806
        %v3826 = vsel %vm585, %v3806, %v3808
        %v3827 = vsel %vm585, %v3808, %v3810
        %v3828 = vsel %vm585, %v3810, %v3812
        %v3829 = vsel %vm585, %v3812, %v3814
        %v3830 = vsel %vm585, %v3814, %v3816
        %3845 = vst [vmem:[#allocation7 + $0xe0] sm:$0xff] %v3817
        %3846 = vst [vmem:[#allocation7 + $0xe8] sm:$0xff] %v3818
        %3847 = vst [vmem:[#allocation7 + $0xf0] sm:$0xff] %v3819
        %3848 = vst [vmem:[#allocation7 + $0xf8] sm:$0xff] %v3820
        %3849 = vst [vmem:[#allocation7 + $0x100] sm:$0xff] %v3821
        %3850 = vst [vmem:[#allocation7 + $0x108] sm:$0xff] %v3822
        %3851 = vst [vmem:[#allocation7 + $0x110] sm:$0xff] %v3823
        %3852 = vst [vmem:[#allocation7 + $0x118] sm:$0xff] %v3824
        %3853 = vst [vmem:[#allocation7 + $0x120] sm:$0xff] %v3825
        %3854 = vst [vmem:[#allocation7 + $0x128] sm:$0xff] %v3826
        %3855 = vst [vmem:[#allocation7 + $0x130] sm:$0xff] %v3827
        %3856 = vst [vmem:[#allocation7 + $0x138] sm:$0xff] %v3828
        %3857 = vst [vmem:[#allocation7 + $0x140] sm:$0xff] %v3829
        %3858 = vst [vmem:[#allocation7 + $0x148] sm:$0xff] %v3830
        %v3859 = vld [vmem:[#allocation3] sm:$0xff]
        %v3860 = vld [vmem:[#allocation3 + $0x8] sm:$0xff]
        %v3861 = vld [vmem:[#allocation3 + $0x10] sm:$0xff]
        %v3862 = vld [vmem:[#allocation3 + $0x18] sm:$0xff]
        %v3863 = vld [vmem:[#allocation3 + $0x20] sm:$0xff]
        %v3864 = vld [vmem:[#allocation3 + $0x28] sm:$0xff]
        %v3865 = vld [vmem:[#allocation3 + $0x30] sm:$0xff]
        %v3866 = vld [vmem:[#allocation3 + $0x38] sm:$0xff]
        %v3867 = vld [vmem:[#allocation3 + $0x40] sm:$0xff]
        %v3868 = vld [vmem:[#allocation3 + $0x48] sm:$0xff]
        %v3869 = vld [vmem:[#allocation3 + $0x50] sm:$0xff]
        %v3870 = vld [vmem:[#allocation3 + $0x58] sm:$0xff]
        %v3871 = vld [vmem:[#allocation3 + $0x60] sm:$0xff]
        %v3872 = vld [vmem:[#allocation3 + $0x68] sm:$0xff]
        %v3873 = vld [vmem:[#allocation3 + $0x70] sm:$0xff]
        %v3874 = vld [vmem:[#allocation3 + $0x78] sm:$0xff]
        %3891 = vrot.lane.b32.xlu0 %v3859, 125
        %v3892 = vpop.permute.xlu0 %3891
        %3893 = vrot.lane.b32.xlu0 %v3860, 125
        %v3894 = vpop.permute.xlu0 %3893
        %3895 = vrot.lane.b32.xlu0 %v3861, 125
        %v3896 = vpop.permute.xlu0 %3895
        %3897 = vrot.lane.b32.xlu0 %v3862, 125
        %v3898 = vpop.permute.xlu0 %3897
        %3899 = vrot.lane.b32.xlu0 %v3863, 125
        %v3900 = vpop.permute.xlu0 %3899
        %3901 = vrot.lane.b32.xlu0 %v3864, 125
        %v3902 = vpop.permute.xlu0 %3901
        %3903 = vrot.lane.b32.xlu0 %v3865, 125
        %v3904 = vpop.permute.xlu0 %3903
        %3905 = vrot.lane.b32.xlu0 %v3866, 125
        %v3906 = vpop.permute.xlu0 %3905
        %3907 = vrot.lane.b32.xlu0 %v3867, 125
        %v3908 = vpop.permute.xlu0 %3907
        %3909 = vrot.lane.b32.xlu0 %v3868, 125
        %v3910 = vpop.permute.xlu0 %3909
        %3911 = vrot.lane.b32.xlu0 %v3869, 125
        %v3912 = vpop.permute.xlu0 %3911
        %3913 = vrot.lane.b32.xlu0 %v3870, 125
        %v3914 = vpop.permute.xlu0 %3913
        %3915 = vrot.lane.b32.xlu0 %v3871, 125
        %v3916 = vpop.permute.xlu0 %3915
        %3917 = vrot.lane.b32.xlu0 %v3872, 125
        %v3918 = vpop.permute.xlu0 %3917
        %3919 = vrot.lane.b32.xlu0 %v3873, 125
        %v3920 = vpop.permute.xlu0 %3919
        %3921 = vrot.lane.b32.xlu0 %v3874, 125
        %v3922 = vpop.permute.xlu0 %3921
        %vm3923 = vcmask 1022976
        %v3924 = vsel %vm3923, %v3892, %v3894
        %v3925 = vsel %vm3923, %v3894, %v3896
        %v3926 = vsel %vm3923, %v3896, %v3898
        %v3927 = vsel %vm3923, %v3898, %v3900
        %v3928 = vsel %vm3923, %v3900, %v3902
        %v3929 = vsel %vm3923, %v3902, %v3904
        %v3930 = vsel %vm3923, %v3904, %v3906
        %v3931 = vsel %vm3923, %v3908, %v3910
        %v3932 = vsel %vm3923, %v3910, %v3912
        %v3933 = vsel %vm3923, %v3912, %v3914
        %v3934 = vsel %vm3923, %v3914, %v3916
        %v3935 = vsel %vm3923, %v3916, %v3918
        %v3936 = vsel %vm3923, %v3918, %v3920
        %v3937 = vsel %vm3923, %v3920, %v3922
        %3952 = vst [vmem:[#allocation7 + $0x150] sm:$0xff] %v3924
        %3953 = vst [vmem:[#allocation7 + $0x158] sm:$0xff] %v3925
        %3954 = vst [vmem:[#allocation7 + $0x160] sm:$0xff] %v3926
        %3955 = vst [vmem:[#allocation7 + $0x168] sm:$0xff] %v3927
        %3956 = vst [vmem:[#allocation7 + $0x170] sm:$0xff] %v3928
        %3957 = vst [vmem:[#allocation7 + $0x178] sm:$0xff] %v3929
        %3958 = vst [vmem:[#allocation7 + $0x180] sm:$0xff] %v3930
        %3959 = vst [vmem:[#allocation7 + $0x188] sm:$0xff] %v3931
        %3960 = vst [vmem:[#allocation7 + $0x190] sm:$0xff] %v3932
        %3961 = vst [vmem:[#allocation7 + $0x198] sm:$0xff] %v3933
        %3962 = vst [vmem:[#allocation7 + $0x1a0] sm:$0xff] %v3934
        %3963 = vst [vmem:[#allocation7 + $0x1a8] sm:$0xff] %v3935
        %3964 = vst [vmem:[#allocation7 + $0x1b0] sm:$0xff] %v3936
        %3965 = vst [vmem:[#allocation7 + $0x1b8] sm:$0xff] %v3937
        %v3966 = vld [vmem:[#allocation3] sm:$0xff]
        %v3967 = vld [vmem:[#allocation3 + $0x8] sm:$0xff]
        %v3968 = vld [vmem:[#allocation3 + $0x10] sm:$0xff]
        %v3969 = vld [vmem:[#allocation3 + $0x18] sm:$0xff]
        %v3970 = vld [vmem:[#allocation3 + $0x20] sm:$0xff]
        %v3971 = vld [vmem:[#allocation3 + $0x28] sm:$0xff]
        %v3972 = vld [vmem:[#allocation3 + $0x30] sm:$0xff]
        %v3973 = vld [vmem:[#allocation3 + $0x38] sm:$0xff]
        %v3974 = vld [vmem:[#allocation3 + $0x40] sm:$0xff]
        %v3975 = vld [vmem:[#allocation3 + $0x48] sm:$0xff]
        %v3976 = vld [vmem:[#allocation3 + $0x50] sm:$0xff]
        %v3977 = vld [vmem:[#allocation3 + $0x58] sm:$0xff]
        %v3978 = vld [vmem:[#allocation3 + $0x60] sm:$0xff]
        %v3979 = vld [vmem:[#allocation3 + $0x68] sm:$0xff]
        %v3980 = vld [vmem:[#allocation3 + $0x70] sm:$0xff]
        %v3981 = vld [vmem:[#allocation3 + $0x78] sm:$0xff]
        %3998 = vrot.lane.b32.xlu0 %v3966, 124
        %v3999 = vpop.permute.xlu0 %3998
        %4000 = vrot.lane.b32.xlu0 %v3967, 124
        %v4001 = vpop.permute.xlu0 %4000
        %4002 = vrot.lane.b32.xlu0 %v3968, 124
        %v4003 = vpop.permute.xlu0 %4002
        %4004 = vrot.lane.b32.xlu0 %v3969, 124
        %v4005 = vpop.permute.xlu0 %4004
        %4006 = vrot.lane.b32.xlu0 %v3970, 124
        %v4007 = vpop.permute.xlu0 %4006
        %4008 = vrot.lane.b32.xlu0 %v3971, 124
        %v4009 = vpop.permute.xlu0 %4008
        %4010 = vrot.lane.b32.xlu0 %v3972, 124
        %v4011 = vpop.permute.xlu0 %4010
        %4012 = vrot.lane.b32.xlu0 %v3973, 124
        %v4013 = vpop.permute.xlu0 %4012
        %4014 = vrot.lane.b32.xlu0 %v3974, 124
        %v4015 = vpop.permute.xlu0 %4014
        %4016 = vrot.lane.b32.xlu0 %v3975, 124
        %v4017 = vpop.permute.xlu0 %4016
        %4018 = vrot.lane.b32.xlu0 %v3976, 124
        %v4019 = vpop.permute.xlu0 %4018
        %4020 = vrot.lane.b32.xlu0 %v3977, 124
        %v4021 = vpop.permute.xlu0 %4020
        %4022 = vrot.lane.b32.xlu0 %v3978, 124
        %v4023 = vpop.permute.xlu0 %4022
        %4024 = vrot.lane.b32.xlu0 %v3979, 124
        %v4025 = vpop.permute.xlu0 %4024
        %4026 = vrot.lane.b32.xlu0 %v3980, 124
        %v4027 = vpop.permute.xlu0 %4026
        %4028 = vrot.lane.b32.xlu0 %v3981, 124
        %v4029 = vpop.permute.xlu0 %4028
        %vm4030 = vcmask 1014784
        %v4031 = vsel %vm4030, %v3999, %v4001
        %v4032 = vsel %vm4030, %v4001, %v4003
        %v4033 = vsel %vm4030, %v4003, %v4005
        %v4034 = vsel %vm4030, %v4005, %v4007
        %v4035 = vsel %vm4030, %v4007, %v4009
        %v4036 = vsel %vm4030, %v4009, %v4011
        %v4037 = vsel %vm4030, %v4011, %v4013
        %v4038 = vsel %vm4030, %v4015, %v4017
        %v4039 = vsel %vm4030, %v4017, %v4019
        %v4040 = vsel %vm4030, %v4019, %v4021
        %v4041 = vsel %vm4030, %v4021, %v4023
        %v4042 = vsel %vm4030, %v4023, %v4025
        %v4043 = vsel %vm4030, %v4025, %v4027
        %v4044 = vsel %vm4030, %v4027, %v4029
        %4059 = vst [vmem:[#allocation7 + $0x1c0] sm:$0xff] %v4031
        %4060 = vst [vmem:[#allocation7 + $0x1c8] sm:$0xff] %v4032
        %4061 = vst [vmem:[#allocation7 + $0x1d0] sm:$0xff] %v4033
        %4062 = vst [vmem:[#allocation7 + $0x1d8] sm:$0xff] %v4034
        %4063 = vst [vmem:[#allocation7 + $0x1e0] sm:$0xff] %v4035
        %4064 = vst [vmem:[#allocation7 + $0x1e8] sm:$0xff] %v4036
        %4065 = vst [vmem:[#allocation7 + $0x1f0] sm:$0xff] %v4037
        %4066 = vst [vmem:[#allocation7 + $0x1f8] sm:$0xff] %v4038
        %4067 = vst [vmem:[#allocation7 + $0x200] sm:$0xff] %v4039
        %4068 = vst [vmem:[#allocation7 + $0x208] sm:$0xff] %v4040
        %4069 = vst [vmem:[#allocation7 + $0x210] sm:$0xff] %v4041
        %4070 = vst [vmem:[#allocation7 + $0x218] sm:$0xff] %v4042
        %4071 = vst [vmem:[#allocation7 + $0x220] sm:$0xff] %v4043
        %4072 = vst [vmem:[#allocation7 + $0x228] sm:$0xff] %v4044
        %v4073 = vld [vmem:[%s5] sm:$0xff]
        %v4074 = vld [vmem:[%s5 + $0x8] sm:$0xff]
        %v4075 = vld [vmem:[%s5 + $0x10] sm:$0xff]
        %v4076 = vld [vmem:[#allocation7] sm:$0xff]
        %v4077 = vld [vmem:[#allocation7 + $0x8] sm:$0xff]
        %v4078 = vld [vmem:[#allocation7 + $0x10] sm:$0xff]
        %v4079 = vld [vmem:[#allocation7 + $0x18] sm:$0xff]
        %v4080 = vld [vmem:[#allocation7 + $0x20] sm:$0xff]
        %v4081 = vld [vmem:[#allocation7 + $0x28] sm:$0xff]
        %v4082 = vld [vmem:[#allocation7 + $0x38] sm:$0xff]
        %v4083 = vld [vmem:[#allocation7 + $0x40] sm:$0xff]
        %v4084 = vld [vmem:[#allocation7 + $0x48] sm:$0xff]
        %v4085 = vld [vmem:[#allocation7 + $0x50] sm:$0xff]
        %v4086 = vld [vmem:[#allocation7 + $0x58] sm:$0xff]
        %v4087 = vld [vmem:[#allocation7 + $0x60] sm:$0xff]
        %v4088 = vld [vmem:[#allocation7 + $0x70] sm:$0xff]
        %v4089 = vld [vmem:[#allocation7 + $0x78] sm:$0xff]
        %v4090 = vld [vmem:[#allocation7 + $0x80] sm:$0xff]
        %v4091 = vld [vmem:[#allocation7 + $0x88] sm:$0xff]
        %v4092 = vld [vmem:[#allocation7 + $0x90] sm:$0xff]
        %v4093 = vld [vmem:[#allocation7 + $0x98] sm:$0xff]
        %v4094 = vld [vmem:[#allocation7 + $0xa8] sm:$0xff]
        %v4095 = vld [vmem:[#allocation7 + $0xb0] sm:$0xff]
        %v4096 = vld [vmem:[#allocation7 + $0xb8] sm:$0xff]
        %v4097 = vld [vmem:[#allocation7 + $0xc0] sm:$0xff]
        %v4098 = vld [vmem:[#allocation7 + $0xc8] sm:$0xff]
        %v4099 = vld [vmem:[#allocation7 + $0xd0] sm:$0xff]
        %v4100 = vld [vmem:[#allocation7 + $0xe0] sm:$0xff]
        %v4101 = vld [vmem:[#allocation7 + $0xe8] sm:$0xff]
        %v4102 = vld [vmem:[#allocation7 + $0xf0] sm:$0xff]
        %v4103 = vld [vmem:[#allocation7 + $0xf8] sm:$0xff]
        %v4104 = vld [vmem:[#allocation7 + $0x100] sm:$0xff]
        %v4105 = vld [vmem:[#allocation7 + $0x108] sm:$0xff]
        %v4106 = vld [vmem:[#allocation7 + $0x118] sm:$0xff]
        %v4107 = vld [vmem:[#allocation7 + $0x120] sm:$0xff]
        %v4108 = vld [vmem:[#allocation7 + $0x128] sm:$0xff]
        %v4109 = vld [vmem:[#allocation7 + $0x130] sm:$0xff]
        %v4110 = vld [vmem:[#allocation7 + $0x138] sm:$0xff]
        %v4111 = vld [vmem:[#allocation7 + $0x140] sm:$0xff]
        %v4112 = vld [vmem:[#allocation7 + $0x150] sm:$0xff]
        %v4113 = vld [vmem:[#allocation7 + $0x158] sm:$0xff]
        %v4114 = vld [vmem:[#allocation7 + $0x160] sm:$0xff]
        %v4115 = vld [vmem:[#allocation7 + $0x168] sm:$0xff]
        %v4116 = vld [vmem:[#allocation7 + $0x170] sm:$0xff]
        %v4117 = vld [vmem:[#allocation7 + $0x178] sm:$0xff]
        %v4118 = vld [vmem:[#allocation7 + $0x188] sm:$0xff]
        %v4119 = vld [vmem:[#allocation7 + $0x190] sm:$0xff]
        %v4120 = vld [vmem:[#allocation7 + $0x198] sm:$0xff]
        %v4121 = vld [vmem:[#allocation7 + $0x1a0] sm:$0xff]
        %v4122 = vld [vmem:[#allocation7 + $0x1a8] sm:$0xff]
        %v4123 = vld [vmem:[#allocation7 + $0x1b0] sm:$0xff]
        %v4124 = vld [vmem:[#allocation7 + $0x1c0] sm:$0xff]
        %v4125 = vld [vmem:[#allocation7 + $0x1c8] sm:$0xff]
        %v4126 = vld [vmem:[#allocation7 + $0x1d0] sm:$0xff]
        %v4127 = vld [vmem:[#allocation7 + $0x1d8] sm:$0xff]
        %v4128 = vld [vmem:[#allocation7 + $0x1e0] sm:$0xff]
        %v4129 = vld [vmem:[#allocation7 + $0x1e8] sm:$0xff]
        %v4130 = vld [vmem:[#allocation7 + $0x1f8] sm:$0xff]
        %v4131 = vld [vmem:[#allocation7 + $0x200] sm:$0xff]
        %v4132 = vld [vmem:[#allocation7 + $0x208] sm:$0xff]
        %v4133 = vld [vmem:[#allocation7 + $0x210] sm:$0xff]
        %v4134 = vld [vmem:[#allocation7 + $0x218] sm:$0xff]
        %v4135 = vld [vmem:[#allocation7 + $0x220] sm:$0xff]
        %s4136 = scalar_lea.vmem %s5, 24
        %v4137 = vld [vmem:[%s4136] sm:$0xff]
        %v4138 = vld [vmem:[%s4136 + $0x8] sm:$0xff]
        %v4139 = vld [vmem:[%s4136 + $0x10] sm:$0xff]
        %v4140 = vld [vmem:[#allocation7] sm:$0xff]
        %v4141 = vld [vmem:[#allocation7 + $0x8] sm:$0xff]
        %v4142 = vld [vmem:[#allocation7 + $0x10] sm:$0xff]
        %v4143 = vld [vmem:[#allocation7 + $0x18] sm:$0xff]
        %v4144 = vld [vmem:[#allocation7 + $0x20] sm:$0xff]
        %v4145 = vld [vmem:[#allocation7 + $0x28] sm:$0xff]
        %v4146 = vld [vmem:[#allocation7 + $0x30] sm:$0xff]
        %v4147 = vld [vmem:[#allocation7 + $0x38] sm:$0xff]
        %v4148 = vld [vmem:[#allocation7 + $0x40] sm:$0xff]
        %v4149 = vld [vmem:[#allocation7 + $0x48] sm:$0xff]
        %v4150 = vld [vmem:[#allocation7 + $0x50] sm:$0xff]
        %v4151 = vld [vmem:[#allocation7 + $0x58] sm:$0xff]
        %v4152 = vld [vmem:[#allocation7 + $0x60] sm:$0xff]
        %v4153 = vld [vmem:[#allocation7 + $0x68] sm:$0xff]
        %v4154 = vld [vmem:[#allocation7 + $0x70] sm:$0xff]
        %v4155 = vld [vmem:[#allocation7 + $0x78] sm:$0xff]
        %v4156 = vld [vmem:[#allocation7 + $0x80] sm:$0xff]
        %v4157 = vld [vmem:[#allocation7 + $0x88] sm:$0xff]
        %v4158 = vld [vmem:[#allocation7 + $0x90] sm:$0xff]
        %v4159 = vld [vmem:[#allocation7 + $0x98] sm:$0xff]
        %v4160 = vld [vmem:[#allocation7 + $0xa0] sm:$0xff]
        %v4161 = vld [vmem:[#allocation7 + $0xa8] sm:$0xff]
        %v4162 = vld [vmem:[#allocation7 + $0xb0] sm:$0xff]
        %v4163 = vld [vmem:[#allocation7 + $0xb8] sm:$0xff]
        %v4164 = vld [vmem:[#allocation7 + $0xc0] sm:$0xff]
        %v4165 = vld [vmem:[#allocation7 + $0xc8] sm:$0xff]
        %v4166 = vld [vmem:[#allocation7 + $0xd0] sm:$0xff]
        %v4167 = vld [vmem:[#allocation7 + $0xd8] sm:$0xff]
        %v4168 = vld [vmem:[#allocation7 + $0xe0] sm:$0xff]
        %v4169 = vld [vmem:[#allocation7 + $0xe8] sm:$0xff]
        %v4170 = vld [vmem:[#allocation7 + $0xf0] sm:$0xff]
        %v4171 = vld [vmem:[#allocation7 + $0xf8] sm:$0xff]
        %v4172 = vld [vmem:[#allocation7 + $0x100] sm:$0xff]
        %v4173 = vld [vmem:[#allocation7 + $0x108] sm:$0xff]
        %v4174 = vld [vmem:[#allocation7 + $0x110] sm:$0xff]
        %v4175 = vld [vmem:[#allocation7 + $0x118] sm:$0xff]
        %v4176 = vld [vmem:[#allocation7 + $0x120] sm:$0xff]
        %v4177 = vld [vmem:[#allocation7 + $0x128] sm:$0xff]
        %v4178 = vld [vmem:[#allocation7 + $0x130] sm:$0xff]
        %v4179 = vld [vmem:[#allocation7 + $0x138] sm:$0xff]
        %v4180 = vld [vmem:[#allocation7 + $0x140] sm:$0xff]
        %v4181 = vld [vmem:[#allocation7 + $0x148] sm:$0xff]
        %v4182 = vld [vmem:[#allocation7 + $0x150] sm:$0xff]
        %v4183 = vld [vmem:[#allocation7 + $0x158] sm:$0xff]
        %v4184 = vld [vmem:[#allocation7 + $0x160] sm:$0xff]
        %v4185 = vld [vmem:[#allocation7 + $0x168] sm:$0xff]
        %v4186 = vld [vmem:[#allocation7 + $0x170] sm:$0xff]
        %v4187 = vld [vmem:[#allocation7 + $0x178] sm:$0xff]
        %v4188 = vld [vmem:[#allocation7 + $0x180] sm:$0xff]
        %v4189 = vld [vmem:[#allocation7 + $0x188] sm:$0xff]
        %v4190 = vld [vmem:[#allocation7 + $0x190] sm:$0xff]
        %v4191 = vld [vmem:[#allocation7 + $0x198] sm:$0xff]
        %v4192 = vld [vmem:[#allocation7 + $0x1a0] sm:$0xff]
        %v4193 = vld [vmem:[#allocation7 + $0x1a8] sm:$0xff]
        %v4194 = vld [vmem:[#allocation7 + $0x1b0] sm:$0xff]
        %v4195 = vld [vmem:[#allocation7 + $0x1b8] sm:$0xff]
        %v4196 = vld [vmem:[#allocation7 + $0x1c0] sm:$0xff]
        %v4197 = vld [vmem:[#allocation7 + $0x1c8] sm:$0xff]
        %v4198 = vld [vmem:[#allocation7 + $0x1d0] sm:$0xff]
        %v4199 = vld [vmem:[#allocation7 + $0x1d8] sm:$0xff]
        %v4200 = vld [vmem:[#allocation7 + $0x1e0] sm:$0xff]
        %v4201 = vld [vmem:[#allocation7 + $0x1e8] sm:$0xff]
        %v4202 = vld [vmem:[#allocation7 + $0x1f0] sm:$0xff]
        %v4203 = vld [vmem:[#allocation7 + $0x1f8] sm:$0xff]
        %v4204 = vld [vmem:[#allocation7 + $0x200] sm:$0xff]
        %v4205 = vld [vmem:[#allocation7 + $0x208] sm:$0xff]
        %v4206 = vld [vmem:[#allocation7 + $0x210] sm:$0xff]
        %v4207 = vld [vmem:[#allocation7 + $0x218] sm:$0xff]
        %v4208 = vld [vmem:[#allocation7 + $0x220] sm:$0xff]
        %v4209 = vld [vmem:[#allocation7 + $0x228] sm:$0xff]
        %4280 = vrot.lane.b32.xlu0 %v4140, 96
        %v4281 = vpop.permute.xlu0 %4280
        %4282 = vrot.lane.b32.xlu0 %v4141, 96
        %v4283 = vpop.permute.xlu0 %4282
        %4284 = vrot.lane.b32.xlu0 %v4142, 96
        %v4285 = vpop.permute.xlu0 %4284
        %4286 = vrot.lane.b32.xlu0 %v4143, 96
        %v4287 = vpop.permute.xlu0 %4286
        %4288 = vrot.lane.b32.xlu0 %v4144, 96
        %v4289 = vpop.permute.xlu0 %4288
        %4290 = vrot.lane.b32.xlu0 %v4145, 96
        %v4291 = vpop.permute.xlu0 %4290
        %4292 = vrot.lane.b32.xlu0 %v4146, 96
        %v4293 = vpop.permute.xlu0 %4292
        %4294 = vrot.lane.b32.xlu0 %v4147, 96
        %v4295 = vpop.permute.xlu0 %4294
        %4296 = vrot.lane.b32.xlu0 %v4148, 96
        %v4297 = vpop.permute.xlu0 %4296
        %4298 = vrot.lane.b32.xlu0 %v4149, 96
        %v4299 = vpop.permute.xlu0 %4298
        %4300 = vrot.lane.b32.xlu0 %v4150, 96
        %v4301 = vpop.permute.xlu0 %4300
        %4302 = vrot.lane.b32.xlu0 %v4151, 96
        %v4303 = vpop.permute.xlu0 %4302
        %4304 = vrot.lane.b32.xlu0 %v4152, 96
        %v4305 = vpop.permute.xlu0 %4304
        %4306 = vrot.lane.b32.xlu0 %v4153, 96
        %v4307 = vpop.permute.xlu0 %4306
        %4308 = vrot.lane.b32.xlu0 %v4154, 96
        %v4309 = vpop.permute.xlu0 %4308
        %4310 = vrot.lane.b32.xlu0 %v4155, 96
        %v4311 = vpop.permute.xlu0 %4310
        %4312 = vrot.lane.b32.xlu0 %v4156, 96
        %v4313 = vpop.permute.xlu0 %4312
        %4314 = vrot.lane.b32.xlu0 %v4157, 96
        %v4315 = vpop.permute.xlu0 %4314
        %4316 = vrot.lane.b32.xlu0 %v4158, 96
        %v4317 = vpop.permute.xlu0 %4316
        %4318 = vrot.lane.b32.xlu0 %v4159, 96
        %v4319 = vpop.permute.xlu0 %4318
        %4320 = vrot.lane.b32.xlu0 %v4160, 96
        %v4321 = vpop.permute.xlu0 %4320
        %4322 = vrot.lane.b32.xlu0 %v4161, 96
        %v4323 = vpop.permute.xlu0 %4322
        %4324 = vrot.lane.b32.xlu0 %v4162, 96
        %v4325 = vpop.permute.xlu0 %4324
        %4326 = vrot.lane.b32.xlu0 %v4163, 96
        %v4327 = vpop.permute.xlu0 %4326
        %4328 = vrot.lane.b32.xlu0 %v4164, 96
        %v4329 = vpop.permute.xlu0 %4328
        %4330 = vrot.lane.b32.xlu0 %v4165, 96
        %v4331 = vpop.permute.xlu0 %4330
        %4332 = vrot.lane.b32.xlu0 %v4166, 96
        %v4333 = vpop.permute.xlu0 %4332
        %4334 = vrot.lane.b32.xlu0 %v4167, 96
        %v4335 = vpop.permute.xlu0 %4334
        %4336 = vrot.lane.b32.xlu0 %v4168, 96
        %v4337 = vpop.permute.xlu0 %4336
        %4338 = vrot.lane.b32.xlu0 %v4169, 96
        %v4339 = vpop.permute.xlu0 %4338
        %4340 = vrot.lane.b32.xlu0 %v4170, 96
        %v4341 = vpop.permute.xlu0 %4340
        %4342 = vrot.lane.b32.xlu0 %v4171, 96
        %v4343 = vpop.permute.xlu0 %4342
        %4344 = vrot.lane.b32.xlu0 %v4172, 96
        %v4345 = vpop.permute.xlu0 %4344
        %4346 = vrot.lane.b32.xlu0 %v4173, 96
        %v4347 = vpop.permute.xlu0 %4346
        %4348 = vrot.lane.b32.xlu0 %v4174, 96
        %v4349 = vpop.permute.xlu0 %4348
        %4350 = vrot.lane.b32.xlu0 %v4175, 96
        %v4351 = vpop.permute.xlu0 %4350
        %4352 = vrot.lane.b32.xlu0 %v4176, 96
        %v4353 = vpop.permute.xlu0 %4352
        %4354 = vrot.lane.b32.xlu0 %v4177, 96
        %v4355 = vpop.permute.xlu0 %4354
        %4356 = vrot.lane.b32.xlu0 %v4178, 96
        %v4357 = vpop.permute.xlu0 %4356
        %4358 = vrot.lane.b32.xlu0 %v4179, 96
        %v4359 = vpop.permute.xlu0 %4358
        %4360 = vrot.lane.b32.xlu0 %v4180, 96
        %v4361 = vpop.permute.xlu0 %4360
        %4362 = vrot.lane.b32.xlu0 %v4181, 96
        %v4363 = vpop.permute.xlu0 %4362
        %4364 = vrot.lane.b32.xlu0 %v4182, 96
        %v4365 = vpop.permute.xlu0 %4364
        %4366 = vrot.lane.b32.xlu0 %v4183, 96
        %v4367 = vpop.permute.xlu0 %4366
        %4368 = vrot.lane.b32.xlu0 %v4184, 96
        %v4369 = vpop.permute.xlu0 %4368
        %4370 = vrot.lane.b32.xlu0 %v4185, 96
        %v4371 = vpop.permute.xlu0 %4370
        %4372 = vrot.lane.b32.xlu0 %v4186, 96
        %v4373 = vpop.permute.xlu0 %4372
        %4374 = vrot.lane.b32.xlu0 %v4187, 96
        %v4375 = vpop.permute.xlu0 %4374
        %4376 = vrot.lane.b32.xlu0 %v4188, 96
        %v4377 = vpop.permute.xlu0 %4376
        %4378 = vrot.lane.b32.xlu0 %v4189, 96
        %v4379 = vpop.permute.xlu0 %4378
        %4380 = vrot.lane.b32.xlu0 %v4190, 96
        %v4381 = vpop.permute.xlu0 %4380
        %4382 = vrot.lane.b32.xlu0 %v4191, 96
        %v4383 = vpop.permute.xlu0 %4382
        %4384 = vrot.lane.b32.xlu0 %v4192, 96
        %v4385 = vpop.permute.xlu0 %4384
        %4386 = vrot.lane.b32.xlu0 %v4193, 96
        %v4387 = vpop.permute.xlu0 %4386
        %4388 = vrot.lane.b32.xlu0 %v4194, 96
        %v4389 = vpop.permute.xlu0 %4388
        %4390 = vrot.lane.b32.xlu0 %v4195, 96
        %v4391 = vpop.permute.xlu0 %4390
        %4392 = vrot.lane.b32.xlu0 %v4196, 96
        %v4393 = vpop.permute.xlu0 %4392
        %4394 = vrot.lane.b32.xlu0 %v4197, 96
        %v4395 = vpop.permute.xlu0 %4394
        %4396 = vrot.lane.b32.xlu0 %v4198, 96
        %v4397 = vpop.permute.xlu0 %4396
        %4398 = vrot.lane.b32.xlu0 %v4199, 96
        %v4399 = vpop.permute.xlu0 %4398
        %4400 = vrot.lane.b32.xlu0 %v4200, 96
        %v4401 = vpop.permute.xlu0 %4400
        %4402 = vrot.lane.b32.xlu0 %v4201, 96
        %v4403 = vpop.permute.xlu0 %4402
        %4404 = vrot.lane.b32.xlu0 %v4202, 96
        %v4405 = vpop.permute.xlu0 %4404
        %4406 = vrot.lane.b32.xlu0 %v4203, 96
        %v4407 = vpop.permute.xlu0 %4406
        %4408 = vrot.lane.b32.xlu0 %v4204, 96
        %v4409 = vpop.permute.xlu0 %4408
        %4410 = vrot.lane.b32.xlu0 %v4205, 96
        %v4411 = vpop.permute.xlu0 %4410
        %4412 = vrot.lane.b32.xlu0 %v4206, 96
        %v4413 = vpop.permute.xlu0 %4412
        %4414 = vrot.lane.b32.xlu0 %v4207, 96
        %v4415 = vpop.permute.xlu0 %4414
        %4416 = vrot.lane.b32.xlu0 %v4208, 96
        %v4417 = vpop.permute.xlu0 %4416
        %4418 = vrot.lane.b32.xlu0 %v4209, 96
        %v4419 = vpop.permute.xlu0 %4418
        %v4420 = vsel %vm725, %v4281, %v4283
        %v4421 = vsel %vm725, %v4283, %v4285
        %v4422 = vsel %vm725, %v4285, %v4287
        %v4423 = vsel %vm725, %v4287, %v4289
        %v4424 = vsel %vm725, %v4289, %v4291
        %v4425 = vsel %vm725, %v4291, %v4293
        %v4426 = vsel %vm725, %v4295, %v4297
        %v4427 = vsel %vm725, %v4297, %v4299
        %v4428 = vsel %vm725, %v4299, %v4301
        %v4429 = vsel %vm725, %v4301, %v4303
        %v4430 = vsel %vm725, %v4303, %v4305
        %v4431 = vsel %vm725, %v4305, %v4307
        %v4432 = vsel %vm725, %v4309, %v4311
        %v4433 = vsel %vm725, %v4311, %v4313
        %v4434 = vsel %vm725, %v4313, %v4315
        %v4435 = vsel %vm725, %v4315, %v4317
        %v4436 = vsel %vm725, %v4317, %v4319
        %v4437 = vsel %vm725, %v4319, %v4321
        %v4438 = vsel %vm725, %v4323, %v4325
        %v4439 = vsel %vm725, %v4325, %v4327
        %v4440 = vsel %vm725, %v4327, %v4329
        %v4441 = vsel %vm725, %v4329, %v4331
        %v4442 = vsel %vm725, %v4331, %v4333
        %v4443 = vsel %vm725, %v4333, %v4335
        %v4444 = vsel %vm725, %v4337, %v4339
        %v4445 = vsel %vm725, %v4339, %v4341
        %v4446 = vsel %vm725, %v4341, %v4343
        %v4447 = vsel %vm725, %v4343, %v4345
        %v4448 = vsel %vm725, %v4345, %v4347
        %v4449 = vsel %vm725, %v4347, %v4349
        %v4450 = vsel %vm725, %v4351, %v4353
        %v4451 = vsel %vm725, %v4353, %v4355
        %v4452 = vsel %vm725, %v4355, %v4357
        %v4453 = vsel %vm725, %v4357, %v4359
        %v4454 = vsel %vm725, %v4359, %v4361
        %v4455 = vsel %vm725, %v4361, %v4363
        %v4456 = vsel %vm725, %v4365, %v4367
        %v4457 = vsel %vm725, %v4367, %v4369
        %v4458 = vsel %vm725, %v4369, %v4371
        %v4459 = vsel %vm725, %v4371, %v4373
        %v4460 = vsel %vm725, %v4373, %v4375
        %v4461 = vsel %vm725, %v4375, %v4377
        %v4462 = vsel %vm725, %v4379, %v4381
        %v4463 = vsel %vm725, %v4381, %v4383
        %v4464 = vsel %vm725, %v4383, %v4385
        %v4465 = vsel %vm725, %v4385, %v4387
        %v4466 = vsel %vm725, %v4387, %v4389
        %v4467 = vsel %vm725, %v4389, %v4391
        %v4468 = vsel %vm725, %v4393, %v4395
        %v4469 = vsel %vm725, %v4395, %v4397
        %v4470 = vsel %vm725, %v4397, %v4399
        %v4471 = vsel %vm725, %v4399, %v4401
        %v4472 = vsel %vm725, %v4401, %v4403
        %v4473 = vsel %vm725, %v4403, %v4405
        %v4474 = vsel %vm725, %v4407, %v4409
        %v4475 = vsel %vm725, %v4409, %v4411
        %v4476 = vsel %vm725, %v4411, %v4413
        %v4477 = vsel %vm725, %v4413, %v4415
        %v4478 = vsel %vm725, %v4415, %v4417
        %v4479 = vsel %vm725, %v4417, %v4419
        %vm4540 = vcmask 654336
        %v4542 = vsel %vm4540, %v4137, 0
        %v4545 = vsel %vm4540, %v4138, 0
        %v4548 = vsel %vm4540, %v4139, 0
        %4550 = vmatprep.subr.mxu0 %v4421
        %4551 = vmatpush1.msra.mxu0 %v4420
        %4552 = vmatprep.subr.mxu0 %v4427
        %4553 = vmatpush1.msra.mxu0 %v4426
        %4554 = vmatprep.subr.mxu0 %v4433
        %4555 = vmatpush1.msra.mxu0 %v4432
        %4556 = vmatprep.subr.mxu0 %v4439
        %4557 = vmatpush1.msra.mxu0 %v4438
        %4558 = vmatprep.subr.mxu0 %v4445
        %4559 = vmatpush1.msra.mxu0 %v4444
        %4560 = vmatprep.subr.mxu0 %v4451
        %4561 = vmatpush1.msra.mxu0 %v4450
        %4562 = vmatprep.subr.mxu0 %v4457
        %4563 = vmatpush1.msra.mxu0 %v4456
        %4564 = vmatprep.subr.mxu0 %v4463
        %4565 = vmatpush1.msra.mxu0 %v4462
        %4566 = vmatprep.subr.mxu0 %v4469
        %4567 = vmatpush1.msra.mxu0 %v4468
        %4568 = vmatprep.subr.mxu0 %v4475
        %4569 = vmatpush1.msra.mxu0 %v4474
        %4570 = vmatprep.subr.mxu0 0.0
        %4571 = vmatpush1.msra.mxu0 0.0
        %4572 = vmatprep.subr.mxu0 0.0
        %4573 = vmatpush1.msra.mxu0 0.0
        %4574 = vmatprep.subr.mxu0 0.0
        %4575 = vmatpush1.msra.mxu0 0.0
        %4576 = vmatprep.subr.mxu0 0.0
        %4577 = vmatpush1.msra.mxu0 0.0
        %4578 = vmatprep.subr.mxu0 0.0
        %4579 = vmatpush1.msra.mxu0 0.0
        %4580 = vmatprep.subr.mxu0 0.0
        %4581 = vmatpush1.msra.mxu0 0.0
        %4582 = vmatprep.subr.mxu0 0.0
        %4583 = vmatpush1.msra.mxu0 0.0
        %4584 = vmatprep.subr.mxu0 0.0
        %4585 = vmatpush1.msra.mxu0 0.0
        %4586 = vmatprep.subr.mxu0 0.0
        %4587 = vmatpush1.msra.mxu0 0.0
        %4588 = vmatprep.subr.mxu0 0.0
        %4589 = vmatpush1.msra.mxu0 0.0
        %4590 = vmatprep.subr.mxu0 0.0
        %4591 = vmatpush1.msra.mxu0 0.0
        %4592 = vmatprep.subr.mxu0 0.0
        %4593 = vmatpush1.msra.mxu0 0.0
        %4594 = vmatprep.subr.mxu0 0.0
        %4595 = vmatpush1.msra.mxu0 0.0
        %4596 = vmatprep.subr.mxu0 0.0
        %4597 = vmatpush1.msra.mxu0 0.0
        %4598 = vmatprep.subr.mxu0 0.0
        %4599 = vmatpush1.msra.mxu0 0.0
        %4600 = vmatprep.subr.mxu0 0.0
        %4601 = vmatpush1.msra.mxu0 0.0
        %4602 = vmatprep.subr.mxu0 0.0
        %4603 = vmatpush1.msra.mxu0 0.0
        %4604 = vmatprep.subr.mxu0 0.0
        %4605 = vmatpush1.msra.mxu0 0.0
        %4606 = vmatprep.subr.mxu0 0.0
        %4607 = vmatpush1.msra.mxu0 0.0
        %4608 = vmatprep.subr.mxu0 0.0
        %4609 = vmatpush1.msra.mxu0 0.0
        %4610 = vmatprep.subr.mxu0 0.0
        %4611 = vmatpush1.msra.mxu0 0.0
        %4612 = vmatprep.subr.mxu0 0.0
        %4613 = vmatpush1.msra.mxu0 0.0
        %4614 = vmatprep.mubr.f32.mxu0 0.0
        %4615 = vmatmul.mubr.f32.gmra.mrb[0].mxu0 %v4542
        %v4616 = vpop.f32.mrb[0].mxu0
        %v4617 = vadd.f32 0.0, %v4616
        %v4618 = vpop.f32.mrb[0].mxu0
        %v4619 = vadd.f32 0.0, %v4618
        %4620 = vmatprep.mubr.f32.mxu0 0.0
        %4621 = vmatmul.mubr.f32.gmra.mrb[0].mxu0 %v4545
        %v4622 = vpop.f32.mrb[0].mxu0
        %v4623 = vadd.f32 0.0, %v4622
        %v4624 = vpop.f32.mrb[0].mxu0
        %v4625 = vadd.f32 0.0, %v4624
        %4626 = vmatprep.mubr.f32.mxu0 0.0
        %4627 = vmatmul.mubr.f32.gmra.mrb[0].mxu0 %v4548
        %v4628 = vpop.f32.mrb[0].mxu0
        %v4629 = vadd.f32 0.0, %v4628
        %v4630 = vpop.f32.mrb[0].mxu0
        %v4631 = vadd.f32 0.0, %v4630
        %4632 = vdwg.mxu0
        %4633 = vmatprep.subr.mxu0 %v4423
        %4634 = vmatpush1.msra.mxu0 %v4422
        %4635 = vmatprep.subr.mxu0 %v4429
        %4636 = vmatpush1.msra.mxu0 %v4428
        %4637 = vmatprep.subr.mxu0 %v4435
        %4638 = vmatpush1.msra.mxu0 %v4434
        %4639 = vmatprep.subr.mxu0 %v4441
        %4640 = vmatpush1.msra.mxu0 %v4440
        %4641 = vmatprep.subr.mxu0 %v4447
        %4642 = vmatpush1.msra.mxu0 %v4446
        %4643 = vmatprep.subr.mxu0 %v4453
        %4644 = vmatpush1.msra.mxu0 %v4452
        %4645 = vmatprep.subr.mxu0 %v4459
        %4646 = vmatpush1.msra.mxu0 %v4458
        %4647 = vmatprep.subr.mxu0 %v4465
        %4648 = vmatpush1.msra.mxu0 %v4464
        %4649 = vmatprep.subr.mxu0 %v4471
        %4650 = vmatpush1.msra.mxu0 %v4470
        %4651 = vmatprep.subr.mxu0 %v4477
        %4652 = vmatpush1.msra.mxu0 %v4476
        %4653 = vmatprep.subr.mxu0 0.0
        %4654 = vmatpush1.msra.mxu0 0.0
        %4655 = vmatprep.subr.mxu0 0.0
        %4656 = vmatpush1.msra.mxu0 0.0
        %4657 = vmatprep.subr.mxu0 0.0
        %4658 = vmatpush1.msra.mxu0 0.0
        %4659 = vmatprep.subr.mxu0 0.0
        %4660 = vmatpush1.msra.mxu0 0.0
        %4661 = vmatprep.subr.mxu0 0.0
        %4662 = vmatpush1.msra.mxu0 0.0
        %4663 = vmatprep.subr.mxu0 0.0
        %4664 = vmatpush1.msra.mxu0 0.0
        %4665 = vmatprep.subr.mxu0 0.0
        %4666 = vmatpush1.msra.mxu0 0.0
        %4667 = vmatprep.subr.mxu0 0.0
        %4668 = vmatpush1.msra.mxu0 0.0
        %4669 = vmatprep.subr.mxu0 0.0
        %4670 = vmatpush1.msra.mxu0 0.0
        %4671 = vmatprep.subr.mxu0 0.0
        %4672 = vmatpush1.msra.mxu0 0.0
        %4673 = vmatprep.subr.mxu0 0.0
        %4674 = vmatpush1.msra.mxu0 0.0
        %4675 = vmatprep.subr.mxu0 0.0
        %4676 = vmatpush1.msra.mxu0 0.0
        %4677 = vmatprep.subr.mxu0 0.0
        %4678 = vmatpush1.msra.mxu0 0.0
        %4679 = vmatprep.subr.mxu0 0.0
        %4680 = vmatpush1.msra.mxu0 0.0
        %4681 = vmatprep.subr.mxu0 0.0
        %4682 = vmatpush1.msra.mxu0 0.0
        %4683 = vmatprep.subr.mxu0 0.0
        %4684 = vmatpush1.msra.mxu0 0.0
        %4685 = vmatprep.subr.mxu0 0.0
        %4686 = vmatpush1.msra.mxu0 0.0
        %4687 = vmatprep.subr.mxu0 0.0
        %4688 = vmatpush1.msra.mxu0 0.0
        %4689 = vmatprep.subr.mxu0 0.0
        %4690 = vmatpush1.msra.mxu0 0.0
        %4691 = vmatprep.subr.mxu0 0.0
        %4692 = vmatpush1.msra.mxu0 0.0
        %4693 = vmatprep.subr.mxu0 0.0
        %4694 = vmatpush1.msra.mxu0 0.0
        %4695 = vmatprep.subr.mxu0 0.0
        %4696 = vmatpush1.msra.mxu0 0.0
        %4697 = vmatprep.mubr.f32.mxu0 0.0
        %4698 = vmatmul.mubr.f32.gmra.mrb[0].mxu0 %v4542
        %v4699 = vpop.f32.mrb[0].mxu0
        %v4700 = vadd.f32 0.0, %v4699
        %v4701 = vpop.f32.mrb[0].mxu0
        %v4702 = vadd.f32 0.0, %v4701
        %4703 = vmatprep.mubr.f32.mxu0 0.0
        %4704 = vmatmul.mubr.f32.gmra.mrb[0].mxu0 %v4545
        %v4705 = vpop.f32.mrb[0].mxu0
        %v4706 = vadd.f32 0.0, %v4705
        %v4707 = vpop.f32.mrb[0].mxu0
        %v4708 = vadd.f32 0.0, %v4707
        %4709 = vmatprep.mubr.f32.mxu0 0.0
        %4710 = vmatmul.mubr.f32.gmra.mrb[0].mxu0 %v4548
        %v4711 = vpop.f32.mrb[0].mxu0
        %v4712 = vadd.f32 0.0, %v4711
        %v4713 = vpop.f32.mrb[0].mxu0
        %v4714 = vadd.f32 0.0, %v4713
        %4715 = vdwg.mxu0
        %4716 = vmatprep.subr.mxu0 %v4425
        %4717 = vmatpush1.msra.mxu0 %v4424
        %4718 = vmatprep.subr.mxu0 %v4431
        %4719 = vmatpush1.msra.mxu0 %v4430
        %4720 = vmatprep.subr.mxu0 %v4437
        %4721 = vmatpush1.msra.mxu0 %v4436
        %4722 = vmatprep.subr.mxu0 %v4443
        %4723 = vmatpush1.msra.mxu0 %v4442
        %4724 = vmatprep.subr.mxu0 %v4449
        %4725 = vmatpush1.msra.mxu0 %v4448
        %4726 = vmatprep.subr.mxu0 %v4455
        %4727 = vmatpush1.msra.mxu0 %v4454
        %4728 = vmatprep.subr.mxu0 %v4461
        %4729 = vmatpush1.msra.mxu0 %v4460
        %4730 = vmatprep.subr.mxu0 %v4467
        %4731 = vmatpush1.msra.mxu0 %v4466
        %4732 = vmatprep.subr.mxu0 %v4473
        %4733 = vmatpush1.msra.mxu0 %v4472
        %4734 = vmatprep.subr.mxu0 %v4479
        %4735 = vmatpush1.msra.mxu0 %v4478
        %4736 = vmatprep.subr.mxu0 0.0
        %4737 = vmatpush1.msra.mxu0 0.0
        %4738 = vmatprep.subr.mxu0 0.0
        %4739 = vmatpush1.msra.mxu0 0.0
        %4740 = vmatprep.subr.mxu0 0.0
        %4741 = vmatpush1.msra.mxu0 0.0
        %4742 = vmatprep.subr.mxu0 0.0
        %4743 = vmatpush1.msra.mxu0 0.0
        %4744 = vmatprep.subr.mxu0 0.0
        %4745 = vmatpush1.msra.mxu0 0.0
        %4746 = vmatprep.subr.mxu0 0.0
        %4747 = vmatpush1.msra.mxu0 0.0
        %4748 = vmatprep.subr.mxu0 0.0
        %4749 = vmatpush1.msra.mxu0 0.0
        %4750 = vmatprep.subr.mxu0 0.0
        %4751 = vmatpush1.msra.mxu0 0.0
        %4752 = vmatprep.subr.mxu0 0.0
        %4753 = vmatpush1.msra.mxu0 0.0
        %4754 = vmatprep.subr.mxu0 0.0
        %4755 = vmatpush1.msra.mxu0 0.0
        %4756 = vmatprep.subr.mxu0 0.0
        %4757 = vmatpush1.msra.mxu0 0.0
        %4758 = vmatprep.subr.mxu0 0.0
        %4759 = vmatpush1.msra.mxu0 0.0
        %4760 = vmatprep.subr.mxu0 0.0
        %4761 = vmatpush1.msra.mxu0 0.0
        %4762 = vmatprep.subr.mxu0 0.0
        %4763 = vmatpush1.msra.mxu0 0.0
        %4764 = vmatprep.subr.mxu0 0.0
        %4765 = vmatpush1.msra.mxu0 0.0
        %4766 = vmatprep.subr.mxu0 0.0
        %4767 = vmatpush1.msra.mxu0 0.0
        %4768 = vmatprep.subr.mxu0 0.0
        %4769 = vmatpush1.msra.mxu0 0.0
        %4770 = vmatprep.subr.mxu0 0.0
        %4771 = vmatpush1.msra.mxu0 0.0
        %4772 = vmatprep.subr.mxu0 0.0
        %4773 = vmatpush1.msra.mxu0 0.0
        %4774 = vmatprep.subr.mxu0 0.0
        %4775 = vmatpush1.msra.mxu0 0.0
        %4776 = vmatprep.subr.mxu0 0.0
        %4777 = vmatpush1.msra.mxu0 0.0
        %4778 = vmatprep.subr.mxu0 0.0
        %4779 = vmatpush1.msra.mxu0 0.0
        %4780 = vmatprep.mubr.f32.mxu0 0.0
        %4781 = vmatmul.mubr.f32.gmra.mrb[0].mxu0 %v4542
        %v4782 = vpop.f32.mrb[0].mxu0
        %v4783 = vadd.f32 0.0, %v4782
        %v4784 = vpop.f32.mrb[0].mxu0
        %v4785 = vadd.f32 0.0, %v4784
        %4786 = vmatprep.mubr.f32.mxu0 0.0
        %4787 = vmatmul.mubr.f32.gmra.mrb[0].mxu0 %v4545
        %v4788 = vpop.f32.mrb[0].mxu0
        %v4789 = vadd.f32 0.0, %v4788
        %v4790 = vpop.f32.mrb[0].mxu0
        %v4791 = vadd.f32 0.0, %v4790
        %4792 = vmatprep.mubr.f32.mxu0 0.0
        %4793 = vmatmul.mubr.f32.gmra.mrb[0].mxu0 %v4548
        %v4794 = vpop.f32.mrb[0].mxu0
        %v4795 = vadd.f32 0.0, %v4794
        %v4796 = vpop.f32.mrb[0].mxu0
        %v4797 = vadd.f32 0.0, %v4796
        %4798 = vdwg.mxu0
        %v4800 = vsel %vm4540, %v4073, 0
        %v4803 = vsel %vm4540, %v4074, 0
        %v4806 = vsel %vm4540, %v4075, 0
        %4808 = vmatprep.subr.mxu0 %v4077
        %4809 = vmatpush1.msra.mxu0 %v4076
        %4810 = vmatprep.subr.mxu0 %v4083
        %4811 = vmatpush1.msra.mxu0 %v4082
        %4812 = vmatprep.subr.mxu0 %v4089
        %4813 = vmatpush1.msra.mxu0 %v4088
        %4814 = vmatprep.subr.mxu0 %v4095
        %4815 = vmatpush1.msra.mxu0 %v4094
        %4816 = vmatprep.subr.mxu0 %v4101
        %4817 = vmatpush1.msra.mxu0 %v4100
        %4818 = vmatprep.subr.mxu0 %v4107
        %4819 = vmatpush1.msra.mxu0 %v4106
        %4820 = vmatprep.subr.mxu0 %v4113
        %4821 = vmatpush1.msra.mxu0 %v4112
        %4822 = vmatprep.subr.mxu0 %v4119
        %4823 = vmatpush1.msra.mxu0 %v4118
        %4824 = vmatprep.subr.mxu0 %v4125
        %4825 = vmatpush1.msra.mxu0 %v4124
        %4826 = vmatprep.subr.mxu0 %v4131
        %4827 = vmatpush1.msra.mxu0 %v4130
        %4828 = vmatprep.subr.mxu0 0.0
        %4829 = vmatpush1.msra.mxu0 0.0
        %4830 = vmatprep.subr.mxu0 0.0
        %4831 = vmatpush1.msra.mxu0 0.0
        %4832 = vmatprep.subr.mxu0 0.0
        %4833 = vmatpush1.msra.mxu0 0.0
        %4834 = vmatprep.subr.mxu0 0.0
        %4835 = vmatpush1.msra.mxu0 0.0
        %4836 = vmatprep.subr.mxu0 0.0
        %4837 = vmatpush1.msra.mxu0 0.0
        %4838 = vmatprep.subr.mxu0 0.0
        %4839 = vmatpush1.msra.mxu0 0.0
        %4840 = vmatprep.subr.mxu0 0.0
        %4841 = vmatpush1.msra.mxu0 0.0
        %4842 = vmatprep.subr.mxu0 0.0
        %4843 = vmatpush1.msra.mxu0 0.0
        %4844 = vmatprep.subr.mxu0 0.0
        %4845 = vmatpush1.msra.mxu0 0.0
        %4846 = vmatprep.subr.mxu0 0.0
        %4847 = vmatpush1.msra.mxu0 0.0
        %4848 = vmatprep.subr.mxu0 0.0
        %4849 = vmatpush1.msra.mxu0 0.0
        %4850 = vmatprep.subr.mxu0 0.0
        %4851 = vmatpush1.msra.mxu0 0.0
        %4852 = vmatprep.subr.mxu0 0.0
        %4853 = vmatpush1.msra.mxu0 0.0
        %4854 = vmatprep.subr.mxu0 0.0
        %4855 = vmatpush1.msra.mxu0 0.0
        %4856 = vmatprep.subr.mxu0 0.0
        %4857 = vmatpush1.msra.mxu0 0.0
        %4858 = vmatprep.subr.mxu0 0.0
        %4859 = vmatpush1.msra.mxu0 0.0
        %4860 = vmatprep.subr.mxu0 0.0
        %4861 = vmatpush1.msra.mxu0 0.0
        %4862 = vmatprep.subr.mxu0 0.0
        %4863 = vmatpush1.msra.mxu0 0.0
        %4864 = vmatprep.subr.mxu0 0.0
        %4865 = vmatpush1.msra.mxu0 0.0
        %4866 = vmatprep.subr.mxu0 0.0
        %4867 = vmatpush1.msra.mxu0 0.0
        %4868 = vmatprep.subr.mxu0 0.0
        %4869 = vmatpush1.msra.mxu0 0.0
        %4870 = vmatprep.subr.mxu0 0.0
        %4871 = vmatpush1.msra.mxu0 0.0
        %4872 = vmatprep.mubr.f32.mxu0 0.0
        %4873 = vmatmul.mubr.f32.gmra.mrb[0].mxu0 %v4800
        %v4874 = vpop.f32.mrb[0].mxu0
        %v4875 = vadd.f32 %v4617, %v4874
        %v4876 = vpop.f32.mrb[0].mxu0
        %v4877 = vadd.f32 %v4619, %v4876
        %4878 = vmatprep.mubr.f32.mxu0 0.0
        %4879 = vmatmul.mubr.f32.gmra.mrb[0].mxu0 %v4803
        %v4880 = vpop.f32.mrb[0].mxu0
        %v4881 = vadd.f32 %v4623, %v4880
        %v4882 = vpop.f32.mrb[0].mxu0
        %v4883 = vadd.f32 %v4625, %v4882
        %4884 = vmatprep.mubr.f32.mxu0 0.0
        %4885 = vmatmul.mubr.f32.gmra.mrb[0].mxu0 %v4806
        %v4886 = vpop.f32.mrb[0].mxu0
        %v4887 = vadd.f32 %v4629, %v4886
        %v4888 = vpop.f32.mrb[0].mxu0
        %v4889 = vadd.f32 %v4631, %v4888
        %4890 = vdwg.mxu0
        %4891 = vmatprep.subr.mxu0 %v4079
        %4892 = vmatpush1.msra.mxu0 %v4078
        %4893 = vmatprep.subr.mxu0 %v4085
        %4894 = vmatpush1.msra.mxu0 %v4084
        %4895 = vmatprep.subr.mxu0 %v4091
        %4896 = vmatpush1.msra.mxu0 %v4090
        %4897 = vmatprep.subr.mxu0 %v4097
        %4898 = vmatpush1.msra.mxu0 %v4096
        %4899 = vmatprep.subr.mxu0 %v4103
        %4900 = vmatpush1.msra.mxu0 %v4102
        %4901 = vmatprep.subr.mxu0 %v4109
        %4902 = vmatpush1.msra.mxu0 %v4108
        %4903 = vmatprep.subr.mxu0 %v4115
        %4904 = vmatpush1.msra.mxu0 %v4114
        %4905 = vmatprep.subr.mxu0 %v4121
        %4906 = vmatpush1.msra.mxu0 %v4120
        %4907 = vmatprep.subr.mxu0 %v4127
        %4908 = vmatpush1.msra.mxu0 %v4126
        %4909 = vmatprep.subr.mxu0 %v4133
        %4910 = vmatpush1.msra.mxu0 %v4132
        %4911 = vmatprep.subr.mxu0 0.0
        %4912 = vmatpush1.msra.mxu0 0.0
        %4913 = vmatprep.subr.mxu0 0.0
        %4914 = vmatpush1.msra.mxu0 0.0
        %4915 = vmatprep.subr.mxu0 0.0
        %4916 = vmatpush1.msra.mxu0 0.0
        %4917 = vmatprep.subr.mxu0 0.0
        %4918 = vmatpush1.msra.mxu0 0.0
        %4919 = vmatprep.subr.mxu0 0.0
        %4920 = vmatpush1.msra.mxu0 0.0
        %4921 = vmatprep.subr.mxu0 0.0
        %4922 = vmatpush1.msra.mxu0 0.0
        %4923 = vmatprep.subr.mxu0 0.0
        %4924 = vmatpush1.msra.mxu0 0.0
        %4925 = vmatprep.subr.mxu0 0.0
        %4926 = vmatpush1.msra.mxu0 0.0
        %4927 = vmatprep.subr.mxu0 0.0
        %4928 = vmatpush1.msra.mxu0 0.0
        %4929 = vmatprep.subr.mxu0 0.0
        %4930 = vmatpush1.msra.mxu0 0.0
        %4931 = vmatprep.subr.mxu0 0.0
        %4932 = vmatpush1.msra.mxu0 0.0
        %4933 = vmatprep.subr.mxu0 0.0
        %4934 = vmatpush1.msra.mxu0 0.0
        %4935 = vmatprep.subr.mxu0 0.0
        %4936 = vmatpush1.msra.mxu0 0.0
        %4937 = vmatprep.subr.mxu0 0.0
        %4938 = vmatpush1.msra.mxu0 0.0
        %4939 = vmatprep.subr.mxu0 0.0
        %4940 = vmatpush1.msra.mxu0 0.0
        %4941 = vmatprep.subr.mxu0 0.0
        %4942 = vmatpush1.msra.mxu0 0.0
        %4943 = vmatprep.subr.mxu0 0.0
        %4944 = vmatpush1.msra.mxu0 0.0
        %4945 = vmatprep.subr.mxu0 0.0
        %4946 = vmatpush1.msra.mxu0 0.0
        %4947 = vmatprep.subr.mxu0 0.0
        %4948 = vmatpush1.msra.mxu0 0.0
        %4949 = vmatprep.subr.mxu0 0.0
        %4950 = vmatpush1.msra.mxu0 0.0
        %4951 = vmatprep.subr.mxu0 0.0
        %4952 = vmatpush1.msra.mxu0 0.0
        %4953 = vmatprep.subr.mxu0 0.0
        %4954 = vmatpush1.msra.mxu0 0.0
        %4955 = vmatprep.mubr.f32.mxu0 0.0
        %4956 = vmatmul.mubr.f32.gmra.mrb[0].mxu0 %v4800
        %v4957 = vpop.f32.mrb[0].mxu0
        %v4958 = vadd.f32 %v4700, %v4957
        %v4959 = vpop.f32.mrb[0].mxu0
        %v4960 = vadd.f32 %v4702, %v4959
        %4961 = vmatprep.mubr.f32.mxu0 0.0
        %4962 = vmatmul.mubr.f32.gmra.mrb[0].mxu0 %v4803
        %v4963 = vpop.f32.mrb[0].mxu0
        %v4964 = vadd.f32 %v4706, %v4963
        %v4965 = vpop.f32.mrb[0].mxu0
        %v4966 = vadd.f32 %v4708, %v4965
        %4967 = vmatprep.mubr.f32.mxu0 0.0
        %4968 = vmatmul.mubr.f32.gmra.mrb[0].mxu0 %v4806
        %v4969 = vpop.f32.mrb[0].mxu0
        %v4970 = vadd.f32 %v4712, %v4969
        %v4971 = vpop.f32.mrb[0].mxu0
        %v4972 = vadd.f32 %v4714, %v4971
        %4973 = vdwg.mxu0
        %4974 = vmatprep.subr.mxu0 %v4081
        %4975 = vmatpush1.msra.mxu0 %v4080
        %4976 = vmatprep.subr.mxu0 %v4087
        %4977 = vmatpush1.msra.mxu0 %v4086
        %4978 = vmatprep.subr.mxu0 %v4093
        %4979 = vmatpush1.msra.mxu0 %v4092
        %4980 = vmatprep.subr.mxu0 %v4099
        %4981 = vmatpush1.msra.mxu0 %v4098
        %4982 = vmatprep.subr.mxu0 %v4105
        %4983 = vmatpush1.msra.mxu0 %v4104
        %4984 = vmatprep.subr.mxu0 %v4111
        %4985 = vmatpush1.msra.mxu0 %v4110
        %4986 = vmatprep.subr.mxu0 %v4117
        %4987 = vmatpush1.msra.mxu0 %v4116
        %4988 = vmatprep.subr.mxu0 %v4123
        %4989 = vmatpush1.msra.mxu0 %v4122
        %4990 = vmatprep.subr.mxu0 %v4129
        %4991 = vmatpush1.msra.mxu0 %v4128
        %4992 = vmatprep.subr.mxu0 %v4135
        %4993 = vmatpush1.msra.mxu0 %v4134
        %4994 = vmatprep.subr.mxu0 0.0
        %4995 = vmatpush1.msra.mxu0 0.0
        %4996 = vmatprep.subr.mxu0 0.0
        %4997 = vmatpush1.msra.mxu0 0.0
        %4998 = vmatprep.subr.mxu0 0.0
        %4999 = vmatpush1.msra.mxu0 0.0
        %5000 = vmatprep.subr.mxu0 0.0
        %5001 = vmatpush1.msra.mxu0 0.0
        %5002 = vmatprep.subr.mxu0 0.0
        %5003 = vmatpush1.msra.mxu0 0.0
        %5004 = vmatprep.subr.mxu0 0.0
        %5005 = vmatpush1.msra.mxu0 0.0
        %5006 = vmatprep.subr.mxu0 0.0
        %5007 = vmatpush1.msra.mxu0 0.0
        %5008 = vmatprep.subr.mxu0 0.0
        %5009 = vmatpush1.msra.mxu0 0.0
        %5010 = vmatprep.subr.mxu0 0.0
        %5011 = vmatpush1.msra.mxu0 0.0
        %5012 = vmatprep.subr.mxu0 0.0
        %5013 = vmatpush1.msra.mxu0 0.0
        %5014 = vmatprep.subr.mxu0 0.0
        %5015 = vmatpush1.msra.mxu0 0.0
        %5016 = vmatprep.subr.mxu0 0.0
        %5017 = vmatpush1.msra.mxu0 0.0
        %5018 = vmatprep.subr.mxu0 0.0
        %5019 = vmatpush1.msra.mxu0 0.0
        %5020 = vmatprep.subr.mxu0 0.0
        %5021 = vmatpush1.msra.mxu0 0.0
        %5022 = vmatprep.subr.mxu0 0.0
        %5023 = vmatpush1.msra.mxu0 0.0
        %5024 = vmatprep.subr.mxu0 0.0
        %5025 = vmatpush1.msra.mxu0 0.0
        %5026 = vmatprep.subr.mxu0 0.0
        %5027 = vmatpush1.msra.mxu0 0.0
        %5028 = vmatprep.subr.mxu0 0.0
        %5029 = vmatpush1.msra.mxu0 0.0
        %5030 = vmatprep.subr.mxu0 0.0
        %5031 = vmatpush1.msra.mxu0 0.0
        %5032 = vmatprep.subr.mxu0 0.0
        %5033 = vmatpush1.msra.mxu0 0.0
        %5034 = vmatprep.subr.mxu0 0.0
        %5035 = vmatpush1.msra.mxu0 0.0
        %5036 = vmatprep.subr.mxu0 0.0
        %5037 = vmatpush1.msra.mxu0 0.0
        %5038 = vmatprep.mubr.f32.mxu0 0.0
        %5039 = vmatmul.mubr.f32.gmra.mrb[0].mxu0 %v4800
        %v5040 = vpop.f32.mrb[0].mxu0
        %v5041 = vadd.f32 %v4783, %v5040
        %v5042 = vpop.f32.mrb[0].mxu0
        %v5043 = vadd.f32 %v4785, %v5042
        %5044 = vmatprep.mubr.f32.mxu0 0.0
        %5045 = vmatmul.mubr.f32.gmra.mrb[0].mxu0 %v4803
        %v5046 = vpop.f32.mrb[0].mxu0
        %v5047 = vadd.f32 %v4789, %v5046
        %v5048 = vpop.f32.mrb[0].mxu0
        %v5049 = vadd.f32 %v4791, %v5048
        %5050 = vmatprep.mubr.f32.mxu0 0.0
        %5051 = vmatmul.mubr.f32.gmra.mrb[0].mxu0 %v4806
        %v5052 = vpop.f32.mrb[0].mxu0
        %v5053 = vadd.f32 %v4795, %v5052
        %v5054 = vpop.f32.mrb[0].mxu0
        %v5055 = vadd.f32 %v4797, %v5054
        %5056 = vdwg.mxu0
        %s5057 = scalar_lea.vmem %s5, 48
        %v5058 = vld [vmem:[%s5057] sm:$0xff]
        %v5059 = vld [vmem:[%s5057 + $0x8] sm:$0xff]
        %v5060 = vld [vmem:[%s5057 + $0x10] sm:$0xff]
        %5061 = vrot.lane.b32.xlu0 %v4140, 64
        %v5062 = vpop.permute.xlu0 %5061
        %5063 = vrot.lane.b32.xlu0 %v4141, 64
        %v5064 = vpop.permute.xlu0 %5063
        %5065 = vrot.lane.b32.xlu0 %v4142, 64
        %v5066 = vpop.permute.xlu0 %5065
        %5067 = vrot.lane.b32.xlu0 %v4143, 64
        %v5068 = vpop.permute.xlu0 %5067
        %5069 = vrot.lane.b32.xlu0 %v4144, 64
        %v5070 = vpop.permute.xlu0 %5069
        %5071 = vrot.lane.b32.xlu0 %v4145, 64
        %v5072 = vpop.permute.xlu0 %5071
        %5073 = vrot.lane.b32.xlu0 %v4146, 64
        %v5074 = vpop.permute.xlu0 %5073
        %5075 = vrot.lane.b32.xlu0 %v4147, 64
        %v5076 = vpop.permute.xlu0 %5075
        %5077 = vrot.lane.b32.xlu0 %v4148, 64
        %v5078 = vpop.permute.xlu0 %5077
        %5079 = vrot.lane.b32.xlu0 %v4149, 64
        %v5080 = vpop.permute.xlu0 %5079
        %5081 = vrot.lane.b32.xlu0 %v4150, 64
        %v5082 = vpop.permute.xlu0 %5081
        %5083 = vrot.lane.b32.xlu0 %v4151, 64
        %v5084 = vpop.permute.xlu0 %5083
        %5085 = vrot.lane.b32.xlu0 %v4152, 64
        %v5086 = vpop.permute.xlu0 %5085
        %5087 = vrot.lane.b32.xlu0 %v4153, 64
        %v5088 = vpop.permute.xlu0 %5087
        %5089 = vrot.lane.b32.xlu0 %v4154, 64
        %v5090 = vpop.permute.xlu0 %5089
        %5091 = vrot.lane.b32.xlu0 %v4155, 64
        %v5092 = vpop.permute.xlu0 %5091
        %5093 = vrot.lane.b32.xlu0 %v4156, 64
        %v5094 = vpop.permute.xlu0 %5093
        %5095 = vrot.lane.b32.xlu0 %v4157, 64
        %v5096 = vpop.permute.xlu0 %5095
        %5097 = vrot.lane.b32.xlu0 %v4158, 64
        %v5098 = vpop.permute.xlu0 %5097
        %5099 = vrot.lane.b32.xlu0 %v4159, 64
        %v5100 = vpop.permute.xlu0 %5099
        %5101 = vrot.lane.b32.xlu0 %v4160, 64
        %v5102 = vpop.permute.xlu0 %5101
        %5103 = vrot.lane.b32.xlu0 %v4161, 64
        %v5104 = vpop.permute.xlu0 %5103
        %5105 = vrot.lane.b32.xlu0 %v4162, 64
        %v5106 = vpop.permute.xlu0 %5105
        %5107 = vrot.lane.b32.xlu0 %v4163, 64
        %v5108 = vpop.permute.xlu0 %5107
        %5109 = vrot.lane.b32.xlu0 %v4164, 64
        %v5110 = vpop.permute.xlu0 %5109
        %5111 = vrot.lane.b32.xlu0 %v4165, 64
        %v5112 = vpop.permute.xlu0 %5111
        %5113 = vrot.lane.b32.xlu0 %v4166, 64
        %v5114 = vpop.permute.xlu0 %5113
        %5115 = vrot.lane.b32.xlu0 %v4167, 64
        %v5116 = vpop.permute.xlu0 %5115
        %5117 = vrot.lane.b32.xlu0 %v4168, 64
        %v5118 = vpop.permute.xlu0 %5117
        %5119 = vrot.lane.b32.xlu0 %v4169, 64
        %v5120 = vpop.permute.xlu0 %5119
        %5121 = vrot.lane.b32.xlu0 %v4170, 64
        %v5122 = vpop.permute.xlu0 %5121
        %5123 = vrot.lane.b32.xlu0 %v4171, 64
        %v5124 = vpop.permute.xlu0 %5123
        %5125 = vrot.lane.b32.xlu0 %v4172, 64
        %v5126 = vpop.permute.xlu0 %5125
        %5127 = vrot.lane.b32.xlu0 %v4173, 64
        %v5128 = vpop.permute.xlu0 %5127
        %5129 = vrot.lane.b32.xlu0 %v4174, 64
        %v5130 = vpop.permute.xlu0 %5129
        %5131 = vrot.lane.b32.xlu0 %v4175, 64
        %v5132 = vpop.permute.xlu0 %5131
        %5133 = vrot.lane.b32.xlu0 %v4176, 64
        %v5134 = vpop.permute.xlu0 %5133
        %5135 = vrot.lane.b32.xlu0 %v4177, 64
        %v5136 = vpop.permute.xlu0 %5135
        %5137 = vrot.lane.b32.xlu0 %v4178, 64
        %v5138 = vpop.permute.xlu0 %5137
        %5139 = vrot.lane.b32.xlu0 %v4179, 64
        %v5140 = vpop.permute.xlu0 %5139
        %5141 = vrot.lane.b32.xlu0 %v4180, 64
        %v5142 = vpop.permute.xlu0 %5141
        %5143 = vrot.lane.b32.xlu0 %v4181, 64
        %v5144 = vpop.permute.xlu0 %5143
        %5145 = vrot.lane.b32.xlu0 %v4182, 64
        %v5146 = vpop.permute.xlu0 %5145
        %5147 = vrot.lane.b32.xlu0 %v4183, 64
        %v5148 = vpop.permute.xlu0 %5147
        %5149 = vrot.lane.b32.xlu0 %v4184, 64
        %v5150 = vpop.permute.xlu0 %5149
        %5151 = vrot.lane.b32.xlu0 %v4185, 64
        %v5152 = vpop.permute.xlu0 %5151
        %5153 = vrot.lane.b32.xlu0 %v4186, 64
        %v5154 = vpop.permute.xlu0 %5153
        %5155 = vrot.lane.b32.xlu0 %v4187, 64
        %v5156 = vpop.permute.xlu0 %5155
        %5157 = vrot.lane.b32.xlu0 %v4188, 64
        %v5158 = vpop.permute.xlu0 %5157
        %5159 = vrot.lane.b32.xlu0 %v4189, 64
        %v5160 = vpop.permute.xlu0 %5159
        %5161 = vrot.lane.b32.xlu0 %v4190, 64
        %v5162 = vpop.permute.xlu0 %5161
        %5163 = vrot.lane.b32.xlu0 %v4191, 64
        %v5164 = vpop.permute.xlu0 %5163
        %5165 = vrot.lane.b32.xlu0 %v4192, 64
        %v5166 = vpop.permute.xlu0 %5165
        %5167 = vrot.lane.b32.xlu0 %v4193, 64
        %v5168 = vpop.permute.xlu0 %5167
        %5169 = vrot.lane.b32.xlu0 %v4194, 64
        %v5170 = vpop.permute.xlu0 %5169
        %5171 = vrot.lane.b32.xlu0 %v4195, 64
        %v5172 = vpop.permute.xlu0 %5171
        %5173 = vrot.lane.b32.xlu0 %v4196, 64
        %v5174 = vpop.permute.xlu0 %5173
        %5175 = vrot.lane.b32.xlu0 %v4197, 64
        %v5176 = vpop.permute.xlu0 %5175
        %5177 = vrot.lane.b32.xlu0 %v4198, 64
        %v5178 = vpop.permute.xlu0 %5177
        %5179 = vrot.lane.b32.xlu0 %v4199, 64
        %v5180 = vpop.permute.xlu0 %5179
        %5181 = vrot.lane.b32.xlu0 %v4200, 64
        %v5182 = vpop.permute.xlu0 %5181
        %5183 = vrot.lane.b32.xlu0 %v4201, 64
        %v5184 = vpop.permute.xlu0 %5183
        %5185 = vrot.lane.b32.xlu0 %v4202, 64
        %v5186 = vpop.permute.xlu0 %5185
        %5187 = vrot.lane.b32.xlu0 %v4203, 64
        %v5188 = vpop.permute.xlu0 %5187
        %5189 = vrot.lane.b32.xlu0 %v4204, 64
        %v5190 = vpop.permute.xlu0 %5189
        %5191 = vrot.lane.b32.xlu0 %v4205, 64
        %v5192 = vpop.permute.xlu0 %5191
        %5193 = vrot.lane.b32.xlu0 %v4206, 64
        %v5194 = vpop.permute.xlu0 %5193
        %5195 = vrot.lane.b32.xlu0 %v4207, 64
        %v5196 = vpop.permute.xlu0 %5195
        %5197 = vrot.lane.b32.xlu0 %v4208, 64
        %v5198 = vpop.permute.xlu0 %5197
        %5199 = vrot.lane.b32.xlu0 %v4209, 64
        %v5200 = vpop.permute.xlu0 %5199
        %v5201 = vsel %vm484, %v5062, %v5064
        %v5202 = vsel %vm484, %v5064, %v5066
        %v5203 = vsel %vm484, %v5066, %v5068
        %v5204 = vsel %vm484, %v5068, %v5070
        %v5205 = vsel %vm484, %v5070, %v5072
        %v5206 = vsel %vm484, %v5072, %v5074
        %v5207 = vsel %vm484, %v5076, %v5078
        %v5208 = vsel %vm484, %v5078, %v5080
        %v5209 = vsel %vm484, %v5080, %v5082
        %v5210 = vsel %vm484, %v5082, %v5084
        %v5211 = vsel %vm484, %v5084, %v5086
        %v5212 = vsel %vm484, %v5086, %v5088
        %v5213 = vsel %vm484, %v5090, %v5092
        %v5214 = vsel %vm484, %v5092, %v5094
        %v5215 = vsel %vm484, %v5094, %v5096
        %v5216 = vsel %vm484, %v5096, %v5098
        %v5217 = vsel %vm484, %v5098, %v5100
        %v5218 = vsel %vm484, %v5100, %v5102
        %v5219 = vsel %vm484, %v5104, %v5106
        %v5220 = vsel %vm484, %v5106, %v5108
        %v5221 = vsel %vm484, %v5108, %v5110
        %v5222 = vsel %vm484, %v5110, %v5112
        %v5223 = vsel %vm484, %v5112, %v5114
        %v5224 = vsel %vm484, %v5114, %v5116
        %v5225 = vsel %vm484, %v5118, %v5120
        %v5226 = vsel %vm484, %v5120, %v5122
        %v5227 = vsel %vm484, %v5122, %v5124
        %v5228 = vsel %vm484, %v5124, %v5126
        %v5229 = vsel %vm484, %v5126, %v5128
        %v5230 = vsel %vm484, %v5128, %v5130
        %v5231 = vsel %vm484, %v5132, %v5134
        %v5232 = vsel %vm484, %v5134, %v5136
        %v5233 = vsel %vm484, %v5136, %v5138
        %v5234 = vsel %vm484, %v5138, %v5140
        %v5235 = vsel %vm484, %v5140, %v5142
        %v5236 = vsel %vm484, %v5142, %v5144
        %v5237 = vsel %vm484, %v5146, %v5148
        %v5238 = vsel %vm484, %v5148, %v5150
        %v5239 = vsel %vm484, %v5150, %v5152
        %v5240 = vsel %vm484, %v5152, %v5154
        %v5241 = vsel %vm484, %v5154, %v5156
        %v5242 = vsel %vm484, %v5156, %v5158
        %v5243 = vsel %vm484, %v5160, %v5162
        %v5244 = vsel %vm484, %v5162, %v5164
        %v5245 = vsel %vm484, %v5164, %v5166
        %v5246 = vsel %vm484, %v5166, %v5168
        %v5247 = vsel %vm484, %v5168, %v5170
        %v5248 = vsel %vm484, %v5170, %v5172
        %v5249 = vsel %vm484, %v5174, %v5176
        %v5250 = vsel %vm484, %v5176, %v5178
        %v5251 = vsel %vm484, %v5178, %v5180
        %v5252 = vsel %vm484, %v5180, %v5182
        %v5253 = vsel %vm484, %v5182, %v5184
        %v5254 = vsel %vm484, %v5184, %v5186
        %v5255 = vsel %vm484, %v5188, %v5190
        %v5256 = vsel %vm484, %v5190, %v5192
        %v5257 = vsel %vm484, %v5192, %v5194
        %v5258 = vsel %vm484, %v5194, %v5196
        %v5259 = vsel %vm484, %v5196, %v5198
        %v5260 = vsel %vm484, %v5198, %v5200
        %v5322 = vsel %vm4540, %v5058, 0
        %v5325 = vsel %vm4540, %v5059, 0
        %v5328 = vsel %vm4540, %v5060, 0
        %5330 = vmatprep.subr.mxu0 %v5202
        %5331 = vmatpush1.msra.mxu0 %v5201
        %5332 = vmatprep.subr.mxu0 %v5208
        %5333 = vmatpush1.msra.mxu0 %v5207
        %5334 = vmatprep.subr.mxu0 %v5214
        %5335 = vmatpush1.msra.mxu0 %v5213
        %5336 = vmatprep.subr.mxu0 %v5220
        %5337 = vmatpush1.msra.mxu0 %v5219
        %5338 = vmatprep.subr.mxu0 %v5226
        %5339 = vmatpush1.msra.mxu0 %v5225
        %5340 = vmatprep.subr.mxu0 %v5232
        %5341 = vmatpush1.msra.mxu0 %v5231
        %5342 = vmatprep.subr.mxu0 %v5238
        %5343 = vmatpush1.msra.mxu0 %v5237
        %5344 = vmatprep.subr.mxu0 %v5244
        %5345 = vmatpush1.msra.mxu0 %v5243
        %5346 = vmatprep.subr.mxu0 %v5250
        %5347 = vmatpush1.msra.mxu0 %v5249
        %5348 = vmatprep.subr.mxu0 %v5256
        %5349 = vmatpush1.msra.mxu0 %v5255
        %5350 = vmatprep.subr.mxu0 0.0
        %5351 = vmatpush1.msra.mxu0 0.0
        %5352 = vmatprep.subr.mxu0 0.0
        %5353 = vmatpush1.msra.mxu0 0.0
        %5354 = vmatprep.subr.mxu0 0.0
        %5355 = vmatpush1.msra.mxu0 0.0
        %5356 = vmatprep.subr.mxu0 0.0
        %5357 = vmatpush1.msra.mxu0 0.0
        %5358 = vmatprep.subr.mxu0 0.0
        %5359 = vmatpush1.msra.mxu0 0.0
        %5360 = vmatprep.subr.mxu0 0.0
        %5361 = vmatpush1.msra.mxu0 0.0
        %5362 = vmatprep.subr.mxu0 0.0
        %5363 = vmatpush1.msra.mxu0 0.0
        %5364 = vmatprep.subr.mxu0 0.0
        %5365 = vmatpush1.msra.mxu0 0.0
        %5366 = vmatprep.subr.mxu0 0.0
        %5367 = vmatpush1.msra.mxu0 0.0
        %5368 = vmatprep.subr.mxu0 0.0
        %5369 = vmatpush1.msra.mxu0 0.0
        %5370 = vmatprep.subr.mxu0 0.0
        %5371 = vmatpush1.msra.mxu0 0.0
        %5372 = vmatprep.subr.mxu0 0.0
        %5373 = vmatpush1.msra.mxu0 0.0
        %5374 = vmatprep.subr.mxu0 0.0
        %5375 = vmatpush1.msra.mxu0 0.0
        %5376 = vmatprep.subr.mxu0 0.0
        %5377 = vmatpush1.msra.mxu0 0.0
        %5378 = vmatprep.subr.mxu0 0.0
        %5379 = vmatpush1.msra.mxu0 0.0
        %5380 = vmatprep.subr.mxu0 0.0
        %5381 = vmatpush1.msra.mxu0 0.0
        %5382 = vmatprep.subr.mxu0 0.0
        %5383 = vmatpush1.msra.mxu0 0.0
        %5384 = vmatprep.subr.mxu0 0.0
        %5385 = vmatpush1.msra.mxu0 0.0
        %5386 = vmatprep.subr.mxu0 0.0
        %5387 = vmatpush1.msra.mxu0 0.0
        %5388 = vmatprep.subr.mxu0 0.0
        %5389 = vmatpush1.msra.mxu0 0.0
        %5390 = vmatprep.subr.mxu0 0.0
        %5391 = vmatpush1.msra.mxu0 0.0
        %5392 = vmatprep.subr.mxu0 0.0
        %5393 = vmatpush1.msra.mxu0 0.0
        %5394 = vmatprep.mubr.f32.mxu0 0.0
        %5395 = vmatmul.mubr.f32.gmra.mrb[0].mxu0 %v5322
        %v5396 = vpop.f32.mrb[0].mxu0
        %v5397 = vadd.f32 0.0, %v5396
        %v5398 = vpop.f32.mrb[0].mxu0
        %v5399 = vadd.f32 0.0, %v5398
        %5400 = vmatprep.mubr.f32.mxu0 0.0
        %5401 = vmatmul.mubr.f32.gmra.mrb[0].mxu0 %v5325
        %v5402 = vpop.f32.mrb[0].mxu0
        %v5403 = vadd.f32 0.0, %v5402
        %v5404 = vpop.f32.mrb[0].mxu0
        %v5405 = vadd.f32 0.0, %v5404
        %5406 = vmatprep.mubr.f32.mxu0 0.0
        %5407 = vmatmul.mubr.f32.gmra.mrb[0].mxu0 %v5328
        %v5408 = vpop.f32.mrb[0].mxu0
        %v5409 = vadd.f32 0.0, %v5408
        %v5410 = vpop.f32.mrb[0].mxu0
        %v5411 = vadd.f32 0.0, %v5410
        %5412 = vdwg.mxu0
        %5413 = vmatprep.subr.mxu0 %v5204
        %5414 = vmatpush1.msra.mxu0 %v5203
        %5415 = vmatprep.subr.mxu0 %v5210
        %5416 = vmatpush1.msra.mxu0 %v5209
        %5417 = vmatprep.subr.mxu0 %v5216
        %5418 = vmatpush1.msra.mxu0 %v5215
        %5419 = vmatprep.subr.mxu0 %v5222
        %5420 = vmatpush1.msra.mxu0 %v5221
        %5421 = vmatprep.subr.mxu0 %v5228
        %5422 = vmatpush1.msra.mxu0 %v5227
        %5423 = vmatprep.subr.mxu0 %v5234
        %5424 = vmatpush1.msra.mxu0 %v5233
        %5425 = vmatprep.subr.mxu0 %v5240
        %5426 = vmatpush1.msra.mxu0 %v5239
        %5427 = vmatprep.subr.mxu0 %v5246
        %5428 = vmatpush1.msra.mxu0 %v5245
        %5429 = vmatprep.subr.mxu0 %v5252
        %5430 = vmatpush1.msra.mxu0 %v5251
        %5431 = vmatprep.subr.mxu0 %v5258
        %5432 = vmatpush1.msra.mxu0 %v5257
        %5433 = vmatprep.subr.mxu0 0.0
        %5434 = vmatpush1.msra.mxu0 0.0
        %5435 = vmatprep.subr.mxu0 0.0
        %5436 = vmatpush1.msra.mxu0 0.0
        %5437 = vmatprep.subr.mxu0 0.0
        %5438 = vmatpush1.msra.mxu0 0.0
        %5439 = vmatprep.subr.mxu0 0.0
        %5440 = vmatpush1.msra.mxu0 0.0
        %5441 = vmatprep.subr.mxu0 0.0
        %5442 = vmatpush1.msra.mxu0 0.0
        %5443 = vmatprep.subr.mxu0 0.0
        %5444 = vmatpush1.msra.mxu0 0.0
        %5445 = vmatprep.subr.mxu0 0.0
        %5446 = vmatpush1.msra.mxu0 0.0
        %5447 = vmatprep.subr.mxu0 0.0
        %5448 = vmatpush1.msra.mxu0 0.0
        %5449 = vmatprep.subr.mxu0 0.0
        %5450 = vmatpush1.msra.mxu0 0.0
        %5451 = vmatprep.subr.mxu0 0.0
        %5452 = vmatpush1.msra.mxu0 0.0
        %5453 = vmatprep.subr.mxu0 0.0
        %5454 = vmatpush1.msra.mxu0 0.0
        %5455 = vmatprep.subr.mxu0 0.0
        %5456 = vmatpush1.msra.mxu0 0.0
        %5457 = vmatprep.subr.mxu0 0.0
        %5458 = vmatpush1.msra.mxu0 0.0
        %5459 = vmatprep.subr.mxu0 0.0
        %5460 = vmatpush1.msra.mxu0 0.0
        %5461 = vmatprep.subr.mxu0 0.0
        %5462 = vmatpush1.msra.mxu0 0.0
        %5463 = vmatprep.subr.mxu0 0.0
        %5464 = vmatpush1.msra.mxu0 0.0
        %5465 = vmatprep.subr.mxu0 0.0
        %5466 = vmatpush1.msra.mxu0 0.0
        %5467 = vmatprep.subr.mxu0 0.0
        %5468 = vmatpush1.msra.mxu0 0.0
        %5469 = vmatprep.subr.mxu0 0.0
        %5470 = vmatpush1.msra.mxu0 0.0
        %5471 = vmatprep.subr.mxu0 0.0
        %5472 = vmatpush1.msra.mxu0 0.0
        %5473 = vmatprep.subr.mxu0 0.0
        %5474 = vmatpush1.msra.mxu0 0.0
        %5475 = vmatprep.subr.mxu0 0.0
        %5476 = vmatpush1.msra.mxu0 0.0
        %5477 = vmatprep.mubr.f32.mxu0 0.0
        %5478 = vmatmul.mubr.f32.gmra.mrb[0].mxu0 %v5322
        %v5479 = vpop.f32.mrb[0].mxu0
        %v5480 = vadd.f32 0.0, %v5479
        %v5481 = vpop.f32.mrb[0].mxu0
        %v5482 = vadd.f32 0.0, %v5481
        %5483 = vmatprep.mubr.f32.mxu0 0.0
        %5484 = vmatmul.mubr.f32.gmra.mrb[0].mxu0 %v5325
        %v5485 = vpop.f32.mrb[0].mxu0
        %v5486 = vadd.f32 0.0, %v5485
        %v5487 = vpop.f32.mrb[0].mxu0
        %v5488 = vadd.f32 0.0, %v5487
        %5489 = vmatprep.mubr.f32.mxu0 0.0
        %5490 = vmatmul.mubr.f32.gmra.mrb[0].mxu0 %v5328
        %v5491 = vpop.f32.mrb[0].mxu0
        %v5492 = vadd.f32 0.0, %v5491
        %v5493 = vpop.f32.mrb[0].mxu0
        %v5494 = vadd.f32 0.0, %v5493
        %5495 = vdwg.mxu0
        %5496 = vmatprep.subr.mxu0 %v5206
        %5497 = vmatpush1.msra.mxu0 %v5205
        %5498 = vmatprep.subr.mxu0 %v5212
        %5499 = vmatpush1.msra.mxu0 %v5211
        %5500 = vmatprep.subr.mxu0 %v5218
        %5501 = vmatpush1.msra.mxu0 %v5217
        %5502 = vmatprep.subr.mxu0 %v5224
        %5503 = vmatpush1.msra.mxu0 %v5223
        %5504 = vmatprep.subr.mxu0 %v5230
        %5505 = vmatpush1.msra.mxu0 %v5229
        %5506 = vmatprep.subr.mxu0 %v5236
        %5507 = vmatpush1.msra.mxu0 %v5235
        %5508 = vmatprep.subr.mxu0 %v5242
        %5509 = vmatpush1.msra.mxu0 %v5241
        %5510 = vmatprep.subr.mxu0 %v5248
        %5511 = vmatpush1.msra.mxu0 %v5247
        %5512 = vmatprep.subr.mxu0 %v5254
        %5513 = vmatpush1.msra.mxu0 %v5253
        %5514 = vmatprep.subr.mxu0 %v5260
        %5515 = vmatpush1.msra.mxu0 %v5259
        %5516 = vmatprep.subr.mxu0 0.0
        %5517 = vmatpush1.msra.mxu0 0.0
        %5518 = vmatprep.subr.mxu0 0.0
        %5519 = vmatpush1.msra.mxu0 0.0
        %5520 = vmatprep.subr.mxu0 0.0
        %5521 = vmatpush1.msra.mxu0 0.0
        %5522 = vmatprep.subr.mxu0 0.0
        %5523 = vmatpush1.msra.mxu0 0.0
        %5524 = vmatprep.subr.mxu0 0.0
        %5525 = vmatpush1.msra.mxu0 0.0
        %5526 = vmatprep.subr.mxu0 0.0
        %5527 = vmatpush1.msra.mxu0 0.0
        %5528 = vmatprep.subr.mxu0 0.0
        %5529 = vmatpush1.msra.mxu0 0.0
        %5530 = vmatprep.subr.mxu0 0.0
        %5531 = vmatpush1.msra.mxu0 0.0
        %5532 = vmatprep.subr.mxu0 0.0
        %5533 = vmatpush1.msra.mxu0 0.0
        %5534 = vmatprep.subr.mxu0 0.0
        %5535 = vmatpush1.msra.mxu0 0.0
        %5536 = vmatprep.subr.mxu0 0.0
        %5537 = vmatpush1.msra.mxu0 0.0
        %5538 = vmatprep.subr.mxu0 0.0
        %5539 = vmatpush1.msra.mxu0 0.0
        %5540 = vmatprep.subr.mxu0 0.0
        %5541 = vmatpush1.msra.mxu0 0.0
        %5542 = vmatprep.subr.mxu0 0.0
        %5543 = vmatpush1.msra.mxu0 0.0
        %5544 = vmatprep.subr.mxu0 0.0
        %5545 = vmatpush1.msra.mxu0 0.0
        %5546 = vmatprep.subr.mxu0 0.0
        %5547 = vmatpush1.msra.mxu0 0.0
        %5548 = vmatprep.subr.mxu0 0.0
        %5549 = vmatpush1.msra.mxu0 0.0
        %5550 = vmatprep.subr.mxu0 0.0
        %5551 = vmatpush1.msra.mxu0 0.0
        %5552 = vmatprep.subr.mxu0 0.0
        %5553 = vmatpush1.msra.mxu0 0.0
        %5554 = vmatprep.subr.mxu0 0.0
        %5555 = vmatpush1.msra.mxu0 0.0
        %5556 = vmatprep.subr.mxu0 0.0
        %5557 = vmatpush1.msra.mxu0 0.0
        %5558 = vmatprep.subr.mxu0 0.0
        %5559 = vmatpush1.msra.mxu0 0.0
        %5560 = vmatprep.mubr.f32.mxu0 0.0
        %5561 = vmatmul.mubr.f32.gmra.mrb[0].mxu0 %v5322
        %v5562 = vpop.f32.mrb[0].mxu0
        %v5563 = vadd.f32 0.0, %v5562
        %v5564 = vpop.f32.mrb[0].mxu0
        %v5565 = vadd.f32 0.0, %v5564
        %5566 = vmatprep.mubr.f32.mxu0 0.0
        %5567 = vmatmul.mubr.f32.gmra.mrb[0].mxu0 %v5325
        %v5568 = vpop.f32.mrb[0].mxu0
        %v5569 = vadd.f32 0.0, %v5568
        %v5570 = vpop.f32.mrb[0].mxu0
        %v5571 = vadd.f32 0.0, %v5570
        %5572 = vmatprep.mubr.f32.mxu0 0.0
        %5573 = vmatmul.mubr.f32.gmra.mrb[0].mxu0 %v5328
        %v5574 = vpop.f32.mrb[0].mxu0
        %v5575 = vadd.f32 0.0, %v5574
        %v5576 = vpop.f32.mrb[0].mxu0
        %v5577 = vadd.f32 0.0, %v5576
        %5578 = vdwg.mxu0
        %v5579 = vadd.f32 %v4875, %v5397
        %v5580 = vadd.f32 %v4877, %v5399
        %v5581 = vadd.f32 %v4958, %v5480
        %v5582 = vadd.f32 %v4960, %v5482
        %v5583 = vadd.f32 %v5041, %v5563
        %v5584 = vadd.f32 %v5043, %v5565
        %v5585 = vadd.f32 %v4881, %v5403
        %v5586 = vadd.f32 %v4883, %v5405
        %v5587 = vadd.f32 %v4964, %v5486
        %v5588 = vadd.f32 %v4966, %v5488
        %v5589 = vadd.f32 %v5047, %v5569
        %v5590 = vadd.f32 %v5049, %v5571
        %v5591 = vadd.f32 %v4887, %v5409
        %v5592 = vadd.f32 %v4889, %v5411
        %v5593 = vadd.f32 %v4970, %v5492
        %v5594 = vadd.f32 %v4972, %v5494
        %v5595 = vadd.f32 %v5053, %v5575
        %v5596 = vadd.f32 %v5055, %v5577
        %s5597 = scalar_lea.vmem %s5, 72
        %v5598 = vld [vmem:[%s5597] sm:$0xff]
        %v5599 = vld [vmem:[%s5597 + $0x8] sm:$0xff]
        %v5600 = vld [vmem:[%s5597 + $0x10] sm:$0xff]
        %5601 = vrot.lane.b32.xlu0 %v4140, 32
        %v5602 = vpop.permute.xlu0 %5601
        %5603 = vrot.lane.b32.xlu0 %v4141, 32
        %v5604 = vpop.permute.xlu0 %5603
        %5605 = vrot.lane.b32.xlu0 %v4142, 32
        %v5606 = vpop.permute.xlu0 %5605
        %5607 = vrot.lane.b32.xlu0 %v4143, 32
        %v5608 = vpop.permute.xlu0 %5607
        %5609 = vrot.lane.b32.xlu0 %v4144, 32
        %v5610 = vpop.permute.xlu0 %5609
        %5611 = vrot.lane.b32.xlu0 %v4145, 32
        %v5612 = vpop.permute.xlu0 %5611
        %5613 = vrot.lane.b32.xlu0 %v4146, 32
        %v5614 = vpop.permute.xlu0 %5613
        %5615 = vrot.lane.b32.xlu0 %v4147, 32
        %v5616 = vpop.permute.xlu0 %5615
        %5617 = vrot.lane.b32.xlu0 %v4148, 32
        %v5618 = vpop.permute.xlu0 %5617
        %5619 = vrot.lane.b32.xlu0 %v4149, 32
        %v5620 = vpop.permute.xlu0 %5619
        %5621 = vrot.lane.b32.xlu0 %v4150, 32
        %v5622 = vpop.permute.xlu0 %5621
        %5623 = vrot.lane.b32.xlu0 %v4151, 32
        %v5624 = vpop.permute.xlu0 %5623
        %5625 = vrot.lane.b32.xlu0 %v4152, 32
        %v5626 = vpop.permute.xlu0 %5625
        %5627 = vrot.lane.b32.xlu0 %v4153, 32
        %v5628 = vpop.permute.xlu0 %5627
        %5629 = vrot.lane.b32.xlu0 %v4154, 32
        %v5630 = vpop.permute.xlu0 %5629
        %5631 = vrot.lane.b32.xlu0 %v4155, 32
        %v5632 = vpop.permute.xlu0 %5631
        %5633 = vrot.lane.b32.xlu0 %v4156, 32
        %v5634 = vpop.permute.xlu0 %5633
        %5635 = vrot.lane.b32.xlu0 %v4157, 32
        %v5636 = vpop.permute.xlu0 %5635
        %5637 = vrot.lane.b32.xlu0 %v4158, 32
        %v5638 = vpop.permute.xlu0 %5637
        %5639 = vrot.lane.b32.xlu0 %v4159, 32
        %v5640 = vpop.permute.xlu0 %5639
        %5641 = vrot.lane.b32.xlu0 %v4160, 32
        %v5642 = vpop.permute.xlu0 %5641
        %5643 = vrot.lane.b32.xlu0 %v4161, 32
        %v5644 = vpop.permute.xlu0 %5643
        %5645 = vrot.lane.b32.xlu0 %v4162, 32
        %v5646 = vpop.permute.xlu0 %5645
        %5647 = vrot.lane.b32.xlu0 %v4163, 32
        %v5648 = vpop.permute.xlu0 %5647
        %5649 = vrot.lane.b32.xlu0 %v4164, 32
        %v5650 = vpop.permute.xlu0 %5649
        %5651 = vrot.lane.b32.xlu0 %v4165, 32
        %v5652 = vpop.permute.xlu0 %5651
        %5653 = vrot.lane.b32.xlu0 %v4166, 32
        %v5654 = vpop.permute.xlu0 %5653
        %5655 = vrot.lane.b32.xlu0 %v4167, 32
        %v5656 = vpop.permute.xlu0 %5655
        %5657 = vrot.lane.b32.xlu0 %v4168, 32
        %v5658 = vpop.permute.xlu0 %5657
        %5659 = vrot.lane.b32.xlu0 %v4169, 32
        %v5660 = vpop.permute.xlu0 %5659
        %5661 = vrot.lane.b32.xlu0 %v4170, 32
        %v5662 = vpop.permute.xlu0 %5661
        %5663 = vrot.lane.b32.xlu0 %v4171, 32
        %v5664 = vpop.permute.xlu0 %5663
        %5665 = vrot.lane.b32.xlu0 %v4172, 32
        %v5666 = vpop.permute.xlu0 %5665
        %5667 = vrot.lane.b32.xlu0 %v4173, 32
        %v5668 = vpop.permute.xlu0 %5667
        %5669 = vrot.lane.b32.xlu0 %v4174, 32
        %v5670 = vpop.permute.xlu0 %5669
        %5671 = vrot.lane.b32.xlu0 %v4175, 32
        %v5672 = vpop.permute.xlu0 %5671
        %5673 = vrot.lane.b32.xlu0 %v4176, 32
        %v5674 = vpop.permute.xlu0 %5673
        %5675 = vrot.lane.b32.xlu0 %v4177, 32
        %v5676 = vpop.permute.xlu0 %5675
        %5677 = vrot.lane.b32.xlu0 %v4178, 32
        %v5678 = vpop.permute.xlu0 %5677
        %5679 = vrot.lane.b32.xlu0 %v4179, 32
        %v5680 = vpop.permute.xlu0 %5679
        %5681 = vrot.lane.b32.xlu0 %v4180, 32
        %v5682 = vpop.permute.xlu0 %5681
        %5683 = vrot.lane.b32.xlu0 %v4181, 32
        %v5684 = vpop.permute.xlu0 %5683
        %5685 = vrot.lane.b32.xlu0 %v4182, 32
        %v5686 = vpop.permute.xlu0 %5685
        %5687 = vrot.lane.b32.xlu0 %v4183, 32
        %v5688 = vpop.permute.xlu0 %5687
        %5689 = vrot.lane.b32.xlu0 %v4184, 32
        %v5690 = vpop.permute.xlu0 %5689
        %5691 = vrot.lane.b32.xlu0 %v4185, 32
        %v5692 = vpop.permute.xlu0 %5691
        %5693 = vrot.lane.b32.xlu0 %v4186, 32
        %v5694 = vpop.permute.xlu0 %5693
        %5695 = vrot.lane.b32.xlu0 %v4187, 32
        %v5696 = vpop.permute.xlu0 %5695
        %5697 = vrot.lane.b32.xlu0 %v4188, 32
        %v5698 = vpop.permute.xlu0 %5697
        %5699 = vrot.lane.b32.xlu0 %v4189, 32
        %v5700 = vpop.permute.xlu0 %5699
        %5701 = vrot.lane.b32.xlu0 %v4190, 32
        %v5702 = vpop.permute.xlu0 %5701
        %5703 = vrot.lane.b32.xlu0 %v4191, 32
        %v5704 = vpop.permute.xlu0 %5703
        %5705 = vrot.lane.b32.xlu0 %v4192, 32
        %v5706 = vpop.permute.xlu0 %5705
        %5707 = vrot.lane.b32.xlu0 %v4193, 32
        %v5708 = vpop.permute.xlu0 %5707
        %5709 = vrot.lane.b32.xlu0 %v4194, 32
        %v5710 = vpop.permute.xlu0 %5709
        %5711 = vrot.lane.b32.xlu0 %v4195, 32
        %v5712 = vpop.permute.xlu0 %5711
        %5713 = vrot.lane.b32.xlu0 %v4196, 32
        %v5714 = vpop.permute.xlu0 %5713
        %5715 = vrot.lane.b32.xlu0 %v4197, 32
        %v5716 = vpop.permute.xlu0 %5715
        %5717 = vrot.lane.b32.xlu0 %v4198, 32
        %v5718 = vpop.permute.xlu0 %5717
        %5719 = vrot.lane.b32.xlu0 %v4199, 32
        %v5720 = vpop.permute.xlu0 %5719
        %5721 = vrot.lane.b32.xlu0 %v4200, 32
        %v5722 = vpop.permute.xlu0 %5721
        %5723 = vrot.lane.b32.xlu0 %v4201, 32
        %v5724 = vpop.permute.xlu0 %5723
        %5725 = vrot.lane.b32.xlu0 %v4202, 32
        %v5726 = vpop.permute.xlu0 %5725
        %5727 = vrot.lane.b32.xlu0 %v4203, 32
        %v5728 = vpop.permute.xlu0 %5727
        %5729 = vrot.lane.b32.xlu0 %v4204, 32
        %v5730 = vpop.permute.xlu0 %5729
        %5731 = vrot.lane.b32.xlu0 %v4205, 32
        %v5732 = vpop.permute.xlu0 %5731
        %5733 = vrot.lane.b32.xlu0 %v4206, 32
        %v5734 = vpop.permute.xlu0 %5733
        %5735 = vrot.lane.b32.xlu0 %v4207, 32
        %v5736 = vpop.permute.xlu0 %5735
        %5737 = vrot.lane.b32.xlu0 %v4208, 32
        %v5738 = vpop.permute.xlu0 %5737
        %5739 = vrot.lane.b32.xlu0 %v4209, 32
        %v5740 = vpop.permute.xlu0 %5739
        %vm5741 = vcmask 261120
        %v5742 = vsel %vm5741, %v5602, %v5604
        %v5743 = vsel %vm5741, %v5604, %v5606
        %v5744 = vsel %vm5741, %v5606, %v5608
        %v5745 = vsel %vm5741, %v5608, %v5610
        %v5746 = vsel %vm5741, %v5610, %v5612
        %v5747 = vsel %vm5741, %v5612, %v5614
        %v5748 = vsel %vm5741, %v5616, %v5618
        %v5749 = vsel %vm5741, %v5618, %v5620
        %v5750 = vsel %vm5741, %v5620, %v5622
        %v5751 = vsel %vm5741, %v5622, %v5624
        %v5752 = vsel %vm5741, %v5624, %v5626
        %v5753 = vsel %vm5741, %v5626, %v5628
        %v5754 = vsel %vm5741, %v5630, %v5632
        %v5755 = vsel %vm5741, %v5632, %v5634
        %v5756 = vsel %vm5741, %v5634, %v5636
        %v5757 = vsel %vm5741, %v5636, %v5638
        %v5758 = vsel %vm5741, %v5638, %v5640
        %v5759 = vsel %vm5741, %v5640, %v5642
        %v5760 = vsel %vm5741, %v5644, %v5646
        %v5761 = vsel %vm5741, %v5646, %v5648
        %v5762 = vsel %vm5741, %v5648, %v5650
        %v5763 = vsel %vm5741, %v5650, %v5652
        %v5764 = vsel %vm5741, %v5652, %v5654
        %v5765 = vsel %vm5741, %v5654, %v5656
        %v5766 = vsel %vm5741, %v5658, %v5660
        %v5767 = vsel %vm5741, %v5660, %v5662
        %v5768 = vsel %vm5741, %v5662, %v5664
        %v5769 = vsel %vm5741, %v5664, %v5666
        %v5770 = vsel %vm5741, %v5666, %v5668
        %v5771 = vsel %vm5741, %v5668, %v5670
        %v5772 = vsel %vm5741, %v5672, %v5674
        %v5773 = vsel %vm5741, %v5674, %v5676
        %v5774 = vsel %vm5741, %v5676, %v5678
        %v5775 = vsel %vm5741, %v5678, %v5680
        %v5776 = vsel %vm5741, %v5680, %v5682
        %v5777 = vsel %vm5741, %v5682, %v5684
        %v5778 = vsel %vm5741, %v5686, %v5688
        %v5779 = vsel %vm5741, %v5688, %v5690
        %v5780 = vsel %vm5741, %v5690, %v5692
        %v5781 = vsel %vm5741, %v5692, %v5694
        %v5782 = vsel %vm5741, %v5694, %v5696
        %v5783 = vsel %vm5741, %v5696, %v5698
        %v5784 = vsel %vm5741, %v5700, %v5702
        %v5785 = vsel %vm5741, %v5702, %v5704
        %v5786 = vsel %vm5741, %v5704, %v5706
        %v5787 = vsel %vm5741, %v5706, %v5708
        %v5788 = vsel %vm5741, %v5708, %v5710
        %v5789 = vsel %vm5741, %v5710, %v5712
        %v5790 = vsel %vm5741, %v5714, %v5716
        %v5791 = vsel %vm5741, %v5716, %v5718
        %v5792 = vsel %vm5741, %v5718, %v5720
        %v5793 = vsel %vm5741, %v5720, %v5722
        %v5794 = vsel %vm5741, %v5722, %v5724
        %v5795 = vsel %vm5741, %v5724, %v5726
        %v5796 = vsel %vm5741, %v5728, %v5730
        %v5797 = vsel %vm5741, %v5730, %v5732
        %v5798 = vsel %vm5741, %v5732, %v5734
        %v5799 = vsel %vm5741, %v5734, %v5736
        %v5800 = vsel %vm5741, %v5736, %v5738
        %v5801 = vsel %vm5741, %v5738, %v5740
        %v5863 = vsel %vm4540, %v5598, 0
        %v5866 = vsel %vm4540, %v5599, 0
        %v5869 = vsel %vm4540, %v5600, 0
        %5871 = vmatprep.subr.mxu0 %v5743
        %5872 = vmatpush1.msra.mxu0 %v5742
        %5873 = vmatprep.subr.mxu0 %v5749
        %5874 = vmatpush1.msra.mxu0 %v5748
        %5875 = vmatprep.subr.mxu0 %v5755
        %5876 = vmatpush1.msra.mxu0 %v5754
        %5877 = vmatprep.subr.mxu0 %v5761
        %5878 = vmatpush1.msra.mxu0 %v5760
        %5879 = vmatprep.subr.mxu0 %v5767
        %5880 = vmatpush1.msra.mxu0 %v5766
        %5881 = vmatprep.subr.mxu0 %v5773
        %5882 = vmatpush1.msra.mxu0 %v5772
        %5883 = vmatprep.subr.mxu0 %v5779
        %5884 = vmatpush1.msra.mxu0 %v5778
        %5885 = vmatprep.subr.mxu0 %v5785
        %5886 = vmatpush1.msra.mxu0 %v5784
        %5887 = vmatprep.subr.mxu0 %v5791
        %5888 = vmatpush1.msra.mxu0 %v5790
        %5889 = vmatprep.subr.mxu0 %v5797
        %5890 = vmatpush1.msra.mxu0 %v5796
        %5891 = vmatprep.subr.mxu0 0.0
        %5892 = vmatpush1.msra.mxu0 0.0
        %5893 = vmatprep.subr.mxu0 0.0
        %5894 = vmatpush1.msra.mxu0 0.0
        %5895 = vmatprep.subr.mxu0 0.0
        %5896 = vmatpush1.msra.mxu0 0.0
        %5897 = vmatprep.subr.mxu0 0.0
        %5898 = vmatpush1.msra.mxu0 0.0
        %5899 = vmatprep.subr.mxu0 0.0
        %5900 = vmatpush1.msra.mxu0 0.0
        %5901 = vmatprep.subr.mxu0 0.0
        %5902 = vmatpush1.msra.mxu0 0.0
        %5903 = vmatprep.subr.mxu0 0.0
        %5904 = vmatpush1.msra.mxu0 0.0
        %5905 = vmatprep.subr.mxu0 0.0
        %5906 = vmatpush1.msra.mxu0 0.0
        %5907 = vmatprep.subr.mxu0 0.0
        %5908 = vmatpush1.msra.mxu0 0.0
        %5909 = vmatprep.subr.mxu0 0.0
        %5910 = vmatpush1.msra.mxu0 0.0
        %5911 = vmatprep.subr.mxu0 0.0
        %5912 = vmatpush1.msra.mxu0 0.0
        %5913 = vmatprep.subr.mxu0 0.0
        %5914 = vmatpush1.msra.mxu0 0.0
        %5915 = vmatprep.subr.mxu0 0.0
        %5916 = vmatpush1.msra.mxu0 0.0
        %5917 = vmatprep.subr.mxu0 0.0
        %5918 = vmatpush1.msra.mxu0 0.0
        %5919 = vmatprep.subr.mxu0 0.0
        %5920 = vmatpush1.msra.mxu0 0.0
        %5921 = vmatprep.subr.mxu0 0.0
        %5922 = vmatpush1.msra.mxu0 0.0
        %5923 = vmatprep.subr.mxu0 0.0
        %5924 = vmatpush1.msra.mxu0 0.0
        %5925 = vmatprep.subr.mxu0 0.0
        %5926 = vmatpush1.msra.mxu0 0.0
        %5927 = vmatprep.subr.mxu0 0.0
        %5928 = vmatpush1.msra.mxu0 0.0
        %5929 = vmatprep.subr.mxu0 0.0
        %5930 = vmatpush1.msra.mxu0 0.0
        %5931 = vmatprep.subr.mxu0 0.0
        %5932 = vmatpush1.msra.mxu0 0.0
        %5933 = vmatprep.subr.mxu0 0.0
        %5934 = vmatpush1.msra.mxu0 0.0
        %5935 = vmatprep.mubr.f32.mxu0 0.0
        %5936 = vmatmul.mubr.f32.gmra.mrb[0].mxu0 %v5863
        %v5937 = vpop.f32.mrb[0].mxu0
        %v5938 = vadd.f32 0.0, %v5937
        %v5939 = vpop.f32.mrb[0].mxu0
        %v5940 = vadd.f32 0.0, %v5939
        %5941 = vmatprep.mubr.f32.mxu0 0.0
        %5942 = vmatmul.mubr.f32.gmra.mrb[0].mxu0 %v5866
        %v5943 = vpop.f32.mrb[0].mxu0
        %v5944 = vadd.f32 0.0, %v5943
        %v5945 = vpop.f32.mrb[0].mxu0
        %v5946 = vadd.f32 0.0, %v5945
        %5947 = vmatprep.mubr.f32.mxu0 0.0
        %5948 = vmatmul.mubr.f32.gmra.mrb[0].mxu0 %v5869
        %v5949 = vpop.f32.mrb[0].mxu0
        %v5950 = vadd.f32 0.0, %v5949
        %v5951 = vpop.f32.mrb[0].mxu0
        %v5952 = vadd.f32 0.0, %v5951
        %5953 = vdwg.mxu0
        %5954 = vmatprep.subr.mxu0 %v5745
        %5955 = vmatpush1.msra.mxu0 %v5744
        %5956 = vmatprep.subr.mxu0 %v5751
        %5957 = vmatpush1.msra.mxu0 %v5750
        %5958 = vmatprep.subr.mxu0 %v5757
        %5959 = vmatpush1.msra.mxu0 %v5756
        %5960 = vmatprep.subr.mxu0 %v5763
        %5961 = vmatpush1.msra.mxu0 %v5762
        %5962 = vmatprep.subr.mxu0 %v5769
        %5963 = vmatpush1.msra.mxu0 %v5768
        %5964 = vmatprep.subr.mxu0 %v5775
        %5965 = vmatpush1.msra.mxu0 %v5774
        %5966 = vmatprep.subr.mxu0 %v5781
        %5967 = vmatpush1.msra.mxu0 %v5780
        %5968 = vmatprep.subr.mxu0 %v5787
        %5969 = vmatpush1.msra.mxu0 %v5786
        %5970 = vmatprep.subr.mxu0 %v5793
        %5971 = vmatpush1.msra.mxu0 %v5792
        %5972 = vmatprep.subr.mxu0 %v5799
        %5973 = vmatpush1.msra.mxu0 %v5798
        %5974 = vmatprep.subr.mxu0 0.0
        %5975 = vmatpush1.msra.mxu0 0.0
        %5976 = vmatprep.subr.mxu0 0.0
        %5977 = vmatpush1.msra.mxu0 0.0
        %5978 = vmatprep.subr.mxu0 0.0
        %5979 = vmatpush1.msra.mxu0 0.0
        %5980 = vmatprep.subr.mxu0 0.0
        %5981 = vmatpush1.msra.mxu0 0.0
        %5982 = vmatprep.subr.mxu0 0.0
        %5983 = vmatpush1.msra.mxu0 0.0
        %5984 = vmatprep.subr.mxu0 0.0
        %5985 = vmatpush1.msra.mxu0 0.0
        %5986 = vmatprep.subr.mxu0 0.0
        %5987 = vmatpush1.msra.mxu0 0.0
        %5988 = vmatprep.subr.mxu0 0.0
        %5989 = vmatpush1.msra.mxu0 0.0
        %5990 = vmatprep.subr.mxu0 0.0
        %5991 = vmatpush1.msra.mxu0 0.0
        %5992 = vmatprep.subr.mxu0 0.0
        %5993 = vmatpush1.msra.mxu0 0.0
        %5994 = vmatprep.subr.mxu0 0.0
        %5995 = vmatpush1.msra.mxu0 0.0
        %5996 = vmatprep.subr.mxu0 0.0
        %5997 = vmatpush1.msra.mxu0 0.0
        %5998 = vmatprep.subr.mxu0 0.0
        %5999 = vmatpush1.msra.mxu0 0.0
        %6000 = vmatprep.subr.mxu0 0.0
        %6001 = vmatpush1.msra.mxu0 0.0
        %6002 = vmatprep.subr.mxu0 0.0
        %6003 = vmatpush1.msra.mxu0 0.0
        %6004 = vmatprep.subr.mxu0 0.0
        %6005 = vmatpush1.msra.mxu0 0.0
        %6006 = vmatprep.subr.mxu0 0.0
        %6007 = vmatpush1.msra.mxu0 0.0
        %6008 = vmatprep.subr.mxu0 0.0
        %6009 = vmatpush1.msra.mxu0 0.0
        %6010 = vmatprep.subr.mxu0 0.0
        %6011 = vmatpush1.msra.mxu0 0.0
        %6012 = vmatprep.subr.mxu0 0.0
        %6013 = vmatpush1.msra.mxu0 0.0
        %6014 = vmatprep.subr.mxu0 0.0
        %6015 = vmatpush1.msra.mxu0 0.0
        %6016 = vmatprep.subr.mxu0 0.0
        %6017 = vmatpush1.msra.mxu0 0.0
        %6018 = vmatprep.mubr.f32.mxu0 0.0
        %6019 = vmatmul.mubr.f32.gmra.mrb[0].mxu0 %v5863
        %v6020 = vpop.f32.mrb[0].mxu0
        %v6021 = vadd.f32 0.0, %v6020
        %v6022 = vpop.f32.mrb[0].mxu0
        %v6023 = vadd.f32 0.0, %v6022
        %6024 = vmatprep.mubr.f32.mxu0 0.0
        %6025 = vmatmul.mubr.f32.gmra.mrb[0].mxu0 %v5866
        %v6026 = vpop.f32.mrb[0].mxu0
        %v6027 = vadd.f32 0.0, %v6026
        %v6028 = vpop.f32.mrb[0].mxu0
        %v6029 = vadd.f32 0.0, %v6028
        %6030 = vmatprep.mubr.f32.mxu0 0.0
        %6031 = vmatmul.mubr.f32.gmra.mrb[0].mxu0 %v5869
        %v6032 = vpop.f32.mrb[0].mxu0
        %v6033 = vadd.f32 0.0, %v6032
        %v6034 = vpop.f32.mrb[0].mxu0
        %v6035 = vadd.f32 0.0, %v6034
        %6036 = vdwg.mxu0
        %6037 = vmatprep.subr.mxu0 %v5747
        %6038 = vmatpush1.msra.mxu0 %v5746
        %6039 = vmatprep.subr.mxu0 %v5753
        %6040 = vmatpush1.msra.mxu0 %v5752
        %6041 = vmatprep.subr.mxu0 %v5759
        %6042 = vmatpush1.msra.mxu0 %v5758
        %6043 = vmatprep.subr.mxu0 %v5765
        %6044 = vmatpush1.msra.mxu0 %v5764
        %6045 = vmatprep.subr.mxu0 %v5771
        %6046 = vmatpush1.msra.mxu0 %v5770
        %6047 = vmatprep.subr.mxu0 %v5777
        %6048 = vmatpush1.msra.mxu0 %v5776
        %6049 = vmatprep.subr.mxu0 %v5783
        %6050 = vmatpush1.msra.mxu0 %v5782
        %6051 = vmatprep.subr.mxu0 %v5789
        %6052 = vmatpush1.msra.mxu0 %v5788
        %6053 = vmatprep.subr.mxu0 %v5795
        %6054 = vmatpush1.msra.mxu0 %v5794
        %6055 = vmatprep.subr.mxu0 %v5801
        %6056 = vmatpush1.msra.mxu0 %v5800
        %6057 = vmatprep.subr.mxu0 0.0
        %6058 = vmatpush1.msra.mxu0 0.0
        %6059 = vmatprep.subr.mxu0 0.0
        %6060 = vmatpush1.msra.mxu0 0.0
        %6061 = vmatprep.subr.mxu0 0.0
        %6062 = vmatpush1.msra.mxu0 0.0
        %6063 = vmatprep.subr.mxu0 0.0
        %6064 = vmatpush1.msra.mxu0 0.0
        %6065 = vmatprep.subr.mxu0 0.0
        %6066 = vmatpush1.msra.mxu0 0.0
        %6067 = vmatprep.subr.mxu0 0.0
        %6068 = vmatpush1.msra.mxu0 0.0
        %6069 = vmatprep.subr.mxu0 0.0
        %6070 = vmatpush1.msra.mxu0 0.0
        %6071 = vmatprep.subr.mxu0 0.0
        %6072 = vmatpush1.msra.mxu0 0.0
        %6073 = vmatprep.subr.mxu0 0.0
        %6074 = vmatpush1.msra.mxu0 0.0
        %6075 = vmatprep.subr.mxu0 0.0
        %6076 = vmatpush1.msra.mxu0 0.0
        %6077 = vmatprep.subr.mxu0 0.0
        %6078 = vmatpush1.msra.mxu0 0.0
        %6079 = vmatprep.subr.mxu0 0.0
        %6080 = vmatpush1.msra.mxu0 0.0
        %6081 = vmatprep.subr.mxu0 0.0
        %6082 = vmatpush1.msra.mxu0 0.0
        %6083 = vmatprep.subr.mxu0 0.0
        %6084 = vmatpush1.msra.mxu0 0.0
        %6085 = vmatprep.subr.mxu0 0.0
        %6086 = vmatpush1.msra.mxu0 0.0
        %6087 = vmatprep.subr.mxu0 0.0
        %6088 = vmatpush1.msra.mxu0 0.0
        %6089 = vmatprep.subr.mxu0 0.0
        %6090 = vmatpush1.msra.mxu0 0.0
        %6091 = vmatprep.subr.mxu0 0.0
        %6092 = vmatpush1.msra.mxu0 0.0
        %6093 = vmatprep.subr.mxu0 0.0
        %6094 = vmatpush1.msra.mxu0 0.0
        %6095 = vmatprep.subr.mxu0 0.0
        %6096 = vmatpush1.msra.mxu0 0.0
        %6097 = vmatprep.subr.mxu0 0.0
        %6098 = vmatpush1.msra.mxu0 0.0
        %6099 = vmatprep.subr.mxu0 0.0
        %6100 = vmatpush1.msra.mxu0 0.0
        %6101 = vmatprep.mubr.f32.mxu0 0.0
        %6102 = vmatmul.mubr.f32.gmra.mrb[0].mxu0 %v5863
        %v6103 = vpop.f32.mrb[0].mxu0
        %v6104 = vadd.f32 0.0, %v6103
        %v6105 = vpop.f32.mrb[0].mxu0
        %v6106 = vadd.f32 0.0, %v6105
        %6107 = vmatprep.mubr.f32.mxu0 0.0
        %6108 = vmatmul.mubr.f32.gmra.mrb[0].mxu0 %v5866
        %v6109 = vpop.f32.mrb[0].mxu0
        %v6110 = vadd.f32 0.0, %v6109
        %v6111 = vpop.f32.mrb[0].mxu0
        %v6112 = vadd.f32 0.0, %v6111
        %6113 = vmatprep.mubr.f32.mxu0 0.0
        %6114 = vmatmul.mubr.f32.gmra.mrb[0].mxu0 %v5869
        %v6115 = vpop.f32.mrb[0].mxu0
        %v6116 = vadd.f32 0.0, %v6115
        %v6117 = vpop.f32.mrb[0].mxu0
        %v6118 = vadd.f32 0.0, %v6117
        %6119 = vdwg.mxu0
        %v6120 = vadd.f32 %v5579, %v5938
        %v6121 = vadd.f32 %v5580, %v5940
        %v6122 = vadd.f32 %v5581, %v6021
        %v6123 = vadd.f32 %v5582, %v6023
        %v6124 = vadd.f32 %v5583, %v6104
        %v6125 = vadd.f32 %v5584, %v6106
        %v6126 = vadd.f32 %v5585, %v5944
        %v6127 = vadd.f32 %v5586, %v5946
        %v6128 = vadd.f32 %v5587, %v6027
        %v6129 = vadd.f32 %v5588, %v6029
        %v6130 = vadd.f32 %v5589, %v6110
        %v6131 = vadd.f32 %v5590, %v6112
        %v6132 = vadd.f32 %v5591, %v5950
        %v6133 = vadd.f32 %v5592, %v5952
        %v6134 = vadd.f32 %v5593, %v6033
        %v6135 = vadd.f32 %v5594, %v6035
        %v6136 = vadd.f32 %v5595, %v6116
        %v6137 = vadd.f32 %v5596, %v6118
        %s6138 = scalar_lea.vmem %s5, 96
        %v6139 = vld [vmem:[%s6138] sm:$0xff]
        %v6140 = vld [vmem:[%s6138 + $0x8] sm:$0xff]
        %v6141 = vld [vmem:[%s6138 + $0x10] sm:$0xff]
        %v6143 = vsel %vm4540, %v6139, 0
        %v6146 = vsel %vm4540, %v6140, 0
        %v6149 = vsel %vm4540, %v6141, 0
        %6151 = vmatprep.subr.mxu0 %v4142
        %6152 = vmatpush1.msra.mxu0 %v4141
        %6153 = vmatprep.subr.mxu0 %v4149
        %6154 = vmatpush1.msra.mxu0 %v4148
        %6155 = vmatprep.subr.mxu0 %v4156
        %6156 = vmatpush1.msra.mxu0 %v4155
        %6157 = vmatprep.subr.mxu0 %v4163
        %6158 = vmatpush1.msra.mxu0 %v4162
        %6159 = vmatprep.subr.mxu0 %v4170
        %6160 = vmatpush1.msra.mxu0 %v4169
        %6161 = vmatprep.subr.mxu0 %v4177
        %6162 = vmatpush1.msra.mxu0 %v4176
        %6163 = vmatprep.subr.mxu0 %v4184
        %6164 = vmatpush1.msra.mxu0 %v4183
        %6165 = vmatprep.subr.mxu0 %v4191
        %6166 = vmatpush1.msra.mxu0 %v4190
        %6167 = vmatprep.subr.mxu0 %v4198
        %6168 = vmatpush1.msra.mxu0 %v4197
        %6169 = vmatprep.subr.mxu0 %v4205
        %6170 = vmatpush1.msra.mxu0 %v4204
        %6171 = vmatprep.subr.mxu0 0.0
        %6172 = vmatpush1.msra.mxu0 0.0
        %6173 = vmatprep.subr.mxu0 0.0
        %6174 = vmatpush1.msra.mxu0 0.0
        %6175 = vmatprep.subr.mxu0 0.0
        %6176 = vmatpush1.msra.mxu0 0.0
        %6177 = vmatprep.subr.mxu0 0.0
        %6178 = vmatpush1.msra.mxu0 0.0
        %6179 = vmatprep.subr.mxu0 0.0
        %6180 = vmatpush1.msra.mxu0 0.0
        %6181 = vmatprep.subr.mxu0 0.0
        %6182 = vmatpush1.msra.mxu0 0.0
        %6183 = vmatprep.subr.mxu0 0.0
        %6184 = vmatpush1.msra.mxu0 0.0
        %6185 = vmatprep.subr.mxu0 0.0
        %6186 = vmatpush1.msra.mxu0 0.0
        %6187 = vmatprep.subr.mxu0 0.0
        %6188 = vmatpush1.msra.mxu0 0.0
        %6189 = vmatprep.subr.mxu0 0.0
        %6190 = vmatpush1.msra.mxu0 0.0
        %6191 = vmatprep.subr.mxu0 0.0
        %6192 = vmatpush1.msra.mxu0 0.0
        %6193 = vmatprep.subr.mxu0 0.0
        %6194 = vmatpush1.msra.mxu0 0.0
        %6195 = vmatprep.subr.mxu0 0.0
        %6196 = vmatpush1.msra.mxu0 0.0
        %6197 = vmatprep.subr.mxu0 0.0
        %6198 = vmatpush1.msra.mxu0 0.0
        %6199 = vmatprep.subr.mxu0 0.0
        %6200 = vmatpush1.msra.mxu0 0.0
        %6201 = vmatprep.subr.mxu0 0.0
        %6202 = vmatpush1.msra.mxu0 0.0
        %6203 = vmatprep.subr.mxu0 0.0
        %6204 = vmatpush1.msra.mxu0 0.0
        %6205 = vmatprep.subr.mxu0 0.0
        %6206 = vmatpush1.msra.mxu0 0.0
        %6207 = vmatprep.subr.mxu0 0.0
        %6208 = vmatpush1.msra.mxu0 0.0
        %6209 = vmatprep.subr.mxu0 0.0
        %6210 = vmatpush1.msra.mxu0 0.0
        %6211 = vmatprep.subr.mxu0 0.0
        %6212 = vmatpush1.msra.mxu0 0.0
        %6213 = vmatprep.subr.mxu0 0.0
        %6214 = vmatpush1.msra.mxu0 0.0
        %6215 = vmatprep.mubr.f32.mxu0 0.0
        %6216 = vmatmul.mubr.f32.gmra.mrb[0].mxu0 %v6143
        %v6217 = vpop.f32.mrb[0].mxu0
        %v6218 = vadd.f32 0.0, %v6217
        %v6219 = vpop.f32.mrb[0].mxu0
        %v6220 = vadd.f32 0.0, %v6219
        %6221 = vmatprep.mubr.f32.mxu0 0.0
        %6222 = vmatmul.mubr.f32.gmra.mrb[0].mxu0 %v6146
        %v6223 = vpop.f32.mrb[0].mxu0
        %v6224 = vadd.f32 0.0, %v6223
        %v6225 = vpop.f32.mrb[0].mxu0
        %v6226 = vadd.f32 0.0, %v6225
        %6227 = vmatprep.mubr.f32.mxu0 0.0
        %6228 = vmatmul.mubr.f32.gmra.mrb[0].mxu0 %v6149
        %v6229 = vpop.f32.mrb[0].mxu0
        %v6230 = vadd.f32 0.0, %v6229
        %v6231 = vpop.f32.mrb[0].mxu0
        %v6232 = vadd.f32 0.0, %v6231
        %6233 = vdwg.mxu0
        %6234 = vmatprep.subr.mxu0 %v4144
        %6235 = vmatpush1.msra.mxu0 %v4143
        %6236 = vmatprep.subr.mxu0 %v4151
        %6237 = vmatpush1.msra.mxu0 %v4150
        %6238 = vmatprep.subr.mxu0 %v4158
        %6239 = vmatpush1.msra.mxu0 %v4157
        %6240 = vmatprep.subr.mxu0 %v4165
        %6241 = vmatpush1.msra.mxu0 %v4164
        %6242 = vmatprep.subr.mxu0 %v4172
        %6243 = vmatpush1.msra.mxu0 %v4171
        %6244 = vmatprep.subr.mxu0 %v4179
        %6245 = vmatpush1.msra.mxu0 %v4178
        %6246 = vmatprep.subr.mxu0 %v4186
        %6247 = vmatpush1.msra.mxu0 %v4185
        %6248 = vmatprep.subr.mxu0 %v4193
        %6249 = vmatpush1.msra.mxu0 %v4192
        %6250 = vmatprep.subr.mxu0 %v4200
        %6251 = vmatpush1.msra.mxu0 %v4199
        %6252 = vmatprep.subr.mxu0 %v4207
        %6253 = vmatpush1.msra.mxu0 %v4206
        %6254 = vmatprep.subr.mxu0 0.0
        %6255 = vmatpush1.msra.mxu0 0.0
        %6256 = vmatprep.subr.mxu0 0.0
        %6257 = vmatpush1.msra.mxu0 0.0
        %6258 = vmatprep.subr.mxu0 0.0
        %6259 = vmatpush1.msra.mxu0 0.0
        %6260 = vmatprep.subr.mxu0 0.0
        %6261 = vmatpush1.msra.mxu0 0.0
        %6262 = vmatprep.subr.mxu0 0.0
        %6263 = vmatpush1.msra.mxu0 0.0
        %6264 = vmatprep.subr.mxu0 0.0
        %6265 = vmatpush1.msra.mxu0 0.0
        %6266 = vmatprep.subr.mxu0 0.0
        %6267 = vmatpush1.msra.mxu0 0.0
        %6268 = vmatprep.subr.mxu0 0.0
        %6269 = vmatpush1.msra.mxu0 0.0
        %6270 = vmatprep.subr.mxu0 0.0
        %6271 = vmatpush1.msra.mxu0 0.0
        %6272 = vmatprep.subr.mxu0 0.0
        %6273 = vmatpush1.msra.mxu0 0.0
        %6274 = vmatprep.subr.mxu0 0.0
        %6275 = vmatpush1.msra.mxu0 0.0
        %6276 = vmatprep.subr.mxu0 0.0
        %6277 = vmatpush1.msra.mxu0 0.0
        %6278 = vmatprep.subr.mxu0 0.0
        %6279 = vmatpush1.msra.mxu0 0.0
        %6280 = vmatprep.subr.mxu0 0.0
        %6281 = vmatpush1.msra.mxu0 0.0
        %6282 = vmatprep.subr.mxu0 0.0
        %6283 = vmatpush1.msra.mxu0 0.0
        %6284 = vmatprep.subr.mxu0 0.0
        %6285 = vmatpush1.msra.mxu0 0.0
        %6286 = vmatprep.subr.mxu0 0.0
        %6287 = vmatpush1.msra.mxu0 0.0
        %6288 = vmatprep.subr.mxu0 0.0
        %6289 = vmatpush1.msra.mxu0 0.0
        %6290 = vmatprep.subr.mxu0 0.0
        %6291 = vmatpush1.msra.mxu0 0.0
        %6292 = vmatprep.subr.mxu0 0.0
        %6293 = vmatpush1.msra.mxu0 0.0
        %6294 = vmatprep.subr.mxu0 0.0
        %6295 = vmatpush1.msra.mxu0 0.0
        %6296 = vmatprep.subr.mxu0 0.0
        %6297 = vmatpush1.msra.mxu0 0.0
        %6298 = vmatprep.mubr.f32.mxu0 0.0
        %6299 = vmatmul.mubr.f32.gmra.mrb[0].mxu0 %v6143
        %v6300 = vpop.f32.mrb[0].mxu0
        %v6301 = vadd.f32 0.0, %v6300
        %v6302 = vpop.f32.mrb[0].mxu0
        %v6303 = vadd.f32 0.0, %v6302
        %6304 = vmatprep.mubr.f32.mxu0 0.0
        %6305 = vmatmul.mubr.f32.gmra.mrb[0].mxu0 %v6146
        %v6306 = vpop.f32.mrb[0].mxu0
        %v6307 = vadd.f32 0.0, %v6306
        %v6308 = vpop.f32.mrb[0].mxu0
        %v6309 = vadd.f32 0.0, %v6308
        %6310 = vmatprep.mubr.f32.mxu0 0.0
        %6311 = vmatmul.mubr.f32.gmra.mrb[0].mxu0 %v6149
        %v6312 = vpop.f32.mrb[0].mxu0
        %v6313 = vadd.f32 0.0, %v6312
        %v6314 = vpop.f32.mrb[0].mxu0
        %v6315 = vadd.f32 0.0, %v6314
        %6316 = vdwg.mxu0
        %6317 = vmatprep.subr.mxu0 %v4146
        %6318 = vmatpush1.msra.mxu0 %v4145
        %6319 = vmatprep.subr.mxu0 %v4153
        %6320 = vmatpush1.msra.mxu0 %v4152
        %6321 = vmatprep.subr.mxu0 %v4160
        %6322 = vmatpush1.msra.mxu0 %v4159
        %6323 = vmatprep.subr.mxu0 %v4167
        %6324 = vmatpush1.msra.mxu0 %v4166
        %6325 = vmatprep.subr.mxu0 %v4174
        %6326 = vmatpush1.msra.mxu0 %v4173
        %6327 = vmatprep.subr.mxu0 %v4181
        %6328 = vmatpush1.msra.mxu0 %v4180
        %6329 = vmatprep.subr.mxu0 %v4188
        %6330 = vmatpush1.msra.mxu0 %v4187
        %6331 = vmatprep.subr.mxu0 %v4195
        %6332 = vmatpush1.msra.mxu0 %v4194
        %6333 = vmatprep.subr.mxu0 %v4202
        %6334 = vmatpush1.msra.mxu0 %v4201
        %6335 = vmatprep.subr.mxu0 %v4209
        %6336 = vmatpush1.msra.mxu0 %v4208
        %6337 = vmatprep.subr.mxu0 0.0
        %6338 = vmatpush1.msra.mxu0 0.0
        %6339 = vmatprep.subr.mxu0 0.0
        %6340 = vmatpush1.msra.mxu0 0.0
        %6341 = vmatprep.subr.mxu0 0.0
        %6342 = vmatpush1.msra.mxu0 0.0
        %6343 = vmatprep.subr.mxu0 0.0
        %6344 = vmatpush1.msra.mxu0 0.0
        %6345 = vmatprep.subr.mxu0 0.0
        %6346 = vmatpush1.msra.mxu0 0.0
        %6347 = vmatprep.subr.mxu0 0.0
        %6348 = vmatpush1.msra.mxu0 0.0
        %6349 = vmatprep.subr.mxu0 0.0
        %6350 = vmatpush1.msra.mxu0 0.0
        %6351 = vmatprep.subr.mxu0 0.0
        %6352 = vmatpush1.msra.mxu0 0.0
        %6353 = vmatprep.subr.mxu0 0.0
        %6354 = vmatpush1.msra.mxu0 0.0
        %6355 = vmatprep.subr.mxu0 0.0
        %6356 = vmatpush1.msra.mxu0 0.0
        %6357 = vmatprep.subr.mxu0 0.0
        %6358 = vmatpush1.msra.mxu0 0.0
        %6359 = vmatprep.subr.mxu0 0.0
        %6360 = vmatpush1.msra.mxu0 0.0
        %6361 = vmatprep.subr.mxu0 0.0
        %6362 = vmatpush1.msra.mxu0 0.0
        %6363 = vmatprep.subr.mxu0 0.0
        %6364 = vmatpush1.msra.mxu0 0.0
        %6365 = vmatprep.subr.mxu0 0.0
        %6366 = vmatpush1.msra.mxu0 0.0
        %6367 = vmatprep.subr.mxu0 0.0
        %6368 = vmatpush1.msra.mxu0 0.0
        %6369 = vmatprep.subr.mxu0 0.0
        %6370 = vmatpush1.msra.mxu0 0.0
        %6371 = vmatprep.subr.mxu0 0.0
        %6372 = vmatpush1.msra.mxu0 0.0
        %6373 = vmatprep.subr.mxu0 0.0
        %6374 = vmatpush1.msra.mxu0 0.0
        %6375 = vmatprep.subr.mxu0 0.0
        %6376 = vmatpush1.msra.mxu0 0.0
        %6377 = vmatprep.subr.mxu0 0.0
        %6378 = vmatpush1.msra.mxu0 0.0
        %6379 = vmatprep.subr.mxu0 0.0
        %6380 = vmatpush1.msra.mxu0 0.0
        %6381 = vmatprep.mubr.f32.mxu0 0.0
        %6382 = vmatmul.mubr.f32.gmra.mrb[0].mxu0 %v6143
        %v6383 = vpop.f32.mrb[0].mxu0
        %v6384 = vadd.f32 0.0, %v6383
        %v6385 = vpop.f32.mrb[0].mxu0
        %v6386 = vadd.f32 0.0, %v6385
        %6387 = vmatprep.mubr.f32.mxu0 0.0
        %6388 = vmatmul.mubr.f32.gmra.mrb[0].mxu0 %v6146
        %v6389 = vpop.f32.mrb[0].mxu0
        %v6390 = vadd.f32 0.0, %v6389
        %v6391 = vpop.f32.mrb[0].mxu0
        %v6392 = vadd.f32 0.0, %v6391
        %6393 = vmatprep.mubr.f32.mxu0 0.0
        %6394 = vmatmul.mubr.f32.gmra.mrb[0].mxu0 %v6149
        %v6395 = vpop.f32.mrb[0].mxu0
        %v6396 = vadd.f32 0.0, %v6395
        %v6397 = vpop.f32.mrb[0].mxu0
        %v6398 = vadd.f32 0.0, %v6397
        %6399 = vdwg.mxu0
        %v6400 = vadd.f32 %v6120, %v6218
        %v6401 = vadd.f32 %v6121, %v6220
        %v6402 = vadd.f32 %v6122, %v6301
        %v6403 = vadd.f32 %v6123, %v6303
        %v6404 = vadd.f32 %v6124, %v6384
        %v6405 = vadd.f32 %v6125, %v6386
        %v6406 = vadd.f32 %v6126, %v6224
        %v6407 = vadd.f32 %v6127, %v6226
        %v6408 = vadd.f32 %v6128, %v6307
        %v6409 = vadd.f32 %v6129, %v6309
        %v6410 = vadd.f32 %v6130, %v6390
        %v6411 = vadd.f32 %v6131, %v6392
        %v6412 = vadd.f32 %v6132, %v6230
        %v6413 = vadd.f32 %v6133, %v6232
        %v6414 = vadd.f32 %v6134, %v6313
        %v6415 = vadd.f32 %v6135, %v6315
        %v6416 = vadd.f32 %v6136, %v6396
        %v6417 = vadd.f32 %v6137, %v6398
        %v6418 = vld [vmem:[%s6] sm:$0xff]
        %v6419 = vld [vmem:[%s6 + $0x8] sm:$0xff]
        %v6420 = vld [vmem:[%s6 + $0x10] sm:$0xff]
        %6422 = vset.pattern.permute.xlu0 0
        %6423 = vperm.xlu0 %6422, %v6418
        %v6424 = vpop.permute.xlu0 %6423
        %6427 = vset.pattern.permute.xlu0 0
        %6428 = vperm.xlu0 %6427, %v6419
        %v6429 = vpop.permute.xlu0 %6428
        %6432 = vset.pattern.permute.xlu0 0
        %6433 = vperm.xlu0 %6432, %v6420
        %v6434 = vpop.permute.xlu0 %6433
        %v6436 = vadd.f32 %v6400, %v6424
        %v6437 = vadd.f32 %v6401, %v6424
        %v6438 = vadd.f32 %v6402, %v6424
        %v6439 = vadd.f32 %v6403, %v6424
        %v6440 = vadd.f32 %v6404, %v6424
        %v6441 = vadd.f32 %v6405, %v6424
        %v6442 = vadd.f32 %v6406, %v6429
        %v6443 = vadd.f32 %v6407, %v6429
        %v6444 = vadd.f32 %v6408, %v6429
        %v6445 = vadd.f32 %v6409, %v6429
        %v6446 = vadd.f32 %v6410, %v6429
        %v6447 = vadd.f32 %v6411, %v6429
        %v6448 = vadd.f32 %v6412, %v6434
        %v6449 = vadd.f32 %v6413, %v6434
        %v6450 = vadd.f32 %v6414, %v6434
        %v6451 = vadd.f32 %v6415, %v6434
        %v6452 = vadd.f32 %v6416, %v6434
        %v6453 = vadd.f32 %v6417, %v6434
        %v6454 = vmax.f32 %v6436, 0.0
        %v6455 = vmax.f32 %v6437, 0.0
        %v6456 = vmax.f32 %v6438, 0.0
        %v6457 = vmax.f32 %v6439, 0.0
        %v6458 = vmax.f32 %v6440, 0.0
        %v6459 = vmax.f32 %v6441, 0.0
        %v6460 = vmax.f32 %v6442, 0.0
        %v6461 = vmax.f32 %v6443, 0.0
        %v6462 = vmax.f32 %v6444, 0.0
        %v6463 = vmax.f32 %v6445, 0.0
        %v6464 = vmax.f32 %v6446, 0.0
        %v6465 = vmax.f32 %v6447, 0.0
        %v6466 = vmax.f32 %v6448, 0.0
        %v6467 = vmax.f32 %v6449, 0.0
        %v6468 = vmax.f32 %v6450, 0.0
        %v6469 = vmax.f32 %v6451, 0.0
        %v6470 = vmax.f32 %v6452, 0.0
        %v6471 = vmax.f32 %v6453, 0.0
        %6472 = vst [vmem:[#allocation4] sm:$0xff] %v6454
        %6473 = vst [vmem:[#allocation4 + $0x8] sm:$0xff] %v6455
        %6474 = vst [vmem:[#allocation4 + $0x10] sm:$0xff] %v6456
        %6475 = vst [vmem:[#allocation4 + $0x18] sm:$0xff] %v6457
        %6476 = vst [vmem:[#allocation4 + $0x20] sm:$0xff] %v6458
        %6477 = vst [vmem:[#allocation4 + $0x28] sm:$0xff] %v6459
        %6478 = vst [vmem:[#allocation4 + $0x30] sm:$0xff] %v6460
        %6479 = vst [vmem:[#allocation4 + $0x38] sm:$0xff] %v6461
        %6480 = vst [vmem:[#allocation4 + $0x40] sm:$0xff] %v6462
        %6481 = vst [vmem:[#allocation4 + $0x48] sm:$0xff] %v6463
        %6482 = vst [vmem:[#allocation4 + $0x50] sm:$0xff] %v6464
        %6483 = vst [vmem:[#allocation4 + $0x58] sm:$0xff] %v6465
        %6484 = vst [vmem:[#allocation4 + $0x60] sm:$0xff] %v6466
        %6485 = vst [vmem:[#allocation4 + $0x68] sm:$0xff] %v6467
        %6486 = vst [vmem:[#allocation4 + $0x70] sm:$0xff] %v6468
        %6487 = vst [vmem:[#allocation4 + $0x78] sm:$0xff] %v6469
        %6488 = vst [vmem:[#allocation4 + $0x80] sm:$0xff] %v6470
        %6489 = vst [vmem:[#allocation4 + $0x88] sm:$0xff] %v6471
        %v6490 = vld [vmem:[#allocation4] sm:$0xff]
        %v6491 = vld [vmem:[#allocation4 + $0x8] sm:$0xff]
        %v6492 = vld [vmem:[#allocation4 + $0x10] sm:$0xff]
        %v6493 = vld [vmem:[#allocation4 + $0x18] sm:$0xff]
        %v6494 = vld [vmem:[#allocation4 + $0x20] sm:$0xff]
        %v6495 = vld [vmem:[#allocation4 + $0x28] sm:$0xff]
        %v6496 = vld [vmem:[#allocation4 + $0x30] sm:$0xff]
        %v6497 = vld [vmem:[#allocation4 + $0x38] sm:$0xff]
        %v6498 = vld [vmem:[#allocation4 + $0x40] sm:$0xff]
        %v6499 = vld [vmem:[#allocation4 + $0x48] sm:$0xff]
        %v6500 = vld [vmem:[#allocation4 + $0x50] sm:$0xff]
        %v6501 = vld [vmem:[#allocation4 + $0x58] sm:$0xff]
        %v6502 = vld [vmem:[#allocation4 + $0x60] sm:$0xff]
        %v6503 = vld [vmem:[#allocation4 + $0x68] sm:$0xff]
        %v6504 = vld [vmem:[#allocation4 + $0x70] sm:$0xff]
        %v6505 = vld [vmem:[#allocation4 + $0x78] sm:$0xff]
        %v6506 = vld [vmem:[#allocation4 + $0x80] sm:$0xff]
        %v6507 = vld [vmem:[#allocation4 + $0x88] sm:$0xff]
        %6526 = vrot.lane.b32.xlu0 %v6490, 127
        %v6527 = vpop.permute.xlu0 %6526
        %6528 = vrot.lane.b32.xlu0 %v6491, 127
        %v6529 = vpop.permute.xlu0 %6528
        %6530 = vrot.lane.b32.xlu0 %v6492, 127
        %v6531 = vpop.permute.xlu0 %6530
        %6532 = vrot.lane.b32.xlu0 %v6493, 127
        %v6533 = vpop.permute.xlu0 %6532
        %6534 = vrot.lane.b32.xlu0 %v6494, 127
        %v6535 = vpop.permute.xlu0 %6534
        %6536 = vrot.lane.b32.xlu0 %v6495, 127
        %v6537 = vpop.permute.xlu0 %6536
        %6538 = vrot.lane.b32.xlu0 %v6496, 127
        %v6539 = vpop.permute.xlu0 %6538
        %6540 = vrot.lane.b32.xlu0 %v6497, 127
        %v6541 = vpop.permute.xlu0 %6540
        %6542 = vrot.lane.b32.xlu0 %v6498, 127
        %v6543 = vpop.permute.xlu0 %6542
        %6544 = vrot.lane.b32.xlu0 %v6499, 127
        %v6545 = vpop.permute.xlu0 %6544
        %6546 = vrot.lane.b32.xlu0 %v6500, 127
        %v6547 = vpop.permute.xlu0 %6546
        %6548 = vrot.lane.b32.xlu0 %v6501, 127
        %v6549 = vpop.permute.xlu0 %6548
        %6550 = vrot.lane.b32.xlu0 %v6502, 127
        %v6551 = vpop.permute.xlu0 %6550
        %6552 = vrot.lane.b32.xlu0 %v6503, 127
        %v6553 = vpop.permute.xlu0 %6552
        %6554 = vrot.lane.b32.xlu0 %v6504, 127
        %v6555 = vpop.permute.xlu0 %6554
        %6556 = vrot.lane.b32.xlu0 %v6505, 127
        %v6557 = vpop.permute.xlu0 %6556
        %6558 = vrot.lane.b32.xlu0 %v6506, 127
        %v6559 = vpop.permute.xlu0 %6558
        %6560 = vrot.lane.b32.xlu0 %v6507, 127
        %v6561 = vpop.permute.xlu0 %6560
        %v6562 = vsel %vm522, %v6527, %v6529
        %v6563 = vsel %vm522, %v6529, %v6531
        %v6564 = vsel %vm522, %v6531, %v6533
        %v6565 = vsel %vm522, %v6533, %v6535
        %v6566 = vsel %vm522, %v6535, %v6537
        %v6567 = vsel %vm522, %v6539, %v6541
        %v6568 = vsel %vm522, %v6541, %v6543
        %v6569 = vsel %vm522, %v6543, %v6545
        %v6570 = vsel %vm522, %v6545, %v6547
        %v6571 = vsel %vm522, %v6547, %v6549
        %v6572 = vsel %vm522, %v6551, %v6553
        %v6573 = vsel %vm522, %v6553, %v6555
        %v6574 = vsel %vm522, %v6555, %v6557
        %v6575 = vsel %vm522, %v6557, %v6559
        %v6576 = vsel %vm522, %v6559, %v6561
        %v6595 = vmax.f32 %v6490, %v6562
        %v6596 = vmax.f32 %v6491, %v6563
        %v6597 = vmax.f32 %v6492, %v6564
        %v6598 = vmax.f32 %v6493, %v6565
        %v6599 = vmax.f32 %v6494, %v6566
        %v6600 = vmax.f32 %v6495, %v6537
        %v6601 = vmax.f32 %v6496, %v6567
        %v6602 = vmax.f32 %v6497, %v6568
        %v6603 = vmax.f32 %v6498, %v6569
        %v6604 = vmax.f32 %v6499, %v6570
        %v6605 = vmax.f32 %v6500, %v6571
        %v6606 = vmax.f32 %v6501, %v6549
        %v6607 = vmax.f32 %v6502, %v6572
        %v6608 = vmax.f32 %v6503, %v6573
        %v6609 = vmax.f32 %v6504, %v6574
        %v6610 = vmax.f32 %v6505, %v6575
        %v6611 = vmax.f32 %v6506, %v6576
        %v6612 = vmax.f32 %v6507, %v6561
        %6631 = vrot.lane.b32.xlu0 %v6595, 96
        %v6632 = vpop.permute.xlu0 %6631
        %6633 = vrot.lane.b32.xlu0 %v6596, 96
        %v6634 = vpop.permute.xlu0 %6633
        %6635 = vrot.lane.b32.xlu0 %v6597, 96
        %v6636 = vpop.permute.xlu0 %6635
        %6637 = vrot.lane.b32.xlu0 %v6598, 96
        %v6638 = vpop.permute.xlu0 %6637
        %6639 = vrot.lane.b32.xlu0 %v6599, 96
        %v6640 = vpop.permute.xlu0 %6639
        %6641 = vrot.lane.b32.xlu0 %v6600, 96
        %v6642 = vpop.permute.xlu0 %6641
        %6643 = vrot.lane.b32.xlu0 %v6601, 96
        %v6644 = vpop.permute.xlu0 %6643
        %6645 = vrot.lane.b32.xlu0 %v6602, 96
        %v6646 = vpop.permute.xlu0 %6645
        %6647 = vrot.lane.b32.xlu0 %v6603, 96
        %v6648 = vpop.permute.xlu0 %6647
        %6649 = vrot.lane.b32.xlu0 %v6604, 96
        %v6650 = vpop.permute.xlu0 %6649
        %6651 = vrot.lane.b32.xlu0 %v6605, 96
        %v6652 = vpop.permute.xlu0 %6651
        %6653 = vrot.lane.b32.xlu0 %v6606, 96
        %v6654 = vpop.permute.xlu0 %6653
        %6655 = vrot.lane.b32.xlu0 %v6607, 96
        %v6656 = vpop.permute.xlu0 %6655
        %6657 = vrot.lane.b32.xlu0 %v6608, 96
        %v6658 = vpop.permute.xlu0 %6657
        %6659 = vrot.lane.b32.xlu0 %v6609, 96
        %v6660 = vpop.permute.xlu0 %6659
        %6661 = vrot.lane.b32.xlu0 %v6610, 96
        %v6662 = vpop.permute.xlu0 %6661
        %6663 = vrot.lane.b32.xlu0 %v6611, 96
        %v6664 = vpop.permute.xlu0 %6663
        %6665 = vrot.lane.b32.xlu0 %v6612, 96
        %v6666 = vpop.permute.xlu0 %6665
        %v6667 = vsel %vm725, %v6632, %v6634
        %v6668 = vsel %vm725, %v6634, %v6636
        %v6669 = vsel %vm725, %v6636, %v6638
        %v6670 = vsel %vm725, %v6638, %v6640
        %v6671 = vsel %vm725, %v6640, %v6642
        %v6672 = vsel %vm725, %v6644, %v6646
        %v6673 = vsel %vm725, %v6646, %v6648
        %v6674 = vsel %vm725, %v6648, %v6650
        %v6675 = vsel %vm725, %v6650, %v6652
        %v6676 = vsel %vm725, %v6652, %v6654
        %v6677 = vsel %vm725, %v6656, %v6658
        %v6678 = vsel %vm725, %v6658, %v6660
        %v6679 = vsel %vm725, %v6660, %v6662
        %v6680 = vsel %vm725, %v6662, %v6664
        %v6681 = vsel %vm725, %v6664, %v6666
        %v6700 = vmax.f32 %v6595, %v6667
        %v6701 = vmax.f32 %v6596, %v6668
        %v6702 = vmax.f32 %v6597, %v6669
        %v6703 = vmax.f32 %v6598, %v6670
        %v6704 = vmax.f32 %v6599, %v6671
        %v6705 = vmax.f32 %v6600, %v6642
        %v6706 = vmax.f32 %v6601, %v6672
        %v6707 = vmax.f32 %v6602, %v6673
        %v6708 = vmax.f32 %v6603, %v6674
        %v6709 = vmax.f32 %v6604, %v6675
        %v6710 = vmax.f32 %v6605, %v6676
        %v6711 = vmax.f32 %v6606, %v6654
        %v6712 = vmax.f32 %v6607, %v6677
        %v6713 = vmax.f32 %v6608, %v6678
        %v6714 = vmax.f32 %v6609, %v6679
        %v6715 = vmax.f32 %v6610, %v6680
        %v6716 = vmax.f32 %v6611, %v6681
        %v6717 = vmax.f32 %v6612, %v6666
        %v6718 = vld [vmem:[%s7] sm:$0xff]
        %v6719 = vld [vmem:[%s7 + $0x8] sm:$0xff]
        %v6720 = vld [vmem:[%s7 + $0x10] sm:$0xff]
        %v6721 = vld [vmem:[%s7 + $0x18] sm:$0xff]
        %v6722 = vld [vmem:[%s7 + $0x20] sm:$0xff]
        %v6723 = vld [vmem:[%s7 + $0x28] sm:$0xff]
        %v6724 = vld [vmem:[%s7 + $0x30] sm:$0xff]
        %v6725 = vld [vmem:[%s7 + $0x38] sm:$0xff]
        %v6726 = vld [vmem:[%s7 + $0x40] sm:$0xff]
        %v6727 = vld [vmem:[%s7 + $0x48] sm:$0xff]
        %v6728 = vld [vmem:[%s7 + $0x50] sm:$0xff]
        %v6729 = vld [vmem:[%s7 + $0x58] sm:$0xff]
        %v6730 = vld [vmem:[%s7 + $0x60] sm:$0xff]
        %v6731 = vld [vmem:[%s7 + $0x68] sm:$0xff]
        %v6732 = vld [vmem:[%s7 + $0x70] sm:$0xff]
        %v6733 = vld [vmem:[%s7 + $0x78] sm:$0xff]
        %v6734 = vld [vmem:[%s7 + $0x80] sm:$0xff]
        %v6735 = vld [vmem:[%s7 + $0x88] sm:$0xff]
        %v6736 = vld [vmem:[%s7 + $0x90] sm:$0xff]
        %v6737 = vld [vmem:[%s7 + $0x98] sm:$0xff]
        %v6738 = vld [vmem:[%s7 + $0xa0] sm:$0xff]
        %v6739 = vld [vmem:[%s7 + $0xa8] sm:$0xff]
        %v6740 = vld [vmem:[%s7 + $0xb0] sm:$0xff]
        %v6741 = vld [vmem:[%s7 + $0xb8] sm:$0xff]
        %v6742 = vld [vmem:[%s7 + $0xc0] sm:$0xff]
        %v6743 = vld [vmem:[%s7 + $0xc8] sm:$0xff]
        %v6744 = vld [vmem:[%s7 + $0xd0] sm:$0xff]
        %v6745 = vld [vmem:[%s7 + $0xd8] sm:$0xff]
        %v6746 = vld [vmem:[%s7 + $0xe0] sm:$0xff]
        %v6747 = vld [vmem:[%s7 + $0xe8] sm:$0xff]
        %v6748 = vld [vmem:[%s7 + $0xf0] sm:$0xff]
        %v6749 = vld [vmem:[%s7 + $0xf8] sm:$0xff]
        %v6750 = vld [vmem:[%s7 + $0x100] sm:$0xff]
        %v6751 = vld [vmem:[%s7 + $0x108] sm:$0xff]
        %v6752 = vld [vmem:[%s7 + $0x110] sm:$0xff]
        %v6753 = vld [vmem:[%s7 + $0x118] sm:$0xff]
        %v6754 = vld [vmem:[%s7 + $0x120] sm:$0xff]
        %v6755 = vld [vmem:[%s7 + $0x128] sm:$0xff]
        %v6756 = vld [vmem:[%s7 + $0x130] sm:$0xff]
        %v6757 = vld [vmem:[%s7 + $0x138] sm:$0xff]
        %v6758 = vld [vmem:[%s7 + $0x140] sm:$0xff]
        %v6759 = vld [vmem:[%s7 + $0x148] sm:$0xff]
        %v6760 = vld [vmem:[%s7 + $0x150] sm:$0xff]
        %v6761 = vld [vmem:[%s7 + $0x158] sm:$0xff]
        %v6762 = vld [vmem:[%s7 + $0x160] sm:$0xff]
        %v6763 = vld [vmem:[%s7 + $0x168] sm:$0xff]
        %v6764 = vld [vmem:[%s7 + $0x170] sm:$0xff]
        %v6765 = vld [vmem:[%s7 + $0x178] sm:$0xff]
        %v6766 = vld [vmem:[%s7 + $0x180] sm:$0xff]
        %v6767 = vld [vmem:[%s7 + $0x188] sm:$0xff]
        %v6768 = vld [vmem:[%s7 + $0x190] sm:$0xff]
        %v6769 = vld [vmem:[%s7 + $0x198] sm:$0xff]
        %v6770 = vld [vmem:[%s7 + $0x1a0] sm:$0xff]
        %v6771 = vld [vmem:[%s7 + $0x1a8] sm:$0xff]
        %v6772 = vld [vmem:[%s7 + $0x1b0] sm:$0xff]
        %v6773 = vld [vmem:[%s7 + $0x1b8] sm:$0xff]
        %v6774 = vld [vmem:[%s7 + $0x1c0] sm:$0xff]
        %v6775 = vld [vmem:[%s7 + $0x1c8] sm:$0xff]
        %v6776 = vld [vmem:[%s7 + $0x1d0] sm:$0xff]
        %v6777 = vld [vmem:[%s7 + $0x1d8] sm:$0xff]
        %v6778 = vld [vmem:[%s7 + $0x1e0] sm:$0xff]
        %v6779 = vld [vmem:[%s7 + $0x1e8] sm:$0xff]
        %v6780 = vld [vmem:[%s7 + $0x1f0] sm:$0xff]
        %v6781 = vld [vmem:[%s7 + $0x1f8] sm:$0xff]
        %v6782 = vld [vmem:[%s7 + $0x200] sm:$0xff]
        %v6783 = vld [vmem:[%s7 + $0x208] sm:$0xff]
        %v6784 = vld [vmem:[%s7 + $0x210] sm:$0xff]
        %v6785 = vld [vmem:[%s7 + $0x218] sm:$0xff]
        %v6786 = vld [vmem:[%s7 + $0x220] sm:$0xff]
        %v6787 = vld [vmem:[%s7 + $0x228] sm:$0xff]
        %v6788 = vld [vmem:[%s7 + $0x230] sm:$0xff]
        %v6789 = vld [vmem:[%s7 + $0x238] sm:$0xff]
        %v6790 = vld [vmem:[%s7 + $0x240] sm:$0xff]
        %v6791 = vld [vmem:[%s7 + $0x248] sm:$0xff]
        %v6792 = vld [vmem:[%s7 + $0x250] sm:$0xff]
        %v6793 = vld [vmem:[%s7 + $0x258] sm:$0xff]
        %v6794 = vld [vmem:[%s7 + $0x260] sm:$0xff]
        %v6795 = vld [vmem:[%s7 + $0x268] sm:$0xff]
        %v6796 = vld [vmem:[%s7 + $0x270] sm:$0xff]
        %v6797 = vld [vmem:[%s7 + $0x278] sm:$0xff]
        %v6798 = vld [vmem:[%s7 + $0x280] sm:$0xff]
        %v6799 = vld [vmem:[%s7 + $0x288] sm:$0xff]
        %v6800 = vld [vmem:[%s7 + $0x290] sm:$0xff]
        %v6801 = vld [vmem:[%s7 + $0x298] sm:$0xff]
        %v6802 = vld [vmem:[%s7 + $0x2a0] sm:$0xff]
        %v6803 = vld [vmem:[%s7 + $0x2a8] sm:$0xff]
        %v6804 = vld [vmem:[%s7 + $0x2b0] sm:$0xff]
        %v6805 = vld [vmem:[%s7 + $0x2b8] sm:$0xff]
        %v6806 = vld [vmem:[%s7 + $0x2c0] sm:$0xff]
        %v6807 = vld [vmem:[%s7 + $0x2c8] sm:$0xff]
        %v6808 = vld [vmem:[%s7 + $0x2d0] sm:$0xff]
        %v6809 = vld [vmem:[%s7 + $0x2d8] sm:$0xff]
        %v6810 = vld [vmem:[%s7 + $0x2e0] sm:$0xff]
        %v6811 = vld [vmem:[%s7 + $0x2e8] sm:$0xff]
        %v6812 = vld [vmem:[%s7 + $0x2f0] sm:$0xff]
        %v6813 = vld [vmem:[%s7 + $0x2f8] sm:$0xff]
        %v6814 = vld [vmem:[%s7 + $0x300] sm:$0xff]
        %v6815 = vld [vmem:[%s7 + $0x308] sm:$0xff]
        %v6816 = vld [vmem:[%s7 + $0x310] sm:$0xff]
        %v6817 = vld [vmem:[%s7 + $0x318] sm:$0xff]
        %v6818 = vld [vmem:[%s7 + $0x320] sm:$0xff]
        %v6819 = vld [vmem:[%s7 + $0x328] sm:$0xff]
        %v6820 = vld [vmem:[%s7 + $0x330] sm:$0xff]
        %v6821 = vld [vmem:[%s7 + $0x338] sm:$0xff]
        %v6822 = vld [vmem:[%s7 + $0x340] sm:$0xff]
        %v6823 = vld [vmem:[%s7 + $0x348] sm:$0xff]
        %v6824 = vld [vmem:[%s7 + $0x350] sm:$0xff]
        %v6825 = vld [vmem:[%s7 + $0x358] sm:$0xff]
        %v6826 = vld [vmem:[%s7 + $0x360] sm:$0xff]
        %v6827 = vld [vmem:[%s7 + $0x368] sm:$0xff]
        %v6828 = vld [vmem:[%s7 + $0x370] sm:$0xff]
        %v6829 = vld [vmem:[%s7 + $0x378] sm:$0xff]
        %v6830 = vld [vmem:[%s7 + $0x380] sm:$0xff]
        %v6831 = vld [vmem:[%s7 + $0x388] sm:$0xff]
        %v6832 = vld [vmem:[%s7 + $0x390] sm:$0xff]
        %v6833 = vld [vmem:[%s7 + $0x398] sm:$0xff]
        %v6834 = vld [vmem:[%s7 + $0x3a0] sm:$0xff]
        %v6835 = vld [vmem:[%s7 + $0x3a8] sm:$0xff]
        %v6836 = vld [vmem:[%s7 + $0x3b0] sm:$0xff]
        %v6837 = vld [vmem:[%s7 + $0x3b8] sm:$0xff]
        %v6838 = vld [vmem:[%s7 + $0x3c0] sm:$0xff]
        %v6839 = vld [vmem:[%s7 + $0x3c8] sm:$0xff]
        %v6840 = vld [vmem:[%s7 + $0x3d0] sm:$0xff]
        %v6841 = vld [vmem:[%s7 + $0x3d8] sm:$0xff]
        %v6842 = vld [vmem:[%s7 + $0x3e0] sm:$0xff]
        %v6843 = vld [vmem:[%s7 + $0x3e8] sm:$0xff]
        %v6844 = vld [vmem:[%s7 + $0x3f0] sm:$0xff]
        %v6845 = vld [vmem:[%s7 + $0x3f8] sm:$0xff]
        %v6846 = vld [vmem:[%s7 + $0x400] sm:$0xff]
        %v6847 = vld [vmem:[%s7 + $0x408] sm:$0xff]
        %v6848 = vld [vmem:[%s7 + $0x410] sm:$0xff]
        %v6849 = vld [vmem:[%s7 + $0x418] sm:$0xff]
        %v6850 = vld [vmem:[%s7 + $0x420] sm:$0xff]
        %v6851 = vld [vmem:[%s7 + $0x428] sm:$0xff]
        %v6852 = vld [vmem:[%s7 + $0x430] sm:$0xff]
        %v6853 = vld [vmem:[%s7 + $0x438] sm:$0xff]
        %v6854 = vld [vmem:[%s7 + $0x440] sm:$0xff]
        %v6855 = vld [vmem:[%s7 + $0x448] sm:$0xff]
        %v6856 = vld [vmem:[%s7 + $0x450] sm:$0xff]
        %v6857 = vld [vmem:[%s7 + $0x458] sm:$0xff]
        %v6858 = vld [vmem:[%s7 + $0x460] sm:$0xff]
        %v6859 = vld [vmem:[%s7 + $0x468] sm:$0xff]
        %v6860 = vld [vmem:[%s7 + $0x470] sm:$0xff]
        %v6861 = vld [vmem:[%s7 + $0x478] sm:$0xff]
        %v6862 = vld [vmem:[%s7 + $0x480] sm:$0xff]
        %v6863 = vld [vmem:[%s7 + $0x488] sm:$0xff]
        %v6864 = vld [vmem:[%s7 + $0x490] sm:$0xff]
        %v6865 = vld [vmem:[%s7 + $0x498] sm:$0xff]
        %v6866 = vld [vmem:[%s7 + $0x4a0] sm:$0xff]
        %v6867 = vld [vmem:[%s7 + $0x4a8] sm:$0xff]
        %v6868 = vld [vmem:[%s7 + $0x4b0] sm:$0xff]
        %v6869 = vld [vmem:[%s7 + $0x4b8] sm:$0xff]
        %v6870 = vld [vmem:[%s7 + $0x4c0] sm:$0xff]
        %v6871 = vld [vmem:[%s7 + $0x4c8] sm:$0xff]
        %v6872 = vld [vmem:[%s7 + $0x4d0] sm:$0xff]
        %v6873 = vld [vmem:[%s7 + $0x4d8] sm:$0xff]
        %v6874 = vld [vmem:[%s7 + $0x4e0] sm:$0xff]
        %v6875 = vld [vmem:[%s7 + $0x4e8] sm:$0xff]
        %v6876 = vld [vmem:[%s7 + $0x4f0] sm:$0xff]
        %v6877 = vld [vmem:[%s7 + $0x4f8] sm:$0xff]
        %v6878 = vld [vmem:[%s7 + $0x500] sm:$0xff]
        %v6879 = vld [vmem:[%s7 + $0x508] sm:$0xff]
        %v6880 = vld [vmem:[%s7 + $0x510] sm:$0xff]
        %v6881 = vld [vmem:[%s7 + $0x518] sm:$0xff]
        %v6882 = vld [vmem:[%s7 + $0x520] sm:$0xff]
        %v6883 = vld [vmem:[%s7 + $0x528] sm:$0xff]
        %v6884 = vld [vmem:[%s7 + $0x530] sm:$0xff]
        %v6885 = vld [vmem:[%s7 + $0x538] sm:$0xff]
        %v6886 = vld [vmem:[%s7 + $0x540] sm:$0xff]
        %v6887 = vld [vmem:[%s7 + $0x548] sm:$0xff]
        %v6888 = vld [vmem:[%s7 + $0x550] sm:$0xff]
        %v6889 = vld [vmem:[%s7 + $0x558] sm:$0xff]
        %v6890 = vld [vmem:[%s7 + $0x560] sm:$0xff]
        %v6891 = vld [vmem:[%s7 + $0x568] sm:$0xff]
        %v6892 = vld [vmem:[%s7 + $0x570] sm:$0xff]
        %v6893 = vld [vmem:[%s7 + $0x578] sm:$0xff]
        %v6894 = vld [vmem:[%s7 + $0x580] sm:$0xff]
        %v6895 = vld [vmem:[%s7 + $0x588] sm:$0xff]
        %v6896 = vld [vmem:[%s7 + $0x590] sm:$0xff]
        %v6897 = vld [vmem:[%s7 + $0x598] sm:$0xff]
        %v6898 = vld [vmem:[%s7 + $0x5a0] sm:$0xff]
        %v6899 = vld [vmem:[%s7 + $0x5a8] sm:$0xff]
        %vm6900 = vcmask 719872
        %v6902 = vsel %vm6900, %v6705, 0
        %v6905 = vsel %vm6900, %v6711, 0
        %v6908 = vsel %vm6900, %v6717, 0
        %6910 = vmatprep.subr.mxu0 %v6719
        %6911 = vmatpush1.msra.mxu0 %v6718
        %6912 = vmatprep.subr.mxu0 %v6721
        %6913 = vmatpush1.msra.mxu0 %v6720
        %6914 = vmatprep.subr.mxu0 %v6723
        %6915 = vmatpush1.msra.mxu0 %v6722
        %6916 = vmatprep.subr.mxu0 %v6725
        %6917 = vmatpush1.msra.mxu0 %v6724
        %6918 = vmatprep.subr.mxu0 %v6727
        %6919 = vmatpush1.msra.mxu0 %v6726
        %6920 = vmatprep.subr.mxu0 %v6729
        %6921 = vmatpush1.msra.mxu0 %v6728
        %6922 = vmatprep.subr.mxu0 %v6731
        %6923 = vmatpush1.msra.mxu0 %v6730
        %6924 = vmatprep.subr.mxu0 %v6733
        %6925 = vmatpush1.msra.mxu0 %v6732
        %6926 = vmatprep.subr.mxu0 %v6735
        %6927 = vmatpush1.msra.mxu0 %v6734
        %6928 = vmatprep.subr.mxu0 %v6737
        %6929 = vmatpush1.msra.mxu0 %v6736
        %6930 = vmatprep.subr.mxu0 %v6739
        %6931 = vmatpush1.msra.mxu0 %v6738
        %6932 = vmatprep.subr.mxu0 %v6741
        %6933 = vmatpush1.msra.mxu0 %v6740
        %6934 = vmatprep.subr.mxu0 %v6743
        %6935 = vmatpush1.msra.mxu0 %v6742
        %6936 = vmatprep.subr.mxu0 %v6745
        %6937 = vmatpush1.msra.mxu0 %v6744
        %6938 = vmatprep.subr.mxu0 %v6747
        %6939 = vmatpush1.msra.mxu0 %v6746
        %6940 = vmatprep.subr.mxu0 %v6749
        %6941 = vmatpush1.msra.mxu0 %v6748
        %6942 = vmatprep.subr.mxu0 %v6751
        %6943 = vmatpush1.msra.mxu0 %v6750
        %6944 = vmatprep.subr.mxu0 %v6753
        %6945 = vmatpush1.msra.mxu0 %v6752
        %6946 = vmatprep.subr.mxu0 %v6755
        %6947 = vmatpush1.msra.mxu0 %v6754
        %6948 = vmatprep.subr.mxu0 %v6757
        %6949 = vmatpush1.msra.mxu0 %v6756
        %6950 = vmatprep.subr.mxu0 %v6759
        %6951 = vmatpush1.msra.mxu0 %v6758
        %6952 = vmatprep.subr.mxu0 %v6761
        %6953 = vmatpush1.msra.mxu0 %v6760
        %6954 = vmatprep.subr.mxu0 %v6763
        %6955 = vmatpush1.msra.mxu0 %v6762
        %6956 = vmatprep.subr.mxu0 %v6765
        %6957 = vmatpush1.msra.mxu0 %v6764
        %6958 = vmatprep.subr.mxu0 %v6767
        %6959 = vmatpush1.msra.mxu0 %v6766
        %6960 = vmatprep.subr.mxu0 %v6769
        %6961 = vmatpush1.msra.mxu0 %v6768
        %6962 = vmatprep.subr.mxu0 %v6771
        %6963 = vmatpush1.msra.mxu0 %v6770
        %6964 = vmatprep.subr.mxu0 %v6773
        %6965 = vmatpush1.msra.mxu0 %v6772
        %6966 = vmatprep.subr.mxu0 %v6775
        %6967 = vmatpush1.msra.mxu0 %v6774
        %6968 = vmatprep.subr.mxu0 %v6777
        %6969 = vmatpush1.msra.mxu0 %v6776
        %6970 = vmatprep.subr.mxu0 %v6779
        %6971 = vmatpush1.msra.mxu0 %v6778
        %6972 = vmatprep.subr.mxu0 %v6781
        %6973 = vmatpush1.msra.mxu0 %v6780
        %6974 = vmatprep.mubr.f32.mxu0 %v6701
        %6975 = vmatmul.mubr.f32.gmra.mrb[0].mxu0 %v6700
        %v6976 = vpop.f32.mrb[0].mxu0
        %v6977 = vadd.f32 0.0, %v6976
        %v6978 = vpop.f32.mrb[0].mxu0
        %v6979 = vadd.f32 0.0, %v6978
        %6980 = vmatprep.mubr.f32.mxu0 %v6707
        %6981 = vmatmul.mubr.f32.gmra.mrb[0].mxu0 %v6706
        %v6982 = vpop.f32.mrb[0].mxu0
        %v6983 = vadd.f32 0.0, %v6982
        %v6984 = vpop.f32.mrb[0].mxu0
        %v6985 = vadd.f32 0.0, %v6984
        %6986 = vmatprep.mubr.f32.mxu0 %v6713
        %6987 = vmatmul.mubr.f32.gmra.mrb[0].mxu0 %v6712
        %v6988 = vpop.f32.mrb[0].mxu0
        %v6989 = vadd.f32 0.0, %v6988
        %v6990 = vpop.f32.mrb[0].mxu0
        %v6991 = vadd.f32 0.0, %v6990
        %6992 = vdwg.mxu0
        %6993 = vmatprep.subr.mxu0 %v6783
        %6994 = vmatpush1.msra.mxu0 %v6782
        %6995 = vmatprep.subr.mxu0 %v6785
        %6996 = vmatpush1.msra.mxu0 %v6784
        %6997 = vmatprep.subr.mxu0 %v6787
        %6998 = vmatpush1.msra.mxu0 %v6786
        %6999 = vmatprep.subr.mxu0 %v6789
        %7000 = vmatpush1.msra.mxu0 %v6788
        %7001 = vmatprep.subr.mxu0 %v6791
        %7002 = vmatpush1.msra.mxu0 %v6790
        %7003 = vmatprep.subr.mxu0 %v6793
        %7004 = vmatpush1.msra.mxu0 %v6792
        %7005 = vmatprep.subr.mxu0 %v6795
        %7006 = vmatpush1.msra.mxu0 %v6794
        %7007 = vmatprep.subr.mxu0 %v6797
        %7008 = vmatpush1.msra.mxu0 %v6796
        %7009 = vmatprep.subr.mxu0 %v6799
        %7010 = vmatpush1.msra.mxu0 %v6798
        %7011 = vmatprep.subr.mxu0 %v6801
        %7012 = vmatpush1.msra.mxu0 %v6800
        %7013 = vmatprep.subr.mxu0 %v6803
        %7014 = vmatpush1.msra.mxu0 %v6802
        %7015 = vmatprep.subr.mxu0 %v6805
        %7016 = vmatpush1.msra.mxu0 %v6804
        %7017 = vmatprep.subr.mxu0 %v6807
        %7018 = vmatpush1.msra.mxu0 %v6806
        %7019 = vmatprep.subr.mxu0 %v6809
        %7020 = vmatpush1.msra.mxu0 %v6808
        %7021 = vmatprep.subr.mxu0 %v6811
        %7022 = vmatpush1.msra.mxu0 %v6810
        %7023 = vmatprep.subr.mxu0 %v6813
        %7024 = vmatpush1.msra.mxu0 %v6812
        %7025 = vmatprep.subr.mxu0 %v6815
        %7026 = vmatpush1.msra.mxu0 %v6814
        %7027 = vmatprep.subr.mxu0 %v6817
        %7028 = vmatpush1.msra.mxu0 %v6816
        %7029 = vmatprep.subr.mxu0 %v6819
        %7030 = vmatpush1.msra.mxu0 %v6818
        %7031 = vmatprep.subr.mxu0 %v6821
        %7032 = vmatpush1.msra.mxu0 %v6820
        %7033 = vmatprep.subr.mxu0 %v6823
        %7034 = vmatpush1.msra.mxu0 %v6822
        %7035 = vmatprep.subr.mxu0 %v6825
        %7036 = vmatpush1.msra.mxu0 %v6824
        %7037 = vmatprep.subr.mxu0 %v6827
        %7038 = vmatpush1.msra.mxu0 %v6826
        %7039 = vmatprep.subr.mxu0 %v6829
        %7040 = vmatpush1.msra.mxu0 %v6828
        %7041 = vmatprep.subr.mxu0 %v6831
        %7042 = vmatpush1.msra.mxu0 %v6830
        %7043 = vmatprep.subr.mxu0 %v6833
        %7044 = vmatpush1.msra.mxu0 %v6832
        %7045 = vmatprep.subr.mxu0 %v6835
        %7046 = vmatpush1.msra.mxu0 %v6834
        %7047 = vmatprep.subr.mxu0 %v6837
        %7048 = vmatpush1.msra.mxu0 %v6836
        %7049 = vmatprep.subr.mxu0 %v6839
        %7050 = vmatpush1.msra.mxu0 %v6838
        %7051 = vmatprep.subr.mxu0 %v6841
        %7052 = vmatpush1.msra.mxu0 %v6840
        %7053 = vmatprep.subr.mxu0 %v6843
        %7054 = vmatpush1.msra.mxu0 %v6842
        %7055 = vmatprep.subr.mxu0 %v6845
        %7056 = vmatpush1.msra.mxu0 %v6844
        %7057 = vmatprep.mubr.f32.mxu0 %v6703
        %7058 = vmatmul.mubr.f32.gmra.mrb[0].mxu0 %v6702
        %v7059 = vpop.f32.mrb[0].mxu0
        %v7060 = vadd.f32 %v6977, %v7059
        %v7061 = vpop.f32.mrb[0].mxu0
        %v7062 = vadd.f32 %v6979, %v7061
        %7063 = vmatprep.mubr.f32.mxu0 %v6709
        %7064 = vmatmul.mubr.f32.gmra.mrb[0].mxu0 %v6708
        %v7065 = vpop.f32.mrb[0].mxu0
        %v7066 = vadd.f32 %v6983, %v7065
        %v7067 = vpop.f32.mrb[0].mxu0
        %v7068 = vadd.f32 %v6985, %v7067
        %7069 = vmatprep.mubr.f32.mxu0 %v6715
        %7070 = vmatmul.mubr.f32.gmra.mrb[0].mxu0 %v6714
        %v7071 = vpop.f32.mrb[0].mxu0
        %v7072 = vadd.f32 %v6989, %v7071
        %v7073 = vpop.f32.mrb[0].mxu0
        %v7074 = vadd.f32 %v6991, %v7073
        %7075 = vdwg.mxu0
        %7076 = vmatprep.subr.mxu0 %v6847
        %7077 = vmatpush1.msra.mxu0 %v6846
        %7078 = vmatprep.subr.mxu0 %v6849
        %7079 = vmatpush1.msra.mxu0 %v6848
        %7080 = vmatprep.subr.mxu0 %v6851
        %7081 = vmatpush1.msra.mxu0 %v6850
        %7082 = vmatprep.subr.mxu0 %v6853
        %7083 = vmatpush1.msra.mxu0 %v6852
        %7084 = vmatprep.subr.mxu0 %v6855
        %7085 = vmatpush1.msra.mxu0 %v6854
        %7086 = vmatprep.subr.mxu0 %v6857
        %7087 = vmatpush1.msra.mxu0 %v6856
        %7088 = vmatprep.subr.mxu0 %v6859
        %7089 = vmatpush1.msra.mxu0 %v6858
        %7090 = vmatprep.subr.mxu0 %v6861
        %7091 = vmatpush1.msra.mxu0 %v6860
        %7092 = vmatprep.subr.mxu0 %v6863
        %7093 = vmatpush1.msra.mxu0 %v6862
        %7094 = vmatprep.subr.mxu0 %v6865
        %7095 = vmatpush1.msra.mxu0 %v6864
        %7096 = vmatprep.subr.mxu0 %v6867
        %7097 = vmatpush1.msra.mxu0 %v6866
        %7098 = vmatprep.subr.mxu0 %v6869
        %7099 = vmatpush1.msra.mxu0 %v6868
        %7100 = vmatprep.subr.mxu0 %v6871
        %7101 = vmatpush1.msra.mxu0 %v6870
        %7102 = vmatprep.subr.mxu0 %v6873
        %7103 = vmatpush1.msra.mxu0 %v6872
        %7104 = vmatprep.subr.mxu0 %v6875
        %7105 = vmatpush1.msra.mxu0 %v6874
        %7106 = vmatprep.subr.mxu0 %v6877
        %7107 = vmatpush1.msra.mxu0 %v6876
        %7108 = vmatprep.subr.mxu0 %v6879
        %7109 = vmatpush1.msra.mxu0 %v6878
        %7110 = vmatprep.subr.mxu0 %v6881
        %7111 = vmatpush1.msra.mxu0 %v6880
        %7112 = vmatprep.subr.mxu0 %v6883
        %7113 = vmatpush1.msra.mxu0 %v6882
        %7114 = vmatprep.subr.mxu0 %v6885
        %7115 = vmatpush1.msra.mxu0 %v6884
        %7116 = vmatprep.subr.mxu0 %v6887
        %7117 = vmatpush1.msra.mxu0 %v6886
        %7118 = vmatprep.subr.mxu0 %v6889
        %7119 = vmatpush1.msra.mxu0 %v6888
        %7120 = vmatprep.subr.mxu0 %v6891
        %7121 = vmatpush1.msra.mxu0 %v6890
        %7122 = vmatprep.subr.mxu0 %v6893
        %7123 = vmatpush1.msra.mxu0 %v6892
        %7124 = vmatprep.subr.mxu0 %v6895
        %7125 = vmatpush1.msra.mxu0 %v6894
        %7126 = vmatprep.subr.mxu0 %v6897
        %7127 = vmatpush1.msra.mxu0 %v6896
        %7128 = vmatprep.subr.mxu0 %v6899
        %7129 = vmatpush1.msra.mxu0 %v6898
        %7130 = vmatprep.subr.mxu0 0.0
        %7131 = vmatpush1.msra.mxu0 0.0
        %7132 = vmatprep.subr.mxu0 0.0
        %7133 = vmatpush1.msra.mxu0 0.0
        %7134 = vmatprep.subr.mxu0 0.0
        %7135 = vmatpush1.msra.mxu0 0.0
        %7136 = vmatprep.subr.mxu0 0.0
        %7137 = vmatpush1.msra.mxu0 0.0
        %7138 = vmatprep.subr.mxu0 0.0
        %7139 = vmatpush1.msra.mxu0 0.0
        %7140 = vmatprep.mubr.f32.mxu0 %v6902
        %7141 = vmatmul.mubr.f32.gmra.mrb[0].mxu0 %v6704
        %v7142 = vpop.f32.mrb[0].mxu0
        %v7143 = vadd.f32 %v7060, %v7142
        %v7144 = vpop.f32.mrb[0].mxu0
        %v7145 = vadd.f32 %v7062, %v7144
        %7146 = vmatprep.mubr.f32.mxu0 %v6905
        %7147 = vmatmul.mubr.f32.gmra.mrb[0].mxu0 %v6710
        %v7148 = vpop.f32.mrb[0].mxu0
        %v7149 = vadd.f32 %v7066, %v7148
        %v7150 = vpop.f32.mrb[0].mxu0
        %v7151 = vadd.f32 %v7068, %v7150
        %7152 = vmatprep.mubr.f32.mxu0 %v6908
        %7153 = vmatmul.mubr.f32.gmra.mrb[0].mxu0 %v6716
        %v7154 = vpop.f32.mrb[0].mxu0
        %v7155 = vadd.f32 %v7072, %v7154
        %v7156 = vpop.f32.mrb[0].mxu0
        %v7157 = vadd.f32 %v7074, %v7156
        %7158 = vdwg.mxu0
        %7159 = vst [vmem:[#allocation8] sm:$0xff] %v7143
        %vm7160 = vcmask 130048
        %7161 = vst.msk [vmem:[#allocation8 + $0x8] sm:$0xff] %vm7160, %v7145
        %7162 = vst [vmem:[#allocation8 + $0x10] sm:$0xff] %v7149
        %7163 = vst.msk [vmem:[#allocation8 + $0x18] sm:$0xff] %vm7160, %v7151
        %7164 = vst [vmem:[#allocation8 + $0x20] sm:$0xff] %v7155
        %7165 = vst.msk [vmem:[#allocation8 + $0x28] sm:$0xff] %vm7160, %v7157
        %7172 = vrot.lane.b32.xlu0 %v7143, 127
        %v7173 = vpop.permute.xlu0 %7172
        %7174 = vrot.lane.b32.xlu0 %v7145, 127
        %v7175 = vpop.permute.xlu0 %7174
        %7176 = vrot.lane.b32.xlu0 %v7149, 127
        %v7177 = vpop.permute.xlu0 %7176
        %7178 = vrot.lane.b32.xlu0 %v7151, 127
        %v7179 = vpop.permute.xlu0 %7178
        %7180 = vrot.lane.b32.xlu0 %v7155, 127
        %v7181 = vpop.permute.xlu0 %7180
        %7182 = vrot.lane.b32.xlu0 %v7157, 127
        %v7183 = vpop.permute.xlu0 %7182
        %v7184 = vsel %vm522, %v7173, %v7175
        %v7185 = vsel %vm522, %v7177, %v7179
        %v7186 = vsel %vm522, %v7181, %v7183
        %7193 = vst [vmem:[#allocation8 + $0x30] sm:$0xff] %v7184
        %7194 = vst.msk [vmem:[#allocation8 + $0x38] sm:$0xff] %vm7160, %v7175
        %7195 = vst [vmem:[#allocation8 + $0x40] sm:$0xff] %v7185
        %7196 = vst.msk [vmem:[#allocation8 + $0x48] sm:$0xff] %vm7160, %v7179
        %7197 = vst [vmem:[#allocation8 + $0x50] sm:$0xff] %v7186
        %7198 = vst.msk [vmem:[#allocation8 + $0x58] sm:$0xff] %vm7160, %v7183
        %7199 = vrot.lane.b32.xlu0 %v7143, 126
        %v7200 = vpop.permute.xlu0 %7199
        %7201 = vrot.lane.b32.xlu0 %v7145, 126
        %v7202 = vpop.permute.xlu0 %7201
        %7203 = vrot.lane.b32.xlu0 %v7149, 126
        %v7204 = vpop.permute.xlu0 %7203
        %7205 = vrot.lane.b32.xlu0 %v7151, 126
        %v7206 = vpop.permute.xlu0 %7205
        %7207 = vrot.lane.b32.xlu0 %v7155, 126
        %v7208 = vpop.permute.xlu0 %7207
        %7209 = vrot.lane.b32.xlu0 %v7157, 126
        %v7210 = vpop.permute.xlu0 %7209
        %v7211 = vsel %vm585, %v7200, %v7202
        %v7212 = vsel %vm585, %v7204, %v7206
        %v7213 = vsel %vm585, %v7208, %v7210
        %7220 = vst [vmem:[#allocation8 + $0x60] sm:$0xff] %v7211
        %7221 = vst.msk [vmem:[#allocation8 + $0x68] sm:$0xff] %vm7160, %v7202
        %7222 = vst [vmem:[#allocation8 + $0x70] sm:$0xff] %v7212
        %7223 = vst.msk [vmem:[#allocation8 + $0x78] sm:$0xff] %vm7160, %v7206
        %7224 = vst [vmem:[#allocation8 + $0x80] sm:$0xff] %v7213
        %7225 = vst.msk [vmem:[#allocation8 + $0x88] sm:$0xff] %vm7160, %v7210
        %7226 = vrot.lane.b32.xlu0 %v7143, 125
        %v7227 = vpop.permute.xlu0 %7226
        %7228 = vrot.lane.b32.xlu0 %v7145, 125
        %v7229 = vpop.permute.xlu0 %7228
        %7230 = vrot.lane.b32.xlu0 %v7149, 125
        %v7231 = vpop.permute.xlu0 %7230
        %7232 = vrot.lane.b32.xlu0 %v7151, 125
        %v7233 = vpop.permute.xlu0 %7232
        %7234 = vrot.lane.b32.xlu0 %v7155, 125
        %v7235 = vpop.permute.xlu0 %7234
        %7236 = vrot.lane.b32.xlu0 %v7157, 125
        %v7237 = vpop.permute.xlu0 %7236
        %v7238 = vsel %vm3923, %v7227, %v7229
        %v7239 = vsel %vm3923, %v7231, %v7233
        %v7240 = vsel %vm3923, %v7235, %v7237
        %7247 = vst [vmem:[#allocation8 + $0x90] sm:$0xff] %v7238
        %7248 = vst.msk [vmem:[#allocation8 + $0x98] sm:$0xff] %vm7160, %v7229
        %7249 = vst [vmem:[#allocation8 + $0xa0] sm:$0xff] %v7239
        %7250 = vst.msk [vmem:[#allocation8 + $0xa8] sm:$0xff] %vm7160, %v7233
        %7251 = vst [vmem:[#allocation8 + $0xb0] sm:$0xff] %v7240
        %7252 = vst.msk [vmem:[#allocation8 + $0xb8] sm:$0xff] %vm7160, %v7237
        %7253 = vrot.lane.b32.xlu0 %v7143, 124
        %v7254 = vpop.permute.xlu0 %7253
        %7255 = vrot.lane.b32.xlu0 %v7145, 124
        %v7256 = vpop.permute.xlu0 %7255
        %7257 = vrot.lane.b32.xlu0 %v7149, 124
        %v7258 = vpop.permute.xlu0 %7257
        %7259 = vrot.lane.b32.xlu0 %v7151, 124
        %v7260 = vpop.permute.xlu0 %7259
        %7261 = vrot.lane.b32.xlu0 %v7155, 124
        %v7262 = vpop.permute.xlu0 %7261
        %7263 = vrot.lane.b32.xlu0 %v7157, 124
        %v7264 = vpop.permute.xlu0 %7263
        %v7265 = vsel %vm4030, %v7254, %v7256
        %v7266 = vsel %vm4030, %v7258, %v7260
        %v7267 = vsel %vm4030, %v7262, %v7264
        %7274 = vst [vmem:[#allocation8 + $0xc0] sm:$0xff] %v7265
        %7275 = vst.msk [vmem:[#allocation8 + $0xc8] sm:$0xff] %vm7160, %v7256
        %7276 = vst [vmem:[#allocation8 + $0xd0] sm:$0xff] %v7266
        %7277 = vst.msk [vmem:[#allocation8 + $0xd8] sm:$0xff] %vm7160, %v7260
        %7278 = vst [vmem:[#allocation8 + $0xe0] sm:$0xff] %v7267
        %7279 = vst.msk [vmem:[#allocation8 + $0xe8] sm:$0xff] %vm7160, %v7264
        %v7280 = vld [vmem:[%s8] sm:$0xff]
        %v7281 = vld [vmem:[%s8 + $0x8] sm:$0xff]
        %v7282 = vld [vmem:[%s8 + $0x10] sm:$0xff]
        %v7283 = vld [vmem:[%s8 + $0x18] sm:$0xff]
        %v7284 = vld [vmem:[#allocation8] sm:$0xff]
        %v7285 = vld [vmem:[#allocation8 + $0x10] sm:$0xff]
        %v7286 = vld [vmem:[#allocation8 + $0x20] sm:$0xff]
        %v7287 = vld [vmem:[#allocation8 + $0x30] sm:$0xff]
        %v7288 = vld [vmem:[#allocation8 + $0x40] sm:$0xff]
        %v7289 = vld [vmem:[#allocation8 + $0x50] sm:$0xff]
        %v7290 = vld [vmem:[#allocation8 + $0x60] sm:$0xff]
        %v7291 = vld [vmem:[#allocation8 + $0x70] sm:$0xff]
        %v7292 = vld [vmem:[#allocation8 + $0x80] sm:$0xff]
        %v7293 = vld [vmem:[#allocation8 + $0x90] sm:$0xff]
        %v7294 = vld [vmem:[#allocation8 + $0xa0] sm:$0xff]
        %v7295 = vld [vmem:[#allocation8 + $0xb0] sm:$0xff]
        %v7296 = vld [vmem:[#allocation8 + $0xc0] sm:$0xff]
        %v7297 = vld [vmem:[#allocation8 + $0xd0] sm:$0xff]
        %v7298 = vld [vmem:[#allocation8 + $0xe0] sm:$0xff]
        %s7299 = scalar_lea.vmem %s8, 32
        %v7300 = vld [vmem:[%s7299] sm:$0xff]
        %v7301 = vld [vmem:[%s7299 + $0x8] sm:$0xff]
        %v7302 = vld [vmem:[%s7299 + $0x10] sm:$0xff]
        %v7303 = vld [vmem:[%s7299 + $0x18] sm:$0xff]
        %7319 = vrot.lane.b32.xlu0 %v7284, 116
        %v7320 = vpop.permute.xlu0 %7319
        %7321 = vrot.lane.b32.xlu0 %v7285, 116
        %v7322 = vpop.permute.xlu0 %7321
        %7323 = vrot.lane.b32.xlu0 %v7286, 116
        %v7324 = vpop.permute.xlu0 %7323
        %7325 = vrot.lane.b32.xlu0 %v7287, 116
        %v7326 = vpop.permute.xlu0 %7325
        %7327 = vrot.lane.b32.xlu0 %v7288, 116
        %v7328 = vpop.permute.xlu0 %7327
        %7329 = vrot.lane.b32.xlu0 %v7289, 116
        %v7330 = vpop.permute.xlu0 %7329
        %7331 = vrot.lane.b32.xlu0 %v7290, 116
        %v7332 = vpop.permute.xlu0 %7331
        %7333 = vrot.lane.b32.xlu0 %v7291, 116
        %v7334 = vpop.permute.xlu0 %7333
        %7335 = vrot.lane.b32.xlu0 %v7292, 116
        %v7336 = vpop.permute.xlu0 %7335
        %7337 = vrot.lane.b32.xlu0 %v7293, 116
        %v7338 = vpop.permute.xlu0 %7337
        %7339 = vrot.lane.b32.xlu0 %v7294, 116
        %v7340 = vpop.permute.xlu0 %7339
        %7341 = vrot.lane.b32.xlu0 %v7295, 116
        %v7342 = vpop.permute.xlu0 %7341
        %7343 = vrot.lane.b32.xlu0 %v7296, 116
        %v7344 = vpop.permute.xlu0 %7343
        %7345 = vrot.lane.b32.xlu0 %v7297, 116
        %v7346 = vpop.permute.xlu0 %7345
        %7347 = vrot.lane.b32.xlu0 %v7298, 116
        %v7348 = vpop.permute.xlu0 %7347
        %vm7364 = vcmask 982016
        %v7366 = vsel %vm7364, %v7300, 0
        %v7369 = vsel %vm7364, %v7301, 0
        %v7372 = vsel %vm7364, %v7302, 0
        %v7375 = vsel %vm7364, %v7303, 0
        %7377 = vmatprep.subr.mxu0 0.0
        %7378 = vmatpush1.msra.mxu0 %v7320
        %7379 = vmatprep.subr.mxu0 0.0
        %7380 = vmatpush1.msra.mxu0 %v7322
        %7381 = vmatprep.subr.mxu0 0.0
        %7382 = vmatpush1.msra.mxu0 %v7324
        %7383 = vmatprep.subr.mxu0 0.0
        %7384 = vmatpush1.msra.mxu0 %v7326
        %7385 = vmatprep.subr.mxu0 0.0
        %7386 = vmatpush1.msra.mxu0 %v7328
        %7387 = vmatprep.subr.mxu0 0.0
        %7388 = vmatpush1.msra.mxu0 %v7330
        %7389 = vmatprep.subr.mxu0 0.0
        %7390 = vmatpush1.msra.mxu0 %v7332
        %7391 = vmatprep.subr.mxu0 0.0
        %7392 = vmatpush1.msra.mxu0 %v7334
        %7393 = vmatprep.subr.mxu0 0.0
        %7394 = vmatpush1.msra.mxu0 %v7336
        %7395 = vmatprep.subr.mxu0 0.0
        %7396 = vmatpush1.msra.mxu0 %v7338
        %7397 = vmatprep.subr.mxu0 0.0
        %7398 = vmatpush1.msra.mxu0 %v7340
        %7399 = vmatprep.subr.mxu0 0.0
        %7400 = vmatpush1.msra.mxu0 %v7342
        %7401 = vmatprep.subr.mxu0 0.0
        %7402 = vmatpush1.msra.mxu0 %v7344
        %7403 = vmatprep.subr.mxu0 0.0
        %7404 = vmatpush1.msra.mxu0 %v7346
        %7405 = vmatprep.subr.mxu0 0.0
        %7406 = vmatpush1.msra.mxu0 %v7348
        %7407 = vmatprep.subr.mxu0 0.0
        %7408 = vmatpush1.msra.mxu0 0.0
        %7409 = vmatprep.subr.mxu0 0.0
        %7410 = vmatpush1.msra.mxu0 0.0
        %7411 = vmatprep.subr.mxu0 0.0
        %7412 = vmatpush1.msra.mxu0 0.0
        %7413 = vmatprep.subr.mxu0 0.0
        %7414 = vmatpush1.msra.mxu0 0.0
        %7415 = vmatprep.subr.mxu0 0.0
        %7416 = vmatpush1.msra.mxu0 0.0
        %7417 = vmatprep.subr.mxu0 0.0
        %7418 = vmatpush1.msra.mxu0 0.0
        %7419 = vmatprep.subr.mxu0 0.0
        %7420 = vmatpush1.msra.mxu0 0.0
        %7421 = vmatprep.subr.mxu0 0.0
        %7422 = vmatpush1.msra.mxu0 0.0
        %7423 = vmatprep.subr.mxu0 0.0
        %7424 = vmatpush1.msra.mxu0 0.0
        %7425 = vmatprep.subr.mxu0 0.0
        %7426 = vmatpush1.msra.mxu0 0.0
        %7427 = vmatprep.subr.mxu0 0.0
        %7428 = vmatpush1.msra.mxu0 0.0
        %7429 = vmatprep.subr.mxu0 0.0
        %7430 = vmatpush1.msra.mxu0 0.0
        %7431 = vmatprep.subr.mxu0 0.0
        %7432 = vmatpush1.msra.mxu0 0.0
        %7433 = vmatprep.subr.mxu0 0.0
        %7434 = vmatpush1.msra.mxu0 0.0
        %7435 = vmatprep.subr.mxu0 0.0
        %7436 = vmatpush1.msra.mxu0 0.0
        %7437 = vmatprep.subr.mxu0 0.0
        %7438 = vmatpush1.msra.mxu0 0.0
        %7439 = vmatprep.subr.mxu0 0.0
        %7440 = vmatpush1.msra.mxu0 0.0
        %7441 = vmatprep.mubr.f32.mxu0 0.0
        %7442 = vmatmul.mubr.f32.gmra.mrb[0].mxu0 %v7366
        %v7443 = vpop.f32.mrb[0].mxu0
        %v7444 = vadd.f32 0.0, %v7443
        %v7445 = vpop.f32.mrb[0].mxu0
        %7446 = vmatprep.mubr.f32.mxu0 0.0
        %7447 = vmatmul.mubr.f32.gmra.mrb[0].mxu0 %v7369
        %v7448 = vpop.f32.mrb[0].mxu0
        %v7449 = vadd.f32 0.0, %v7448
        %v7450 = vpop.f32.mrb[0].mxu0
        %7451 = vmatprep.mubr.f32.mxu0 0.0
        %7452 = vmatmul.mubr.f32.gmra.mrb[0].mxu0 %v7372
        %v7453 = vpop.f32.mrb[0].mxu0
        %v7454 = vadd.f32 0.0, %v7453
        %v7455 = vpop.f32.mrb[0].mxu0
        %7456 = vmatprep.mubr.f32.mxu0 0.0
        %7457 = vmatmul.mubr.f32.gmra.mrb[0].mxu0 %v7375
        %v7458 = vpop.f32.mrb[0].mxu0
        %v7459 = vadd.f32 0.0, %v7458
        %v7460 = vpop.f32.mrb[0].mxu0
        %7461 = vdwg.mxu0
        %v7463 = vsel %vm7364, %v7280, 0
        %v7466 = vsel %vm7364, %v7281, 0
        %v7469 = vsel %vm7364, %v7282, 0
        %v7472 = vsel %vm7364, %v7283, 0
        %7474 = vmatprep.subr.mxu0 0.0
        %7475 = vmatpush1.msra.mxu0 %v7284
        %7476 = vmatprep.subr.mxu0 0.0
        %7477 = vmatpush1.msra.mxu0 %v7285
        %7478 = vmatprep.subr.mxu0 0.0
        %7479 = vmatpush1.msra.mxu0 %v7286
        %7480 = vmatprep.subr.mxu0 0.0
        %7481 = vmatpush1.msra.mxu0 %v7287
        %7482 = vmatprep.subr.mxu0 0.0
        %7483 = vmatpush1.msra.mxu0 %v7288
        %7484 = vmatprep.subr.mxu0 0.0
        %7485 = vmatpush1.msra.mxu0 %v7289
        %7486 = vmatprep.subr.mxu0 0.0
        %7487 = vmatpush1.msra.mxu0 %v7290
        %7488 = vmatprep.subr.mxu0 0.0
        %7489 = vmatpush1.msra.mxu0 %v7291
        %7490 = vmatprep.subr.mxu0 0.0
        %7491 = vmatpush1.msra.mxu0 %v7292
        %7492 = vmatprep.subr.mxu0 0.0
        %7493 = vmatpush1.msra.mxu0 %v7293
        %7494 = vmatprep.subr.mxu0 0.0
        %7495 = vmatpush1.msra.mxu0 %v7294
        %7496 = vmatprep.subr.mxu0 0.0
        %7497 = vmatpush1.msra.mxu0 %v7295
        %7498 = vmatprep.subr.mxu0 0.0
        %7499 = vmatpush1.msra.mxu0 %v7296
        %7500 = vmatprep.subr.mxu0 0.0
        %7501 = vmatpush1.msra.mxu0 %v7297
        %7502 = vmatprep.subr.mxu0 0.0
        %7503 = vmatpush1.msra.mxu0 %v7298
        %7504 = vmatprep.subr.mxu0 0.0
        %7505 = vmatpush1.msra.mxu0 0.0
        %7506 = vmatprep.subr.mxu0 0.0
        %7507 = vmatpush1.msra.mxu0 0.0
        %7508 = vmatprep.subr.mxu0 0.0
        %7509 = vmatpush1.msra.mxu0 0.0
        %7510 = vmatprep.subr.mxu0 0.0
        %7511 = vmatpush1.msra.mxu0 0.0
        %7512 = vmatprep.subr.mxu0 0.0
        %7513 = vmatpush1.msra.mxu0 0.0
        %7514 = vmatprep.subr.mxu0 0.0
        %7515 = vmatpush1.msra.mxu0 0.0
        %7516 = vmatprep.subr.mxu0 0.0
        %7517 = vmatpush1.msra.mxu0 0.0
        %7518 = vmatprep.subr.mxu0 0.0
        %7519 = vmatpush1.msra.mxu0 0.0
        %7520 = vmatprep.subr.mxu0 0.0
        %7521 = vmatpush1.msra.mxu0 0.0
        %7522 = vmatprep.subr.mxu0 0.0
        %7523 = vmatpush1.msra.mxu0 0.0
        %7524 = vmatprep.subr.mxu0 0.0
        %7525 = vmatpush1.msra.mxu0 0.0
        %7526 = vmatprep.subr.mxu0 0.0
        %7527 = vmatpush1.msra.mxu0 0.0
        %7528 = vmatprep.subr.mxu0 0.0
        %7529 = vmatpush1.msra.mxu0 0.0
        %7530 = vmatprep.subr.mxu0 0.0
        %7531 = vmatpush1.msra.mxu0 0.0
        %7532 = vmatprep.subr.mxu0 0.0
        %7533 = vmatpush1.msra.mxu0 0.0
        %7534 = vmatprep.subr.mxu0 0.0
        %7535 = vmatpush1.msra.mxu0 0.0
        %7536 = vmatprep.subr.mxu0 0.0
        %7537 = vmatpush1.msra.mxu0 0.0
        %7538 = vmatprep.mubr.f32.mxu0 0.0
        %7539 = vmatmul.mubr.f32.gmra.mrb[0].mxu0 %v7463
        %v7540 = vpop.f32.mrb[0].mxu0
        %v7541 = vadd.f32 %v7444, %v7540
        %v7542 = vpop.f32.mrb[0].mxu0
        %7543 = vmatprep.mubr.f32.mxu0 0.0
        %7544 = vmatmul.mubr.f32.gmra.mrb[0].mxu0 %v7466
        %v7545 = vpop.f32.mrb[0].mxu0
        %v7546 = vadd.f32 %v7449, %v7545
        %v7547 = vpop.f32.mrb[0].mxu0
        %7548 = vmatprep.mubr.f32.mxu0 0.0
        %7549 = vmatmul.mubr.f32.gmra.mrb[0].mxu0 %v7469
        %v7550 = vpop.f32.mrb[0].mxu0
        %v7551 = vadd.f32 %v7454, %v7550
        %v7552 = vpop.f32.mrb[0].mxu0
        %7553 = vmatprep.mubr.f32.mxu0 0.0
        %7554 = vmatmul.mubr.f32.gmra.mrb[0].mxu0 %v7472
        %v7555 = vpop.f32.mrb[0].mxu0
        %v7556 = vadd.f32 %v7459, %v7555
        %v7557 = vpop.f32.mrb[0].mxu0
        %7558 = vdwg.mxu0
        %s7559 = scalar_lea.vmem %s8, 64
        %v7560 = vld [vmem:[%s7559] sm:$0xff]
        %v7561 = vld [vmem:[%s7559 + $0x8] sm:$0xff]
        %v7562 = vld [vmem:[%s7559 + $0x10] sm:$0xff]
        %v7563 = vld [vmem:[%s7559 + $0x18] sm:$0xff]
        %7564 = vrot.lane.b32.xlu0 %v7284, 104
        %v7565 = vpop.permute.xlu0 %7564
        %7566 = vrot.lane.b32.xlu0 %v7285, 104
        %v7567 = vpop.permute.xlu0 %7566
        %7568 = vrot.lane.b32.xlu0 %v7286, 104
        %v7569 = vpop.permute.xlu0 %7568
        %7570 = vrot.lane.b32.xlu0 %v7287, 104
        %v7571 = vpop.permute.xlu0 %7570
        %7572 = vrot.lane.b32.xlu0 %v7288, 104
        %v7573 = vpop.permute.xlu0 %7572
        %7574 = vrot.lane.b32.xlu0 %v7289, 104
        %v7575 = vpop.permute.xlu0 %7574
        %7576 = vrot.lane.b32.xlu0 %v7290, 104
        %v7577 = vpop.permute.xlu0 %7576
        %7578 = vrot.lane.b32.xlu0 %v7291, 104
        %v7579 = vpop.permute.xlu0 %7578
        %7580 = vrot.lane.b32.xlu0 %v7292, 104
        %v7581 = vpop.permute.xlu0 %7580
        %7582 = vrot.lane.b32.xlu0 %v7293, 104
        %v7583 = vpop.permute.xlu0 %7582
        %7584 = vrot.lane.b32.xlu0 %v7294, 104
        %v7585 = vpop.permute.xlu0 %7584
        %7586 = vrot.lane.b32.xlu0 %v7295, 104
        %v7587 = vpop.permute.xlu0 %7586
        %7588 = vrot.lane.b32.xlu0 %v7296, 104
        %v7589 = vpop.permute.xlu0 %7588
        %7590 = vrot.lane.b32.xlu0 %v7297, 104
        %v7591 = vpop.permute.xlu0 %7590
        %7592 = vrot.lane.b32.xlu0 %v7298, 104
        %v7593 = vpop.permute.xlu0 %7592
        %v7610 = vsel %vm7364, %v7560, 0
        %v7613 = vsel %vm7364, %v7561, 0
        %v7616 = vsel %vm7364, %v7562, 0
        %v7619 = vsel %vm7364, %v7563, 0
        %7621 = vmatprep.subr.mxu0 0.0
        %7622 = vmatpush1.msra.mxu0 %v7565
        %7623 = vmatprep.subr.mxu0 0.0
        %7624 = vmatpush1.msra.mxu0 %v7567
        %7625 = vmatprep.subr.mxu0 0.0
        %7626 = vmatpush1.msra.mxu0 %v7569
        %7627 = vmatprep.subr.mxu0 0.0
        %7628 = vmatpush1.msra.mxu0 %v7571
        %7629 = vmatprep.subr.mxu0 0.0
        %7630 = vmatpush1.msra.mxu0 %v7573
        %7631 = vmatprep.subr.mxu0 0.0
        %7632 = vmatpush1.msra.mxu0 %v7575
        %7633 = vmatprep.subr.mxu0 0.0
        %7634 = vmatpush1.msra.mxu0 %v7577
        %7635 = vmatprep.subr.mxu0 0.0
        %7636 = vmatpush1.msra.mxu0 %v7579
        %7637 = vmatprep.subr.mxu0 0.0
        %7638 = vmatpush1.msra.mxu0 %v7581
        %7639 = vmatprep.subr.mxu0 0.0
        %7640 = vmatpush1.msra.mxu0 %v7583
        %7641 = vmatprep.subr.mxu0 0.0
        %7642 = vmatpush1.msra.mxu0 %v7585
        %7643 = vmatprep.subr.mxu0 0.0
        %7644 = vmatpush1.msra.mxu0 %v7587
        %7645 = vmatprep.subr.mxu0 0.0
        %7646 = vmatpush1.msra.mxu0 %v7589
        %7647 = vmatprep.subr.mxu0 0.0
        %7648 = vmatpush1.msra.mxu0 %v7591
        %7649 = vmatprep.subr.mxu0 0.0
        %7650 = vmatpush1.msra.mxu0 %v7593
        %7651 = vmatprep.subr.mxu0 0.0
        %7652 = vmatpush1.msra.mxu0 0.0
        %7653 = vmatprep.subr.mxu0 0.0
        %7654 = vmatpush1.msra.mxu0 0.0
        %7655 = vmatprep.subr.mxu0 0.0
        %7656 = vmatpush1.msra.mxu0 0.0
        %7657 = vmatprep.subr.mxu0 0.0
        %7658 = vmatpush1.msra.mxu0 0.0
        %7659 = vmatprep.subr.mxu0 0.0
        %7660 = vmatpush1.msra.mxu0 0.0
        %7661 = vmatprep.subr.mxu0 0.0
        %7662 = vmatpush1.msra.mxu0 0.0
        %7663 = vmatprep.subr.mxu0 0.0
        %7664 = vmatpush1.msra.mxu0 0.0
        %7665 = vmatprep.subr.mxu0 0.0
        %7666 = vmatpush1.msra.mxu0 0.0
        %7667 = vmatprep.subr.mxu0 0.0
        %7668 = vmatpush1.msra.mxu0 0.0
        %7669 = vmatprep.subr.mxu0 0.0
        %7670 = vmatpush1.msra.mxu0 0.0
        %7671 = vmatprep.subr.mxu0 0.0
        %7672 = vmatpush1.msra.mxu0 0.0
        %7673 = vmatprep.subr.mxu0 0.0
        %7674 = vmatpush1.msra.mxu0 0.0
        %7675 = vmatprep.subr.mxu0 0.0
        %7676 = vmatpush1.msra.mxu0 0.0
        %7677 = vmatprep.subr.mxu0 0.0
        %7678 = vmatpush1.msra.mxu0 0.0
        %7679 = vmatprep.subr.mxu0 0.0
        %7680 = vmatpush1.msra.mxu0 0.0
        %7681 = vmatprep.subr.mxu0 0.0
        %7682 = vmatpush1.msra.mxu0 0.0
        %7683 = vmatprep.subr.mxu0 0.0
        %7684 = vmatpush1.msra.mxu0 0.0
        %7685 = vmatprep.mubr.f32.mxu0 0.0
        %7686 = vmatmul.mubr.f32.gmra.mrb[0].mxu0 %v7610
        %v7687 = vpop.f32.mrb[0].mxu0
        %v7688 = vadd.f32 0.0, %v7687
        %v7689 = vpop.f32.mrb[0].mxu0
        %7690 = vmatprep.mubr.f32.mxu0 0.0
        %7691 = vmatmul.mubr.f32.gmra.mrb[0].mxu0 %v7613
        %v7692 = vpop.f32.mrb[0].mxu0
        %v7693 = vadd.f32 0.0, %v7692
        %v7694 = vpop.f32.mrb[0].mxu0
        %7695 = vmatprep.mubr.f32.mxu0 0.0
        %7696 = vmatmul.mubr.f32.gmra.mrb[0].mxu0 %v7616
        %v7697 = vpop.f32.mrb[0].mxu0
        %v7698 = vadd.f32 0.0, %v7697
        %v7699 = vpop.f32.mrb[0].mxu0
        %7700 = vmatprep.mubr.f32.mxu0 0.0
        %7701 = vmatmul.mubr.f32.gmra.mrb[0].mxu0 %v7619
        %v7702 = vpop.f32.mrb[0].mxu0
        %v7703 = vadd.f32 0.0, %v7702
        %v7704 = vpop.f32.mrb[0].mxu0
        %7705 = vdwg.mxu0
        %v7706 = vadd.f32 %v7541, %v7688
        %v7707 = vadd.f32 %v7546, %v7693
        %v7708 = vadd.f32 %v7551, %v7698
        %v7709 = vadd.f32 %v7556, %v7703
        %s7710 = scalar_lea.vmem %s8, 96
        %v7711 = vld [vmem:[%s7710] sm:$0xff]
        %v7712 = vld [vmem:[%s7710 + $0x8] sm:$0xff]
        %v7713 = vld [vmem:[%s7710 + $0x10] sm:$0xff]
        %v7714 = vld [vmem:[%s7710 + $0x18] sm:$0xff]
        %v7715 = vld [vmem:[#allocation8] sm:$0xff]
        %v7716 = vld [vmem:[#allocation8 + $0x8] sm:$0xff]
        %v7717 = vld [vmem:[#allocation8 + $0x10] sm:$0xff]
        %v7718 = vld [vmem:[#allocation8 + $0x18] sm:$0xff]
        %v7719 = vld [vmem:[#allocation8 + $0x20] sm:$0xff]
        %v7720 = vld [vmem:[#allocation8 + $0x28] sm:$0xff]
        %v7721 = vld [vmem:[#allocation8 + $0x30] sm:$0xff]
        %v7722 = vld [vmem:[#allocation8 + $0x38] sm:$0xff]
        %v7723 = vld [vmem:[#allocation8 + $0x40] sm:$0xff]
        %v7724 = vld [vmem:[#allocation8 + $0x48] sm:$0xff]
        %v7725 = vld [vmem:[#allocation8 + $0x50] sm:$0xff]
        %v7726 = vld [vmem:[#allocation8 + $0x58] sm:$0xff]
        %v7727 = vld [vmem:[#allocation8 + $0x60] sm:$0xff]
        %v7728 = vld [vmem:[#allocation8 + $0x68] sm:$0xff]
        %v7729 = vld [vmem:[#allocation8 + $0x70] sm:$0xff]
        %v7730 = vld [vmem:[#allocation8 + $0x78] sm:$0xff]
        %v7731 = vld [vmem:[#allocation8 + $0x80] sm:$0xff]
        %v7732 = vld [vmem:[#allocation8 + $0x88] sm:$0xff]
        %v7733 = vld [vmem:[#allocation8 + $0x90] sm:$0xff]
        %v7734 = vld [vmem:[#allocation8 + $0x98] sm:$0xff]
        %v7735 = vld [vmem:[#allocation8 + $0xa0] sm:$0xff]
        %v7736 = vld [vmem:[#allocation8 + $0xa8] sm:$0xff]
        %v7737 = vld [vmem:[#allocation8 + $0xb0] sm:$0xff]
        %v7738 = vld [vmem:[#allocation8 + $0xb8] sm:$0xff]
        %v7739 = vld [vmem:[#allocation8 + $0xc0] sm:$0xff]
        %v7740 = vld [vmem:[#allocation8 + $0xc8] sm:$0xff]
        %v7741 = vld [vmem:[#allocation8 + $0xd0] sm:$0xff]
        %v7742 = vld [vmem:[#allocation8 + $0xd8] sm:$0xff]
        %v7743 = vld [vmem:[#allocation8 + $0xe0] sm:$0xff]
        %v7744 = vld [vmem:[#allocation8 + $0xe8] sm:$0xff]
        %7775 = vrot.lane.b32.xlu0 %v7715, 92
        %v7776 = vpop.permute.xlu0 %7775
        %7777 = vrot.lane.b32.xlu0 %v7716, 92
        %v7778 = vpop.permute.xlu0 %7777
        %7779 = vrot.lane.b32.xlu0 %v7717, 92
        %v7780 = vpop.permute.xlu0 %7779
        %7781 = vrot.lane.b32.xlu0 %v7718, 92
        %v7782 = vpop.permute.xlu0 %7781
        %7783 = vrot.lane.b32.xlu0 %v7719, 92
        %v7784 = vpop.permute.xlu0 %7783
        %7785 = vrot.lane.b32.xlu0 %v7720, 92
        %v7786 = vpop.permute.xlu0 %7785
        %7787 = vrot.lane.b32.xlu0 %v7721, 92
        %v7788 = vpop.permute.xlu0 %7787
        %7789 = vrot.lane.b32.xlu0 %v7722, 92
        %v7790 = vpop.permute.xlu0 %7789
        %7791 = vrot.lane.b32.xlu0 %v7723, 92
        %v7792 = vpop.permute.xlu0 %7791
        %7793 = vrot.lane.b32.xlu0 %v7724, 92
        %v7794 = vpop.permute.xlu0 %7793
        %7795 = vrot.lane.b32.xlu0 %v7725, 92
        %v7796 = vpop.permute.xlu0 %7795
        %7797 = vrot.lane.b32.xlu0 %v7726, 92
        %v7798 = vpop.permute.xlu0 %7797
        %7799 = vrot.lane.b32.xlu0 %v7727, 92
        %v7800 = vpop.permute.xlu0 %7799
        %7801 = vrot.lane.b32.xlu0 %v7728, 92
        %v7802 = vpop.permute.xlu0 %7801
        %7803 = vrot.lane.b32.xlu0 %v7729, 92
        %v7804 = vpop.permute.xlu0 %7803
        %7805 = vrot.lane.b32.xlu0 %v7730, 92
        %v7806 = vpop.permute.xlu0 %7805
        %7807 = vrot.lane.b32.xlu0 %v7731, 92
        %v7808 = vpop.permute.xlu0 %7807
        %7809 = vrot.lane.b32.xlu0 %v7732, 92
        %v7810 = vpop.permute.xlu0 %7809
        %7811 = vrot.lane.b32.xlu0 %v7733, 92
        %v7812 = vpop.permute.xlu0 %7811
        %7813 = vrot.lane.b32.xlu0 %v7734, 92
        %v7814 = vpop.permute.xlu0 %7813
        %7815 = vrot.lane.b32.xlu0 %v7735, 92
        %v7816 = vpop.permute.xlu0 %7815
        %7817 = vrot.lane.b32.xlu0 %v7736, 92
        %v7818 = vpop.permute.xlu0 %7817
        %7819 = vrot.lane.b32.xlu0 %v7737, 92
        %v7820 = vpop.permute.xlu0 %7819
        %7821 = vrot.lane.b32.xlu0 %v7738, 92
        %v7822 = vpop.permute.xlu0 %7821
        %7823 = vrot.lane.b32.xlu0 %v7739, 92
        %v7824 = vpop.permute.xlu0 %7823
        %7825 = vrot.lane.b32.xlu0 %v7740, 92
        %v7826 = vpop.permute.xlu0 %7825
        %7827 = vrot.lane.b32.xlu0 %v7741, 92
        %v7828 = vpop.permute.xlu0 %7827
        %7829 = vrot.lane.b32.xlu0 %v7742, 92
        %v7830 = vpop.permute.xlu0 %7829
        %7831 = vrot.lane.b32.xlu0 %v7743, 92
        %v7832 = vpop.permute.xlu0 %7831
        %7833 = vrot.lane.b32.xlu0 %v7744, 92
        %v7834 = vpop.permute.xlu0 %7833
        %vm7835 = vcmask 752640
        %v7836 = vsel %vm7835, %v7776, %v7778
        %v7837 = vsel %vm7835, %v7780, %v7782
        %v7838 = vsel %vm7835, %v7784, %v7786
        %v7839 = vsel %vm7835, %v7788, %v7790
        %v7840 = vsel %vm7835, %v7792, %v7794
        %v7841 = vsel %vm7835, %v7796, %v7798
        %v7842 = vsel %vm7835, %v7800, %v7802
        %v7843 = vsel %vm7835, %v7804, %v7806
        %v7844 = vsel %vm7835, %v7808, %v7810
        %v7845 = vsel %vm7835, %v7812, %v7814
        %v7846 = vsel %vm7835, %v7816, %v7818
        %v7847 = vsel %vm7835, %v7820, %v7822
        %v7848 = vsel %vm7835, %v7824, %v7826
        %v7849 = vsel %vm7835, %v7828, %v7830
        %v7850 = vsel %vm7835, %v7832, %v7834
        %v7867 = vsel %vm7364, %v7711, 0
        %v7870 = vsel %vm7364, %v7712, 0
        %v7873 = vsel %vm7364, %v7713, 0
        %v7876 = vsel %vm7364, %v7714, 0
        %7878 = vmatprep.subr.mxu0 0.0
        %7879 = vmatpush1.msra.mxu0 %v7836
        %7880 = vmatprep.subr.mxu0 0.0
        %7881 = vmatpush1.msra.mxu0 %v7837
        %7882 = vmatprep.subr.mxu0 0.0
        %7883 = vmatpush1.msra.mxu0 %v7838
        %7884 = vmatprep.subr.mxu0 0.0
        %7885 = vmatpush1.msra.mxu0 %v7839
        %7886 = vmatprep.subr.mxu0 0.0
        %7887 = vmatpush1.msra.mxu0 %v7840
        %7888 = vmatprep.subr.mxu0 0.0
        %7889 = vmatpush1.msra.mxu0 %v7841
        %7890 = vmatprep.subr.mxu0 0.0
        %7891 = vmatpush1.msra.mxu0 %v7842
        %7892 = vmatprep.subr.mxu0 0.0
        %7893 = vmatpush1.msra.mxu0 %v7843
        %7894 = vmatprep.subr.mxu0 0.0
        %7895 = vmatpush1.msra.mxu0 %v7844
        %7896 = vmatprep.subr.mxu0 0.0
        %7897 = vmatpush1.msra.mxu0 %v7845
        %7898 = vmatprep.subr.mxu0 0.0
        %7899 = vmatpush1.msra.mxu0 %v7846
        %7900 = vmatprep.subr.mxu0 0.0
        %7901 = vmatpush1.msra.mxu0 %v7847
        %7902 = vmatprep.subr.mxu0 0.0
        %7903 = vmatpush1.msra.mxu0 %v7848
        %7904 = vmatprep.subr.mxu0 0.0
        %7905 = vmatpush1.msra.mxu0 %v7849
        %7906 = vmatprep.subr.mxu0 0.0
        %7907 = vmatpush1.msra.mxu0 %v7850
        %7908 = vmatprep.subr.mxu0 0.0
        %7909 = vmatpush1.msra.mxu0 0.0
        %7910 = vmatprep.subr.mxu0 0.0
        %7911 = vmatpush1.msra.mxu0 0.0
        %7912 = vmatprep.subr.mxu0 0.0
        %7913 = vmatpush1.msra.mxu0 0.0
        %7914 = vmatprep.subr.mxu0 0.0
        %7915 = vmatpush1.msra.mxu0 0.0
        %7916 = vmatprep.subr.mxu0 0.0
        %7917 = vmatpush1.msra.mxu0 0.0
        %7918 = vmatprep.subr.mxu0 0.0
        %7919 = vmatpush1.msra.mxu0 0.0
        %7920 = vmatprep.subr.mxu0 0.0
        %7921 = vmatpush1.msra.mxu0 0.0
        %7922 = vmatprep.subr.mxu0 0.0
        %7923 = vmatpush1.msra.mxu0 0.0
        %7924 = vmatprep.subr.mxu0 0.0
        %7925 = vmatpush1.msra.mxu0 0.0
        %7926 = vmatprep.subr.mxu0 0.0
        %7927 = vmatpush1.msra.mxu0 0.0
        %7928 = vmatprep.subr.mxu0 0.0
        %7929 = vmatpush1.msra.mxu0 0.0
        %7930 = vmatprep.subr.mxu0 0.0
        %7931 = vmatpush1.msra.mxu0 0.0
        %7932 = vmatprep.subr.mxu0 0.0
        %7933 = vmatpush1.msra.mxu0 0.0
        %7934 = vmatprep.subr.mxu0 0.0
        %7935 = vmatpush1.msra.mxu0 0.0
        %7936 = vmatprep.subr.mxu0 0.0
        %7937 = vmatpush1.msra.mxu0 0.0
        %7938 = vmatprep.subr.mxu0 0.0
        %7939 = vmatpush1.msra.mxu0 0.0
        %7940 = vmatprep.subr.mxu0 0.0
        %7941 = vmatpush1.msra.mxu0 0.0
        %7942 = vmatprep.mubr.f32.mxu0 0.0
        %7943 = vmatmul.mubr.f32.gmra.mrb[0].mxu0 %v7867
        %v7944 = vpop.f32.mrb[0].mxu0
        %v7945 = vadd.f32 0.0, %v7944
        %v7946 = vpop.f32.mrb[0].mxu0
        %7947 = vmatprep.mubr.f32.mxu0 0.0
        %7948 = vmatmul.mubr.f32.gmra.mrb[0].mxu0 %v7870
        %v7949 = vpop.f32.mrb[0].mxu0
        %v7950 = vadd.f32 0.0, %v7949
        %v7951 = vpop.f32.mrb[0].mxu0
        %7952 = vmatprep.mubr.f32.mxu0 0.0
        %7953 = vmatmul.mubr.f32.gmra.mrb[0].mxu0 %v7873
        %v7954 = vpop.f32.mrb[0].mxu0
        %v7955 = vadd.f32 0.0, %v7954
        %v7956 = vpop.f32.mrb[0].mxu0
        %7957 = vmatprep.mubr.f32.mxu0 0.0
        %7958 = vmatmul.mubr.f32.gmra.mrb[0].mxu0 %v7876
        %v7959 = vpop.f32.mrb[0].mxu0
        %v7960 = vadd.f32 0.0, %v7959
        %v7961 = vpop.f32.mrb[0].mxu0
        %7962 = vdwg.mxu0
        %v7963 = vadd.f32 %v7706, %v7945
        %v7964 = vadd.f32 %v7707, %v7950
        %v7965 = vadd.f32 %v7708, %v7955
        %v7966 = vadd.f32 %v7709, %v7960
        %s7967 = scalar_lea.vmem %s8, 128
        %v7968 = vld [vmem:[%s7967] sm:$0xff]
        %v7969 = vld [vmem:[%s7967 + $0x8] sm:$0xff]
        %v7970 = vld [vmem:[%s7967 + $0x10] sm:$0xff]
        %v7971 = vld [vmem:[%s7967 + $0x18] sm:$0xff]
        %7972 = vrot.lane.b32.xlu0 %v7715, 80
        %v7973 = vpop.permute.xlu0 %7972
        %7974 = vrot.lane.b32.xlu0 %v7716, 80
        %v7975 = vpop.permute.xlu0 %7974
        %7976 = vrot.lane.b32.xlu0 %v7717, 80
        %v7977 = vpop.permute.xlu0 %7976
        %7978 = vrot.lane.b32.xlu0 %v7718, 80
        %v7979 = vpop.permute.xlu0 %7978
        %7980 = vrot.lane.b32.xlu0 %v7719, 80
        %v7981 = vpop.permute.xlu0 %7980
        %7982 = vrot.lane.b32.xlu0 %v7720, 80
        %v7983 = vpop.permute.xlu0 %7982
        %7984 = vrot.lane.b32.xlu0 %v7721, 80
        %v7985 = vpop.permute.xlu0 %7984
        %7986 = vrot.lane.b32.xlu0 %v7722, 80
        %v7987 = vpop.permute.xlu0 %7986
        %7988 = vrot.lane.b32.xlu0 %v7723, 80
        %v7989 = vpop.permute.xlu0 %7988
        %7990 = vrot.lane.b32.xlu0 %v7724, 80
        %v7991 = vpop.permute.xlu0 %7990
        %7992 = vrot.lane.b32.xlu0 %v7725, 80
        %v7993 = vpop.permute.xlu0 %7992
        %7994 = vrot.lane.b32.xlu0 %v7726, 80
        %v7995 = vpop.permute.xlu0 %7994
        %7996 = vrot.lane.b32.xlu0 %v7727, 80
        %v7997 = vpop.permute.xlu0 %7996
        %7998 = vrot.lane.b32.xlu0 %v7728, 80
        %v7999 = vpop.permute.xlu0 %7998
        %8000 = vrot.lane.b32.xlu0 %v7729, 80
        %v8001 = vpop.permute.xlu0 %8000
        %8002 = vrot.lane.b32.xlu0 %v7730, 80
        %v8003 = vpop.permute.xlu0 %8002
        %8004 = vrot.lane.b32.xlu0 %v7731, 80
        %v8005 = vpop.permute.xlu0 %8004
        %8006 = vrot.lane.b32.xlu0 %v7732, 80
        %v8007 = vpop.permute.xlu0 %8006
        %8008 = vrot.lane.b32.xlu0 %v7733, 80
        %v8009 = vpop.permute.xlu0 %8008
        %8010 = vrot.lane.b32.xlu0 %v7734, 80
        %v8011 = vpop.permute.xlu0 %8010
        %8012 = vrot.lane.b32.xlu0 %v7735, 80
        %v8013 = vpop.permute.xlu0 %8012
        %8014 = vrot.lane.b32.xlu0 %v7736, 80
        %v8015 = vpop.permute.xlu0 %8014
        %8016 = vrot.lane.b32.xlu0 %v7737, 80
        %v8017 = vpop.permute.xlu0 %8016
        %8018 = vrot.lane.b32.xlu0 %v7738, 80
        %v8019 = vpop.permute.xlu0 %8018
        %8020 = vrot.lane.b32.xlu0 %v7739, 80
        %v8021 = vpop.permute.xlu0 %8020
        %8022 = vrot.lane.b32.xlu0 %v7740, 80
        %v8023 = vpop.permute.xlu0 %8022
        %8024 = vrot.lane.b32.xlu0 %v7741, 80
        %v8025 = vpop.permute.xlu0 %8024
        %8026 = vrot.lane.b32.xlu0 %v7742, 80
        %v8027 = vpop.permute.xlu0 %8026
        %8028 = vrot.lane.b32.xlu0 %v7743, 80
        %v8029 = vpop.permute.xlu0 %8028
        %8030 = vrot.lane.b32.xlu0 %v7744, 80
        %v8031 = vpop.permute.xlu0 %8030
        %v8032 = vsel %vm4540, %v7973, %v7975
        %v8033 = vsel %vm4540, %v7977, %v7979
        %v8034 = vsel %vm4540, %v7981, %v7983
        %v8035 = vsel %vm4540, %v7985, %v7987
        %v8036 = vsel %vm4540, %v7989, %v7991
        %v8037 = vsel %vm4540, %v7993, %v7995
        %v8038 = vsel %vm4540, %v7997, %v7999
        %v8039 = vsel %vm4540, %v8001, %v8003
        %v8040 = vsel %vm4540, %v8005, %v8007
        %v8041 = vsel %vm4540, %v8009, %v8011
        %v8042 = vsel %vm4540, %v8013, %v8015
        %v8043 = vsel %vm4540, %v8017, %v8019
        %v8044 = vsel %vm4540, %v8021, %v8023
        %v8045 = vsel %vm4540, %v8025, %v8027
        %v8046 = vsel %vm4540, %v8029, %v8031
        %v8063 = vsel %vm7364, %v7968, 0
        %v8066 = vsel %vm7364, %v7969, 0
        %v8069 = vsel %vm7364, %v7970, 0
        %v8072 = vsel %vm7364, %v7971, 0
        %8074 = vmatprep.subr.mxu0 0.0
        %8075 = vmatpush1.msra.mxu0 %v8032
        %8076 = vmatprep.subr.mxu0 0.0
        %8077 = vmatpush1.msra.mxu0 %v8033
        %8078 = vmatprep.subr.mxu0 0.0
        %8079 = vmatpush1.msra.mxu0 %v8034
        %8080 = vmatprep.subr.mxu0 0.0
        %8081 = vmatpush1.msra.mxu0 %v8035
        %8082 = vmatprep.subr.mxu0 0.0
        %8083 = vmatpush1.msra.mxu0 %v8036
        %8084 = vmatprep.subr.mxu0 0.0
        %8085 = vmatpush1.msra.mxu0 %v8037
        %8086 = vmatprep.subr.mxu0 0.0
        %8087 = vmatpush1.msra.mxu0 %v8038
        %8088 = vmatprep.subr.mxu0 0.0
        %8089 = vmatpush1.msra.mxu0 %v8039
        %8090 = vmatprep.subr.mxu0 0.0
        %8091 = vmatpush1.msra.mxu0 %v8040
        %8092 = vmatprep.subr.mxu0 0.0
        %8093 = vmatpush1.msra.mxu0 %v8041
        %8094 = vmatprep.subr.mxu0 0.0
        %8095 = vmatpush1.msra.mxu0 %v8042
        %8096 = vmatprep.subr.mxu0 0.0
        %8097 = vmatpush1.msra.mxu0 %v8043
        %8098 = vmatprep.subr.mxu0 0.0
        %8099 = vmatpush1.msra.mxu0 %v8044
        %8100 = vmatprep.subr.mxu0 0.0
        %8101 = vmatpush1.msra.mxu0 %v8045
        %8102 = vmatprep.subr.mxu0 0.0
        %8103 = vmatpush1.msra.mxu0 %v8046
        %8104 = vmatprep.subr.mxu0 0.0
        %8105 = vmatpush1.msra.mxu0 0.0
        %8106 = vmatprep.subr.mxu0 0.0
        %8107 = vmatpush1.msra.mxu0 0.0
        %8108 = vmatprep.subr.mxu0 0.0
        %8109 = vmatpush1.msra.mxu0 0.0
        %8110 = vmatprep.subr.mxu0 0.0
        %8111 = vmatpush1.msra.mxu0 0.0
        %8112 = vmatprep.subr.mxu0 0.0
        %8113 = vmatpush1.msra.mxu0 0.0
        %8114 = vmatprep.subr.mxu0 0.0
        %8115 = vmatpush1.msra.mxu0 0.0
        %8116 = vmatprep.subr.mxu0 0.0
        %8117 = vmatpush1.msra.mxu0 0.0
        %8118 = vmatprep.subr.mxu0 0.0
        %8119 = vmatpush1.msra.mxu0 0.0
        %8120 = vmatprep.subr.mxu0 0.0
        %8121 = vmatpush1.msra.mxu0 0.0
        %8122 = vmatprep.subr.mxu0 0.0
        %8123 = vmatpush1.msra.mxu0 0.0
        %8124 = vmatprep.subr.mxu0 0.0
        %8125 = vmatpush1.msra.mxu0 0.0
        %8126 = vmatprep.subr.mxu0 0.0
        %8127 = vmatpush1.msra.mxu0 0.0
        %8128 = vmatprep.subr.mxu0 0.0
        %8129 = vmatpush1.msra.mxu0 0.0
        %8130 = vmatprep.subr.mxu0 0.0
        %8131 = vmatpush1.msra.mxu0 0.0
        %8132 = vmatprep.subr.mxu0 0.0
        %8133 = vmatpush1.msra.mxu0 0.0
        %8134 = vmatprep.subr.mxu0 0.0
        %8135 = vmatpush1.msra.mxu0 0.0
        %8136 = vmatprep.subr.mxu0 0.0
        %8137 = vmatpush1.msra.mxu0 0.0
        %8138 = vmatprep.mubr.f32.mxu0 0.0
        %8139 = vmatmul.mubr.f32.gmra.mrb[0].mxu0 %v8063
        %v8140 = vpop.f32.mrb[0].mxu0
        %v8141 = vadd.f32 0.0, %v8140
        %v8142 = vpop.f32.mrb[0].mxu0
        %8143 = vmatprep.mubr.f32.mxu0 0.0
        %8144 = vmatmul.mubr.f32.gmra.mrb[0].mxu0 %v8066
        %v8145 = vpop.f32.mrb[0].mxu0
        %v8146 = vadd.f32 0.0, %v8145
        %v8147 = vpop.f32.mrb[0].mxu0
        %8148 = vmatprep.mubr.f32.mxu0 0.0
        %8149 = vmatmul.mubr.f32.gmra.mrb[0].mxu0 %v8069
        %v8150 = vpop.f32.mrb[0].mxu0
        %v8151 = vadd.f32 0.0, %v8150
        %v8152 = vpop.f32.mrb[0].mxu0
        %8153 = vmatprep.mubr.f32.mxu0 0.0
        %8154 = vmatmul.mubr.f32.gmra.mrb[0].mxu0 %v8072
        %v8155 = vpop.f32.mrb[0].mxu0
        %v8156 = vadd.f32 0.0, %v8155
        %v8157 = vpop.f32.mrb[0].mxu0
        %8158 = vdwg.mxu0
        %v8159 = vadd.f32 %v7963, %v8141
        %v8160 = vadd.f32 %v7964, %v8146
        %v8161 = vadd.f32 %v7965, %v8151
        %v8162 = vadd.f32 %v7966, %v8156
        %v8163 = vld [vmem:[%s9] sm:$0xff]
        %v8164 = vld [vmem:[%s9 + $0x8] sm:$0xff]
        %v8165 = vld [vmem:[%s9 + $0x10] sm:$0xff]
        %v8166 = vld [vmem:[%s9 + $0x18] sm:$0xff]
        %8168 = vset.pattern.permute.xlu0 0
        %8169 = vperm.xlu0 %8168, %v8163
        %v8170 = vpop.permute.xlu0 %8169
        %8173 = vset.pattern.permute.xlu0 0
        %8174 = vperm.xlu0 %8173, %v8164
        %v8175 = vpop.permute.xlu0 %8174
        %8178 = vset.pattern.permute.xlu0 0
        %8179 = vperm.xlu0 %8178, %v8165
        %v8180 = vpop.permute.xlu0 %8179
        %8183 = vset.pattern.permute.xlu0 0
        %8184 = vperm.xlu0 %8183, %v8166
        %v8185 = vpop.permute.xlu0 %8184
        %v8187 = vadd.f32 %v8159, %v8170
        %v8188 = vadd.f32 %v8160, %v8175
        %v8189 = vadd.f32 %v8161, %v8180
        %v8190 = vadd.f32 %v8162, %v8185
        %v8191 = vmax.f32 %v8187, 0.0
        %v8192 = vmax.f32 %v8188, 0.0
        %v8193 = vmax.f32 %v8189, 0.0
        %v8194 = vmax.f32 %v8190, 0.0
        %8199 = vrot.lane.b32.xlu0 %v8191, 127
        %v8200 = vpop.permute.xlu0 %8199
        %8201 = vrot.lane.b32.xlu0 %v8192, 127
        %v8202 = vpop.permute.xlu0 %8201
        %8203 = vrot.lane.b32.xlu0 %v8193, 127
        %v8204 = vpop.permute.xlu0 %8203
        %8205 = vrot.lane.b32.xlu0 %v8194, 127
        %v8206 = vpop.permute.xlu0 %8205
        %v8211 = vmax.f32 %v8191, %v8200
        %v8212 = vmax.f32 %v8192, %v8202
        %v8213 = vmax.f32 %v8193, %v8204
        %v8214 = vmax.f32 %v8194, %v8206
        %8219 = vrot.lane.b32.xlu0 %v8211, 116
        %v8220 = vpop.permute.xlu0 %8219
        %8221 = vrot.lane.b32.xlu0 %v8212, 116
        %v8222 = vpop.permute.xlu0 %8221
        %8223 = vrot.lane.b32.xlu0 %v8213, 116
        %v8224 = vpop.permute.xlu0 %8223
        %8225 = vrot.lane.b32.xlu0 %v8214, 116
        %v8226 = vpop.permute.xlu0 %8225
        %v8231 = vmax.f32 %v8211, %v8220
        %v8232 = vmax.f32 %v8212, %v8222
        %v8233 = vmax.f32 %v8213, %v8224
        %v8234 = vmax.f32 %v8214, %v8226
        %v8235 = vld [vmem:[%s10] sm:$0xff]
        %v8236 = vld [vmem:[%s10 + $0x8] sm:$0xff]
        %v8237 = vld [vmem:[%s10 + $0x10] sm:$0xff]
        %v8238 = vld [vmem:[%s10 + $0x18] sm:$0xff]
        %v8239 = vld [vmem:[%s10 + $0x20] sm:$0xff]
        %v8240 = vld [vmem:[%s10 + $0x28] sm:$0xff]
        %v8241 = vld [vmem:[%s10 + $0x30] sm:$0xff]
        %v8242 = vld [vmem:[%s10 + $0x38] sm:$0xff]
        %v8243 = vld [vmem:[%s10 + $0x40] sm:$0xff]
        %v8244 = vld [vmem:[%s10 + $0x48] sm:$0xff]
        %v8245 = vld [vmem:[%s10 + $0x50] sm:$0xff]
        %v8246 = vld [vmem:[%s10 + $0x58] sm:$0xff]
        %v8247 = vld [vmem:[%s10 + $0x60] sm:$0xff]
        %v8248 = vld [vmem:[%s10 + $0x68] sm:$0xff]
        %v8249 = vld [vmem:[%s10 + $0x70] sm:$0xff]
        %v8250 = vld [vmem:[%s10 + $0x78] sm:$0xff]
        %v8251 = vld [vmem:[%s10 + $0x80] sm:$0xff]
        %v8252 = vld [vmem:[%s10 + $0x88] sm:$0xff]
        %v8253 = vld [vmem:[%s10 + $0x90] sm:$0xff]
        %v8254 = vld [vmem:[%s10 + $0x98] sm:$0xff]
        %v8256 = vsel %vm4540, %v8231, 0
        %v8259 = vsel %vm4540, %v8232, 0
        %v8262 = vsel %vm4540, %v8233, 0
        %v8265 = vsel %vm4540, %v8234, 0
        %8267 = vmatprep.subr.mxu0 %v8236
        %8268 = vmatpush1.msra.mxu0 %v8235
        %8269 = vmatprep.subr.mxu0 %v8238
        %8270 = vmatpush1.msra.mxu0 %v8237
        %8271 = vmatprep.subr.mxu0 %v8240
        %8272 = vmatpush1.msra.mxu0 %v8239
        %8273 = vmatprep.subr.mxu0 %v8242
        %8274 = vmatpush1.msra.mxu0 %v8241
        %8275 = vmatprep.subr.mxu0 %v8244
        %8276 = vmatpush1.msra.mxu0 %v8243
        %8277 = vmatprep.subr.mxu0 %v8246
        %8278 = vmatpush1.msra.mxu0 %v8245
        %8279 = vmatprep.subr.mxu0 %v8248
        %8280 = vmatpush1.msra.mxu0 %v8247
        %8281 = vmatprep.subr.mxu0 %v8250
        %8282 = vmatpush1.msra.mxu0 %v8249
        %8283 = vmatprep.subr.mxu0 %v8252
        %8284 = vmatpush1.msra.mxu0 %v8251
        %8285 = vmatprep.subr.mxu0 %v8254
        %8286 = vmatpush1.msra.mxu0 %v8253
        %8287 = vmatprep.subr.mxu0 0.0
        %8288 = vmatpush1.msra.mxu0 0.0
        %8289 = vmatprep.subr.mxu0 0.0
        %8290 = vmatpush1.msra.mxu0 0.0
        %8291 = vmatprep.subr.mxu0 0.0
        %8292 = vmatpush1.msra.mxu0 0.0
        %8293 = vmatprep.subr.mxu0 0.0
        %8294 = vmatpush1.msra.mxu0 0.0
        %8295 = vmatprep.subr.mxu0 0.0
        %8296 = vmatpush1.msra.mxu0 0.0
        %8297 = vmatprep.subr.mxu0 0.0
        %8298 = vmatpush1.msra.mxu0 0.0
        %8299 = vmatprep.subr.mxu0 0.0
        %8300 = vmatpush1.msra.mxu0 0.0
        %8301 = vmatprep.subr.mxu0 0.0
        %8302 = vmatpush1.msra.mxu0 0.0
        %8303 = vmatprep.subr.mxu0 0.0
        %8304 = vmatpush1.msra.mxu0 0.0
        %8305 = vmatprep.subr.mxu0 0.0
        %8306 = vmatpush1.msra.mxu0 0.0
        %8307 = vmatprep.subr.mxu0 0.0
        %8308 = vmatpush1.msra.mxu0 0.0
        %8309 = vmatprep.subr.mxu0 0.0
        %8310 = vmatpush1.msra.mxu0 0.0
        %8311 = vmatprep.subr.mxu0 0.0
        %8312 = vmatpush1.msra.mxu0 0.0
        %8313 = vmatprep.subr.mxu0 0.0
        %8314 = vmatpush1.msra.mxu0 0.0
        %8315 = vmatprep.subr.mxu0 0.0
        %8316 = vmatpush1.msra.mxu0 0.0
        %8317 = vmatprep.subr.mxu0 0.0
        %8318 = vmatpush1.msra.mxu0 0.0
        %8319 = vmatprep.subr.mxu0 0.0
        %8320 = vmatpush1.msra.mxu0 0.0
        %8321 = vmatprep.subr.mxu0 0.0
        %8322 = vmatpush1.msra.mxu0 0.0
        %8323 = vmatprep.subr.mxu0 0.0
        %8324 = vmatpush1.msra.mxu0 0.0
        %8325 = vmatprep.subr.mxu0 0.0
        %8326 = vmatpush1.msra.mxu0 0.0
        %8327 = vmatprep.subr.mxu0 0.0
        %8328 = vmatpush1.msra.mxu0 0.0
        %8329 = vmatprep.subr.mxu0 0.0
        %8330 = vmatpush1.msra.mxu0 0.0
        %8331 = vmatprep.mubr.f32.mxu0 0.0
        %8332 = vmatmul.mubr.f32.gmra.mrb[0].mxu0 %v8256
        %v8333 = vpop.f32.mrb[0].mxu0
        %v8334 = vadd.f32 0.0, %v8333
        %v8335 = vpop.f32.mrb[0].mxu0
        %v8336 = vadd.f32 0.0, %v8335
        %8337 = vmatprep.mubr.f32.mxu0 0.0
        %8338 = vmatmul.mubr.f32.gmra.mrb[0].mxu0 %v8259
        %v8339 = vpop.f32.mrb[0].mxu0
        %v8340 = vadd.f32 0.0, %v8339
        %v8341 = vpop.f32.mrb[0].mxu0
        %v8342 = vadd.f32 0.0, %v8341
        %8343 = vmatprep.mubr.f32.mxu0 0.0
        %8344 = vmatmul.mubr.f32.gmra.mrb[0].mxu0 %v8262
        %v8345 = vpop.f32.mrb[0].mxu0
        %v8346 = vadd.f32 0.0, %v8345
        %v8347 = vpop.f32.mrb[0].mxu0
        %v8348 = vadd.f32 0.0, %v8347
        %8349 = vmatprep.mubr.f32.mxu0 0.0
        %8350 = vmatmul.mubr.f32.gmra.mrb[0].mxu0 %v8265
        %v8351 = vpop.f32.mrb[0].mxu0
        %v8352 = vadd.f32 0.0, %v8351
        %v8353 = vpop.f32.mrb[0].mxu0
        %v8354 = vadd.f32 0.0, %v8353
        %8355 = vdwg.mxu0
        %v8356 = vld [vmem:[%s11] sm:$0xff]
        %v8357 = vld [vmem:[%s11 + $0x8] sm:$0xff]
        %v8358 = vld [vmem:[%s11 + $0x10] sm:$0xff]
        %v8359 = vld [vmem:[%s11 + $0x18] sm:$0xff]
        %v8360 = vld [vmem:[%s11 + $0x20] sm:$0xff]
        %v8361 = vld [vmem:[%s11 + $0x28] sm:$0xff]
        %v8362 = vld [vmem:[%s11 + $0x30] sm:$0xff]
        %v8363 = vld [vmem:[%s11 + $0x38] sm:$0xff]
        %v8364 = vmul.f32 %v8334, %v8356
        %v8365 = vmul.f32 %v8336, %v8357
        %v8366 = vmul.f32 %v8340, %v8358
        %v8367 = vmul.f32 %v8342, %v8359
        %v8368 = vmul.f32 %v8346, %v8360
        %v8369 = vmul.f32 %v8348, %v8361
        %v8370 = vmul.f32 %v8352, %v8362
        %v8371 = vmul.f32 %v8354, %v8363
        %v8372 = vld [vmem:[%s12] sm:$0xff]
        %v8373 = vld [vmem:[%s12 + $0x8] sm:$0xff]
        %v8374 = vld [vmem:[%s12 + $0x10] sm:$0xff]
        %v8375 = vld [vmem:[%s12 + $0x18] sm:$0xff]
        %v8376 = vld [vmem:[%s12 + $0x20] sm:$0xff]
        %v8377 = vld [vmem:[%s12 + $0x28] sm:$0xff]
        %v8378 = vld [vmem:[%s12 + $0x30] sm:$0xff]
        %v8379 = vld [vmem:[%s12 + $0x38] sm:$0xff]
        %v8380 = vld [vmem:[%s12 + $0x40] sm:$0xff]
        %v8381 = vld [vmem:[%s12 + $0x48] sm:$0xff]
        %v8382 = vld [vmem:[%s12 + $0x50] sm:$0xff]
        %v8383 = vld [vmem:[%s12 + $0x58] sm:$0xff]
        %v8384 = vld [vmem:[%s12 + $0x60] sm:$0xff]
        %v8385 = vld [vmem:[%s12 + $0x68] sm:$0xff]
        %v8386 = vld [vmem:[%s12 + $0x70] sm:$0xff]
        %v8387 = vld [vmem:[%s12 + $0x78] sm:$0xff]
        %v8388 = vld [vmem:[%s12 + $0x80] sm:$0xff]
        %v8389 = vld [vmem:[%s12 + $0x88] sm:$0xff]
        %v8390 = vld [vmem:[%s12 + $0x90] sm:$0xff]
        %v8391 = vld [vmem:[%s12 + $0x98] sm:$0xff]
        %v8392 = vld [vmem:[%s12 + $0xa0] sm:$0xff]
        %v8393 = vld [vmem:[%s12 + $0xa8] sm:$0xff]
        %v8394 = vld [vmem:[%s12 + $0xb0] sm:$0xff]
        %v8395 = vld [vmem:[%s12 + $0xb8] sm:$0xff]
        %v8396 = vld [vmem:[%s12 + $0xc0] sm:$0xff]
        %v8397 = vld [vmem:[%s12 + $0xc8] sm:$0xff]
        %v8398 = vld [vmem:[%s12 + $0xd0] sm:$0xff]
        %v8399 = vld [vmem:[%s12 + $0xd8] sm:$0xff]
        %v8400 = vld [vmem:[%s12 + $0xe0] sm:$0xff]
        %v8401 = vld [vmem:[%s12 + $0xe8] sm:$0xff]
        %v8402 = vld [vmem:[%s12 + $0xf0] sm:$0xff]
        %v8403 = vld [vmem:[%s12 + $0xf8] sm:$0xff]
        %8404 = vmatprep.subr.mxu0 0.0
        %8405 = vmatpush1.msra.mxu0 %v8372
        %8406 = vmatprep.subr.mxu0 0.0
        %8407 = vmatpush1.msra.mxu0 %v8373
        %8408 = vmatprep.subr.mxu0 0.0
        %8409 = vmatpush1.msra.mxu0 %v8374
        %8410 = vmatprep.subr.mxu0 0.0
        %8411 = vmatpush1.msra.mxu0 %v8375
        %8412 = vmatprep.subr.mxu0 0.0
        %8413 = vmatpush1.msra.mxu0 %v8376
        %8414 = vmatprep.subr.mxu0 0.0
        %8415 = vmatpush1.msra.mxu0 %v8377
        %8416 = vmatprep.subr.mxu0 0.0
        %8417 = vmatpush1.msra.mxu0 %v8378
        %8418 = vmatprep.subr.mxu0 0.0
        %8419 = vmatpush1.msra.mxu0 %v8379
        %8420 = vmatprep.subr.mxu0 0.0
        %8421 = vmatpush1.msra.mxu0 %v8380
        %8422 = vmatprep.subr.mxu0 0.0
        %8423 = vmatpush1.msra.mxu0 %v8381
        %8424 = vmatprep.subr.mxu0 0.0
        %8425 = vmatpush1.msra.mxu0 %v8382
        %8426 = vmatprep.subr.mxu0 0.0
        %8427 = vmatpush1.msra.mxu0 %v8383
        %8428 = vmatprep.subr.mxu0 0.0
        %8429 = vmatpush1.msra.mxu0 %v8384
        %8430 = vmatprep.subr.mxu0 0.0
        %8431 = vmatpush1.msra.mxu0 %v8385
        %8432 = vmatprep.subr.mxu0 0.0
        %8433 = vmatpush1.msra.mxu0 %v8386
        %8434 = vmatprep.subr.mxu0 0.0
        %8435 = vmatpush1.msra.mxu0 %v8387
        %8436 = vmatprep.subr.mxu0 0.0
        %8437 = vmatpush1.msra.mxu0 %v8388
        %8438 = vmatprep.subr.mxu0 0.0
        %8439 = vmatpush1.msra.mxu0 %v8389
        %8440 = vmatprep.subr.mxu0 0.0
        %8441 = vmatpush1.msra.mxu0 %v8390
        %8442 = vmatprep.subr.mxu0 0.0
        %8443 = vmatpush1.msra.mxu0 %v8391
        %8444 = vmatprep.subr.mxu0 0.0
        %8445 = vmatpush1.msra.mxu0 %v8392
        %8446 = vmatprep.subr.mxu0 0.0
        %8447 = vmatpush1.msra.mxu0 %v8393
        %8448 = vmatprep.subr.mxu0 0.0
        %8449 = vmatpush1.msra.mxu0 %v8394
        %8450 = vmatprep.subr.mxu0 0.0
        %8451 = vmatpush1.msra.mxu0 %v8395
        %8452 = vmatprep.subr.mxu0 0.0
        %8453 = vmatpush1.msra.mxu0 %v8396
        %8454 = vmatprep.subr.mxu0 0.0
        %8455 = vmatpush1.msra.mxu0 %v8397
        %8456 = vmatprep.subr.mxu0 0.0
        %8457 = vmatpush1.msra.mxu0 %v8398
        %8458 = vmatprep.subr.mxu0 0.0
        %8459 = vmatpush1.msra.mxu0 %v8399
        %8460 = vmatprep.subr.mxu0 0.0
        %8461 = vmatpush1.msra.mxu0 %v8400
        %8462 = vmatprep.subr.mxu0 0.0
        %8463 = vmatpush1.msra.mxu0 %v8401
        %8464 = vmatprep.subr.mxu0 0.0
        %8465 = vmatpush1.msra.mxu0 %v8402
        %8466 = vmatprep.subr.mxu0 0.0
        %8467 = vmatpush1.msra.mxu0 %v8403
        %8468 = vmatprep.mubr.f32.mxu0 %v8365
        %8469 = vmatmul.mubr.f32.gmra.mrb[0].mxu0 %v8364
        %v8470 = vpop.f32.mrb[0].mxu0
        %v8471 = vadd.f32 0.0, %v8470
        %v8472 = vpop.f32.mrb[0].mxu0
        %8473 = vmatprep.mubr.f32.mxu0 %v8367
        %8474 = vmatmul.mubr.f32.gmra.mrb[0].mxu0 %v8366
        %v8475 = vpop.f32.mrb[0].mxu0
        %v8476 = vadd.f32 0.0, %v8475
        %v8477 = vpop.f32.mrb[0].mxu0
        %8478 = vmatprep.mubr.f32.mxu0 %v8369
        %8479 = vmatmul.mubr.f32.gmra.mrb[0].mxu0 %v8368
        %v8480 = vpop.f32.mrb[0].mxu0
        %v8481 = vadd.f32 0.0, %v8480
        %v8482 = vpop.f32.mrb[0].mxu0
        %8483 = vmatprep.mubr.f32.mxu0 %v8371
        %8484 = vmatmul.mubr.f32.gmra.mrb[0].mxu0 %v8370
        %v8485 = vpop.f32.mrb[0].mxu0
        %v8486 = vadd.f32 0.0, %v8485
        %v8487 = vpop.f32.mrb[0].mxu0
        %8488 = vdwg.mxu0
        %vm8489 = vcmask 80896
        %v8490 = vsel %vm8489, %v8471, 0.0
        %v8491 = vsel %vm8489, %v8476, 0.0
        %v8492 = vadd.f32 %v8490, %v8491
        %v8493 = vsel %vm8489, %v8481, 0.0
        %v8494 = vadd.f32 %v8492, %v8493
        %v8495 = vsel %vm8489, %v8486, 0.0
        %v8496 = vadd.f32 %v8494, %v8495
        %v8497 = vrot.slane %v8496, 4
        %v8498 = vadd.f32 %v8496, %v8497
        %v8499 = vrot.slane %v8498, 2
        %v8500 = vadd.f32 %v8498, %v8499
        %v8501 = vrot.slane %v8500, 1
        %v8502 = vadd.f32 %v8500, %v8501
        %v8503 = vld [vmem:[%s13] sm:$0x1]
        %v8504 = vadd.f32 %v8502, %v8503
        %vm8505 = vcmask 73728
        %8506 = vst.msk [vmem:[%s459] sm:$0x1] %vm8505, %v8504
        %s8507 = sand.u32 %s335, 1
        %s8508 = scalar_lea.sflag [#allocation10], %s8507
        %s8509 = sand.u32 %s335, 1
        %s8510 = scalar_lea.vmem [#allocation9], %s8509
        // Predicated region
        $region77: #{network_forward.1} parent=75 // pred_check
          %p8511 = pneg %p345
        $region78: #{network_forward.1} parent=75 // pred_check_branch
          %8513 = sbr.rel (%p8511) target = $region80
        $region79: #{network_forward.1} parent=75 // pred_region
          %s8515 = ssub.s32 16, 16
          %8516 = vsyncadd %s8508, %s8515
          %s8517 = smul.addr %s28, 16
          %s8518 = scalar_lea.hbm %s14, %s8517
          %s8520 = sshll.u32 %s8510, 4
          %s8521 = int_to_ptr.vmem [resolvable:$true] %s8520
          %8523 = dma.vmem_to_hbm [thread:$0]  %s8521, 16, %s8518, %s8508
        $region80: #{network_forward.1} parent=75 // pred_fallthru
          _
      $region76: #{network_forward.1} parent=5 // pred_fallthru
        _
      %p8524 = scmp.le.s32.totalorder 2, %s23
      // Predicated region
      $region81: #{network_forward.1} parent=5 // pred_check
        %p8525 = pneg %p8524
      $region82: #{network_forward.1} parent=5 // pred_check_branch
        %8527 = sbr.rel (%p8525) target = $region84
      $region83: #{network_forward.1} parent=5 // pred_region
        %s8528 = ssub.s32 %s23, 2
        // Predicated region
        $region85: #{network_forward.1} parent=83 // pred_check
          %p8529 = pneg %p351
        $region86: #{network_forward.1} parent=83 // pred_check_branch
          %8531 = sbr.rel (%p8529) target = $region88
        $region87: #{network_forward.1} parent=83 // pred_region
          %s8532 = sand.u32 %s336, 1
          %s8533 = scalar_lea.sflag [#allocation10], %s8532
          %s8534 = sand.u32 %s336, 1
          %s8535 = scalar_lea.vmem [#allocation9], %s8534
          %8536 = dma.done %s8533, 16
        $region88: #{network_forward.1} parent=83 // pred_fallthru
          _
      $region84: #{network_forward.1} parent=5 // pred_fallthru
        _
    $region6: #{network_forward.1} parent=1 // loop_footer
      %s27 = sadd.s32 1, %s23
    $region7: #{network_forward.1} parent=1 // loop_footer_branch
      %22 = sbr.rel target = $region3
    $region8: #{network_forward.1} parent=1 // loop_exit
      _
    %8537 = vsyncpa [#allocation10], 1
    %s8538 = scalar_lea.sflag [#allocation10], 1
    %8539 = vsyncpa %s8538, 1

</llo_original>
